<compile_context>
chip_gen: v6e
topology: v6e:2x2x1
jax: 0.10.0
libtpu: 0.0.40
codegen_flags: <defaults>
</compile_context>

<pallas_src>
import numpy as np
import jax
import jax.numpy as jnp
from jax.experimental import pallas as pl
from jax.experimental.pallas import tpu as pltpu

# ---- module hyper-parameters (from the training script globals) ----
HIDDEN_DIM = 64
LASER_DIM = 90
NUM_AGENTS = 5
RELPOS_DIM = 3

L1 = (LASER_DIM + 2 * 2 - 5) // 2 + 1   # conv1 output length = 45
L2 = L1 // 2                            # after MaxPool1d(2)   = 22
LP = 16                                 # AdaptiveAvgPool1d target length
CONV_OUT_DIM = 32 * LP                  # 512

# ---- kernel layout constants ----
DEFAULT_BATCH_TILE = 512   # samples per grid step (multiple of 128); 512-1024 for big PPO batches
PAR_W = 384                # per-parity conv1 width: 22*16 = 352, padded to 3*128 lanes
CONV2_W = L2 * 32          # 704
CONV2_PAD_W = 768          # conv2 / laser-fold width padded to 3*256 (v6e/v7x MXU alignment)
LASER_PAD = 128            # padded laser length: 2 left conv pad + 90 + zeros (lane-dense)


# =====================================================================
# Fused Pallas kernel: conv stack + pos encoder + joint net + attention
# + value head for one batch tile.
# =====================================================================
def fused_critic_kernel(xp_ref, pos_ref,
                        w1s_ref, b1s_ref, w2s_ref, b2s_ref, wlas_ref,
                        wp1_ref, wsq_ref, bsq_ref, wa_ref, wv2_ref, bv2_ref,
                        out_ref):
    f32 = jnp.float32
    bf16 = jnp.bfloat16
    bt = out_ref.shape[-1]                     # batch tile (static)
    na = NUM_AGENTS

    # ---- conv1(1->16,k5,s2,p2) + ReLU + MaxPool1d(2) as ONE structured matmul.
    # Column layout: parity p (even/odd conv position) * 384 + l*16 + c.
    # NOTE: conv1 position 44 (the odd leftover of the 45 outputs) is dropped,
    # matching PyTorch MaxPool1d floor behavior; the parity packing relies on
    # this -- revisit if LASER_DIM changes.
    y1 = jnp.dot(xp_ref[...], w1s_ref[...],
                 preferred_element_type=f32) + b1s_ref[...]          # (bt, 768) f32
    y1 = jnp.maximum(y1, 0.0).astype(bf16)                           # (bt, 768) bf16
    mp = jnp.maximum(y1[:, :PAR_W], y1[:, PAR_W:])                   # (bt, 384) bf16

    # ---- conv2(16->32,k3,s1,p1) + ReLU as a structured matmul
    # (cols = l*32 + c, zero-padded 704 -> 768 so MXU passes are 256-aligned).
    c2 = jnp.dot(mp, w2s_ref[...],
                 preferred_element_type=f32) + b2s_ref[...]          # (bt, 768) f32
    c2 = jnp.maximum(c2, 0.0).astype(bf16)                           # (bt, 768) bf16

    # ---- AdaptiveAvgPool1d(16) + Flatten + laser half of joint Linear-1,
    # all folded into one (768, 64) matmul.
    lc = jnp.dot(c2, wlas_ref[...], preferred_element_type=f32)      # (bt, 64) f32

    # ---- pos encoder Linear(3,64)+ReLU for all agents at once
    # (rows agent-major: r = a*bt + i; bias folded via a homogeneous 1-column).
    pos = pos_ref[0]                                                 # (na*bt, 4) bf16
    p1 = jnp.maximum(jnp.dot(pos, wp1_ref[...],
                             preferred_element_type=f32), 0.0)
    p1 = p1.astype(bf16)                                             # (na*bt, 64)

    wfold, wj2, wv1 = wsq_ref[0], wsq_ref[1], wsq_ref[2]             # (64, 64) each
    bfold, bj2, bv1 = bsq_ref[0], bsq_ref[1], bsq_ref[2]             # (1, 64) each
    wa = wa_ref[...]                                                 # (64, 1)

    # ---- joint net + attention logits, per agent (no lc_rep concat copies;
    # the pos-encoder Linear-2 is already folded into wfold/bfold).
    h2s, lgs = [], []
    for a in range(na):
        p1_a = p1[a * bt:(a + 1) * bt]                               # (bt, 64) bf16
        pre_a = jnp.dot(p1_a, wfold, preferred_element_type=f32) + bfold
        h1_a = jnp.maximum(pre_a + lc, 0.0).astype(bf16)
        h2_a = jnp.maximum(
            jnp.dot(h1_a, wj2, preferred_element_type=f32) + bj2, 0.0)   # (bt,64) f32
        h2s.append(h2_a)
        lgs.append(jnp.dot(h2_a.astype(bf16), wa,
                           preferred_element_type=f32))              # (bt, 1)

    # ---- softmax over agents (pure VPU ops, no sublane reductions; the
    # attention bias cancels: single shared logit -> softmax shift invariance).
    m = lgs[0]
    for a in range(1, na):
        m = jnp.maximum(m, lgs[a])
    e = [jnp.exp(lgs[a] - m) for a in range(na)]
    den = e[0]
    ctx = e[0] * h2s[0]
    for a in range(1, na):
        den = den + e[a]
        ctx = ctx + e[a] * h2s[a]
    ctx = ctx / den                                                  # (bt, 64) f32

    # ---- value head; final Linear(64,1) done as (1,64)@(bt,64)^T so the store
    # is a lane-dense (1, bt) row.
    v1 = jnp.maximum(
        jnp.dot(ctx.astype(bf16), wv1,
                preferred_element_type=f32) + bv1, 0.0)              # (bt, 64)
    v = jax.lax.dot_general(wv2_ref[...], v1.astype(bf16),
                            (((1,), (1,)), ((), ())),
                            preferred_element_type=f32) + bv2_ref[...]   # (1, bt)
    out_ref[...] = v[None]


# =====================================================================
# Glue: one-time host-side repack of the PyTorch-layout weights into the
# structured, lane-dense matrices consumed by the fused kernel.
# =====================================================================
def _adaptive_pool_matrix(l_in, l_out):
    pm = np.zeros((l_in, l_out), np.float32)
    for i in range(l_out):
        s = (i * l_in) // l_out
        e = -(-((i + 1) * l_in) // l_out)
        pm[s:e, i] = 1.0 / (e - s)
    return pm


def pack_params(P):
    f32 = np.float32
    bf16 = jnp.bfloat16
    C1, C2, H = 16, 32, HIDDEN_DIM
    W1 = np.asarray(P["W1"], f32)          # (16, 1, 5)
    b1 = np.asarray(P["b1"], f32)
    W2 = np.asarray(P["W2"], f32)          # (32, 16, 3)
    b2 = np.asarray(P["b2"], f32)
    Wj1 = np.asarray(P["Wj1"], f32)        # (64, 576)

    # conv1 + parity split (for the fused maxpool): (128, 768)
    W1s = np.zeros((LASER_PAD, 2 * PAR_W), f32)
    b1s = np.zeros((1, 2 * PAR_W), f32)
    for p in range(2):
        for l in range(L2):
            col = p * PAR_W + l * C1
            row = 4 * l + 2 * p                     # window start in padded coords
            for t in range(5):
                W1s[row + t, col:col + C1] = W1[:, 0, t]
            b1s[0, col:col + C1] = b1

    # conv2: maps (l*16 + ci) maxpool layout -> (l*32 + c) conv2 layout,
    # zero-padded to 768 output columns: (384, 768)
    W2s = np.zeros((PAR_W, CONV2_PAD_W), f32)
    b2s = np.zeros((1, CONV2_PAD_W), f32)
    for l in range(L2):
        for k in range(3):
            j = l + k - 1
            if 0 <= j < L2:
                W2s[j * C1:(j + 1) * C1, l * C2:(l + 1) * C2] = W2[:, :, k].T
        b2s[0, l * C2:(l + 1) * C2] = b2

    # AdaptiveAvgPool1d(16) + Flatten(c*16+i) + laser half of joint Linear-1,
    # zero-padded rows 704..767 to match the padded conv2 width: (768, 64)
    pm = _adaptive_pool_matrix(L2, LP)                           # (22, 16)
    Wj1_laser = Wj1[:, :CONV_OUT_DIM].reshape(H, C2, LP)         # (h, c, i)
    Wlas = np.zeros((CONV2_PAD_W, H), f32)
    Wlas[:CONV2_W] = np.einsum('ji,hci->jch', pm, Wj1_laser).reshape(CONV2_W, H)

    # pos-encoder Linear(3,64) with bias folded in via a homogeneous 1-column.
    Wp1a = np.concatenate([np.asarray(P["Wp1"], f32).T,
                           np.asarray(P["bp1"], f32)[None, :]], axis=0)   # (4, 64)

    # EXACT fold of pos-encoder Linear-2 into the pos half of joint Linear-1
    # (no nonlinearity between them):  pre = relu(pos@Wp1^T+bp1) @ Wfold + bfold
    Wj1_pos = Wj1[:, CONV_OUT_DIM:]                              # (64, 64)
    Wp2 = np.asarray(P["Wp2"], f32)
    bp2 = np.asarray(P["bp2"], f32)
    bj1 = np.asarray(P["bj1"], f32)
    Wfold = Wp2.T @ Wj1_pos.T                                    # (64, 64)
    bfold = bp2 @ Wj1_pos.T + bj1                                # (64,)

    # Consolidated (64,64) weights / (1,64) biases for the small tail layers.
    Wsq = np.stack([Wfold,                           # folded pos L2 + joint L1 (pos half)
                    np.asarray(P["Wj2"], f32).T,     # joint Linear-2
                    np.asarray(P["Wv1"], f32).T],    # value head Linear-1
                   axis=0)                                                # (3, 64, 64)
    Bsq = np.stack([bfold[None, :],
                    np.asarray(P["bj2"], f32)[None, :],
                    np.asarray(P["bv1"], f32)[None, :]], axis=0)          # (3, 1, 64)

    return {
        "W1s": jnp.asarray(W1s, bf16), "b1s": jnp.asarray(b1s),
        "W2s": jnp.asarray(W2s, bf16), "b2s": jnp.asarray(b2s),
        "Wlas": jnp.asarray(Wlas, bf16),
        "Wp1a": jnp.asarray(Wp1a, bf16),
        "Wsq": jnp.asarray(Wsq, bf16),
        "Bsq": jnp.asarray(Bsq),
        "Wa": jnp.asarray(np.asarray(P["Wa"], f32).T, bf16),              # (64, 1)
        "Wv2r": jnp.asarray(np.asarray(P["Wv2"], f32), bf16),             # (1, 64)
        "bv2": jnp.asarray(np.asarray(P["bv2"], f32).reshape(1, 1)),
        # NOTE: attention bias P["ba"] is dropped on purpose: with a single
        # shared logit the softmax over agents is invariant to a per-sample
        # constant shift. This breaks if the head ever becomes multi-logit.
    }


def _round_up(x, m):
    return -(-x // m) * m


def _wspec(a):
    nd = a.ndim
    return pl.BlockSpec(a.shape, lambda b, _nd=nd: (0,) * _nd)


def laser_fc_critic(laser, relpos, packed, batch_tile=DEFAULT_BATCH_TILE):
    """Forward pass. laser: (B,1,90), relpos: (B,5,3), packed: pack_params(P).

    batch_tile: samples per grid step (multiple of 128). 512 is a good default;
    1024 for very large PPO batches. The wrapper keeps >= 2 grid steps when there
    is enough work so the "parallel" batch axis spans both v7x TensorCores.
    """
    assert batch_tile % 128 == 0 and batch_tile > 0
    B = laser.shape[0]
    bf16, f32 = jnp.bfloat16, jnp.float32
    NA = NUM_AGENTS

    if B >= batch_tile:
        bt = batch_tile
    elif B > 256:
        bt = _round_up(-(-B // 2), 8)      # two tiles -> both v7x TensorCores
    else:
        bt = _round_up(B, 8)               # small batches: one (padded) tile
    nb = -(-B // bt)
    B_pad = nb * bt

    # laser -> bf16, zero-padded (B_pad, 128): 2 left (conv padding) + right zeros.
    x = laser[:, 0, :].astype(bf16)
    xp = jnp.pad(x, ((0, B_pad - B), (2, LASER_PAD - 2 - LASER_DIM)))

    # relpos (bf16) + homogeneous 1-column, agent-major rows per batch block:
    # (nb, 5*bt, 4). The 4-wide lane dim is lane-sparse in VMEM, but the payload
    # is tiny (tens of KB/tile) so the padding/DMA cost is accepted.
    rp = jnp.pad(relpos.astype(bf16), ((0, B_pad - B), (0, 0), (0, 0)))
    pos4 = jnp.concatenate([rp, jnp.ones((B_pad, NA, 1), bf16)], axis=-1)
    pos_blk = (pos4.transpose(1, 0, 2)               # (NA, B_pad, 4)
                   .reshape(NA, nb, bt, 4)
                   .transpose(1, 0, 2, 3)
                   .reshape(nb, NA * bt, 4))

    w_list = [packed[k] for k in ("W1s", "b1s", "W2s", "b2s", "Wlas",
                                  "Wp1a", "Wsq", "Bsq", "Wa", "Wv2r", "bv2")]

    out = pl.pallas_call(
        fused_critic_kernel,
        out_shape=jax.ShapeDtypeStruct((nb, 1, bt), f32),
        grid=(nb,),
        in_specs=[pl.BlockSpec((bt, LASER_PAD), lambda b: (b, 0)),
                  pl.BlockSpec((1, NA * bt, 4), lambda b: (b, 0, 0))]
                 + [_wspec(w) for w in w_list],   # constant index -> fetched once
        out_specs=pl.BlockSpec((1, 1, bt), lambda b: (b, 0, 0)),
        compiler_params=pltpu.CompilerParams(
            dimension_semantics=("parallel",),
            vmem_limit_bytes=32 * 1024 * 1024),
    )(xp, pos_blk, *w_list)

    return out.reshape(nb * bt)[:B]                                  # (B,)


# =====================================================================
# Pure-JAX reference (mirrors the PyTorch module directly)
# =====================================================================
def reference_forward(laser, relpos, P):
    B = laser.shape[0]
    c1 = jax.lax.conv_general_dilated(
        laser, P["W1"], window_strides=(2,), padding=[(2, 2)],
        dimension_numbers=("NCH", "OIH", "NCH"))
    c1 = jax.nn.relu(c1 + P["b1"][None, :, None])
    mp = jax.lax.reduce_window(c1, -jnp.inf, jax.lax.max,
                               window_dimensions=(1, 1, 2),
                               window_strides=(1, 1, 2), padding="VALID")
    c2 = jax.lax.conv_general_dilated(
        mp, P["W2"], window_strides=(1,), padding=[(1, 1)],
        dimension_numbers=("NCH", "OIH", "NCH"))
    c2 = jax.nn.relu(c2 + P["b2"][None, :, None])
    l_in = c2.shape[-1]
    cols = []
    for i in range(LP):
        s = (i * l_in) // LP
        e = -(-((i + 1) * l_in) // LP)
        cols.append(jnp.mean(c2[:, :, s:e], axis=-1))
    ap = jnp.stack(cols, axis=-1)                                     # (B, 32, 16)
    laser_feat = ap.reshape(B, -1)                                    # (B, 512)

    pos = relpos.reshape(-1, RELPOS_DIM)
    pf = jax.nn.relu(pos @ P["Wp1"].T + P["bp1"]) @ P["Wp2"].T + P["bp2"]
    pf = pf.reshape(B, NUM_AGENTS, 64)
    lf = jnp.broadcast_to(laser_feat[:, None, :],
                          (B, NUM_AGENTS, laser_feat.shape[-1]))
    comb = jnp.concatenate([lf, pf], axis=-1)
    h = jax.nn.relu(comb @ P["Wj1"].T + P["bj1"])
    h = jax.nn.relu(h @ P["Wj2"].T + P["bj2"])
    logits = h @ P["Wa"].T + P["ba"]
    attn = jax.nn.softmax(logits, axis=1)
    ctx = jnp.sum(attn * h, axis=1)
    v = jax.nn.relu(ctx @ P["Wv1"].T + P["bv1"]) @ P["Wv2"].T + P["bv2"]
    return v.squeeze(-1)


# =====================================================================
# Deterministic parameter init (torch shapes: Linear weight = (out, in))
# =====================================================================
def init_params(key):
    def lin(k, out_f, in_f):
        k1, k2 = jax.random.split(k)
        bound = 1.0 / np.sqrt(in_f)
        W = jax.random.uniform(k1, (out_f, in_f), jnp.float32, -bound, bound)
        b = jax.random.uniform(k2, (out_f,), jnp.float32, -bound, bound)
        return W, b

    keys = jax.random.split(key, 9)
    P = {}
    k1, k2 = jax.random.split(keys[0])
    bound = 1.0 / np.sqrt(1 * 5)
    P["W1"] = jax.random.uniform(k1, (16, 1, 5), jnp.float32, -bound, bound)
    P["b1"] = jax.random.uniform(k2, (16,), jnp.float32, -bound, bound)
    k1, k2 = jax.random.split(keys[1])
    bound = 1.0 / np.sqrt(16 * 3)
    P["W2"] = jax.random.uniform(k1, (32, 16, 3), jnp.float32, -bound, bound)
    P["b2"] = jax.random.uniform(k2, (32,), jnp.float32, -bound, bound)
    P["Wp1"], P["bp1"] = lin(keys[2], 64, RELPOS_DIM)
    P["Wp2"], P["bp2"] = lin(keys[3], 64, 64)
    P["Wj1"], P["bj1"] = lin(keys[4], HIDDEN_DIM, CONV_OUT_DIM + 64)
    P["Wj2"], P["bj2"] = lin(keys[5], HIDDEN_DIM, HIDDEN_DIM)
    P["Wa"], P["ba"] = lin(keys[6], 1, HIDDEN_DIM)
    P["Wv1"], P["bv1"] = lin(keys[7], 64, HIDDEN_DIM)
    P["Wv2"], P["bv2"] = lin(keys[8], 1, 64)
    return P


if __name__ == "__main__":
    key = jax.random.PRNGKey(0)
    kp, kl, kr = jax.random.split(key, 3)
    B = 200                                     # small demo batch
    params = init_params(kp)
    laser_input = jax.random.uniform(kl, (B, 1, LASER_DIM), jnp.float32, 0.0, 1.0)
    relative_pos = jax.random.normal(kr, (B, NUM_AGENTS, RELPOS_DIM), jnp.float32)

    packed = pack_params(params)                # one-time weight repack
    # Small demo tile (128) -> 2 grid steps so multi-step pipelining and the
    # "parallel" megacore axis are exercised; production PPO batches should use
    # the default batch_tile=512 (or 1024).
    forward = jax.jit(lambda l, p: laser_fc_critic(l, p, packed, batch_tile=128))
    value = jax.block_until_ready(forward(laser_input, relative_pos))

    with jax.default_matmul_precision("highest"):
        ref = jax.block_until_ready(
            reference_forward(laser_input, relative_pos, params))
    np.testing.assert_allclose(np.asarray(value), np.asarray(ref),
                               rtol=2e-2, atol=1e-2)
    print("KERNEL_OK")
</pallas_src>

<mosaic_0001>
module attributes {stable_mosaic.version = 11 : i64} {
  func.func @fused_critic_kernel(%arg0: i32, %arg1: memref<128x128xbf16, #tpu.memory_space<vmem>>, %arg2: memref<1x640x4xbf16, #tpu.memory_space<vmem>>, %arg3: memref<128x768xbf16, #tpu.memory_space<vmem>>, %arg4: memref<1x768xf32, #tpu.memory_space<vmem>>, %arg5: memref<384x768xbf16, #tpu.memory_space<vmem>>, %arg6: memref<1x768xf32, #tpu.memory_space<vmem>>, %arg7: memref<768x64xbf16, #tpu.memory_space<vmem>>, %arg8: memref<4x64xbf16, #tpu.memory_space<vmem>>, %arg9: memref<3x64x64xbf16, #tpu.memory_space<vmem>>, %arg10: memref<3x1x64xf32, #tpu.memory_space<vmem>>, %arg11: memref<64x1xbf16, #tpu.memory_space<vmem>>, %arg12: memref<1x64xbf16, #tpu.memory_space<vmem>>, %arg13: memref<1x1xf32, #tpu.memory_space<vmem>>, %arg14: memref<1x1x128xf32, #tpu.memory_space<vmem>>) attributes {dimension_semantics = [#tpu.dimension_semantics<parallel>], iteration_bounds = array<i64: 2>, scalar_prefetch = 0 : i64, scratch_operands = 0 : i64, tpu.core_type = #tpu.core_type<tc>, window_params = [{transform_indices = @transform_0, window_bounds = array<i64: 128, 128>}, {transform_indices = @transform_1, window_bounds = array<i64: 1, 640, 4>}, {pipeline_mode = #tpu.pipeline_mode<synchronous>, transform_indices = @transform_2, window_bounds = array<i64: 128, 768>}, {pipeline_mode = #tpu.pipeline_mode<synchronous>, transform_indices = @transform_3, window_bounds = array<i64: 1, 768>}, {pipeline_mode = #tpu.pipeline_mode<synchronous>, transform_indices = @transform_4, window_bounds = array<i64: 384, 768>}, {pipeline_mode = #tpu.pipeline_mode<synchronous>, transform_indices = @transform_5, window_bounds = array<i64: 1, 768>}, {pipeline_mode = #tpu.pipeline_mode<synchronous>, transform_indices = @transform_6, window_bounds = array<i64: 768, 64>}, {pipeline_mode = #tpu.pipeline_mode<synchronous>, transform_indices = @transform_7, window_bounds = array<i64: 4, 64>}, {pipeline_mode = #tpu.pipeline_mode<synchronous>, transform_indices = @transform_8, window_bounds = array<i64: 3, 64, 64>}, {pipeline_mode = #tpu.pipeline_mode<synchronous>, transform_indices = @transform_9, window_bounds = array<i64: 3, 1, 64>}, {pipeline_mode = #tpu.pipeline_mode<synchronous>, transform_indices = @transform_10, window_bounds = array<i64: 64, 1>}, {pipeline_mode = #tpu.pipeline_mode<synchronous>, transform_indices = @transform_11, window_bounds = array<i64: 1, 64>}, {pipeline_mode = #tpu.pipeline_mode<synchronous>, transform_indices = @transform_12, window_bounds = array<i64: 1, 1>}, {transform_indices = @transform_13, window_bounds = array<i64: 1, 1, 128>}]} {
    %c0 = arith.constant 0 : index
    %c0_0 = arith.constant 0 : index
    %0 = vector.load %arg1[%c0, %c0_0] : memref<128x128xbf16, #tpu.memory_space<vmem>>, vector<128x128xbf16>
    %c0_1 = arith.constant 0 : index
    %c0_2 = arith.constant 0 : index
    %1 = vector.load %arg3[%c0_1, %c0_2] : memref<128x768xbf16, #tpu.memory_space<vmem>>, vector<128x768xbf16>
    %cst = arith.constant dense<0.000000e+00> : vector<128x768xf32>
    %2 = tpu.matmul %0, %1, %cst {dimension_numbers = #tpu.dot_dimension_numbers<[1], [0], [0], [1], [0, 0, 1, 1], [], []>} : vector<128x128xbf16>, vector<128x768xbf16>, vector<128x768xf32> -> vector<128x768xf32>
    %c0_3 = arith.constant 0 : index
    %c0_4 = arith.constant 0 : index
    %3 = vector.load %arg4[%c0_3, %c0_4] : memref<1x768xf32, #tpu.memory_space<vmem>>, vector<1x768xf32>
    %4 = vector.broadcast %3 : vector<1x768xf32> to vector<128x768xf32>
    %5 = arith.addf %2, %4 : vector<128x768xf32>
    %cst_5 = arith.constant 0.000000e+00 : f32
    %6 = vector.broadcast %cst_5 : f32 to vector<128x768xf32>
    %7 = arith.maximumf %5, %6 : vector<128x768xf32>
    %8 = arith.truncf %7 : vector<128x768xf32> to vector<128x768xbf16>
    %9 = vector.extract_strided_slice %8 {offsets = [0, 0], sizes = [128, 384], strides = [1, 1]} : vector<128x768xbf16> to vector<128x384xbf16>
    %10 = vector.extract_strided_slice %8 {offsets = [0, 384], sizes = [128, 384], strides = [1, 1]} : vector<128x768xbf16> to vector<128x384xbf16>
    %11 = arith.maximumf %9, %10 : vector<128x384xbf16>
    %c0_6 = arith.constant 0 : index
    %c0_7 = arith.constant 0 : index
    %12 = vector.load %arg5[%c0_6, %c0_7] : memref<384x768xbf16, #tpu.memory_space<vmem>>, vector<384x768xbf16>
    %cst_8 = arith.constant dense<0.000000e+00> : vector<128x768xf32>
    %13 = tpu.matmul %11, %12, %cst_8 {dimension_numbers = #tpu.dot_dimension_numbers<[1], [0], [0], [1], [0, 0, 1, 1], [], []>} : vector<128x384xbf16>, vector<384x768xbf16>, vector<128x768xf32> -> vector<128x768xf32>
    %c0_9 = arith.constant 0 : index
    %c0_10 = arith.constant 0 : index
    %14 = vector.load %arg6[%c0_9, %c0_10] : memref<1x768xf32, #tpu.memory_space<vmem>>, vector<1x768xf32>
    %15 = vector.broadcast %14 : vector<1x768xf32> to vector<128x768xf32>
    %16 = arith.addf %13, %15 : vector<128x768xf32>
    %cst_11 = arith.constant 0.000000e+00 : f32
    %17 = vector.broadcast %cst_11 : f32 to vector<128x768xf32>
    %18 = arith.maximumf %16, %17 : vector<128x768xf32>
    %19 = arith.truncf %18 : vector<128x768xf32> to vector<128x768xbf16>
    %c0_12 = arith.constant 0 : index
    %c0_13 = arith.constant 0 : index
    %20 = vector.load %arg7[%c0_12, %c0_13] : memref<768x64xbf16, #tpu.memory_space<vmem>>, vector<768x64xbf16>
    %cst_14 = arith.constant dense<0.000000e+00> : vector<128x64xf32>
    %21 = tpu.matmul %19, %20, %cst_14 {dimension_numbers = #tpu.dot_dimension_numbers<[1], [0], [0], [1], [0, 0, 1, 1], [], []>} : vector<128x768xbf16>, vector<768x64xbf16>, vector<128x64xf32> -> vector<128x64xf32>
    %c0_15 = arith.constant 0 : index
    %c0_16 = arith.constant 0 : index
    %c0_17 = arith.constant 0 : index
    %22 = vector.load %arg2[%c0_15, %c0_16, %c0_17] : memref<1x640x4xbf16, #tpu.memory_space<vmem>>, vector<1x640x4xbf16>
    %23 = vector.shape_cast %22 : vector<1x640x4xbf16> to vector<640x4xbf16>
    %c0_18 = arith.constant 0 : index
    %c0_19 = arith.constant 0 : index
    %24 = vector.load %arg8[%c0_18, %c0_19] : memref<4x64xbf16, #tpu.memory_space<vmem>>, vector<4x64xbf16>
    %cst_20 = arith.constant dense<0.000000e+00> : vector<640x64xf32>
    %25 = tpu.matmul %23, %24, %cst_20 {dimension_numbers = #tpu.dot_dimension_numbers<[1], [0], [0], [1], [0, 0, 1, 1], [], []>} : vector<640x4xbf16>, vector<4x64xbf16>, vector<640x64xf32> -> vector<640x64xf32>
    %cst_21 = arith.constant 0.000000e+00 : f32
    %26 = vector.broadcast %cst_21 : f32 to vector<640x64xf32>
    %27 = arith.maximumf %25, %26 : vector<640x64xf32>
    %28 = arith.truncf %27 : vector<640x64xf32> to vector<640x64xbf16>
    %c0_22 = arith.constant 0 : index
    %c0_23 = arith.constant 0 : index
    %c0_24 = arith.constant 0 : index
    %29 = vector.load %arg9[%c0_22, %c0_23, %c0_24] : memref<3x64x64xbf16, #tpu.memory_space<vmem>>, vector<1x64x64xbf16>
    %30 = vector.shape_cast %29 : vector<1x64x64xbf16> to vector<64x64xbf16>
    %c1 = arith.constant 1 : index
    %c0_25 = arith.constant 0 : index
    %c0_26 = arith.constant 0 : index
    %31 = vector.load %arg9[%c1, %c0_25, %c0_26] : memref<3x64x64xbf16, #tpu.memory_space<vmem>>, vector<1x64x64xbf16>
    %32 = vector.shape_cast %31 : vector<1x64x64xbf16> to vector<64x64xbf16>
    %c2 = arith.constant 2 : index
    %c0_27 = arith.constant 0 : index
    %c0_28 = arith.constant 0 : index
    %33 = vector.load %arg9[%c2, %c0_27, %c0_28] : memref<3x64x64xbf16, #tpu.memory_space<vmem>>, vector<1x64x64xbf16>
    %34 = vector.shape_cast %33 : vector<1x64x64xbf16> to vector<64x64xbf16>
    %c0_29 = arith.constant 0 : index
    %c0_30 = arith.constant 0 : index
    %c0_31 = arith.constant 0 : index
    %35 = vector.load %arg10[%c0_29, %c0_30, %c0_31] : memref<3x1x64xf32, #tpu.memory_space<vmem>>, vector<1x1x64xf32>
    %36 = vector.shape_cast %35 : vector<1x1x64xf32> to vector<1x64xf32>
    %c1_32 = arith.constant 1 : index
    %c0_33 = arith.constant 0 : index
    %c0_34 = arith.constant 0 : index
    %37 = vector.load %arg10[%c1_32, %c0_33, %c0_34] : memref<3x1x64xf32, #tpu.memory_space<vmem>>, vector<1x1x64xf32>
    %38 = vector.shape_cast %37 : vector<1x1x64xf32> to vector<1x64xf32>
    %c2_35 = arith.constant 2 : index
    %c0_36 = arith.constant 0 : index
    %c0_37 = arith.constant 0 : index
    %39 = vector.load %arg10[%c2_35, %c0_36, %c0_37] : memref<3x1x64xf32, #tpu.memory_space<vmem>>, vector<1x1x64xf32>
    %40 = vector.shape_cast %39 : vector<1x1x64xf32> to vector<1x64xf32>
    %c0_38 = arith.constant 0 : index
    %c0_39 = arith.constant 0 : index
    %41 = vector.load %arg11[%c0_38, %c0_39] : memref<64x1xbf16, #tpu.memory_space<vmem>>, vector<64x1xbf16>
    %42 = vector.extract_strided_slice %28 {offsets = [0, 0], sizes = [128, 64], strides = [1, 1]} : vector<640x64xbf16> to vector<128x64xbf16>
    %cst_40 = arith.constant dense<0.000000e+00> : vector<128x64xf32>
    %43 = tpu.matmul %42, %30, %cst_40 {dimension_numbers = #tpu.dot_dimension_numbers<[1], [0], [0], [1], [0, 0, 1, 1], [], []>} : vector<128x64xbf16>, vector<64x64xbf16>, vector<128x64xf32> -> vector<128x64xf32>
    %44 = vector.broadcast %36 : vector<1x64xf32> to vector<128x64xf32>
    %45 = arith.addf %43, %44 : vector<128x64xf32>
    %46 = arith.addf %45, %21 : vector<128x64xf32>
    %cst_41 = arith.constant 0.000000e+00 : f32
    %47 = vector.broadcast %cst_41 : f32 to vector<128x64xf32>
    %48 = arith.maximumf %46, %47 : vector<128x64xf32>
    %49 = arith.truncf %48 : vector<128x64xf32> to vector<128x64xbf16>
    %cst_42 = arith.constant dense<0.000000e+00> : vector<128x64xf32>
    %50 = tpu.matmul %49, %32, %cst_42 {dimension_numbers = #tpu.dot_dimension_numbers<[1], [0], [0], [1], [0, 0, 1, 1], [], []>} : vector<128x64xbf16>, vector<64x64xbf16>, vector<128x64xf32> -> vector<128x64xf32>
    %51 = vector.broadcast %38 : vector<1x64xf32> to vector<128x64xf32>
    %52 = arith.addf %50, %51 : vector<128x64xf32>
    %cst_43 = arith.constant 0.000000e+00 : f32
    %53 = vector.broadcast %cst_43 : f32 to vector<128x64xf32>
    %54 = arith.maximumf %52, %53 : vector<128x64xf32>
    %55 = arith.truncf %54 : vector<128x64xf32> to vector<128x64xbf16>
    %cst_44 = arith.constant dense<0.000000e+00> : vector<128x1xf32>
    %56 = tpu.matmul %55, %41, %cst_44 {dimension_numbers = #tpu.dot_dimension_numbers<[1], [0], [0], [1], [0, 0, 1, 1], [], []>} : vector<128x64xbf16>, vector<64x1xbf16>, vector<128x1xf32> -> vector<128x1xf32>
    %57 = vector.extract_strided_slice %28 {offsets = [128, 0], sizes = [128, 64], strides = [1, 1]} : vector<640x64xbf16> to vector<128x64xbf16>
    %cst_45 = arith.constant dense<0.000000e+00> : vector<128x64xf32>
    %58 = tpu.matmul %57, %30, %cst_45 {dimension_numbers = #tpu.dot_dimension_numbers<[1], [0], [0], [1], [0, 0, 1, 1], [], []>} : vector<128x64xbf16>, vector<64x64xbf16>, vector<128x64xf32> -> vector<128x64xf32>
    %59 = vector.broadcast %36 : vector<1x64xf32> to vector<128x64xf32>
    %60 = arith.addf %58, %59 : vector<128x64xf32>
    %61 = arith.addf %60, %21 : vector<128x64xf32>
    %cst_46 = arith.constant 0.000000e+00 : f32
    %62 = vector.broadcast %cst_46 : f32 to vector<128x64xf32>
    %63 = arith.maximumf %61, %62 : vector<128x64xf32>
    %64 = arith.truncf %63 : vector<128x64xf32> to vector<128x64xbf16>
    %cst_47 = arith.constant dense<0.000000e+00> : vector<128x64xf32>
    %65 = tpu.matmul %64, %32, %cst_47 {dimension_numbers = #tpu.dot_dimension_numbers<[1], [0], [0], [1], [0, 0, 1, 1], [], []>} : vector<128x64xbf16>, vector<64x64xbf16>, vector<128x64xf32> -> vector<128x64xf32>
    %66 = vector.broadcast %38 : vector<1x64xf32> to vector<128x64xf32>
    %67 = arith.addf %65, %66 : vector<128x64xf32>
    %cst_48 = arith.constant 0.000000e+00 : f32
    %68 = vector.broadcast %cst_48 : f32 to vector<128x64xf32>
    %69 = arith.maximumf %67, %68 : vector<128x64xf32>
    %70 = arith.truncf %69 : vector<128x64xf32> to vector<128x64xbf16>
    %cst_49 = arith.constant dense<0.000000e+00> : vector<128x1xf32>
    %71 = tpu.matmul %70, %41, %cst_49 {dimension_numbers = #tpu.dot_dimension_numbers<[1], [0], [0], [1], [0, 0, 1, 1], [], []>} : vector<128x64xbf16>, vector<64x1xbf16>, vector<128x1xf32> -> vector<128x1xf32>
    %72 = vector.extract_strided_slice %28 {offsets = [256, 0], sizes = [128, 64], strides = [1, 1]} : vector<640x64xbf16> to vector<128x64xbf16>
    %cst_50 = arith.constant dense<0.000000e+00> : vector<128x64xf32>
    %73 = tpu.matmul %72, %30, %cst_50 {dimension_numbers = #tpu.dot_dimension_numbers<[1], [0], [0], [1], [0, 0, 1, 1], [], []>} : vector<128x64xbf16>, vector<64x64xbf16>, vector<128x64xf32> -> vector<128x64xf32>
    %74 = vector.broadcast %36 : vector<1x64xf32> to vector<128x64xf32>
    %75 = arith.addf %73, %74 : vector<128x64xf32>
    %76 = arith.addf %75, %21 : vector<128x64xf32>
    %cst_51 = arith.constant 0.000000e+00 : f32
    %77 = vector.broadcast %cst_51 : f32 to vector<128x64xf32>
    %78 = arith.maximumf %76, %77 : vector<128x64xf32>
    %79 = arith.truncf %78 : vector<128x64xf32> to vector<128x64xbf16>
    %cst_52 = arith.constant dense<0.000000e+00> : vector<128x64xf32>
    %80 = tpu.matmul %79, %32, %cst_52 {dimension_numbers = #tpu.dot_dimension_numbers<[1], [0], [0], [1], [0, 0, 1, 1], [], []>} : vector<128x64xbf16>, vector<64x64xbf16>, vector<128x64xf32> -> vector<128x64xf32>
    %81 = vector.broadcast %38 : vector<1x64xf32> to vector<128x64xf32>
    %82 = arith.addf %80, %81 : vector<128x64xf32>
    %cst_53 = arith.constant 0.000000e+00 : f32
    %83 = vector.broadcast %cst_53 : f32 to vector<128x64xf32>
    %84 = arith.maximumf %82, %83 : vector<128x64xf32>
    %85 = arith.truncf %84 : vector<128x64xf32> to vector<128x64xbf16>
    %cst_54 = arith.constant dense<0.000000e+00> : vector<128x1xf32>
    %86 = tpu.matmul %85, %41, %cst_54 {dimension_numbers = #tpu.dot_dimension_numbers<[1], [0], [0], [1], [0, 0, 1, 1], [], []>} : vector<128x64xbf16>, vector<64x1xbf16>, vector<128x1xf32> -> vector<128x1xf32>
    %87 = vector.extract_strided_slice %28 {offsets = [384, 0], sizes = [128, 64], strides = [1, 1]} : vector<640x64xbf16> to vector<128x64xbf16>
    %cst_55 = arith.constant dense<0.000000e+00> : vector<128x64xf32>
    %88 = tpu.matmul %87, %30, %cst_55 {dimension_numbers = #tpu.dot_dimension_numbers<[1], [0], [0], [1], [0, 0, 1, 1], [], []>} : vector<128x64xbf16>, vector<64x64xbf16>, vector<128x64xf32> -> vector<128x64xf32>
    %89 = vector.broadcast %36 : vector<1x64xf32> to vector<128x64xf32>
    %90 = arith.addf %88, %89 : vector<128x64xf32>
    %91 = arith.addf %90, %21 : vector<128x64xf32>
    %cst_56 = arith.constant 0.000000e+00 : f32
    %92 = vector.broadcast %cst_56 : f32 to vector<128x64xf32>
    %93 = arith.maximumf %91, %92 : vector<128x64xf32>
    %94 = arith.truncf %93 : vector<128x64xf32> to vector<128x64xbf16>
    %cst_57 = arith.constant dense<0.000000e+00> : vector<128x64xf32>
    %95 = tpu.matmul %94, %32, %cst_57 {dimension_numbers = #tpu.dot_dimension_numbers<[1], [0], [0], [1], [0, 0, 1, 1], [], []>} : vector<128x64xbf16>, vector<64x64xbf16>, vector<128x64xf32> -> vector<128x64xf32>
    %96 = vector.broadcast %38 : vector<1x64xf32> to vector<128x64xf32>
    %97 = arith.addf %95, %96 : vector<128x64xf32>
    %cst_58 = arith.constant 0.000000e+00 : f32
    %98 = vector.broadcast %cst_58 : f32 to vector<128x64xf32>
    %99 = arith.maximumf %97, %98 : vector<128x64xf32>
    %100 = arith.truncf %99 : vector<128x64xf32> to vector<128x64xbf16>
    %cst_59 = arith.constant dense<0.000000e+00> : vector<128x1xf32>
    %101 = tpu.matmul %100, %41, %cst_59 {dimension_numbers = #tpu.dot_dimension_numbers<[1], [0], [0], [1], [0, 0, 1, 1], [], []>} : vector<128x64xbf16>, vector<64x1xbf16>, vector<128x1xf32> -> vector<128x1xf32>
    %102 = vector.extract_strided_slice %28 {offsets = [512, 0], sizes = [128, 64], strides = [1, 1]} : vector<640x64xbf16> to vector<128x64xbf16>
    %cst_60 = arith.constant dense<0.000000e+00> : vector<128x64xf32>
    %103 = tpu.matmul %102, %30, %cst_60 {dimension_numbers = #tpu.dot_dimension_numbers<[1], [0], [0], [1], [0, 0, 1, 1], [], []>} : vector<128x64xbf16>, vector<64x64xbf16>, vector<128x64xf32> -> vector<128x64xf32>
    %104 = vector.broadcast %36 : vector<1x64xf32> to vector<128x64xf32>
    %105 = arith.addf %103, %104 : vector<128x64xf32>
    %106 = arith.addf %105, %21 : vector<128x64xf32>
    %cst_61 = arith.constant 0.000000e+00 : f32
    %107 = vector.broadcast %cst_61 : f32 to vector<128x64xf32>
    %108 = arith.maximumf %106, %107 : vector<128x64xf32>
    %109 = arith.truncf %108 : vector<128x64xf32> to vector<128x64xbf16>
    %cst_62 = arith.constant dense<0.000000e+00> : vector<128x64xf32>
    %110 = tpu.matmul %109, %32, %cst_62 {dimension_numbers = #tpu.dot_dimension_numbers<[1], [0], [0], [1], [0, 0, 1, 1], [], []>} : vector<128x64xbf16>, vector<64x64xbf16>, vector<128x64xf32> -> vector<128x64xf32>
    %111 = vector.broadcast %38 : vector<1x64xf32> to vector<128x64xf32>
    %112 = arith.addf %110, %111 : vector<128x64xf32>
    %cst_63 = arith.constant 0.000000e+00 : f32
    %113 = vector.broadcast %cst_63 : f32 to vector<128x64xf32>
    %114 = arith.maximumf %112, %113 : vector<128x64xf32>
    %115 = arith.truncf %114 : vector<128x64xf32> to vector<128x64xbf16>
    %cst_64 = arith.constant dense<0.000000e+00> : vector<128x1xf32>
    %116 = tpu.matmul %115, %41, %cst_64 {dimension_numbers = #tpu.dot_dimension_numbers<[1], [0], [0], [1], [0, 0, 1, 1], [], []>} : vector<128x64xbf16>, vector<64x1xbf16>, vector<128x1xf32> -> vector<128x1xf32>
    %117 = arith.maximumf %56, %71 : vector<128x1xf32>
    %118 = arith.maximumf %117, %86 : vector<128x1xf32>
    %119 = arith.maximumf %118, %101 : vector<128x1xf32>
    %120 = arith.maximumf %119, %116 : vector<128x1xf32>
    %121 = arith.subf %56, %120 : vector<128x1xf32>
    %122 = math.exp %121 : vector<128x1xf32>
    %123 = arith.subf %71, %120 : vector<128x1xf32>
    %124 = math.exp %123 : vector<128x1xf32>
    %125 = arith.subf %86, %120 : vector<128x1xf32>
    %126 = math.exp %125 : vector<128x1xf32>
    %127 = arith.subf %101, %120 : vector<128x1xf32>
    %128 = math.exp %127 : vector<128x1xf32>
    %129 = arith.subf %116, %120 : vector<128x1xf32>
    %130 = math.exp %129 : vector<128x1xf32>
    %131 = vector.broadcast %122 : vector<128x1xf32> to vector<128x64xf32>
    %132 = arith.mulf %131, %54 : vector<128x64xf32>
    %133 = arith.addf %122, %124 : vector<128x1xf32>
    %134 = vector.broadcast %124 : vector<128x1xf32> to vector<128x64xf32>
    %135 = arith.mulf %134, %69 : vector<128x64xf32>
    %136 = arith.addf %132, %135 : vector<128x64xf32>
    %137 = arith.addf %133, %126 : vector<128x1xf32>
    %138 = vector.broadcast %126 : vector<128x1xf32> to vector<128x64xf32>
    %139 = arith.mulf %138, %84 : vector<128x64xf32>
    %140 = arith.addf %136, %139 : vector<128x64xf32>
    %141 = arith.addf %137, %128 : vector<128x1xf32>
    %142 = vector.broadcast %128 : vector<128x1xf32> to vector<128x64xf32>
    %143 = arith.mulf %142, %99 : vector<128x64xf32>
    %144 = arith.addf %140, %143 : vector<128x64xf32>
    %145 = arith.addf %141, %130 : vector<128x1xf32>
    %146 = vector.broadcast %130 : vector<128x1xf32> to vector<128x64xf32>
    %147 = arith.mulf %146, %114 : vector<128x64xf32>
    %148 = arith.addf %144, %147 : vector<128x64xf32>
    %149 = vector.broadcast %145 : vector<128x1xf32> to vector<128x64xf32>
    %150 = arith.divf %148, %149 : vector<128x64xf32>
    %151 = arith.truncf %150 : vector<128x64xf32> to vector<128x64xbf16>
    %cst_65 = arith.constant dense<0.000000e+00> : vector<128x64xf32>
    %152 = tpu.matmul %151, %34, %cst_65 {dimension_numbers = #tpu.dot_dimension_numbers<[1], [0], [0], [1], [0, 0, 1, 1], [], []>} : vector<128x64xbf16>, vector<64x64xbf16>, vector<128x64xf32> -> vector<128x64xf32>
    %153 = vector.broadcast %40 : vector<1x64xf32> to vector<128x64xf32>
    %154 = arith.addf %152, %153 : vector<128x64xf32>
    %cst_66 = arith.constant 0.000000e+00 : f32
    %155 = vector.broadcast %cst_66 : f32 to vector<128x64xf32>
    %156 = arith.maximumf %154, %155 : vector<128x64xf32>
    %c0_67 = arith.constant 0 : index
    %c0_68 = arith.constant 0 : index
    %157 = vector.load %arg12[%c0_67, %c0_68] : memref<1x64xbf16, #tpu.memory_space<vmem>>, vector<1x64xbf16>
    %158 = arith.truncf %156 : vector<128x64xf32> to vector<128x64xbf16>
    %cst_69 = arith.constant dense<0.000000e+00> : vector<1x128xf32>
    %159 = tpu.matmul %157, %158, %cst_69 {dimension_numbers = #tpu.dot_dimension_numbers<[1], [1], [0], [0], [0, 0, 1, 0], [], []>} : vector<1x64xbf16>, vector<128x64xbf16>, vector<1x128xf32> -> vector<1x128xf32>
    %c0_70 = arith.constant 0 : index
    %c0_71 = arith.constant 0 : index
    %160 = vector.load %arg13[%c0_70, %c0_71] : memref<1x1xf32, #tpu.memory_space<vmem>>, vector<1x1xf32>
    %161 = vector.broadcast %160 : vector<1x1xf32> to vector<1x128xf32>
    %162 = arith.addf %159, %161 : vector<1x128xf32>
    %163 = vector.shape_cast %162 : vector<1x128xf32> to vector<1x1x128xf32>
    %c0_72 = arith.constant 0 : index
    %c0_73 = arith.constant 0 : index
    %c0_74 = arith.constant 0 : index
    %164 = vector.load %arg14[%c0_72, %c0_73, %c0_74] : memref<1x1x128xf32, #tpu.memory_space<vmem>>, vector<1x1x128xf32>
    tpu.vector_store %arg14[%c0_72, %c0_73, %c0_74], %163 {strides = array<i32>} : memref<1x1x128xf32, #tpu.memory_space<vmem>>, vector<1x1x128xf32>,
    return
  }
  func.func @transform_0(%arg0: i32) -> (i32, i32) {
    %c0_i32 = arith.constant 0 : i32
    %c0_i32_0 = arith.constant 0 : i32
    return %arg0, %c0_i32 : i32, i32
  }
  func.func @transform_1(%arg0: i32) -> (i32, i32, i32) {
    %c0_i32 = arith.constant 0 : i32
    %c0_i32_0 = arith.constant 0 : i32
    %c0_i32_1 = arith.constant 0 : i32
    return %arg0, %c0_i32, %c0_i32_0 : i32, i32, i32
  }
  func.func @transform_2(%arg0: i32) -> (i32, i32) {
    %c0_i32 = arith.constant 0 : i32
    %c0_i32_0 = arith.constant 0 : i32
    %c0_i32_1 = arith.constant 0 : i32
    return %c0_i32, %c0_i32_0 : i32, i32
  }
  func.func @transform_3(%arg0: i32) -> (i32, i32) {
    %c0_i32 = arith.constant 0 : i32
    %c0_i32_0 = arith.constant 0 : i32
    %c0_i32_1 = arith.constant 0 : i32
    return %c0_i32, %c0_i32_0 : i32, i32
  }
  func.func @transform_4(%arg0: i32) -> (i32, i32) {
    %c0_i32 = arith.constant 0 : i32
    %c0_i32_0 = arith.constant 0 : i32
    %c0_i32_1 = arith.constant 0 : i32
    return %c0_i32, %c0_i32_0 : i32, i32
  }
  func.func @transform_5(%arg0: i32) -> (i32, i32) {
    %c0_i32 = arith.constant 0 : i32
    %c0_i32_0 = arith.constant 0 : i32
    %c0_i32_1 = arith.constant 0 : i32
    return %c0_i32, %c0_i32_0 : i32, i32
  }
  func.func @transform_6(%arg0: i32) -> (i32, i32) {
    %c0_i32 = arith.constant 0 : i32
    %c0_i32_0 = arith.constant 0 : i32
    %c0_i32_1 = arith.constant 0 : i32
    return %c0_i32, %c0_i32_0 : i32, i32
  }
  func.func @transform_7(%arg0: i32) -> (i32, i32) {
    %c0_i32 = arith.constant 0 : i32
    %c0_i32_0 = arith.constant 0 : i32
    %c0_i32_1 = arith.constant 0 : i32
    return %c0_i32, %c0_i32_0 : i32, i32
  }
  func.func @transform_8(%arg0: i32) -> (i32, i32, i32) {
    %c0_i32 = arith.constant 0 : i32
    %c0_i32_0 = arith.constant 0 : i32
    %c0_i32_1 = arith.constant 0 : i32
    %c0_i32_2 = arith.constant 0 : i32
    return %c0_i32, %c0_i32_0, %c0_i32_1 : i32, i32, i32
  }
  func.func @transform_9(%arg0: i32) -> (i32, i32, i32) {
    %c0_i32 = arith.constant 0 : i32
    %c0_i32_0 = arith.constant 0 : i32
    %c0_i32_1 = arith.constant 0 : i32
    %c0_i32_2 = arith.constant 0 : i32
    return %c0_i32, %c0_i32_0, %c0_i32_1 : i32, i32, i32
  }
  func.func @transform_10(%arg0: i32) -> (i32, i32) {
    %c0_i32 = arith.constant 0 : i32
    %c0_i32_0 = arith.constant 0 : i32
    %c0_i32_1 = arith.constant 0 : i32
    return %c0_i32, %c0_i32_0 : i32, i32
  }
  func.func @transform_11(%arg0: i32) -> (i32, i32) {
    %c0_i32 = arith.constant 0 : i32
    %c0_i32_0 = arith.constant 0 : i32
    %c0_i32_1 = arith.constant 0 : i32
    return %c0_i32, %c0_i32_0 : i32, i32
  }
  func.func @transform_12(%arg0: i32) -> (i32, i32) {
    %c0_i32 = arith.constant 0 : i32
    %c0_i32_0 = arith.constant 0 : i32
    %c0_i32_1 = arith.constant 0 : i32
    return %c0_i32, %c0_i32_0 : i32, i32
  }
  func.func @transform_13(%arg0: i32) -> (i32, i32, i32) {
    %c0_i32 = arith.constant 0 : i32
    %c0_i32_0 = arith.constant 0 : i32
    %c0_i32_1 = arith.constant 0 : i32
    return %arg0, %c0_i32, %c0_i32_0 : i32, i32, i32
  }
}

</mosaic_0001>

<llo_original>
// kernel: _lambda_.1
$region0: #{_lambda_.1}
  #allocation0 [shape = 'u32[]', space=smem, size = 0x4, offset = 0x4, fixed_abs, tag = 'smem constant byte address 0x4 - core index']
  #allocation1 [shape = 'u32[144,128]{1,0:T(1,128)}', space=vmem, size = 0x12000, scoped, tag = 'internal scratch']
  #allocation2 [shape = 'f32[1,1]{1,0:T(1,128)S(1)}', space=vmem, size = 0x200, scoped, tag = 'scoped memory for _lambda_.1']
  %s0 = inlined_call_operand.vmem [shape: bf16[256,128], index: 0, kind: input, shape index: {}]
  %s1 = inlined_call_operand.vmem [shape: bf16[2,640,4], index: 1, kind: input, shape index: {}]
  %s2 = inlined_call_operand.hbm [shape: bf16[128,768], index: 2, kind: input, shape index: {}]
  %s3 = inlined_call_operand.vmem [shape: f32[1,768], index: 3, kind: input, shape index: {}]
  %s4 = inlined_call_operand.vmem [shape: bf16[384,768], index: 4, kind: input, shape index: {}]
  %s5 = inlined_call_operand.vmem [shape: f32[1,768], index: 5, kind: input, shape index: {}]
  %s6 = inlined_call_operand.hbm [shape: bf16[768,64], index: 6, kind: input, shape index: {}]
  %s7 = inlined_call_operand.vmem [shape: bf16[4,64], index: 7, kind: input, shape index: {}]
  %s8 = inlined_call_operand.vmem [shape: bf16[3,64,64], index: 8, kind: input, shape index: {}]
  %s9 = inlined_call_operand.vmem [shape: f32[3,1,64], index: 9, kind: input, shape index: {}]
  %s10 = inlined_call_operand.vmem [shape: bf16[64,1], index: 10, kind: input, shape index: {}]
  %s11 = inlined_call_operand.vmem [shape: bf16[1,64], index: 11, kind: input, shape index: {}]
  %s12 = inlined_call_operand.<no memory space> [shape: f32[1,1], index: 12, kind: input, shape index: {}]
  %s13 = inlined_call_operand.hbm [shape: f32[2,1,128], index: 13, kind: output, shape index: {}]
  %s14 = sld [smem:[#allocation0]]
  $region93: #{_lambda_.1} parent=0
    _
  %s16 = ssub.s32 1, %s14
  %s17 = scalar_select 0, %s16, %s14
  %v18 = vstv %s12
  %19 = vst [vmem:[#allocation2] sm:$0x1] %v18
  $region1: #{_lambda_.1} parent=0
    #allocation3 [shape = 'u8[196608]{0}', space=vmem, size = 0x30000, scoped, tag = 'input window, operand 2, single buffered']
    #allocation4 [shape = 's32[2]{0}', space=sflag, size = 0x8, scoped, tag = 'scoped memory for _lambda_.1']
    #allocation5 [shape = 's32[2]{0}', space=sflag, size = 0x8, scoped, tag = 'scoped memory for _lambda_.1']
    #allocation6 [shape = 'u8[196608]{0}', space=vmem, size = 0x30000, scoped, tag = 'input window, operand 6, single buffered']
    #allocation7 [shape = 's32[1]{0}', space=sflag, size = 0x4, scoped, tag = 'scoped memory for _lambda_.1']
    #allocation8 [shape = 'u8[1024]{0}', space=vmem, size = 0x400, scoped, tag = 'output window, operand 0']
    %20 = vsyncpa [#allocation4], 0
    %21 = vsyncpa [#allocation7], 0
    %22 = vsyncpa [#allocation5], 0
    %s23 = scalar_lea.sflag [#allocation5], 1
    %24 = vsyncpa %s23, 0
    loop: start=0, step=1, limit=4
    $region2: #{_lambda_.1} parent=1 // loop_pre_header
      _
    $region3: #{_lambda_.1} parent=1 // loop_header
      %s26 = sphi 0, %s30
      %p27 = scmp.ge.s32.totalorder %s26, 4
      %s36 = sphi 0, %s38
      %s39 = sphi 0, %s36
      %s40 = sphi 0, %s39
      %s56 = sphi 0, %s40
      %s62 = sphi 0, %s64
      %s65 = sphi 0, %s62
      %s66 = sphi 0, %s65
      %s82 = sphi 0, %s66
      %s86 = sphi 0, %s86
      %s88 = sphi 0, %s86
      %s89 = sphi 0, %s88
      %s103 = sphi 0, %s89
      %s107 = sphi 0, %s107
      %s109 = sphi 0, %s107
      %s110 = sphi 0, %s109
      %s124 = sphi 0, %s110
      %s128 = sphi 0, %s128
      %s130 = sphi 0, %s128
      %s131 = sphi 0, %s130
      %s145 = sphi 0, %s131
      %s149 = sphi 0, %s149
      %s151 = sphi 0, %s149
      %s152 = sphi 0, %s151
      %s166 = sphi 0, %s152
      %s170 = sphi 0, %s170
      %s172 = sphi 0, %s170
      %s173 = sphi 0, %s172
      %s187 = sphi 0, %s173
      %s191 = sphi 0, %s191
      %s193 = sphi 0, %s191
      %s194 = sphi 0, %s193
      %s208 = sphi 0, %s194
      %s212 = sphi 0, %s212
      %s214 = sphi 0, %s212
      %s215 = sphi 0, %s214
      %s229 = sphi 0, %s215
      %s233 = sphi 0, %s233
      %s235 = sphi 0, %s233
      %s236 = sphi 0, %s235
      %s250 = sphi 0, %s236
      %s254 = sphi 0, %s254
      %s256 = sphi 0, %s254
      %s257 = sphi 0, %s256
      %s271 = sphi 0, %s257
      %s275 = sphi 0, %s275
      %s277 = sphi 0, %s275
      %s278 = sphi 0, %s277
      %s292 = sphi 0, %s278
      %s296 = sphi 0, %s296
      %s298 = sphi 0, %s296
      %s299 = sphi 0, %s298
      %s313 = sphi 0, %s299
      %s319 = sphi 0, %s321
      %s322 = sphi 0, %s319
      %s323 = sphi 0, %s322
      %s339 = sphi 0, %s323
    $region4: #{_lambda_.1} parent=1 // loop_header_branch
      %29 = sbr.rel (%p27) target = $region8
    $region5: #{_lambda_.1} parent=1 // loop_body
      %s31 = ssub.s32 %s26, 1
      %s32 = ssub.s32 %s26, 2
      %s33 = sadd.s32 %s26, 1
      %s34 = ssub.s32 %s26, %s33
      %p35 = scmp.eq.s32.totalorder %s34, 0
      %s37 = sadd.s32 %s36, 1
      %s38 = scalar_select %p35, %s36, %s37
      %p41 = pneg %p35
      %p42 = scmp.eq.s32.totalorder %s26, 1
      %p43 = por %p41, %p42
      %p44 = scmp.ne.s32.totalorder %s36, %s39
      %p45 = scmp.eq.s32.totalorder %s26, 0
      %p46 = por %p44, %p45
      %p47 = scmp.ne.s32.totalorder %s36, %s39
      %p48 = scmp.eq.s32.totalorder %s31, 1
      %p49 = por %p47, %p48
      %p50 = scmp.ne.s32.totalorder %s39, %s40
      %p51 = scmp.eq.s32.totalorder %s31, 0
      %p52 = por %p50, %p51
      %p53 = scmp.ne.s32.totalorder %s39, %s40
      %p54 = scmp.eq.s32.totalorder %s32, 1
      %p55 = por %p53, %p54
      %p57 = scmp.ne.s32.totalorder %s40, %s56
      %p58 = scmp.eq.s32.totalorder %s32, 0
      %p59 = por %p57, %p58
      %s60 = ssub.s32 %s26, %s33
      %p61 = scmp.eq.s32.totalorder %s60, 0
      %s63 = sadd.s32 %s62, 1
      %s64 = scalar_select %p61, %s62, %s63
      %p67 = pneg %p61
      %p68 = scmp.eq.s32.totalorder %s26, 1
      %p69 = por %p67, %p68
      %p70 = scmp.ne.s32.totalorder %s62, %s65
      %p71 = scmp.eq.s32.totalorder %s26, 0
      %p72 = por %p70, %p71
      %p73 = scmp.ne.s32.totalorder %s62, %s65
      %p74 = scmp.eq.s32.totalorder %s31, 1
      %p75 = por %p73, %p74
      %p76 = scmp.ne.s32.totalorder %s65, %s66
      %p77 = scmp.eq.s32.totalorder %s31, 0
      %p78 = por %p76, %p77
      %p79 = scmp.ne.s32.totalorder %s65, %s66
      %p80 = scmp.eq.s32.totalorder %s32, 1
      %p81 = por %p79, %p80
      %p83 = scmp.ne.s32.totalorder %s66, %s82
      %p84 = scmp.eq.s32.totalorder %s32, 0
      %p85 = por %p83, %p84
      %s87 = sadd.s32 %s86, 1
      %p90 = scmp.eq.s32.totalorder %s26, 1
      %p91 = scmp.ne.s32.totalorder %s86, %s88
      %p92 = scmp.eq.s32.totalorder %s26, 0
      %p93 = por %p91, %p92
      %p94 = scmp.ne.s32.totalorder %s86, %s88
      %p95 = scmp.eq.s32.totalorder %s31, 1
      %p96 = por %p94, %p95
      %p97 = scmp.ne.s32.totalorder %s88, %s89
      %p98 = scmp.eq.s32.totalorder %s31, 0
      %p99 = por %p97, %p98
      %p100 = scmp.ne.s32.totalorder %s88, %s89
      %p101 = scmp.eq.s32.totalorder %s32, 1
      %p102 = por %p100, %p101
      %p104 = scmp.ne.s32.totalorder %s89, %s103
      %p105 = scmp.eq.s32.totalorder %s32, 0
      %p106 = por %p104, %p105
      %s108 = sadd.s32 %s107, 1
      %p111 = scmp.eq.s32.totalorder %s26, 1
      %p112 = scmp.ne.s32.totalorder %s107, %s109
      %p113 = scmp.eq.s32.totalorder %s26, 0
      %p114 = por %p112, %p113
      %p115 = scmp.ne.s32.totalorder %s107, %s109
      %p116 = scmp.eq.s32.totalorder %s31, 1
      %p117 = por %p115, %p116
      %p118 = scmp.ne.s32.totalorder %s109, %s110
      %p119 = scmp.eq.s32.totalorder %s31, 0
      %p120 = por %p118, %p119
      %p121 = scmp.ne.s32.totalorder %s109, %s110
      %p122 = scmp.eq.s32.totalorder %s32, 1
      %p123 = por %p121, %p122
      %p125 = scmp.ne.s32.totalorder %s110, %s124
      %p126 = scmp.eq.s32.totalorder %s32, 0
      %p127 = por %p125, %p126
      %s129 = sadd.s32 %s128, 1
      %p132 = scmp.eq.s32.totalorder %s26, 1
      %p133 = scmp.ne.s32.totalorder %s128, %s130
      %p134 = scmp.eq.s32.totalorder %s26, 0
      %p135 = por %p133, %p134
      %p136 = scmp.ne.s32.totalorder %s128, %s130
      %p137 = scmp.eq.s32.totalorder %s31, 1
      %p138 = por %p136, %p137
      %p139 = scmp.ne.s32.totalorder %s130, %s131
      %p140 = scmp.eq.s32.totalorder %s31, 0
      %p141 = por %p139, %p140
      %p142 = scmp.ne.s32.totalorder %s130, %s131
      %p143 = scmp.eq.s32.totalorder %s32, 1
      %p144 = por %p142, %p143
      %p146 = scmp.ne.s32.totalorder %s131, %s145
      %p147 = scmp.eq.s32.totalorder %s32, 0
      %p148 = por %p146, %p147
      %s150 = sadd.s32 %s149, 1
      %p153 = scmp.eq.s32.totalorder %s26, 1
      %p154 = scmp.ne.s32.totalorder %s149, %s151
      %p155 = scmp.eq.s32.totalorder %s26, 0
      %p156 = por %p154, %p155
      %p157 = scmp.ne.s32.totalorder %s149, %s151
      %p158 = scmp.eq.s32.totalorder %s31, 1
      %p159 = por %p157, %p158
      %p160 = scmp.ne.s32.totalorder %s151, %s152
      %p161 = scmp.eq.s32.totalorder %s31, 0
      %p162 = por %p160, %p161
      %p163 = scmp.ne.s32.totalorder %s151, %s152
      %p164 = scmp.eq.s32.totalorder %s32, 1
      %p165 = por %p163, %p164
      %p167 = scmp.ne.s32.totalorder %s152, %s166
      %p168 = scmp.eq.s32.totalorder %s32, 0
      %p169 = por %p167, %p168
      %s171 = sadd.s32 %s170, 1
      %p174 = scmp.eq.s32.totalorder %s26, 1
      %p175 = scmp.ne.s32.totalorder %s170, %s172
      %p176 = scmp.eq.s32.totalorder %s26, 0
      %p177 = por %p175, %p176
      %p178 = scmp.ne.s32.totalorder %s170, %s172
      %p179 = scmp.eq.s32.totalorder %s31, 1
      %p180 = por %p178, %p179
      %p181 = scmp.ne.s32.totalorder %s172, %s173
      %p182 = scmp.eq.s32.totalorder %s31, 0
      %p183 = por %p181, %p182
      %p184 = scmp.ne.s32.totalorder %s172, %s173
      %p185 = scmp.eq.s32.totalorder %s32, 1
      %p186 = por %p184, %p185
      %p188 = scmp.ne.s32.totalorder %s173, %s187
      %p189 = scmp.eq.s32.totalorder %s32, 0
      %p190 = por %p188, %p189
      %s192 = sadd.s32 %s191, 1
      %p195 = scmp.eq.s32.totalorder %s26, 1
      %p196 = scmp.ne.s32.totalorder %s191, %s193
      %p197 = scmp.eq.s32.totalorder %s26, 0
      %p198 = por %p196, %p197
      %p199 = scmp.ne.s32.totalorder %s191, %s193
      %p200 = scmp.eq.s32.totalorder %s31, 1
      %p201 = por %p199, %p200
      %p202 = scmp.ne.s32.totalorder %s193, %s194
      %p203 = scmp.eq.s32.totalorder %s31, 0
      %p204 = por %p202, %p203
      %p205 = scmp.ne.s32.totalorder %s193, %s194
      %p206 = scmp.eq.s32.totalorder %s32, 1
      %p207 = por %p205, %p206
      %p209 = scmp.ne.s32.totalorder %s194, %s208
      %p210 = scmp.eq.s32.totalorder %s32, 0
      %p211 = por %p209, %p210
      %s213 = sadd.s32 %s212, 1
      %p216 = scmp.eq.s32.totalorder %s26, 1
      %p217 = scmp.ne.s32.totalorder %s212, %s214
      %p218 = scmp.eq.s32.totalorder %s26, 0
      %p219 = por %p217, %p218
      %p220 = scmp.ne.s32.totalorder %s212, %s214
      %p221 = scmp.eq.s32.totalorder %s31, 1
      %p222 = por %p220, %p221
      %p223 = scmp.ne.s32.totalorder %s214, %s215
      %p224 = scmp.eq.s32.totalorder %s31, 0
      %p225 = por %p223, %p224
      %p226 = scmp.ne.s32.totalorder %s214, %s215
      %p227 = scmp.eq.s32.totalorder %s32, 1
      %p228 = por %p226, %p227
      %p230 = scmp.ne.s32.totalorder %s215, %s229
      %p231 = scmp.eq.s32.totalorder %s32, 0
      %p232 = por %p230, %p231
      %s234 = sadd.s32 %s233, 1
      %p237 = scmp.eq.s32.totalorder %s26, 1
      %p238 = scmp.ne.s32.totalorder %s233, %s235
      %p239 = scmp.eq.s32.totalorder %s26, 0
      %p240 = por %p238, %p239
      %p241 = scmp.ne.s32.totalorder %s233, %s235
      %p242 = scmp.eq.s32.totalorder %s31, 1
      %p243 = por %p241, %p242
      %p244 = scmp.ne.s32.totalorder %s235, %s236
      %p245 = scmp.eq.s32.totalorder %s31, 0
      %p246 = por %p244, %p245
      %p247 = scmp.ne.s32.totalorder %s235, %s236
      %p248 = scmp.eq.s32.totalorder %s32, 1
      %p249 = por %p247, %p248
      %p251 = scmp.ne.s32.totalorder %s236, %s250
      %p252 = scmp.eq.s32.totalorder %s32, 0
      %p253 = por %p251, %p252
      %s255 = sadd.s32 %s254, 1
      %p258 = scmp.eq.s32.totalorder %s26, 1
      %p259 = scmp.ne.s32.totalorder %s254, %s256
      %p260 = scmp.eq.s32.totalorder %s26, 0
      %p261 = por %p259, %p260
      %p262 = scmp.ne.s32.totalorder %s254, %s256
      %p263 = scmp.eq.s32.totalorder %s31, 1
      %p264 = por %p262, %p263
      %p265 = scmp.ne.s32.totalorder %s256, %s257
      %p266 = scmp.eq.s32.totalorder %s31, 0
      %p267 = por %p265, %p266
      %p268 = scmp.ne.s32.totalorder %s256, %s257
      %p269 = scmp.eq.s32.totalorder %s32, 1
      %p270 = por %p268, %p269
      %p272 = scmp.ne.s32.totalorder %s257, %s271
      %p273 = scmp.eq.s32.totalorder %s32, 0
      %p274 = por %p272, %p273
      %s276 = sadd.s32 %s275, 1
      %p279 = scmp.eq.s32.totalorder %s26, 1
      %p280 = scmp.ne.s32.totalorder %s275, %s277
      %p281 = scmp.eq.s32.totalorder %s26, 0
      %p282 = por %p280, %p281
      %p283 = scmp.ne.s32.totalorder %s275, %s277
      %p284 = scmp.eq.s32.totalorder %s31, 1
      %p285 = por %p283, %p284
      %p286 = scmp.ne.s32.totalorder %s277, %s278
      %p287 = scmp.eq.s32.totalorder %s31, 0
      %p288 = por %p286, %p287
      %p289 = scmp.ne.s32.totalorder %s277, %s278
      %p290 = scmp.eq.s32.totalorder %s32, 1
      %p291 = por %p289, %p290
      %p293 = scmp.ne.s32.totalorder %s278, %s292
      %p294 = scmp.eq.s32.totalorder %s32, 0
      %p295 = por %p293, %p294
      %s297 = sadd.s32 %s296, 1
      %p300 = scmp.eq.s32.totalorder %s26, 1
      %p301 = scmp.ne.s32.totalorder %s296, %s298
      %p302 = scmp.eq.s32.totalorder %s26, 0
      %p303 = por %p301, %p302
      %p304 = scmp.ne.s32.totalorder %s296, %s298
      %p305 = scmp.eq.s32.totalorder %s31, 1
      %p306 = por %p304, %p305
      %p307 = scmp.ne.s32.totalorder %s298, %s299
      %p308 = scmp.eq.s32.totalorder %s31, 0
      %p309 = por %p307, %p308
      %p310 = scmp.ne.s32.totalorder %s298, %s299
      %p311 = scmp.eq.s32.totalorder %s32, 1
      %p312 = por %p310, %p311
      %p314 = scmp.ne.s32.totalorder %s299, %s313
      %p315 = scmp.eq.s32.totalorder %s32, 0
      %p316 = por %p314, %p315
      %s317 = ssub.s32 %s26, %s33
      %p318 = scmp.eq.s32.totalorder %s317, 0
      %s320 = sadd.s32 %s319, 1
      %s321 = scalar_select %p318, %s319, %s320
      %p324 = pneg %p318
      %p325 = scmp.eq.s32.totalorder %s26, 1
      %p326 = por %p324, %p325
      %p327 = scmp.ne.s32.totalorder %s319, %s322
      %p328 = scmp.eq.s32.totalorder %s26, 0
      %p329 = por %p327, %p328
      %p330 = scmp.ne.s32.totalorder %s319, %s322
      %p331 = scmp.eq.s32.totalorder %s31, 1
      %p332 = por %p330, %p331
      %p333 = scmp.ne.s32.totalorder %s322, %s323
      %p334 = scmp.eq.s32.totalorder %s31, 0
      %p335 = por %p333, %p334
      %p336 = scmp.ne.s32.totalorder %s322, %s323
      %p337 = scmp.eq.s32.totalorder %s32, 1
      %p338 = por %p336, %p337
      %p340 = scmp.ne.s32.totalorder %s323, %s339
      %p341 = scmp.eq.s32.totalorder %s32, 0
      %p342 = por %p340, %p341
      %p343 = scmp.le.s32.totalorder 1, %s26
      %p344 = scmp.lt.s32.totalorder %s26, 3
      %p345 = pnand %p343, %p344
      %p346 = pneg %p345
      // Predicated region
      $region9: #{_lambda_.1} parent=5 // pred_check
        _
      $region10: #{_lambda_.1} parent=5 // pred_check_branch
        %348 = sbr.rel (%p345) target = $region12
      $region11: #{_lambda_.1} parent=5 // pred_region
        %s349 = ssub.s32 %s26, 1
        // Predicated region
        $region13: #{_lambda_.1} parent=11 // pred_check
          %p350 = pneg %p99
        $region14: #{_lambda_.1} parent=11 // pred_check_branch
          %352 = sbr.rel (%p350) target = $region16
        $region15: #{_lambda_.1} parent=11 // pred_region
          %s354 = ssub.s32 6144, 6144
          %355 = vsyncadd [#allocation4], %s354
          %s356 = sshll.u32 [#allocation3], 4
          %s357 = int_to_ptr.vmem [resolvable:$true] %s356
          %362 = dma.hbm_to_vmem [thread:$0]  %s2, 6144, %s357, [#allocation4], 384, 384, 24
        $region16: #{_lambda_.1} parent=11 // pred_fallthru
          _
        // Predicated region
        $region17: #{_lambda_.1} parent=11 // pred_check
          %p363 = pneg %p120
        $region18: #{_lambda_.1} parent=11 // pred_check_branch
          %365 = sbr.rel (%p363) target = $region20
        $region19: #{_lambda_.1} parent=11 // pred_region
          _
        $region20: #{_lambda_.1} parent=11 // pred_fallthru
          _
        // Predicated region
        $region21: #{_lambda_.1} parent=11 // pred_check
          %p366 = pneg %p141
        $region22: #{_lambda_.1} parent=11 // pred_check_branch
          %368 = sbr.rel (%p366) target = $region24
        $region23: #{_lambda_.1} parent=11 // pred_region
          _
        $region24: #{_lambda_.1} parent=11 // pred_fallthru
          _
        // Predicated region
        $region25: #{_lambda_.1} parent=11 // pred_check
          %p369 = pneg %p162
        $region26: #{_lambda_.1} parent=11 // pred_check_branch
          %371 = sbr.rel (%p369) target = $region28
        $region27: #{_lambda_.1} parent=11 // pred_region
          _
        $region28: #{_lambda_.1} parent=11 // pred_fallthru
          _
        // Predicated region
        $region29: #{_lambda_.1} parent=11 // pred_check
          %p372 = pneg %p183
        $region30: #{_lambda_.1} parent=11 // pred_check_branch
          %374 = sbr.rel (%p372) target = $region32
        $region31: #{_lambda_.1} parent=11 // pred_region
          %s376 = ssub.s32 6144, 6144
          %377 = vsyncadd [#allocation7], %s376
          %s378 = sshll.u32 [#allocation6], 4
          %s379 = int_to_ptr.vmem [resolvable:$true] %s378
          %384 = dma.hbm_to_vmem [thread:$0]  %s6, 6144, %s379, [#allocation7], 64, 64, 4
        $region32: #{_lambda_.1} parent=11 // pred_fallthru
          _
        // Predicated region
        $region33: #{_lambda_.1} parent=11 // pred_check
          %p385 = pneg %p204
        $region34: #{_lambda_.1} parent=11 // pred_check_branch
          %387 = sbr.rel (%p385) target = $region36
        $region35: #{_lambda_.1} parent=11 // pred_region
          _
        $region36: #{_lambda_.1} parent=11 // pred_fallthru
          _
        // Predicated region
        $region37: #{_lambda_.1} parent=11 // pred_check
          %p388 = pneg %p225
        $region38: #{_lambda_.1} parent=11 // pred_check_branch
          %390 = sbr.rel (%p388) target = $region40
        $region39: #{_lambda_.1} parent=11 // pred_region
          _
        $region40: #{_lambda_.1} parent=11 // pred_fallthru
          _
        // Predicated region
        $region41: #{_lambda_.1} parent=11 // pred_check
          %p391 = pneg %p246
        $region42: #{_lambda_.1} parent=11 // pred_check_branch
          %393 = sbr.rel (%p391) target = $region44
        $region43: #{_lambda_.1} parent=11 // pred_region
          _
        $region44: #{_lambda_.1} parent=11 // pred_fallthru
          _
        // Predicated region
        $region45: #{_lambda_.1} parent=11 // pred_check
          %p394 = pneg %p267
        $region46: #{_lambda_.1} parent=11 // pred_check_branch
          %396 = sbr.rel (%p394) target = $region48
        $region47: #{_lambda_.1} parent=11 // pred_region
          _
        $region48: #{_lambda_.1} parent=11 // pred_fallthru
          _
        // Predicated region
        $region49: #{_lambda_.1} parent=11 // pred_check
          %p397 = pneg %p288
        $region50: #{_lambda_.1} parent=11 // pred_check_branch
          %399 = sbr.rel (%p397) target = $region52
        $region51: #{_lambda_.1} parent=11 // pred_region
          _
        $region52: #{_lambda_.1} parent=11 // pred_fallthru
          _
        // Predicated region
        $region53: #{_lambda_.1} parent=11 // pred_check
          %p400 = pneg %p309
        $region54: #{_lambda_.1} parent=11 // pred_check_branch
          %402 = sbr.rel (%p400) target = $region56
        $region55: #{_lambda_.1} parent=11 // pred_region
          _
        $region56: #{_lambda_.1} parent=11 // pred_fallthru
          _
      $region12: #{_lambda_.1} parent=5 // pred_fallthru
        _
      %p403 = scmp.lt.s32.totalorder %s26, 2
      // Predicated region
      $region57: #{_lambda_.1} parent=5 // pred_check
        %p404 = pneg %p403
      $region58: #{_lambda_.1} parent=5 // pred_check_branch
        %406 = sbr.rel (%p404) target = $region60
      $region59: #{_lambda_.1} parent=5 // pred_region
        // Predicated region
        $region61: #{_lambda_.1} parent=59 // pred_check
          %p407 = pneg %p46
        $region62: #{_lambda_.1} parent=59 // pred_check_branch
          %409 = sbr.rel (%p407) target = $region64
        $region63: #{_lambda_.1} parent=59 // pred_region
          %s410 = smul.u32 16, %s26
          %p411 = scmp.lt.s32.totalorder %s410, 31
          %s412 = scalar_select %p411, %s410, 31
          %s413 = smul.addr %s412, 4
          %s414 = scalar_lea.vmem %s0, %s413
          %s415 = smul.u32 16, %s26
        $region64: #{_lambda_.1} parent=59 // pred_fallthru
          _
        // Predicated region
        $region65: #{_lambda_.1} parent=59 // pred_check
          %p416 = pneg %p72
        $region66: #{_lambda_.1} parent=59 // pred_check_branch
          %418 = sbr.rel (%p416) target = $region68
        $region67: #{_lambda_.1} parent=59 // pred_region
          %p419 = scmp.lt.s32.totalorder %s26, 1
          %s420 = scalar_select %p419, %s26, 1
          %s421 = smul.addr %s420, 80
          %s422 = smul.addr %s421, 4
          %s423 = scalar_lea.vmem %s1, %s422
        $region68: #{_lambda_.1} parent=59 // pred_fallthru
          _
      $region60: #{_lambda_.1} parent=5 // pred_fallthru
        _
      %p424 = scmp.le.s32.totalorder 1, %s26
      %p425 = scmp.lt.s32.totalorder %s26, 3
      %p426 = pnand %p424, %p425
      %p427 = pneg %p426
      // Predicated region
      $region69: #{_lambda_.1} parent=5 // pred_check
        _
      $region70: #{_lambda_.1} parent=5 // pred_check_branch
        %429 = sbr.rel (%p426) target = $region72
      $region71: #{_lambda_.1} parent=5 // pred_region
        %s430 = ssub.s32 %s26, 1
        // Predicated region
        $region73: #{_lambda_.1} parent=71 // pred_check
          %p431 = pneg %p99
        $region74: #{_lambda_.1} parent=71 // pred_check_branch
          %433 = sbr.rel (%p431) target = $region76
        $region75: #{_lambda_.1} parent=71 // pred_region
          %434 = dma.done [#allocation4], 6144
        $region76: #{_lambda_.1} parent=71 // pred_fallthru
          _
        // Predicated region
        $region77: #{_lambda_.1} parent=71 // pred_check
          %p435 = pneg %p183
        $region78: #{_lambda_.1} parent=71 // pred_check_branch
          %437 = sbr.rel (%p435) target = $region80
        $region79: #{_lambda_.1} parent=71 // pred_region
          %438 = dma.done [#allocation7], 6144
        $region80: #{_lambda_.1} parent=71 // pred_fallthru
          _
        %s439 = smul.u32 16, %s31
        %p440 = scmp.lt.s32.totalorder %s439, 31
        %s441 = scalar_select %p440, %s439, 31
        %s442 = smul.addr %s441, 4
        %s443 = scalar_lea.vmem %s0, %s442
        %p444 = pneg %p52
        %p445 = pneg %p49
        %p446 = scmp.lt.s32.totalorder %s31, 1
        %s447 = scalar_select %p446, %s31, 1
        %s448 = smul.addr %s447, 80
        %s449 = smul.addr %s448, 4
        %s450 = scalar_lea.vmem %s1, %s449
        %p451 = pneg %p78
        %p452 = pneg %p75
        %p453 = pneg %p99
        %p454 = pneg %p96
        %p455 = pneg %p120
        %p456 = pneg %p117
        %p457 = pneg %p141
        %p458 = pneg %p138
        %p459 = pneg %p162
        %p460 = pneg %p159
        %p461 = pneg %p183
        %p462 = pneg %p180
        %p463 = pneg %p204
        %p464 = pneg %p201
        %p465 = pneg %p225
        %p466 = pneg %p222
        %p467 = pneg %p246
        %p468 = pneg %p243
        %p469 = pneg %p267
        %p470 = pneg %p264
        %p471 = pneg %p288
        %p472 = pneg %p285
        %p473 = pneg %p309
        %p474 = pneg %p306
        %p475 = pneg %p335
        %p476 = pneg %p332
        %s477 = sand.u32 %s322, 1
        %s478 = scalar_lea.sflag [#allocation5], %s477
        %s479 = sand.u32 %s322, 1
        %s480 = scalar_lea.vmem [#allocation8], %s479
        %s481 = smul.u32 16, %s31
        %p482 = scmp.lt.s32.totalorder %s481, 31
        %s483 = scalar_select %p482, %s481, 31
        %s484 = smul.addr %s483, 4
        %s485 = scalar_lea.vmem %s0, %s484
        %s486 = smul.u32 16, %s31
        %p487 = scmp.lt.s32.totalorder %s31, 1
        %s488 = scalar_select %p487, %s31, 1
        %s489 = smul.addr %s488, 80
        %s490 = smul.addr %s489, 4
        %s491 = scalar_lea.vmem %s1, %s490
        %v493 = vld [vmem:[%s485] sm:$0xf]
        %v494 = vld [vmem:[%s485 + $0x4] sm:$0xf]
        %v495 = vld [vmem:[%s485 + $0x8] sm:$0xf]
        %v496 = vld [vmem:[%s485 + $0xc] sm:$0xf]
        %v497 = vld [vmem:[%s485 + $0x10] sm:$0xf]
        %v498 = vld [vmem:[%s485 + $0x14] sm:$0xf]
        %v499 = vld [vmem:[%s485 + $0x18] sm:$0xf]
        %v500 = vld [vmem:[%s485 + $0x1c] sm:$0xf]
        %v501 = vld [vmem:[%s485 + $0x20] sm:$0xf]
        %v502 = vld [vmem:[%s485 + $0x24] sm:$0xf]
        %v503 = vld [vmem:[%s485 + $0x28] sm:$0xf]
        %v504 = vld [vmem:[%s485 + $0x2c] sm:$0xf]
        %v505 = vld [vmem:[%s485 + $0x30] sm:$0xf]
        %v506 = vld [vmem:[%s485 + $0x34] sm:$0xf]
        %v507 = vld [vmem:[%s485 + $0x38] sm:$0xf]
        %v508 = vld [vmem:[%s485 + $0x3c] sm:$0xf]
        %v509 = vld [vmem:[#allocation3] sm:$0xff]
        %v510 = vld [vmem:[#allocation3 + $0x8] sm:$0xff]
        %v511 = vld [vmem:[#allocation3 + $0x10] sm:$0xff]
        %v512 = vld [vmem:[#allocation3 + $0x18] sm:$0xff]
        %v513 = vld [vmem:[#allocation3 + $0x20] sm:$0xff]
        %v514 = vld [vmem:[#allocation3 + $0x28] sm:$0xff]
        %v515 = vld [vmem:[#allocation3 + $0x30] sm:$0xff]
        %v516 = vld [vmem:[#allocation3 + $0x38] sm:$0xff]
        %v517 = vld [vmem:[#allocation3 + $0x40] sm:$0xff]
        %v518 = vld [vmem:[#allocation3 + $0x48] sm:$0xff]
        %v519 = vld [vmem:[#allocation3 + $0x50] sm:$0xff]
        %v520 = vld [vmem:[#allocation3 + $0x58] sm:$0xff]
        %v521 = vld [vmem:[#allocation3 + $0x60] sm:$0xff]
        %v522 = vld [vmem:[#allocation3 + $0x68] sm:$0xff]
        %v523 = vld [vmem:[#allocation3 + $0x70] sm:$0xff]
        %v524 = vld [vmem:[#allocation3 + $0x78] sm:$0xff]
        %v525 = vld [vmem:[#allocation3 + $0x80] sm:$0xff]
        %v526 = vld [vmem:[#allocation3 + $0x88] sm:$0xff]
        %v527 = vld [vmem:[#allocation3 + $0x90] sm:$0xff]
        %v528 = vld [vmem:[#allocation3 + $0x98] sm:$0xff]
        %v529 = vld [vmem:[#allocation3 + $0xa0] sm:$0xff]
        %v530 = vld [vmem:[#allocation3 + $0xa8] sm:$0xff]
        %v531 = vld [vmem:[#allocation3 + $0xb0] sm:$0xff]
        %v532 = vld [vmem:[#allocation3 + $0xb8] sm:$0xff]
        %v533 = vld [vmem:[#allocation3 + $0xc0] sm:$0xff]
        %v534 = vld [vmem:[#allocation3 + $0xc8] sm:$0xff]
        %v535 = vld [vmem:[#allocation3 + $0xd0] sm:$0xff]
        %v536 = vld [vmem:[#allocation3 + $0xd8] sm:$0xff]
        %v537 = vld [vmem:[#allocation3 + $0xe0] sm:$0xff]
        %v538 = vld [vmem:[#allocation3 + $0xe8] sm:$0xff]
        %v539 = vld [vmem:[#allocation3 + $0xf0] sm:$0xff]
        %v540 = vld [vmem:[#allocation3 + $0xf8] sm:$0xff]
        %v541 = vld [vmem:[#allocation3 + $0x100] sm:$0xff]
        %v542 = vld [vmem:[#allocation3 + $0x108] sm:$0xff]
        %v543 = vld [vmem:[#allocation3 + $0x110] sm:$0xff]
        %v544 = vld [vmem:[#allocation3 + $0x118] sm:$0xff]
        %v545 = vld [vmem:[#allocation3 + $0x120] sm:$0xff]
        %v546 = vld [vmem:[#allocation3 + $0x128] sm:$0xff]
        %v547 = vld [vmem:[#allocation3 + $0x130] sm:$0xff]
        %v548 = vld [vmem:[#allocation3 + $0x138] sm:$0xff]
        %v549 = vld [vmem:[#allocation3 + $0x140] sm:$0xff]
        %v550 = vld [vmem:[#allocation3 + $0x148] sm:$0xff]
        %v551 = vld [vmem:[#allocation3 + $0x150] sm:$0xff]
        %v552 = vld [vmem:[#allocation3 + $0x158] sm:$0xff]
        %v553 = vld [vmem:[#allocation3 + $0x160] sm:$0xff]
        %v554 = vld [vmem:[#allocation3 + $0x168] sm:$0xff]
        %v555 = vld [vmem:[#allocation3 + $0x170] sm:$0xff]
        %v556 = vld [vmem:[#allocation3 + $0x178] sm:$0xff]
        %v557 = vld [vmem:[%s3] sm:$0x3f]
        %v559 = vlaneseq
        %v560 = vshrl.u32 %v559, 7
        %v561 = vsub.s32 0, %v560
        %v562 = vrot.slane %v557, %v561
        %v563 = vlaneseq
        %v564 = vshrl.u32 %v563, 7
        %v565 = vsub.s32 1, %v564
        %v566 = vrot.slane %v557, %v565
        %v567 = vlaneseq
        %v568 = vshrl.u32 %v567, 7
        %v569 = vsub.s32 2, %v568
        %v570 = vrot.slane %v557, %v569
        %v571 = vlaneseq
        %v572 = vshrl.u32 %v571, 7
        %v573 = vsub.s32 3, %v572
        %v574 = vrot.slane %v557, %v573
        %v575 = vlaneseq
        %v576 = vshrl.u32 %v575, 7
        %v577 = vsub.s32 4, %v576
        %v578 = vrot.slane %v557, %v577
        %v579 = vlaneseq
        %v580 = vshrl.u32 %v579, 7
        %v581 = vsub.s32 5, %v580
        %v582 = vrot.slane %v557, %v581
        %v605 = vunpack.c.l.b16 %v493
        %v606 = vunpack.c.l.b16 %v494
        %v607 = vunpack.c.l.b16 %v495
        %v608 = vunpack.c.l.b16 %v496
        %v609 = vunpack.c.l.b16 %v497
        %v610 = vunpack.c.l.b16 %v498
        %v611 = vunpack.c.l.b16 %v499
        %v612 = vunpack.c.l.b16 %v500
        %v613 = vunpack.c.l.b16 %v501
        %v614 = vunpack.c.l.b16 %v502
        %v615 = vunpack.c.l.b16 %v503
        %v616 = vunpack.c.l.b16 %v504
        %v617 = vunpack.c.l.b16 %v505
        %v618 = vunpack.c.l.b16 %v506
        %v619 = vunpack.c.l.b16 %v507
        %v620 = vunpack.c.l.b16 %v508
        %v621 = vpack.c.b16 %v606, %v605
        %v622 = vpack.c.b16 %v608, %v607
        %v623 = vpack.c.b16 %v610, %v609
        %v624 = vpack.c.b16 %v612, %v611
        %v625 = vpack.c.b16 %v614, %v613
        %v626 = vpack.c.b16 %v616, %v615
        %v627 = vpack.c.b16 %v618, %v617
        %v628 = vpack.c.b16 %v620, %v619
        %v685 = vunpack.c.l.b16 %v509
        %v686 = vunpack.c.h.b16 %v509
        %v687 = vunpack.c.l.b16 %v510
        %v688 = vunpack.c.h.b16 %v510
        %v689 = vunpack.c.l.b16 %v511
        %v690 = vunpack.c.h.b16 %v511
        %v691 = vunpack.c.l.b16 %v512
        %v692 = vunpack.c.h.b16 %v512
        %v693 = vunpack.c.l.b16 %v513
        %v694 = vunpack.c.h.b16 %v513
        %v695 = vunpack.c.l.b16 %v514
        %v696 = vunpack.c.h.b16 %v514
        %v697 = vunpack.c.l.b16 %v515
        %v698 = vunpack.c.h.b16 %v515
        %v699 = vunpack.c.l.b16 %v516
        %v700 = vunpack.c.h.b16 %v516
        %v701 = vunpack.c.l.b16 %v517
        %v702 = vunpack.c.h.b16 %v517
        %v703 = vunpack.c.l.b16 %v518
        %v704 = vunpack.c.h.b16 %v518
        %v705 = vunpack.c.l.b16 %v519
        %v706 = vunpack.c.h.b16 %v519
        %v707 = vunpack.c.l.b16 %v520
        %v708 = vunpack.c.h.b16 %v520
        %v709 = vunpack.c.l.b16 %v521
        %v710 = vunpack.c.h.b16 %v521
        %v711 = vunpack.c.l.b16 %v522
        %v712 = vunpack.c.h.b16 %v522
        %v713 = vunpack.c.l.b16 %v523
        %v714 = vunpack.c.h.b16 %v523
        %v715 = vunpack.c.l.b16 %v524
        %v716 = vunpack.c.h.b16 %v524
        %v717 = vunpack.c.l.b16 %v525
        %v718 = vunpack.c.h.b16 %v525
        %v719 = vunpack.c.l.b16 %v526
        %v720 = vunpack.c.h.b16 %v526
        %v721 = vunpack.c.l.b16 %v527
        %v722 = vunpack.c.h.b16 %v527
        %v723 = vunpack.c.l.b16 %v528
        %v724 = vunpack.c.h.b16 %v528
        %v725 = vunpack.c.l.b16 %v529
        %v726 = vunpack.c.h.b16 %v529
        %v727 = vunpack.c.l.b16 %v530
        %v728 = vunpack.c.h.b16 %v530
        %v729 = vunpack.c.l.b16 %v531
        %v730 = vunpack.c.h.b16 %v531
        %v731 = vunpack.c.l.b16 %v532
        %v732 = vunpack.c.h.b16 %v532
        %v733 = vunpack.c.l.b16 %v533
        %v734 = vunpack.c.h.b16 %v533
        %v735 = vunpack.c.l.b16 %v534
        %v736 = vunpack.c.h.b16 %v534
        %v737 = vunpack.c.l.b16 %v535
        %v738 = vunpack.c.h.b16 %v535
        %v739 = vunpack.c.l.b16 %v536
        %v740 = vunpack.c.h.b16 %v536
        %v741 = vunpack.c.l.b16 %v537
        %v742 = vunpack.c.h.b16 %v537
        %v743 = vunpack.c.l.b16 %v538
        %v744 = vunpack.c.h.b16 %v538
        %v745 = vunpack.c.l.b16 %v539
        %v746 = vunpack.c.h.b16 %v539
        %v747 = vunpack.c.l.b16 %v540
        %v748 = vunpack.c.h.b16 %v540
        %v749 = vunpack.c.l.b16 %v541
        %v750 = vunpack.c.h.b16 %v541
        %v751 = vunpack.c.l.b16 %v542
        %v752 = vunpack.c.h.b16 %v542
        %v753 = vunpack.c.l.b16 %v543
        %v754 = vunpack.c.h.b16 %v543
        %v755 = vunpack.c.l.b16 %v544
        %v756 = vunpack.c.h.b16 %v544
        %v757 = vunpack.c.l.b16 %v545
        %v758 = vunpack.c.h.b16 %v545
        %v759 = vunpack.c.l.b16 %v546
        %v760 = vunpack.c.h.b16 %v546
        %v761 = vunpack.c.l.b16 %v547
        %v762 = vunpack.c.h.b16 %v547
        %v763 = vunpack.c.l.b16 %v548
        %v764 = vunpack.c.h.b16 %v548
        %v765 = vunpack.c.l.b16 %v549
        %v766 = vunpack.c.h.b16 %v549
        %v767 = vunpack.c.l.b16 %v550
        %v768 = vunpack.c.h.b16 %v550
        %v769 = vunpack.c.l.b16 %v551
        %v770 = vunpack.c.h.b16 %v551
        %v771 = vunpack.c.l.b16 %v552
        %v772 = vunpack.c.h.b16 %v552
        %v773 = vunpack.c.l.b16 %v553
        %v774 = vunpack.c.h.b16 %v553
        %v775 = vunpack.c.l.b16 %v554
        %v776 = vunpack.c.h.b16 %v554
        %v777 = vunpack.c.l.b16 %v555
        %v778 = vunpack.c.h.b16 %v555
        %v779 = vunpack.c.l.b16 %v556
        %v780 = vunpack.c.h.b16 %v556
        %v781 = vpack.c.b16 %v691, %v685
        %v782 = vpack.c.b16 %v692, %v686
        %v783 = vpack.c.b16 %v693, %v687
        %v784 = vpack.c.b16 %v694, %v688
        %v785 = vpack.c.b16 %v695, %v689
        %v786 = vpack.c.b16 %v696, %v690
        %v787 = vpack.c.b16 %v703, %v697
        %v788 = vpack.c.b16 %v704, %v698
        %v789 = vpack.c.b16 %v705, %v699
        %v790 = vpack.c.b16 %v706, %v700
        %v791 = vpack.c.b16 %v707, %v701
        %v792 = vpack.c.b16 %v708, %v702
        %v793 = vpack.c.b16 %v715, %v709
        %v794 = vpack.c.b16 %v716, %v710
        %v795 = vpack.c.b16 %v717, %v711
        %v796 = vpack.c.b16 %v718, %v712
        %v797 = vpack.c.b16 %v719, %v713
        %v798 = vpack.c.b16 %v720, %v714
        %v799 = vpack.c.b16 %v727, %v721
        %v800 = vpack.c.b16 %v728, %v722
        %v801 = vpack.c.b16 %v729, %v723
        %v802 = vpack.c.b16 %v730, %v724
        %v803 = vpack.c.b16 %v731, %v725
        %v804 = vpack.c.b16 %v732, %v726
        %v805 = vpack.c.b16 %v739, %v733
        %v806 = vpack.c.b16 %v740, %v734
        %v807 = vpack.c.b16 %v741, %v735
        %v808 = vpack.c.b16 %v742, %v736
        %v809 = vpack.c.b16 %v743, %v737
        %v810 = vpack.c.b16 %v744, %v738
        %v811 = vpack.c.b16 %v751, %v745
        %v812 = vpack.c.b16 %v752, %v746
        %v813 = vpack.c.b16 %v753, %v747
        %v814 = vpack.c.b16 %v754, %v748
        %v815 = vpack.c.b16 %v755, %v749
        %v816 = vpack.c.b16 %v756, %v750
        %v817 = vpack.c.b16 %v763, %v757
        %v818 = vpack.c.b16 %v764, %v758
        %v819 = vpack.c.b16 %v765, %v759
        %v820 = vpack.c.b16 %v766, %v760
        %v821 = vpack.c.b16 %v767, %v761
        %v822 = vpack.c.b16 %v768, %v762
        %v823 = vpack.c.b16 %v775, %v769
        %v824 = vpack.c.b16 %v776, %v770
        %v825 = vpack.c.b16 %v777, %v771
        %v826 = vpack.c.b16 %v778, %v772
        %v827 = vpack.c.b16 %v779, %v773
        %v828 = vpack.c.b16 %v780, %v774
        %877 = vmatprep.subr.bf16.mxu0 %v824
        %878 = vmatpush1.bf16.msra.mxu0 %v823
        %879 = vmatprep.subr.bf16.mxu0 %v818
        %880 = vmatpush1.bf16.msra.mxu0 %v817
        %881 = vmatprep.subr.bf16.mxu0 %v812
        %882 = vmatpush1.bf16.msra.mxu0 %v811
        %883 = vmatprep.subr.bf16.mxu0 %v806
        %884 = vmatpush1.bf16.msra.mxu0 %v805
        %885 = vmatprep.subr.bf16.mxu0 %v800
        %886 = vmatpush1.bf16.msra.mxu0 %v799
        %887 = vmatprep.subr.bf16.mxu0 %v794
        %888 = vmatpush1.bf16.msra.mxu0 %v793
        %889 = vmatprep.subr.bf16.mxu0 %v788
        %890 = vmatpush1.bf16.msra.mxu0 %v787
        %891 = vmatprep.subr.bf16.mxu0 %v782
        %892 = vmatpush1.bf16.msra.mxu0 %v781
        %893 = vmatprep.subr.bf16.mxu0 0
        %894 = vmatpush2.bf16.msra.mxu0 0
        %895 = vmatprep.subr.bf16.mxu0 0
        %896 = vmatpush2.bf16.msra.mxu0 0
        %897 = vmatprep.subr.bf16.mxu0 0
        %898 = vmatpush2.bf16.msra.mxu0 0
        %899 = vmatprep.subr.bf16.mxu0 0
        %900 = vmatpush2.bf16.msra.mxu0 0
        %901 = vmatprep.subr.bf16.mxu0 0
        %902 = vmatpush2.bf16.msra.mxu0 0
        %903 = vmatprep.subr.bf16.mxu0 0
        %904 = vmatpush2.bf16.msra.mxu0 0
        %905 = vmatprep.subr.bf16.mxu0 0
        %906 = vmatpush2.bf16.msra.mxu0 0
        %907 = vmatprep.subr.bf16.mxu0 0
        %908 = vmatpush2.bf16.msra.mxu0 0
        %909 = vmatprep.mubr.bf16.mxu0 0
        %910 = vmatmul.mubr.bf16.gmra.mxu0 %v621
        %v911 = vpop.f32.mrf.mxu0
        %v912 = vadd.f32 %v562, %v911
        %v913 = vpop.f32.mrf.mxu0
        %v914 = vadd.f32 %v566, %v913
        %v915 = vpop.f32.mrf.mxu0
        %v916 = vadd.f32 %v562, %v915
        %v917 = vpop.f32.mrf.mxu0
        %v918 = vadd.f32 %v566, %v917
        %919 = vmatprep.mubr.bf16.mxu0 0
        %920 = vmatmul.mubr.bf16.gmra.mxu0 %v622
        %v921 = vpop.f32.mrf.mxu0
        %v922 = vadd.f32 %v562, %v921
        %v923 = vpop.f32.mrf.mxu0
        %v924 = vadd.f32 %v566, %v923
        %v925 = vpop.f32.mrf.mxu0
        %v926 = vadd.f32 %v562, %v925
        %v927 = vpop.f32.mrf.mxu0
        %v928 = vadd.f32 %v566, %v927
        %929 = vmatprep.mubr.bf16.mxu0 0
        %930 = vmatmul.mubr.bf16.gmra.mxu0 %v623
        %v931 = vpop.f32.mrf.mxu0
        %v932 = vadd.f32 %v562, %v931
        %v933 = vpop.f32.mrf.mxu0
        %v934 = vadd.f32 %v566, %v933
        %v935 = vpop.f32.mrf.mxu0
        %v936 = vadd.f32 %v562, %v935
        %v937 = vpop.f32.mrf.mxu0
        %v938 = vadd.f32 %v566, %v937
        %939 = vmatprep.mubr.bf16.mxu0 0
        %940 = vmatmul.mubr.bf16.gmra.mxu0 %v624
        %v941 = vpop.f32.mrf.mxu0
        %v942 = vadd.f32 %v562, %v941
        %v943 = vpop.f32.mrf.mxu0
        %v944 = vadd.f32 %v566, %v943
        %v945 = vpop.f32.mrf.mxu0
        %v946 = vadd.f32 %v562, %v945
        %v947 = vpop.f32.mrf.mxu0
        %v948 = vadd.f32 %v566, %v947
        %949 = vmatprep.mubr.bf16.mxu0 0
        %950 = vmatmul.mubr.bf16.gmra.mxu0 %v625
        %v951 = vpop.f32.mrf.mxu0
        %v952 = vadd.f32 %v562, %v951
        %v953 = vpop.f32.mrf.mxu0
        %v954 = vadd.f32 %v566, %v953
        %v955 = vpop.f32.mrf.mxu0
        %v956 = vadd.f32 %v562, %v955
        %v957 = vpop.f32.mrf.mxu0
        %v958 = vadd.f32 %v566, %v957
        %959 = vmatprep.mubr.bf16.mxu0 0
        %960 = vmatmul.mubr.bf16.gmra.mxu0 %v626
        %v961 = vpop.f32.mrf.mxu0
        %v962 = vadd.f32 %v562, %v961
        %v963 = vpop.f32.mrf.mxu0
        %v964 = vadd.f32 %v566, %v963
        %v965 = vpop.f32.mrf.mxu0
        %v966 = vadd.f32 %v562, %v965
        %v967 = vpop.f32.mrf.mxu0
        %v968 = vadd.f32 %v566, %v967
        %969 = vmatprep.mubr.bf16.mxu0 0
        %970 = vmatmul.mubr.bf16.gmra.mxu0 %v627
        %v971 = vpop.f32.mrf.mxu0
        %v972 = vadd.f32 %v562, %v971
        %v973 = vpop.f32.mrf.mxu0
        %v974 = vadd.f32 %v566, %v973
        %v975 = vpop.f32.mrf.mxu0
        %v976 = vadd.f32 %v562, %v975
        %v977 = vpop.f32.mrf.mxu0
        %v978 = vadd.f32 %v566, %v977
        %979 = vmatprep.mubr.bf16.mxu0 0
        %980 = vmatmul.mubr.bf16.gmra.mxu0 %v628
        %v981 = vpop.f32.mrf.mxu0
        %v982 = vadd.f32 %v562, %v981
        %v983 = vpop.f32.mrf.mxu0
        %v984 = vadd.f32 %v566, %v983
        %v985 = vpop.f32.mrf.mxu0
        %v986 = vadd.f32 %v562, %v985
        %v987 = vpop.f32.mrf.mxu0
        %v988 = vadd.f32 %v566, %v987
        %989 = vdwg.mxu0
        %990 = vmatprep.subr.bf16.mxu0 %v826
        %991 = vmatpush1.bf16.msra.mxu0 %v825
        %992 = vmatprep.subr.bf16.mxu0 %v820
        %993 = vmatpush1.bf16.msra.mxu0 %v819
        %994 = vmatprep.subr.bf16.mxu0 %v814
        %995 = vmatpush1.bf16.msra.mxu0 %v813
        %996 = vmatprep.subr.bf16.mxu0 %v808
        %997 = vmatpush1.bf16.msra.mxu0 %v807
        %998 = vmatprep.subr.bf16.mxu0 %v802
        %999 = vmatpush1.bf16.msra.mxu0 %v801
        %1000 = vmatprep.subr.bf16.mxu0 %v796
        %1001 = vmatpush1.bf16.msra.mxu0 %v795
        %1002 = vmatprep.subr.bf16.mxu0 %v790
        %1003 = vmatpush1.bf16.msra.mxu0 %v789
        %1004 = vmatprep.subr.bf16.mxu0 %v784
        %1005 = vmatpush1.bf16.msra.mxu0 %v783
        %1006 = vmatprep.subr.bf16.mxu0 0
        %1007 = vmatpush2.bf16.msra.mxu0 0
        %1008 = vmatprep.subr.bf16.mxu0 0
        %1009 = vmatpush2.bf16.msra.mxu0 0
        %1010 = vmatprep.subr.bf16.mxu0 0
        %1011 = vmatpush2.bf16.msra.mxu0 0
        %1012 = vmatprep.subr.bf16.mxu0 0
        %1013 = vmatpush2.bf16.msra.mxu0 0
        %1014 = vmatprep.subr.bf16.mxu0 0
        %1015 = vmatpush2.bf16.msra.mxu0 0
        %1016 = vmatprep.subr.bf16.mxu0 0
        %1017 = vmatpush2.bf16.msra.mxu0 0
        %1018 = vmatprep.subr.bf16.mxu0 0
        %1019 = vmatpush2.bf16.msra.mxu0 0
        %1020 = vmatprep.subr.bf16.mxu0 0
        %1021 = vmatpush2.bf16.msra.mxu0 0
        %1022 = vmatprep.mubr.bf16.mxu0 0
        %1023 = vmatmul.mubr.bf16.gmra.mxu0 %v621
        %v1024 = vpop.f32.mrf.mxu0
        %v1025 = vadd.f32 %v570, %v1024
        %v1026 = vpop.f32.mrf.mxu0
        %v1027 = vadd.f32 %v574, %v1026
        %v1028 = vpop.f32.mrf.mxu0
        %v1029 = vadd.f32 %v570, %v1028
        %v1030 = vpop.f32.mrf.mxu0
        %v1031 = vadd.f32 %v574, %v1030
        %1032 = vmatprep.mubr.bf16.mxu0 0
        %1033 = vmatmul.mubr.bf16.gmra.mxu0 %v622
        %v1034 = vpop.f32.mrf.mxu0
        %v1035 = vadd.f32 %v570, %v1034
        %v1036 = vpop.f32.mrf.mxu0
        %v1037 = vadd.f32 %v574, %v1036
        %v1038 = vpop.f32.mrf.mxu0
        %v1039 = vadd.f32 %v570, %v1038
        %v1040 = vpop.f32.mrf.mxu0
        %v1041 = vadd.f32 %v574, %v1040
        %1042 = vmatprep.mubr.bf16.mxu0 0
        %1043 = vmatmul.mubr.bf16.gmra.mxu0 %v623
        %v1044 = vpop.f32.mrf.mxu0
        %v1045 = vadd.f32 %v570, %v1044
        %v1046 = vpop.f32.mrf.mxu0
        %v1047 = vadd.f32 %v574, %v1046
        %v1048 = vpop.f32.mrf.mxu0
        %v1049 = vadd.f32 %v570, %v1048
        %v1050 = vpop.f32.mrf.mxu0
        %v1051 = vadd.f32 %v574, %v1050
        %1052 = vmatprep.mubr.bf16.mxu0 0
        %1053 = vmatmul.mubr.bf16.gmra.mxu0 %v624
        %v1054 = vpop.f32.mrf.mxu0
        %v1055 = vadd.f32 %v570, %v1054
        %v1056 = vpop.f32.mrf.mxu0
        %v1057 = vadd.f32 %v574, %v1056
        %v1058 = vpop.f32.mrf.mxu0
        %v1059 = vadd.f32 %v570, %v1058
        %v1060 = vpop.f32.mrf.mxu0
        %v1061 = vadd.f32 %v574, %v1060
        %1062 = vmatprep.mubr.bf16.mxu0 0
        %1063 = vmatmul.mubr.bf16.gmra.mxu0 %v625
        %v1064 = vpop.f32.mrf.mxu0
        %v1065 = vadd.f32 %v570, %v1064
        %v1066 = vpop.f32.mrf.mxu0
        %v1067 = vadd.f32 %v574, %v1066
        %v1068 = vpop.f32.mrf.mxu0
        %v1069 = vadd.f32 %v570, %v1068
        %v1070 = vpop.f32.mrf.mxu0
        %v1071 = vadd.f32 %v574, %v1070
        %1072 = vmatprep.mubr.bf16.mxu0 0
        %1073 = vmatmul.mubr.bf16.gmra.mxu0 %v626
        %v1074 = vpop.f32.mrf.mxu0
        %v1075 = vadd.f32 %v570, %v1074
        %v1076 = vpop.f32.mrf.mxu0
        %v1077 = vadd.f32 %v574, %v1076
        %v1078 = vpop.f32.mrf.mxu0
        %v1079 = vadd.f32 %v570, %v1078
        %v1080 = vpop.f32.mrf.mxu0
        %v1081 = vadd.f32 %v574, %v1080
        %1082 = vmatprep.mubr.bf16.mxu0 0
        %1083 = vmatmul.mubr.bf16.gmra.mxu0 %v627
        %v1084 = vpop.f32.mrf.mxu0
        %v1085 = vadd.f32 %v570, %v1084
        %v1086 = vpop.f32.mrf.mxu0
        %v1087 = vadd.f32 %v574, %v1086
        %v1088 = vpop.f32.mrf.mxu0
        %v1089 = vadd.f32 %v570, %v1088
        %v1090 = vpop.f32.mrf.mxu0
        %v1091 = vadd.f32 %v574, %v1090
        %1092 = vmatprep.mubr.bf16.mxu0 0
        %1093 = vmatmul.mubr.bf16.gmra.mxu0 %v628
        %v1094 = vpop.f32.mrf.mxu0
        %v1095 = vadd.f32 %v570, %v1094
        %v1096 = vpop.f32.mrf.mxu0
        %v1097 = vadd.f32 %v574, %v1096
        %v1098 = vpop.f32.mrf.mxu0
        %v1099 = vadd.f32 %v570, %v1098
        %v1100 = vpop.f32.mrf.mxu0
        %v1101 = vadd.f32 %v574, %v1100
        %1102 = vdwg.mxu0
        %1103 = vmatprep.subr.bf16.mxu0 %v828
        %1104 = vmatpush1.bf16.msra.mxu0 %v827
        %1105 = vmatprep.subr.bf16.mxu0 %v822
        %1106 = vmatpush1.bf16.msra.mxu0 %v821
        %1107 = vmatprep.subr.bf16.mxu0 %v816
        %1108 = vmatpush1.bf16.msra.mxu0 %v815
        %1109 = vmatprep.subr.bf16.mxu0 %v810
        %1110 = vmatpush1.bf16.msra.mxu0 %v809
        %1111 = vmatprep.subr.bf16.mxu0 %v804
        %1112 = vmatpush1.bf16.msra.mxu0 %v803
        %1113 = vmatprep.subr.bf16.mxu0 %v798
        %1114 = vmatpush1.bf16.msra.mxu0 %v797
        %1115 = vmatprep.subr.bf16.mxu0 %v792
        %1116 = vmatpush1.bf16.msra.mxu0 %v791
        %1117 = vmatprep.subr.bf16.mxu0 %v786
        %1118 = vmatpush1.bf16.msra.mxu0 %v785
        %1119 = vmatprep.subr.bf16.mxu0 0
        %1120 = vmatpush2.bf16.msra.mxu0 0
        %1121 = vmatprep.subr.bf16.mxu0 0
        %1122 = vmatpush2.bf16.msra.mxu0 0
        %1123 = vmatprep.subr.bf16.mxu0 0
        %1124 = vmatpush2.bf16.msra.mxu0 0
        %1125 = vmatprep.subr.bf16.mxu0 0
        %1126 = vmatpush2.bf16.msra.mxu0 0
        %1127 = vmatprep.subr.bf16.mxu0 0
        %1128 = vmatpush2.bf16.msra.mxu0 0
        %1129 = vmatprep.subr.bf16.mxu0 0
        %1130 = vmatpush2.bf16.msra.mxu0 0
        %1131 = vmatprep.subr.bf16.mxu0 0
        %1132 = vmatpush2.bf16.msra.mxu0 0
        %1133 = vmatprep.subr.bf16.mxu0 0
        %1134 = vmatpush2.bf16.msra.mxu0 0
        %1135 = vmatprep.mubr.bf16.mxu0 0
        %1136 = vmatmul.mubr.bf16.gmra.mxu0 %v621
        %v1137 = vpop.f32.mrf.mxu0
        %v1138 = vadd.f32 %v578, %v1137
        %v1139 = vpop.f32.mrf.mxu0
        %v1140 = vadd.f32 %v582, %v1139
        %v1141 = vpop.f32.mrf.mxu0
        %v1142 = vadd.f32 %v578, %v1141
        %v1143 = vpop.f32.mrf.mxu0
        %v1144 = vadd.f32 %v582, %v1143
        %1145 = vmatprep.mubr.bf16.mxu0 0
        %1146 = vmatmul.mubr.bf16.gmra.mxu0 %v622
        %v1147 = vpop.f32.mrf.mxu0
        %v1148 = vadd.f32 %v578, %v1147
        %v1149 = vpop.f32.mrf.mxu0
        %v1150 = vadd.f32 %v582, %v1149
        %v1151 = vpop.f32.mrf.mxu0
        %v1152 = vadd.f32 %v578, %v1151
        %v1153 = vpop.f32.mrf.mxu0
        %v1154 = vadd.f32 %v582, %v1153
        %1155 = vmatprep.mubr.bf16.mxu0 0
        %1156 = vmatmul.mubr.bf16.gmra.mxu0 %v623
        %v1157 = vpop.f32.mrf.mxu0
        %v1158 = vadd.f32 %v578, %v1157
        %v1159 = vpop.f32.mrf.mxu0
        %v1160 = vadd.f32 %v582, %v1159
        %v1161 = vpop.f32.mrf.mxu0
        %v1162 = vadd.f32 %v578, %v1161
        %v1163 = vpop.f32.mrf.mxu0
        %v1164 = vadd.f32 %v582, %v1163
        %1165 = vmatprep.mubr.bf16.mxu0 0
        %1166 = vmatmul.mubr.bf16.gmra.mxu0 %v624
        %v1167 = vpop.f32.mrf.mxu0
        %v1168 = vadd.f32 %v578, %v1167
        %v1169 = vpop.f32.mrf.mxu0
        %v1170 = vadd.f32 %v582, %v1169
        %v1171 = vpop.f32.mrf.mxu0
        %v1172 = vadd.f32 %v578, %v1171
        %v1173 = vpop.f32.mrf.mxu0
        %v1174 = vadd.f32 %v582, %v1173
        %1175 = vmatprep.mubr.bf16.mxu0 0
        %1176 = vmatmul.mubr.bf16.gmra.mxu0 %v625
        %v1177 = vpop.f32.mrf.mxu0
        %v1178 = vadd.f32 %v578, %v1177
        %v1179 = vpop.f32.mrf.mxu0
        %v1180 = vadd.f32 %v582, %v1179
        %v1181 = vpop.f32.mrf.mxu0
        %v1182 = vadd.f32 %v578, %v1181
        %v1183 = vpop.f32.mrf.mxu0
        %v1184 = vadd.f32 %v582, %v1183
        %1185 = vmatprep.mubr.bf16.mxu0 0
        %1186 = vmatmul.mubr.bf16.gmra.mxu0 %v626
        %v1187 = vpop.f32.mrf.mxu0
        %v1188 = vadd.f32 %v578, %v1187
        %v1189 = vpop.f32.mrf.mxu0
        %v1190 = vadd.f32 %v582, %v1189
        %v1191 = vpop.f32.mrf.mxu0
        %v1192 = vadd.f32 %v578, %v1191
        %v1193 = vpop.f32.mrf.mxu0
        %v1194 = vadd.f32 %v582, %v1193
        %1195 = vmatprep.mubr.bf16.mxu0 0
        %1196 = vmatmul.mubr.bf16.gmra.mxu0 %v627
        %v1197 = vpop.f32.mrf.mxu0
        %v1198 = vadd.f32 %v578, %v1197
        %v1199 = vpop.f32.mrf.mxu0
        %v1200 = vadd.f32 %v582, %v1199
        %v1201 = vpop.f32.mrf.mxu0
        %v1202 = vadd.f32 %v578, %v1201
        %v1203 = vpop.f32.mrf.mxu0
        %v1204 = vadd.f32 %v582, %v1203
        %1205 = vmatprep.mubr.bf16.mxu0 0
        %1206 = vmatmul.mubr.bf16.gmra.mxu0 %v628
        %v1207 = vpop.f32.mrf.mxu0
        %v1208 = vadd.f32 %v578, %v1207
        %v1209 = vpop.f32.mrf.mxu0
        %v1210 = vadd.f32 %v582, %v1209
        %v1211 = vpop.f32.mrf.mxu0
        %v1212 = vadd.f32 %v578, %v1211
        %v1213 = vpop.f32.mrf.mxu0
        %v1214 = vadd.f32 %v582, %v1213
        %1215 = vdwg.mxu0
        %v1216 = vmax.f32 %v912, 0.0
        %v1217 = vmax.f32 %v914, 0.0
        %v1218 = vmax.f32 %v1025, 0.0
        %v1219 = vmax.f32 %v1027, 0.0
        %v1220 = vmax.f32 %v1138, 0.0
        %v1221 = vmax.f32 %v1140, 0.0
        %v1222 = vmax.f32 %v916, 0.0
        %v1223 = vmax.f32 %v918, 0.0
        %v1224 = vmax.f32 %v1029, 0.0
        %v1225 = vmax.f32 %v1031, 0.0
        %v1226 = vmax.f32 %v1142, 0.0
        %v1227 = vmax.f32 %v1144, 0.0
        %v1228 = vmax.f32 %v922, 0.0
        %v1229 = vmax.f32 %v924, 0.0
        %v1230 = vmax.f32 %v1035, 0.0
        %v1231 = vmax.f32 %v1037, 0.0
        %v1232 = vmax.f32 %v1148, 0.0
        %v1233 = vmax.f32 %v1150, 0.0
        %v1234 = vmax.f32 %v926, 0.0
        %v1235 = vmax.f32 %v928, 0.0
        %v1236 = vmax.f32 %v1039, 0.0
        %v1237 = vmax.f32 %v1041, 0.0
        %v1238 = vmax.f32 %v1152, 0.0
        %v1239 = vmax.f32 %v1154, 0.0
        %v1240 = vmax.f32 %v932, 0.0
        %v1241 = vmax.f32 %v934, 0.0
        %v1242 = vmax.f32 %v1045, 0.0
        %v1243 = vmax.f32 %v1047, 0.0
        %v1244 = vmax.f32 %v1158, 0.0
        %v1245 = vmax.f32 %v1160, 0.0
        %v1246 = vmax.f32 %v936, 0.0
        %v1247 = vmax.f32 %v938, 0.0
        %v1248 = vmax.f32 %v1049, 0.0
        %v1249 = vmax.f32 %v1051, 0.0
        %v1250 = vmax.f32 %v1162, 0.0
        %v1251 = vmax.f32 %v1164, 0.0
        %v1252 = vmax.f32 %v942, 0.0
        %v1253 = vmax.f32 %v944, 0.0
        %v1254 = vmax.f32 %v1055, 0.0
        %v1255 = vmax.f32 %v1057, 0.0
        %v1256 = vmax.f32 %v1168, 0.0
        %v1257 = vmax.f32 %v1170, 0.0
        %v1258 = vmax.f32 %v946, 0.0
        %v1259 = vmax.f32 %v948, 0.0
        %v1260 = vmax.f32 %v1059, 0.0
        %v1261 = vmax.f32 %v1061, 0.0
        %v1262 = vmax.f32 %v1172, 0.0
        %v1263 = vmax.f32 %v1174, 0.0
        %v1264 = vmax.f32 %v952, 0.0
        %v1265 = vmax.f32 %v954, 0.0
        %v1266 = vmax.f32 %v1065, 0.0
        %v1267 = vmax.f32 %v1067, 0.0
        %v1268 = vmax.f32 %v1178, 0.0
        %v1269 = vmax.f32 %v1180, 0.0
        %v1270 = vmax.f32 %v956, 0.0
        %v1271 = vmax.f32 %v958, 0.0
        %v1272 = vmax.f32 %v1069, 0.0
        %v1273 = vmax.f32 %v1071, 0.0
        %v1274 = vmax.f32 %v1182, 0.0
        %v1275 = vmax.f32 %v1184, 0.0
        %v1276 = vmax.f32 %v962, 0.0
        %v1277 = vmax.f32 %v964, 0.0
        %v1278 = vmax.f32 %v1075, 0.0
        %v1279 = vmax.f32 %v1077, 0.0
        %v1280 = vmax.f32 %v1188, 0.0
        %v1281 = vmax.f32 %v1190, 0.0
        %v1282 = vmax.f32 %v966, 0.0
        %v1283 = vmax.f32 %v968, 0.0
        %v1284 = vmax.f32 %v1079, 0.0
        %v1285 = vmax.f32 %v1081, 0.0
        %v1286 = vmax.f32 %v1192, 0.0
        %v1287 = vmax.f32 %v1194, 0.0
        %v1288 = vmax.f32 %v972, 0.0
        %v1289 = vmax.f32 %v974, 0.0
        %v1290 = vmax.f32 %v1085, 0.0
        %v1291 = vmax.f32 %v1087, 0.0
        %v1292 = vmax.f32 %v1198, 0.0
        %v1293 = vmax.f32 %v1200, 0.0
        %v1294 = vmax.f32 %v976, 0.0
        %v1295 = vmax.f32 %v978, 0.0
        %v1296 = vmax.f32 %v1089, 0.0
        %v1297 = vmax.f32 %v1091, 0.0
        %v1298 = vmax.f32 %v1202, 0.0
        %v1299 = vmax.f32 %v1204, 0.0
        %v1300 = vmax.f32 %v982, 0.0
        %v1301 = vmax.f32 %v984, 0.0
        %v1302 = vmax.f32 %v1095, 0.0
        %v1303 = vmax.f32 %v1097, 0.0
        %v1304 = vmax.f32 %v1208, 0.0
        %v1305 = vmax.f32 %v1210, 0.0
        %v1306 = vmax.f32 %v986, 0.0
        %v1307 = vmax.f32 %v988, 0.0
        %v1308 = vmax.f32 %v1099, 0.0
        %v1309 = vmax.f32 %v1101, 0.0
        %v1310 = vmax.f32 %v1212, 0.0
        %v1311 = vmax.f32 %v1214, 0.0
        %v1312 = vpack.c.bf16 %v1222, %v1216
        %v1313 = vpack.c.bf16 %v1223, %v1217
        %v1314 = vpack.c.bf16 %v1224, %v1218
        %v1315 = vpack.c.bf16 %v1225, %v1219
        %v1316 = vpack.c.bf16 %v1226, %v1220
        %v1317 = vpack.c.bf16 %v1227, %v1221
        %v1318 = vpack.c.bf16 %v1234, %v1228
        %v1319 = vpack.c.bf16 %v1235, %v1229
        %v1320 = vpack.c.bf16 %v1236, %v1230
        %v1321 = vpack.c.bf16 %v1237, %v1231
        %v1322 = vpack.c.bf16 %v1238, %v1232
        %v1323 = vpack.c.bf16 %v1239, %v1233
        %v1324 = vpack.c.bf16 %v1246, %v1240
        %v1325 = vpack.c.bf16 %v1247, %v1241
        %v1326 = vpack.c.bf16 %v1248, %v1242
        %v1327 = vpack.c.bf16 %v1249, %v1243
        %v1328 = vpack.c.bf16 %v1250, %v1244
        %v1329 = vpack.c.bf16 %v1251, %v1245
        %v1330 = vpack.c.bf16 %v1258, %v1252
        %v1331 = vpack.c.bf16 %v1259, %v1253
        %v1332 = vpack.c.bf16 %v1260, %v1254
        %v1333 = vpack.c.bf16 %v1261, %v1255
        %v1334 = vpack.c.bf16 %v1262, %v1256
        %v1335 = vpack.c.bf16 %v1263, %v1257
        %v1336 = vpack.c.bf16 %v1270, %v1264
        %v1337 = vpack.c.bf16 %v1271, %v1265
        %v1338 = vpack.c.bf16 %v1272, %v1266
        %v1339 = vpack.c.bf16 %v1273, %v1267
        %v1340 = vpack.c.bf16 %v1274, %v1268
        %v1341 = vpack.c.bf16 %v1275, %v1269
        %v1342 = vpack.c.bf16 %v1282, %v1276
        %v1343 = vpack.c.bf16 %v1283, %v1277
        %v1344 = vpack.c.bf16 %v1284, %v1278
        %v1345 = vpack.c.bf16 %v1285, %v1279
        %v1346 = vpack.c.bf16 %v1286, %v1280
        %v1347 = vpack.c.bf16 %v1287, %v1281
        %v1348 = vpack.c.bf16 %v1294, %v1288
        %v1349 = vpack.c.bf16 %v1295, %v1289
        %v1350 = vpack.c.bf16 %v1296, %v1290
        %v1351 = vpack.c.bf16 %v1297, %v1291
        %v1352 = vpack.c.bf16 %v1298, %v1292
        %v1353 = vpack.c.bf16 %v1299, %v1293
        %v1354 = vpack.c.bf16 %v1306, %v1300
        %v1355 = vpack.c.bf16 %v1307, %v1301
        %v1356 = vpack.c.bf16 %v1308, %v1302
        %v1357 = vpack.c.bf16 %v1309, %v1303
        %v1358 = vpack.c.bf16 %v1310, %v1304
        %v1359 = vpack.c.bf16 %v1311, %v1305
        %v1360 = vmax.bf16 %v1312, %v1315
        %v1361 = vmax.bf16 %v1313, %v1316
        %v1362 = vmax.bf16 %v1314, %v1317
        %v1363 = vmax.bf16 %v1318, %v1321
        %v1364 = vmax.bf16 %v1319, %v1322
        %v1365 = vmax.bf16 %v1320, %v1323
        %v1366 = vmax.bf16 %v1324, %v1327
        %v1367 = vmax.bf16 %v1325, %v1328
        %v1368 = vmax.bf16 %v1326, %v1329
        %v1369 = vmax.bf16 %v1330, %v1333
        %v1370 = vmax.bf16 %v1331, %v1334
        %v1371 = vmax.bf16 %v1332, %v1335
        %v1372 = vmax.bf16 %v1336, %v1339
        %v1373 = vmax.bf16 %v1337, %v1340
        %v1374 = vmax.bf16 %v1338, %v1341
        %v1375 = vmax.bf16 %v1342, %v1345
        %v1376 = vmax.bf16 %v1343, %v1346
        %v1377 = vmax.bf16 %v1344, %v1347
        %v1378 = vmax.bf16 %v1348, %v1351
        %v1379 = vmax.bf16 %v1349, %v1352
        %v1380 = vmax.bf16 %v1350, %v1353
        %v1381 = vmax.bf16 %v1354, %v1357
        %v1382 = vmax.bf16 %v1355, %v1358
        %v1383 = vmax.bf16 %v1356, %v1359
        %v1384 = vld [vmem:[%s4] sm:$0xff]
        %v1385 = vld [vmem:[%s4 + $0x8] sm:$0xff]
        %v1386 = vld [vmem:[%s4 + $0x10] sm:$0xff]
        %v1387 = vld [vmem:[%s4 + $0x18] sm:$0xff]
        %v1388 = vld [vmem:[%s4 + $0x20] sm:$0xff]
        %v1389 = vld [vmem:[%s4 + $0x28] sm:$0xff]
        %v1390 = vld [vmem:[%s4 + $0x30] sm:$0xff]
        %v1391 = vld [vmem:[%s4 + $0x38] sm:$0xff]
        %v1392 = vld [vmem:[%s4 + $0x40] sm:$0xff]
        %v1393 = vld [vmem:[%s4 + $0x48] sm:$0xff]
        %v1394 = vld [vmem:[%s4 + $0x50] sm:$0xff]
        %v1395 = vld [vmem:[%s4 + $0x58] sm:$0xff]
        %v1396 = vld [vmem:[%s4 + $0x60] sm:$0xff]
        %v1397 = vld [vmem:[%s4 + $0x68] sm:$0xff]
        %v1398 = vld [vmem:[%s4 + $0x70] sm:$0xff]
        %v1399 = vld [vmem:[%s4 + $0x78] sm:$0xff]
        %v1400 = vld [vmem:[%s4 + $0x80] sm:$0xff]
        %v1401 = vld [vmem:[%s4 + $0x88] sm:$0xff]
        %v1402 = vld [vmem:[%s4 + $0x90] sm:$0xff]
        %v1403 = vld [vmem:[%s4 + $0x98] sm:$0xff]
        %v1404 = vld [vmem:[%s4 + $0xa0] sm:$0xff]
        %v1405 = vld [vmem:[%s4 + $0xa8] sm:$0xff]
        %v1406 = vld [vmem:[%s4 + $0xb0] sm:$0xff]
        %v1407 = vld [vmem:[%s4 + $0xb8] sm:$0xff]
        %v1408 = vld [vmem:[%s4 + $0xc0] sm:$0xff]
        %v1409 = vld [vmem:[%s4 + $0xc8] sm:$0xff]
        %v1410 = vld [vmem:[%s4 + $0xd0] sm:$0xff]
        %v1411 = vld [vmem:[%s4 + $0xd8] sm:$0xff]
        %v1412 = vld [vmem:[%s4 + $0xe0] sm:$0xff]
        %v1413 = vld [vmem:[%s4 + $0xe8] sm:$0xff]
        %v1414 = vld [vmem:[%s4 + $0xf0] sm:$0xff]
        %v1415 = vld [vmem:[%s4 + $0xf8] sm:$0xff]
        %v1416 = vld [vmem:[%s4 + $0x100] sm:$0xff]
        %v1417 = vld [vmem:[%s4 + $0x108] sm:$0xff]
        %v1418 = vld [vmem:[%s4 + $0x110] sm:$0xff]
        %v1419 = vld [vmem:[%s4 + $0x118] sm:$0xff]
        %v1420 = vld [vmem:[%s4 + $0x120] sm:$0xff]
        %v1421 = vld [vmem:[%s4 + $0x128] sm:$0xff]
        %v1422 = vld [vmem:[%s4 + $0x130] sm:$0xff]
        %v1423 = vld [vmem:[%s4 + $0x138] sm:$0xff]
        %v1424 = vld [vmem:[%s4 + $0x140] sm:$0xff]
        %v1425 = vld [vmem:[%s4 + $0x148] sm:$0xff]
        %v1426 = vld [vmem:[%s4 + $0x150] sm:$0xff]
        %v1427 = vld [vmem:[%s4 + $0x158] sm:$0xff]
        %v1428 = vld [vmem:[%s4 + $0x160] sm:$0xff]
        %v1429 = vld [vmem:[%s4 + $0x168] sm:$0xff]
        %v1430 = vld [vmem:[%s4 + $0x170] sm:$0xff]
        %v1431 = vld [vmem:[%s4 + $0x178] sm:$0xff]
        %v1432 = vld [vmem:[%s4 + $0x180] sm:$0xff]
        %v1433 = vld [vmem:[%s4 + $0x188] sm:$0xff]
        %v1434 = vld [vmem:[%s4 + $0x190] sm:$0xff]
        %v1435 = vld [vmem:[%s4 + $0x198] sm:$0xff]
        %v1436 = vld [vmem:[%s4 + $0x1a0] sm:$0xff]
        %v1437 = vld [vmem:[%s4 + $0x1a8] sm:$0xff]
        %v1438 = vld [vmem:[%s4 + $0x1b0] sm:$0xff]
        %v1439 = vld [vmem:[%s4 + $0x1b8] sm:$0xff]
        %v1440 = vld [vmem:[%s4 + $0x1c0] sm:$0xff]
        %v1441 = vld [vmem:[%s4 + $0x1c8] sm:$0xff]
        %v1442 = vld [vmem:[%s4 + $0x1d0] sm:$0xff]
        %v1443 = vld [vmem:[%s4 + $0x1d8] sm:$0xff]
        %v1444 = vld [vmem:[%s4 + $0x1e0] sm:$0xff]
        %v1445 = vld [vmem:[%s4 + $0x1e8] sm:$0xff]
        %v1446 = vld [vmem:[%s4 + $0x1f0] sm:$0xff]
        %v1447 = vld [vmem:[%s4 + $0x1f8] sm:$0xff]
        %v1448 = vld [vmem:[%s4 + $0x200] sm:$0xff]
        %v1449 = vld [vmem:[%s4 + $0x208] sm:$0xff]
        %v1450 = vld [vmem:[%s4 + $0x210] sm:$0xff]
        %v1451 = vld [vmem:[%s4 + $0x218] sm:$0xff]
        %v1452 = vld [vmem:[%s4 + $0x220] sm:$0xff]
        %v1453 = vld [vmem:[%s4 + $0x228] sm:$0xff]
        %v1454 = vld [vmem:[%s4 + $0x230] sm:$0xff]
        %v1455 = vld [vmem:[%s4 + $0x238] sm:$0xff]
        %v1456 = vld [vmem:[%s4 + $0x240] sm:$0xff]
        %v1457 = vld [vmem:[%s4 + $0x248] sm:$0xff]
        %v1458 = vld [vmem:[%s4 + $0x250] sm:$0xff]
        %v1459 = vld [vmem:[%s4 + $0x258] sm:$0xff]
        %v1460 = vld [vmem:[%s4 + $0x260] sm:$0xff]
        %v1461 = vld [vmem:[%s4 + $0x268] sm:$0xff]
        %v1462 = vld [vmem:[%s4 + $0x270] sm:$0xff]
        %v1463 = vld [vmem:[%s4 + $0x278] sm:$0xff]
        %v1464 = vld [vmem:[%s4 + $0x280] sm:$0xff]
        %v1465 = vld [vmem:[%s4 + $0x288] sm:$0xff]
        %v1466 = vld [vmem:[%s4 + $0x290] sm:$0xff]
        %v1467 = vld [vmem:[%s4 + $0x298] sm:$0xff]
        %v1468 = vld [vmem:[%s4 + $0x2a0] sm:$0xff]
        %v1469 = vld [vmem:[%s4 + $0x2a8] sm:$0xff]
        %v1470 = vld [vmem:[%s4 + $0x2b0] sm:$0xff]
        %v1471 = vld [vmem:[%s4 + $0x2b8] sm:$0xff]
        %v1472 = vld [vmem:[%s4 + $0x2c0] sm:$0xff]
        %v1473 = vld [vmem:[%s4 + $0x2c8] sm:$0xff]
        %v1474 = vld [vmem:[%s4 + $0x2d0] sm:$0xff]
        %v1475 = vld [vmem:[%s4 + $0x2d8] sm:$0xff]
        %v1476 = vld [vmem:[%s4 + $0x2e0] sm:$0xff]
        %v1477 = vld [vmem:[%s4 + $0x2e8] sm:$0xff]
        %v1478 = vld [vmem:[%s4 + $0x2f0] sm:$0xff]
        %v1479 = vld [vmem:[%s4 + $0x2f8] sm:$0xff]
        %v1480 = vld [vmem:[%s4 + $0x300] sm:$0xff]
        %v1481 = vld [vmem:[%s4 + $0x308] sm:$0xff]
        %v1482 = vld [vmem:[%s4 + $0x310] sm:$0xff]
        %v1483 = vld [vmem:[%s4 + $0x318] sm:$0xff]
        %v1484 = vld [vmem:[%s4 + $0x320] sm:$0xff]
        %v1485 = vld [vmem:[%s4 + $0x328] sm:$0xff]
        %v1486 = vld [vmem:[%s4 + $0x330] sm:$0xff]
        %v1487 = vld [vmem:[%s4 + $0x338] sm:$0xff]
        %v1488 = vld [vmem:[%s4 + $0x340] sm:$0xff]
        %v1489 = vld [vmem:[%s4 + $0x348] sm:$0xff]
        %v1490 = vld [vmem:[%s4 + $0x350] sm:$0xff]
        %v1491 = vld [vmem:[%s4 + $0x358] sm:$0xff]
        %v1492 = vld [vmem:[%s4 + $0x360] sm:$0xff]
        %v1493 = vld [vmem:[%s4 + $0x368] sm:$0xff]
        %v1494 = vld [vmem:[%s4 + $0x370] sm:$0xff]
        %v1495 = vld [vmem:[%s4 + $0x378] sm:$0xff]
        %v1496 = vld [vmem:[%s4 + $0x380] sm:$0xff]
        %v1497 = vld [vmem:[%s4 + $0x388] sm:$0xff]
        %v1498 = vld [vmem:[%s4 + $0x390] sm:$0xff]
        %v1499 = vld [vmem:[%s4 + $0x398] sm:$0xff]
        %v1500 = vld [vmem:[%s4 + $0x3a0] sm:$0xff]
        %v1501 = vld [vmem:[%s4 + $0x3a8] sm:$0xff]
        %v1502 = vld [vmem:[%s4 + $0x3b0] sm:$0xff]
        %v1503 = vld [vmem:[%s4 + $0x3b8] sm:$0xff]
        %v1504 = vld [vmem:[%s4 + $0x3c0] sm:$0xff]
        %v1505 = vld [vmem:[%s4 + $0x3c8] sm:$0xff]
        %v1506 = vld [vmem:[%s4 + $0x3d0] sm:$0xff]
        %v1507 = vld [vmem:[%s4 + $0x3d8] sm:$0xff]
        %v1508 = vld [vmem:[%s4 + $0x3e0] sm:$0xff]
        %v1509 = vld [vmem:[%s4 + $0x3e8] sm:$0xff]
        %v1510 = vld [vmem:[%s4 + $0x3f0] sm:$0xff]
        %v1511 = vld [vmem:[%s4 + $0x3f8] sm:$0xff]
        %v1512 = vld [vmem:[%s4 + $0x400] sm:$0xff]
        %v1513 = vld [vmem:[%s4 + $0x408] sm:$0xff]
        %v1514 = vld [vmem:[%s4 + $0x410] sm:$0xff]
        %v1515 = vld [vmem:[%s4 + $0x418] sm:$0xff]
        %v1516 = vld [vmem:[%s4 + $0x420] sm:$0xff]
        %v1517 = vld [vmem:[%s4 + $0x428] sm:$0xff]
        %v1518 = vld [vmem:[%s4 + $0x430] sm:$0xff]
        %v1519 = vld [vmem:[%s4 + $0x438] sm:$0xff]
        %v1520 = vld [vmem:[%s4 + $0x440] sm:$0xff]
        %v1521 = vld [vmem:[%s4 + $0x448] sm:$0xff]
        %v1522 = vld [vmem:[%s4 + $0x450] sm:$0xff]
        %v1523 = vld [vmem:[%s4 + $0x458] sm:$0xff]
        %v1524 = vld [vmem:[%s4 + $0x460] sm:$0xff]
        %v1525 = vld [vmem:[%s4 + $0x468] sm:$0xff]
        %v1526 = vld [vmem:[%s4 + $0x470] sm:$0xff]
        %v1527 = vld [vmem:[%s4 + $0x478] sm:$0xff]
        %v1528 = vld [vmem:[%s5] sm:$0x3f]
        %v1530 = vlaneseq
        %v1531 = vshrl.u32 %v1530, 7
        %v1532 = vsub.s32 0, %v1531
        %v1533 = vrot.slane %v1528, %v1532
        %v1534 = vlaneseq
        %v1535 = vshrl.u32 %v1534, 7
        %v1536 = vsub.s32 1, %v1535
        %v1537 = vrot.slane %v1528, %v1536
        %v1538 = vlaneseq
        %v1539 = vshrl.u32 %v1538, 7
        %v1540 = vsub.s32 2, %v1539
        %v1541 = vrot.slane %v1528, %v1540
        %v1542 = vlaneseq
        %v1543 = vshrl.u32 %v1542, 7
        %v1544 = vsub.s32 3, %v1543
        %v1545 = vrot.slane %v1528, %v1544
        %v1546 = vlaneseq
        %v1547 = vshrl.u32 %v1546, 7
        %v1548 = vsub.s32 4, %v1547
        %v1549 = vrot.slane %v1528, %v1548
        %v1550 = vlaneseq
        %v1551 = vshrl.u32 %v1550, 7
        %v1552 = vsub.s32 5, %v1551
        %v1553 = vrot.slane %v1528, %v1552
        %v1704 = vunpack.c.l.b16 %v1384
        %v1705 = vunpack.c.h.b16 %v1384
        %v1706 = vunpack.c.l.b16 %v1385
        %v1707 = vunpack.c.h.b16 %v1385
        %v1708 = vunpack.c.l.b16 %v1386
        %v1709 = vunpack.c.h.b16 %v1386
        %v1710 = vunpack.c.l.b16 %v1387
        %v1711 = vunpack.c.h.b16 %v1387
        %v1712 = vunpack.c.l.b16 %v1388
        %v1713 = vunpack.c.h.b16 %v1388
        %v1714 = vunpack.c.l.b16 %v1389
        %v1715 = vunpack.c.h.b16 %v1389
        %v1716 = vunpack.c.l.b16 %v1390
        %v1717 = vunpack.c.h.b16 %v1390
        %v1718 = vunpack.c.l.b16 %v1391
        %v1719 = vunpack.c.h.b16 %v1391
        %v1720 = vunpack.c.l.b16 %v1392
        %v1721 = vunpack.c.h.b16 %v1392
        %v1722 = vunpack.c.l.b16 %v1393
        %v1723 = vunpack.c.h.b16 %v1393
        %v1724 = vunpack.c.l.b16 %v1394
        %v1725 = vunpack.c.h.b16 %v1394
        %v1726 = vunpack.c.l.b16 %v1395
        %v1727 = vunpack.c.h.b16 %v1395
        %v1728 = vunpack.c.l.b16 %v1396
        %v1729 = vunpack.c.h.b16 %v1396
        %v1730 = vunpack.c.l.b16 %v1397
        %v1731 = vunpack.c.h.b16 %v1397
        %v1732 = vunpack.c.l.b16 %v1398
        %v1733 = vunpack.c.h.b16 %v1398
        %v1734 = vunpack.c.l.b16 %v1399
        %v1735 = vunpack.c.h.b16 %v1399
        %v1736 = vunpack.c.l.b16 %v1400
        %v1737 = vunpack.c.h.b16 %v1400
        %v1738 = vunpack.c.l.b16 %v1401
        %v1739 = vunpack.c.h.b16 %v1401
        %v1740 = vunpack.c.l.b16 %v1402
        %v1741 = vunpack.c.h.b16 %v1402
        %v1742 = vunpack.c.l.b16 %v1403
        %v1743 = vunpack.c.h.b16 %v1403
        %v1744 = vunpack.c.l.b16 %v1404
        %v1745 = vunpack.c.h.b16 %v1404
        %v1746 = vunpack.c.l.b16 %v1405
        %v1747 = vunpack.c.h.b16 %v1405
        %v1748 = vunpack.c.l.b16 %v1406
        %v1749 = vunpack.c.h.b16 %v1406
        %v1750 = vunpack.c.l.b16 %v1407
        %v1751 = vunpack.c.h.b16 %v1407
        %v1752 = vunpack.c.l.b16 %v1408
        %v1753 = vunpack.c.h.b16 %v1408
        %v1754 = vunpack.c.l.b16 %v1409
        %v1755 = vunpack.c.h.b16 %v1409
        %v1756 = vunpack.c.l.b16 %v1410
        %v1757 = vunpack.c.h.b16 %v1410
        %v1758 = vunpack.c.l.b16 %v1411
        %v1759 = vunpack.c.h.b16 %v1411
        %v1760 = vunpack.c.l.b16 %v1412
        %v1761 = vunpack.c.h.b16 %v1412
        %v1762 = vunpack.c.l.b16 %v1413
        %v1763 = vunpack.c.h.b16 %v1413
        %v1764 = vunpack.c.l.b16 %v1414
        %v1765 = vunpack.c.h.b16 %v1414
        %v1766 = vunpack.c.l.b16 %v1415
        %v1767 = vunpack.c.h.b16 %v1415
        %v1768 = vunpack.c.l.b16 %v1416
        %v1769 = vunpack.c.h.b16 %v1416
        %v1770 = vunpack.c.l.b16 %v1417
        %v1771 = vunpack.c.h.b16 %v1417
        %v1772 = vunpack.c.l.b16 %v1418
        %v1773 = vunpack.c.h.b16 %v1418
        %v1774 = vunpack.c.l.b16 %v1419
        %v1775 = vunpack.c.h.b16 %v1419
        %v1776 = vunpack.c.l.b16 %v1420
        %v1777 = vunpack.c.h.b16 %v1420
        %v1778 = vunpack.c.l.b16 %v1421
        %v1779 = vunpack.c.h.b16 %v1421
        %v1780 = vunpack.c.l.b16 %v1422
        %v1781 = vunpack.c.h.b16 %v1422
        %v1782 = vunpack.c.l.b16 %v1423
        %v1783 = vunpack.c.h.b16 %v1423
        %v1784 = vunpack.c.l.b16 %v1424
        %v1785 = vunpack.c.h.b16 %v1424
        %v1786 = vunpack.c.l.b16 %v1425
        %v1787 = vunpack.c.h.b16 %v1425
        %v1788 = vunpack.c.l.b16 %v1426
        %v1789 = vunpack.c.h.b16 %v1426
        %v1790 = vunpack.c.l.b16 %v1427
        %v1791 = vunpack.c.h.b16 %v1427
        %v1792 = vunpack.c.l.b16 %v1428
        %v1793 = vunpack.c.h.b16 %v1428
        %v1794 = vunpack.c.l.b16 %v1429
        %v1795 = vunpack.c.h.b16 %v1429
        %v1796 = vunpack.c.l.b16 %v1430
        %v1797 = vunpack.c.h.b16 %v1430
        %v1798 = vunpack.c.l.b16 %v1431
        %v1799 = vunpack.c.h.b16 %v1431
        %v1800 = vunpack.c.l.b16 %v1432
        %v1801 = vunpack.c.h.b16 %v1432
        %v1802 = vunpack.c.l.b16 %v1433
        %v1803 = vunpack.c.h.b16 %v1433
        %v1804 = vunpack.c.l.b16 %v1434
        %v1805 = vunpack.c.h.b16 %v1434
        %v1806 = vunpack.c.l.b16 %v1435
        %v1807 = vunpack.c.h.b16 %v1435
        %v1808 = vunpack.c.l.b16 %v1436
        %v1809 = vunpack.c.h.b16 %v1436
        %v1810 = vunpack.c.l.b16 %v1437
        %v1811 = vunpack.c.h.b16 %v1437
        %v1812 = vunpack.c.l.b16 %v1438
        %v1813 = vunpack.c.h.b16 %v1438
        %v1814 = vunpack.c.l.b16 %v1439
        %v1815 = vunpack.c.h.b16 %v1439
        %v1816 = vunpack.c.l.b16 %v1440
        %v1817 = vunpack.c.h.b16 %v1440
        %v1818 = vunpack.c.l.b16 %v1441
        %v1819 = vunpack.c.h.b16 %v1441
        %v1820 = vunpack.c.l.b16 %v1442
        %v1821 = vunpack.c.h.b16 %v1442
        %v1822 = vunpack.c.l.b16 %v1443
        %v1823 = vunpack.c.h.b16 %v1443
        %v1824 = vunpack.c.l.b16 %v1444
        %v1825 = vunpack.c.h.b16 %v1444
        %v1826 = vunpack.c.l.b16 %v1445
        %v1827 = vunpack.c.h.b16 %v1445
        %v1828 = vunpack.c.l.b16 %v1446
        %v1829 = vunpack.c.h.b16 %v1446
        %v1830 = vunpack.c.l.b16 %v1447
        %v1831 = vunpack.c.h.b16 %v1447
        %v1832 = vunpack.c.l.b16 %v1448
        %v1833 = vunpack.c.h.b16 %v1448
        %v1834 = vunpack.c.l.b16 %v1449
        %v1835 = vunpack.c.h.b16 %v1449
        %v1836 = vunpack.c.l.b16 %v1450
        %v1837 = vunpack.c.h.b16 %v1450
        %v1838 = vunpack.c.l.b16 %v1451
        %v1839 = vunpack.c.h.b16 %v1451
        %v1840 = vunpack.c.l.b16 %v1452
        %v1841 = vunpack.c.h.b16 %v1452
        %v1842 = vunpack.c.l.b16 %v1453
        %v1843 = vunpack.c.h.b16 %v1453
        %v1844 = vunpack.c.l.b16 %v1454
        %v1845 = vunpack.c.h.b16 %v1454
        %v1846 = vunpack.c.l.b16 %v1455
        %v1847 = vunpack.c.h.b16 %v1455
        %v1848 = vunpack.c.l.b16 %v1456
        %v1849 = vunpack.c.h.b16 %v1456
        %v1850 = vunpack.c.l.b16 %v1457
        %v1851 = vunpack.c.h.b16 %v1457
        %v1852 = vunpack.c.l.b16 %v1458
        %v1853 = vunpack.c.h.b16 %v1458
        %v1854 = vunpack.c.l.b16 %v1459
        %v1855 = vunpack.c.h.b16 %v1459
        %v1856 = vunpack.c.l.b16 %v1460
        %v1857 = vunpack.c.h.b16 %v1460
        %v1858 = vunpack.c.l.b16 %v1461
        %v1859 = vunpack.c.h.b16 %v1461
        %v1860 = vunpack.c.l.b16 %v1462
        %v1861 = vunpack.c.h.b16 %v1462
        %v1862 = vunpack.c.l.b16 %v1463
        %v1863 = vunpack.c.h.b16 %v1463
        %v1864 = vunpack.c.l.b16 %v1464
        %v1865 = vunpack.c.h.b16 %v1464
        %v1866 = vunpack.c.l.b16 %v1465
        %v1867 = vunpack.c.h.b16 %v1465
        %v1868 = vunpack.c.l.b16 %v1466
        %v1869 = vunpack.c.h.b16 %v1466
        %v1870 = vunpack.c.l.b16 %v1467
        %v1871 = vunpack.c.h.b16 %v1467
        %v1872 = vunpack.c.l.b16 %v1468
        %v1873 = vunpack.c.h.b16 %v1468
        %v1874 = vunpack.c.l.b16 %v1469
        %v1875 = vunpack.c.h.b16 %v1469
        %v1876 = vunpack.c.l.b16 %v1470
        %v1877 = vunpack.c.h.b16 %v1470
        %v1878 = vunpack.c.l.b16 %v1471
        %v1879 = vunpack.c.h.b16 %v1471
        %v1880 = vunpack.c.l.b16 %v1472
        %v1881 = vunpack.c.h.b16 %v1472
        %v1882 = vunpack.c.l.b16 %v1473
        %v1883 = vunpack.c.h.b16 %v1473
        %v1884 = vunpack.c.l.b16 %v1474
        %v1885 = vunpack.c.h.b16 %v1474
        %v1886 = vunpack.c.l.b16 %v1475
        %v1887 = vunpack.c.h.b16 %v1475
        %v1888 = vunpack.c.l.b16 %v1476
        %v1889 = vunpack.c.h.b16 %v1476
        %v1890 = vunpack.c.l.b16 %v1477
        %v1891 = vunpack.c.h.b16 %v1477
        %v1892 = vunpack.c.l.b16 %v1478
        %v1893 = vunpack.c.h.b16 %v1478
        %v1894 = vunpack.c.l.b16 %v1479
        %v1895 = vunpack.c.h.b16 %v1479
        %v1896 = vunpack.c.l.b16 %v1480
        %v1897 = vunpack.c.h.b16 %v1480
        %v1898 = vunpack.c.l.b16 %v1481
        %v1899 = vunpack.c.h.b16 %v1481
        %v1900 = vunpack.c.l.b16 %v1482
        %v1901 = vunpack.c.h.b16 %v1482
        %v1902 = vunpack.c.l.b16 %v1483
        %v1903 = vunpack.c.h.b16 %v1483
        %v1904 = vunpack.c.l.b16 %v1484
        %v1905 = vunpack.c.h.b16 %v1484
        %v1906 = vunpack.c.l.b16 %v1485
        %v1907 = vunpack.c.h.b16 %v1485
        %v1908 = vunpack.c.l.b16 %v1486
        %v1909 = vunpack.c.h.b16 %v1486
        %v1910 = vunpack.c.l.b16 %v1487
        %v1911 = vunpack.c.h.b16 %v1487
        %v1912 = vunpack.c.l.b16 %v1488
        %v1913 = vunpack.c.h.b16 %v1488
        %v1914 = vunpack.c.l.b16 %v1489
        %v1915 = vunpack.c.h.b16 %v1489
        %v1916 = vunpack.c.l.b16 %v1490
        %v1917 = vunpack.c.h.b16 %v1490
        %v1918 = vunpack.c.l.b16 %v1491
        %v1919 = vunpack.c.h.b16 %v1491
        %v1920 = vunpack.c.l.b16 %v1492
        %v1921 = vunpack.c.h.b16 %v1492
        %v1922 = vunpack.c.l.b16 %v1493
        %v1923 = vunpack.c.h.b16 %v1493
        %v1924 = vunpack.c.l.b16 %v1494
        %v1925 = vunpack.c.h.b16 %v1494
        %v1926 = vunpack.c.l.b16 %v1495
        %v1927 = vunpack.c.h.b16 %v1495
        %v1928 = vunpack.c.l.b16 %v1496
        %v1929 = vunpack.c.h.b16 %v1496
        %v1930 = vunpack.c.l.b16 %v1497
        %v1931 = vunpack.c.h.b16 %v1497
        %v1932 = vunpack.c.l.b16 %v1498
        %v1933 = vunpack.c.h.b16 %v1498
        %v1934 = vunpack.c.l.b16 %v1499
        %v1935 = vunpack.c.h.b16 %v1499
        %v1936 = vunpack.c.l.b16 %v1500
        %v1937 = vunpack.c.h.b16 %v1500
        %v1938 = vunpack.c.l.b16 %v1501
        %v1939 = vunpack.c.h.b16 %v1501
        %v1940 = vunpack.c.l.b16 %v1502
        %v1941 = vunpack.c.h.b16 %v1502
        %v1942 = vunpack.c.l.b16 %v1503
        %v1943 = vunpack.c.h.b16 %v1503
        %v1944 = vunpack.c.l.b16 %v1504
        %v1945 = vunpack.c.h.b16 %v1504
        %v1946 = vunpack.c.l.b16 %v1505
        %v1947 = vunpack.c.h.b16 %v1505
        %v1948 = vunpack.c.l.b16 %v1506
        %v1949 = vunpack.c.h.b16 %v1506
        %v1950 = vunpack.c.l.b16 %v1507
        %v1951 = vunpack.c.h.b16 %v1507
        %v1952 = vunpack.c.l.b16 %v1508
        %v1953 = vunpack.c.h.b16 %v1508
        %v1954 = vunpack.c.l.b16 %v1509
        %v1955 = vunpack.c.h.b16 %v1509
        %v1956 = vunpack.c.l.b16 %v1510
        %v1957 = vunpack.c.h.b16 %v1510
        %v1958 = vunpack.c.l.b16 %v1511
        %v1959 = vunpack.c.h.b16 %v1511
        %v1960 = vunpack.c.l.b16 %v1512
        %v1961 = vunpack.c.h.b16 %v1512
        %v1962 = vunpack.c.l.b16 %v1513
        %v1963 = vunpack.c.h.b16 %v1513
        %v1964 = vunpack.c.l.b16 %v1514
        %v1965 = vunpack.c.h.b16 %v1514
        %v1966 = vunpack.c.l.b16 %v1515
        %v1967 = vunpack.c.h.b16 %v1515
        %v1968 = vunpack.c.l.b16 %v1516
        %v1969 = vunpack.c.h.b16 %v1516
        %v1970 = vunpack.c.l.b16 %v1517
        %v1971 = vunpack.c.h.b16 %v1517
        %v1972 = vunpack.c.l.b16 %v1518
        %v1973 = vunpack.c.h.b16 %v1518
        %v1974 = vunpack.c.l.b16 %v1519
        %v1975 = vunpack.c.h.b16 %v1519
        %v1976 = vunpack.c.l.b16 %v1520
        %v1977 = vunpack.c.h.b16 %v1520
        %v1978 = vunpack.c.l.b16 %v1521
        %v1979 = vunpack.c.h.b16 %v1521
        %v1980 = vunpack.c.l.b16 %v1522
        %v1981 = vunpack.c.h.b16 %v1522
        %v1982 = vunpack.c.l.b16 %v1523
        %v1983 = vunpack.c.h.b16 %v1523
        %v1984 = vunpack.c.l.b16 %v1524
        %v1985 = vunpack.c.h.b16 %v1524
        %v1986 = vunpack.c.l.b16 %v1525
        %v1987 = vunpack.c.h.b16 %v1525
        %v1988 = vunpack.c.l.b16 %v1526
        %v1989 = vunpack.c.h.b16 %v1526
        %v1990 = vunpack.c.l.b16 %v1527
        %v1991 = vunpack.c.h.b16 %v1527
        %v1992 = vpack.c.b16 %v1710, %v1704
        %v1993 = vpack.c.b16 %v1711, %v1705
        %v1994 = vpack.c.b16 %v1712, %v1706
        %v1995 = vpack.c.b16 %v1713, %v1707
        %v1996 = vpack.c.b16 %v1714, %v1708
        %v1997 = vpack.c.b16 %v1715, %v1709
        %v1998 = vpack.c.b16 %v1722, %v1716
        %v1999 = vpack.c.b16 %v1723, %v1717
        %v2000 = vpack.c.b16 %v1724, %v1718
        %v2001 = vpack.c.b16 %v1725, %v1719
        %v2002 = vpack.c.b16 %v1726, %v1720
        %v2003 = vpack.c.b16 %v1727, %v1721
        %v2004 = vpack.c.b16 %v1734, %v1728
        %v2005 = vpack.c.b16 %v1735, %v1729
        %v2006 = vpack.c.b16 %v1736, %v1730
        %v2007 = vpack.c.b16 %v1737, %v1731
        %v2008 = vpack.c.b16 %v1738, %v1732
        %v2009 = vpack.c.b16 %v1739, %v1733
        %v2010 = vpack.c.b16 %v1746, %v1740
        %v2011 = vpack.c.b16 %v1747, %v1741
        %v2012 = vpack.c.b16 %v1748, %v1742
        %v2013 = vpack.c.b16 %v1749, %v1743
        %v2014 = vpack.c.b16 %v1750, %v1744
        %v2015 = vpack.c.b16 %v1751, %v1745
        %v2016 = vpack.c.b16 %v1758, %v1752
        %v2017 = vpack.c.b16 %v1759, %v1753
        %v2018 = vpack.c.b16 %v1760, %v1754
        %v2019 = vpack.c.b16 %v1761, %v1755
        %v2020 = vpack.c.b16 %v1762, %v1756
        %v2021 = vpack.c.b16 %v1763, %v1757
        %v2022 = vpack.c.b16 %v1770, %v1764
        %v2023 = vpack.c.b16 %v1771, %v1765
        %v2024 = vpack.c.b16 %v1772, %v1766
        %v2025 = vpack.c.b16 %v1773, %v1767
        %v2026 = vpack.c.b16 %v1774, %v1768
        %v2027 = vpack.c.b16 %v1775, %v1769
        %v2028 = vpack.c.b16 %v1782, %v1776
        %v2029 = vpack.c.b16 %v1783, %v1777
        %v2030 = vpack.c.b16 %v1784, %v1778
        %v2031 = vpack.c.b16 %v1785, %v1779
        %v2032 = vpack.c.b16 %v1786, %v1780
        %v2033 = vpack.c.b16 %v1787, %v1781
        %v2034 = vpack.c.b16 %v1794, %v1788
        %v2035 = vpack.c.b16 %v1795, %v1789
        %v2036 = vpack.c.b16 %v1796, %v1790
        %v2037 = vpack.c.b16 %v1797, %v1791
        %v2038 = vpack.c.b16 %v1798, %v1792
        %v2039 = vpack.c.b16 %v1799, %v1793
        %v2040 = vpack.c.b16 %v1806, %v1800
        %v2041 = vpack.c.b16 %v1807, %v1801
        %v2042 = vpack.c.b16 %v1808, %v1802
        %v2043 = vpack.c.b16 %v1809, %v1803
        %v2044 = vpack.c.b16 %v1810, %v1804
        %v2045 = vpack.c.b16 %v1811, %v1805
        %v2046 = vpack.c.b16 %v1818, %v1812
        %v2047 = vpack.c.b16 %v1819, %v1813
        %v2048 = vpack.c.b16 %v1820, %v1814
        %v2049 = vpack.c.b16 %v1821, %v1815
        %v2050 = vpack.c.b16 %v1822, %v1816
        %v2051 = vpack.c.b16 %v1823, %v1817
        %v2052 = vpack.c.b16 %v1830, %v1824
        %v2053 = vpack.c.b16 %v1831, %v1825
        %v2054 = vpack.c.b16 %v1832, %v1826
        %v2055 = vpack.c.b16 %v1833, %v1827
        %v2056 = vpack.c.b16 %v1834, %v1828
        %v2057 = vpack.c.b16 %v1835, %v1829
        %v2058 = vpack.c.b16 %v1842, %v1836
        %v2059 = vpack.c.b16 %v1843, %v1837
        %v2060 = vpack.c.b16 %v1844, %v1838
        %v2061 = vpack.c.b16 %v1845, %v1839
        %v2062 = vpack.c.b16 %v1846, %v1840
        %v2063 = vpack.c.b16 %v1847, %v1841
        %v2064 = vpack.c.b16 %v1854, %v1848
        %v2065 = vpack.c.b16 %v1855, %v1849
        %v2066 = vpack.c.b16 %v1856, %v1850
        %v2067 = vpack.c.b16 %v1857, %v1851
        %v2068 = vpack.c.b16 %v1858, %v1852
        %v2069 = vpack.c.b16 %v1859, %v1853
        %v2070 = vpack.c.b16 %v1866, %v1860
        %v2071 = vpack.c.b16 %v1867, %v1861
        %v2072 = vpack.c.b16 %v1868, %v1862
        %v2073 = vpack.c.b16 %v1869, %v1863
        %v2074 = vpack.c.b16 %v1870, %v1864
        %v2075 = vpack.c.b16 %v1871, %v1865
        %v2076 = vpack.c.b16 %v1878, %v1872
        %v2077 = vpack.c.b16 %v1879, %v1873
        %v2078 = vpack.c.b16 %v1880, %v1874
        %v2079 = vpack.c.b16 %v1881, %v1875
        %v2080 = vpack.c.b16 %v1882, %v1876
        %v2081 = vpack.c.b16 %v1883, %v1877
        %v2082 = vpack.c.b16 %v1890, %v1884
        %v2083 = vpack.c.b16 %v1891, %v1885
        %v2084 = vpack.c.b16 %v1892, %v1886
        %v2085 = vpack.c.b16 %v1893, %v1887
        %v2086 = vpack.c.b16 %v1894, %v1888
        %v2087 = vpack.c.b16 %v1895, %v1889
        %v2088 = vpack.c.b16 %v1902, %v1896
        %v2089 = vpack.c.b16 %v1903, %v1897
        %v2090 = vpack.c.b16 %v1904, %v1898
        %v2091 = vpack.c.b16 %v1905, %v1899
        %v2092 = vpack.c.b16 %v1906, %v1900
        %v2093 = vpack.c.b16 %v1907, %v1901
        %v2094 = vpack.c.b16 %v1914, %v1908
        %v2095 = vpack.c.b16 %v1915, %v1909
        %v2096 = vpack.c.b16 %v1916, %v1910
        %v2097 = vpack.c.b16 %v1917, %v1911
        %v2098 = vpack.c.b16 %v1918, %v1912
        %v2099 = vpack.c.b16 %v1919, %v1913
        %v2100 = vpack.c.b16 %v1926, %v1920
        %v2101 = vpack.c.b16 %v1927, %v1921
        %v2102 = vpack.c.b16 %v1928, %v1922
        %v2103 = vpack.c.b16 %v1929, %v1923
        %v2104 = vpack.c.b16 %v1930, %v1924
        %v2105 = vpack.c.b16 %v1931, %v1925
        %v2106 = vpack.c.b16 %v1938, %v1932
        %v2107 = vpack.c.b16 %v1939, %v1933
        %v2108 = vpack.c.b16 %v1940, %v1934
        %v2109 = vpack.c.b16 %v1941, %v1935
        %v2110 = vpack.c.b16 %v1942, %v1936
        %v2111 = vpack.c.b16 %v1943, %v1937
        %v2112 = vpack.c.b16 %v1950, %v1944
        %v2113 = vpack.c.b16 %v1951, %v1945
        %v2114 = vpack.c.b16 %v1952, %v1946
        %v2115 = vpack.c.b16 %v1953, %v1947
        %v2116 = vpack.c.b16 %v1954, %v1948
        %v2117 = vpack.c.b16 %v1955, %v1949
        %v2118 = vpack.c.b16 %v1962, %v1956
        %v2119 = vpack.c.b16 %v1963, %v1957
        %v2120 = vpack.c.b16 %v1964, %v1958
        %v2121 = vpack.c.b16 %v1965, %v1959
        %v2122 = vpack.c.b16 %v1966, %v1960
        %v2123 = vpack.c.b16 %v1967, %v1961
        %v2124 = vpack.c.b16 %v1974, %v1968
        %v2125 = vpack.c.b16 %v1975, %v1969
        %v2126 = vpack.c.b16 %v1976, %v1970
        %v2127 = vpack.c.b16 %v1977, %v1971
        %v2128 = vpack.c.b16 %v1978, %v1972
        %v2129 = vpack.c.b16 %v1979, %v1973
        %v2130 = vpack.c.b16 %v1986, %v1980
        %v2131 = vpack.c.b16 %v1987, %v1981
        %v2132 = vpack.c.b16 %v1988, %v1982
        %v2133 = vpack.c.b16 %v1989, %v1983
        %v2134 = vpack.c.b16 %v1990, %v1984
        %v2135 = vpack.c.b16 %v1991, %v1985
        %2280 = vmatprep.subr.bf16.mxu0 %v2035
        %2281 = vmatpush1.bf16.msra.mxu0 %v2034
        %2282 = vmatprep.subr.bf16.mxu0 %v2029
        %2283 = vmatpush1.bf16.msra.mxu0 %v2028
        %2284 = vmatprep.subr.bf16.mxu0 %v2023
        %2285 = vmatpush1.bf16.msra.mxu0 %v2022
        %2286 = vmatprep.subr.bf16.mxu0 %v2017
        %2287 = vmatpush1.bf16.msra.mxu0 %v2016
        %2288 = vmatprep.subr.bf16.mxu0 %v2011
        %2289 = vmatpush1.bf16.msra.mxu0 %v2010
        %2290 = vmatprep.subr.bf16.mxu0 %v2005
        %2291 = vmatpush1.bf16.msra.mxu0 %v2004
        %2292 = vmatprep.subr.bf16.mxu0 %v1999
        %2293 = vmatpush1.bf16.msra.mxu0 %v1998
        %2294 = vmatprep.subr.bf16.mxu0 %v1993
        %2295 = vmatpush1.bf16.msra.mxu0 %v1992
        %2296 = vmatprep.subr.bf16.mxu0 %v2083
        %2297 = vmatpush2.bf16.msra.mxu0 %v2082
        %2298 = vmatprep.subr.bf16.mxu0 %v2077
        %2299 = vmatpush2.bf16.msra.mxu0 %v2076
        %2300 = vmatprep.subr.bf16.mxu0 %v2071
        %2301 = vmatpush2.bf16.msra.mxu0 %v2070
        %2302 = vmatprep.subr.bf16.mxu0 %v2065
        %2303 = vmatpush2.bf16.msra.mxu0 %v2064
        %2304 = vmatprep.subr.bf16.mxu0 %v2059
        %2305 = vmatpush2.bf16.msra.mxu0 %v2058
        %2306 = vmatprep.subr.bf16.mxu0 %v2053
        %2307 = vmatpush2.bf16.msra.mxu0 %v2052
        %2308 = vmatprep.subr.bf16.mxu0 %v2047
        %2309 = vmatpush2.bf16.msra.mxu0 %v2046
        %2310 = vmatprep.subr.bf16.mxu0 %v2041
        %2311 = vmatpush2.bf16.msra.mxu0 %v2040
        %2312 = vmatprep.mubr.bf16.mxu0 %v1361
        %2313 = vmatmul.mubr.bf16.gmra.mxu0 %v1360
        %v2314 = vpop.f32.mrf.mxu0
        %v2315 = vadd.f32 %v1533, %v2314
        %v2316 = vpop.f32.mrf.mxu0
        %v2317 = vadd.f32 %v1537, %v2316
        %v2318 = vpop.f32.mrf.mxu0
        %v2319 = vadd.f32 %v1533, %v2318
        %v2320 = vpop.f32.mrf.mxu0
        %v2321 = vadd.f32 %v1537, %v2320
        %2322 = vmatprep.mubr.bf16.mxu0 %v1364
        %2323 = vmatmul.mubr.bf16.gmra.mxu0 %v1363
        %v2324 = vpop.f32.mrf.mxu0
        %v2325 = vadd.f32 %v1533, %v2324
        %v2326 = vpop.f32.mrf.mxu0
        %v2327 = vadd.f32 %v1537, %v2326
        %v2328 = vpop.f32.mrf.mxu0
        %v2329 = vadd.f32 %v1533, %v2328
        %v2330 = vpop.f32.mrf.mxu0
        %v2331 = vadd.f32 %v1537, %v2330
        %2332 = vmatprep.mubr.bf16.mxu0 %v1367
        %2333 = vmatmul.mubr.bf16.gmra.mxu0 %v1366
        %v2334 = vpop.f32.mrf.mxu0
        %v2335 = vadd.f32 %v1533, %v2334
        %v2336 = vpop.f32.mrf.mxu0
        %v2337 = vadd.f32 %v1537, %v2336
        %v2338 = vpop.f32.mrf.mxu0
        %v2339 = vadd.f32 %v1533, %v2338
        %v2340 = vpop.f32.mrf.mxu0
        %v2341 = vadd.f32 %v1537, %v2340
        %2342 = vmatprep.mubr.bf16.mxu0 %v1370
        %2343 = vmatmul.mubr.bf16.gmra.mxu0 %v1369
        %v2344 = vpop.f32.mrf.mxu0
        %v2345 = vadd.f32 %v1533, %v2344
        %v2346 = vpop.f32.mrf.mxu0
        %v2347 = vadd.f32 %v1537, %v2346
        %v2348 = vpop.f32.mrf.mxu0
        %v2349 = vadd.f32 %v1533, %v2348
        %v2350 = vpop.f32.mrf.mxu0
        %v2351 = vadd.f32 %v1537, %v2350
        %2352 = vmatprep.mubr.bf16.mxu0 %v1373
        %2353 = vmatmul.mubr.bf16.gmra.mxu0 %v1372
        %v2354 = vpop.f32.mrf.mxu0
        %v2355 = vadd.f32 %v1533, %v2354
        %v2356 = vpop.f32.mrf.mxu0
        %v2357 = vadd.f32 %v1537, %v2356
        %v2358 = vpop.f32.mrf.mxu0
        %v2359 = vadd.f32 %v1533, %v2358
        %v2360 = vpop.f32.mrf.mxu0
        %v2361 = vadd.f32 %v1537, %v2360
        %2362 = vmatprep.mubr.bf16.mxu0 %v1376
        %2363 = vmatmul.mubr.bf16.gmra.mxu0 %v1375
        %v2364 = vpop.f32.mrf.mxu0
        %v2365 = vadd.f32 %v1533, %v2364
        %v2366 = vpop.f32.mrf.mxu0
        %v2367 = vadd.f32 %v1537, %v2366
        %v2368 = vpop.f32.mrf.mxu0
        %v2369 = vadd.f32 %v1533, %v2368
        %v2370 = vpop.f32.mrf.mxu0
        %v2371 = vadd.f32 %v1537, %v2370
        %2372 = vmatprep.mubr.bf16.mxu0 %v1379
        %2373 = vmatmul.mubr.bf16.gmra.mxu0 %v1378
        %v2374 = vpop.f32.mrf.mxu0
        %v2375 = vadd.f32 %v1533, %v2374
        %v2376 = vpop.f32.mrf.mxu0
        %v2377 = vadd.f32 %v1537, %v2376
        %v2378 = vpop.f32.mrf.mxu0
        %v2379 = vadd.f32 %v1533, %v2378
        %v2380 = vpop.f32.mrf.mxu0
        %v2381 = vadd.f32 %v1537, %v2380
        %2382 = vmatprep.mubr.bf16.mxu0 %v1382
        %2383 = vmatmul.mubr.bf16.gmra.mxu0 %v1381
        %v2384 = vpop.f32.mrf.mxu0
        %v2385 = vadd.f32 %v1533, %v2384
        %v2386 = vpop.f32.mrf.mxu0
        %v2387 = vadd.f32 %v1537, %v2386
        %v2388 = vpop.f32.mrf.mxu0
        %v2389 = vadd.f32 %v1533, %v2388
        %v2390 = vpop.f32.mrf.mxu0
        %v2391 = vadd.f32 %v1537, %v2390
        %2392 = vdwg.mxu0
        %2393 = vmatprep.subr.bf16.mxu0 %v2131
        %2394 = vmatpush1.bf16.msra.mxu0 %v2130
        %2395 = vmatprep.subr.bf16.mxu0 %v2125
        %2396 = vmatpush1.bf16.msra.mxu0 %v2124
        %2397 = vmatprep.subr.bf16.mxu0 %v2119
        %2398 = vmatpush1.bf16.msra.mxu0 %v2118
        %2399 = vmatprep.subr.bf16.mxu0 %v2113
        %2400 = vmatpush1.bf16.msra.mxu0 %v2112
        %2401 = vmatprep.subr.bf16.mxu0 %v2107
        %2402 = vmatpush1.bf16.msra.mxu0 %v2106
        %2403 = vmatprep.subr.bf16.mxu0 %v2101
        %2404 = vmatpush1.bf16.msra.mxu0 %v2100
        %2405 = vmatprep.subr.bf16.mxu0 %v2095
        %2406 = vmatpush1.bf16.msra.mxu0 %v2094
        %2407 = vmatprep.subr.bf16.mxu0 %v2089
        %2408 = vmatpush1.bf16.msra.mxu0 %v2088
        %2409 = vmatprep.subr.bf16.mxu0 0
        %2410 = vmatpush2.bf16.msra.mxu0 0
        %2411 = vmatprep.subr.bf16.mxu0 0
        %2412 = vmatpush2.bf16.msra.mxu0 0
        %2413 = vmatprep.subr.bf16.mxu0 0
        %2414 = vmatpush2.bf16.msra.mxu0 0
        %2415 = vmatprep.subr.bf16.mxu0 0
        %2416 = vmatpush2.bf16.msra.mxu0 0
        %2417 = vmatprep.subr.bf16.mxu0 0
        %2418 = vmatpush2.bf16.msra.mxu0 0
        %2419 = vmatprep.subr.bf16.mxu0 0
        %2420 = vmatpush2.bf16.msra.mxu0 0
        %2421 = vmatprep.subr.bf16.mxu0 0
        %2422 = vmatpush2.bf16.msra.mxu0 0
        %2423 = vmatprep.subr.bf16.mxu0 0
        %2424 = vmatpush2.bf16.msra.mxu0 0
        %2425 = vmatprep.mubr.bf16.mxu0 0
        %2426 = vmatmul.mubr.bf16.gmra.mxu0 %v1362
        %v2427 = vpop.f32.mrf.mxu0
        %v2428 = vadd.f32 %v2315, %v2427
        %v2429 = vpop.f32.mrf.mxu0
        %v2430 = vadd.f32 %v2317, %v2429
        %v2431 = vpop.f32.mrf.mxu0
        %v2432 = vadd.f32 %v2319, %v2431
        %v2433 = vpop.f32.mrf.mxu0
        %v2434 = vadd.f32 %v2321, %v2433
        %2435 = vmatprep.mubr.bf16.mxu0 0
        %2436 = vmatmul.mubr.bf16.gmra.mxu0 %v1365
        %v2437 = vpop.f32.mrf.mxu0
        %v2438 = vadd.f32 %v2325, %v2437
        %v2439 = vpop.f32.mrf.mxu0
        %v2440 = vadd.f32 %v2327, %v2439
        %v2441 = vpop.f32.mrf.mxu0
        %v2442 = vadd.f32 %v2329, %v2441
        %v2443 = vpop.f32.mrf.mxu0
        %v2444 = vadd.f32 %v2331, %v2443
        %2445 = vmatprep.mubr.bf16.mxu0 0
        %2446 = vmatmul.mubr.bf16.gmra.mxu0 %v1368
        %v2447 = vpop.f32.mrf.mxu0
        %v2448 = vadd.f32 %v2335, %v2447
        %v2449 = vpop.f32.mrf.mxu0
        %v2450 = vadd.f32 %v2337, %v2449
        %v2451 = vpop.f32.mrf.mxu0
        %v2452 = vadd.f32 %v2339, %v2451
        %v2453 = vpop.f32.mrf.mxu0
        %v2454 = vadd.f32 %v2341, %v2453
        %2455 = vmatprep.mubr.bf16.mxu0 0
        %2456 = vmatmul.mubr.bf16.gmra.mxu0 %v1371
        %v2457 = vpop.f32.mrf.mxu0
        %v2458 = vadd.f32 %v2345, %v2457
        %v2459 = vpop.f32.mrf.mxu0
        %v2460 = vadd.f32 %v2347, %v2459
        %v2461 = vpop.f32.mrf.mxu0
        %v2462 = vadd.f32 %v2349, %v2461
        %v2463 = vpop.f32.mrf.mxu0
        %v2464 = vadd.f32 %v2351, %v2463
        %2465 = vmatprep.mubr.bf16.mxu0 0
        %2466 = vmatmul.mubr.bf16.gmra.mxu0 %v1374
        %v2467 = vpop.f32.mrf.mxu0
        %v2468 = vadd.f32 %v2355, %v2467
        %v2469 = vpop.f32.mrf.mxu0
        %v2470 = vadd.f32 %v2357, %v2469
        %v2471 = vpop.f32.mrf.mxu0
        %v2472 = vadd.f32 %v2359, %v2471
        %v2473 = vpop.f32.mrf.mxu0
        %v2474 = vadd.f32 %v2361, %v2473
        %2475 = vmatprep.mubr.bf16.mxu0 0
        %2476 = vmatmul.mubr.bf16.gmra.mxu0 %v1377
        %v2477 = vpop.f32.mrf.mxu0
        %v2478 = vadd.f32 %v2365, %v2477
        %v2479 = vpop.f32.mrf.mxu0
        %v2480 = vadd.f32 %v2367, %v2479
        %v2481 = vpop.f32.mrf.mxu0
        %v2482 = vadd.f32 %v2369, %v2481
        %v2483 = vpop.f32.mrf.mxu0
        %v2484 = vadd.f32 %v2371, %v2483
        %2485 = vmatprep.mubr.bf16.mxu0 0
        %2486 = vmatmul.mubr.bf16.gmra.mxu0 %v1380
        %v2487 = vpop.f32.mrf.mxu0
        %v2488 = vadd.f32 %v2375, %v2487
        %v2489 = vpop.f32.mrf.mxu0
        %v2490 = vadd.f32 %v2377, %v2489
        %v2491 = vpop.f32.mrf.mxu0
        %v2492 = vadd.f32 %v2379, %v2491
        %v2493 = vpop.f32.mrf.mxu0
        %v2494 = vadd.f32 %v2381, %v2493
        %2495 = vmatprep.mubr.bf16.mxu0 0
        %2496 = vmatmul.mubr.bf16.gmra.mxu0 %v1383
        %v2497 = vpop.f32.mrf.mxu0
        %v2498 = vadd.f32 %v2385, %v2497
        %v2499 = vpop.f32.mrf.mxu0
        %v2500 = vadd.f32 %v2387, %v2499
        %v2501 = vpop.f32.mrf.mxu0
        %v2502 = vadd.f32 %v2389, %v2501
        %v2503 = vpop.f32.mrf.mxu0
        %v2504 = vadd.f32 %v2391, %v2503
        %2505 = vdwg.mxu0
        %2506 = vmatprep.subr.bf16.mxu0 %v2037
        %2507 = vmatpush1.bf16.msra.mxu0 %v2036
        %2508 = vmatprep.subr.bf16.mxu0 %v2031
        %2509 = vmatpush1.bf16.msra.mxu0 %v2030
        %2510 = vmatprep.subr.bf16.mxu0 %v2025
        %2511 = vmatpush1.bf16.msra.mxu0 %v2024
        %2512 = vmatprep.subr.bf16.mxu0 %v2019
        %2513 = vmatpush1.bf16.msra.mxu0 %v2018
        %2514 = vmatprep.subr.bf16.mxu0 %v2013
        %2515 = vmatpush1.bf16.msra.mxu0 %v2012
        %2516 = vmatprep.subr.bf16.mxu0 %v2007
        %2517 = vmatpush1.bf16.msra.mxu0 %v2006
        %2518 = vmatprep.subr.bf16.mxu0 %v2001
        %2519 = vmatpush1.bf16.msra.mxu0 %v2000
        %2520 = vmatprep.subr.bf16.mxu0 %v1995
        %2521 = vmatpush1.bf16.msra.mxu0 %v1994
        %2522 = vmatprep.subr.bf16.mxu0 %v2085
        %2523 = vmatpush2.bf16.msra.mxu0 %v2084
        %2524 = vmatprep.subr.bf16.mxu0 %v2079
        %2525 = vmatpush2.bf16.msra.mxu0 %v2078
        %2526 = vmatprep.subr.bf16.mxu0 %v2073
        %2527 = vmatpush2.bf16.msra.mxu0 %v2072
        %2528 = vmatprep.subr.bf16.mxu0 %v2067
        %2529 = vmatpush2.bf16.msra.mxu0 %v2066
        %2530 = vmatprep.subr.bf16.mxu0 %v2061
        %2531 = vmatpush2.bf16.msra.mxu0 %v2060
        %2532 = vmatprep.subr.bf16.mxu0 %v2055
        %2533 = vmatpush2.bf16.msra.mxu0 %v2054
        %2534 = vmatprep.subr.bf16.mxu0 %v2049
        %2535 = vmatpush2.bf16.msra.mxu0 %v2048
        %2536 = vmatprep.subr.bf16.mxu0 %v2043
        %2537 = vmatpush2.bf16.msra.mxu0 %v2042
        %2538 = vmatprep.mubr.bf16.mxu0 %v1361
        %2539 = vmatmul.mubr.bf16.gmra.mxu0 %v1360
        %v2540 = vpop.f32.mrf.mxu0
        %v2541 = vadd.f32 %v1541, %v2540
        %v2542 = vpop.f32.mrf.mxu0
        %v2543 = vadd.f32 %v1545, %v2542
        %v2544 = vpop.f32.mrf.mxu0
        %v2545 = vadd.f32 %v1541, %v2544
        %v2546 = vpop.f32.mrf.mxu0
        %v2547 = vadd.f32 %v1545, %v2546
        %2548 = vmatprep.mubr.bf16.mxu0 %v1364
        %2549 = vmatmul.mubr.bf16.gmra.mxu0 %v1363
        %v2550 = vpop.f32.mrf.mxu0
        %v2551 = vadd.f32 %v1541, %v2550
        %v2552 = vpop.f32.mrf.mxu0
        %v2553 = vadd.f32 %v1545, %v2552
        %v2554 = vpop.f32.mrf.mxu0
        %v2555 = vadd.f32 %v1541, %v2554
        %v2556 = vpop.f32.mrf.mxu0
        %v2557 = vadd.f32 %v1545, %v2556
        %2558 = vmatprep.mubr.bf16.mxu0 %v1367
        %2559 = vmatmul.mubr.bf16.gmra.mxu0 %v1366
        %v2560 = vpop.f32.mrf.mxu0
        %v2561 = vadd.f32 %v1541, %v2560
        %v2562 = vpop.f32.mrf.mxu0
        %v2563 = vadd.f32 %v1545, %v2562
        %v2564 = vpop.f32.mrf.mxu0
        %v2565 = vadd.f32 %v1541, %v2564
        %v2566 = vpop.f32.mrf.mxu0
        %v2567 = vadd.f32 %v1545, %v2566
        %2568 = vmatprep.mubr.bf16.mxu0 %v1370
        %2569 = vmatmul.mubr.bf16.gmra.mxu0 %v1369
        %v2570 = vpop.f32.mrf.mxu0
        %v2571 = vadd.f32 %v1541, %v2570
        %v2572 = vpop.f32.mrf.mxu0
        %v2573 = vadd.f32 %v1545, %v2572
        %v2574 = vpop.f32.mrf.mxu0
        %v2575 = vadd.f32 %v1541, %v2574
        %v2576 = vpop.f32.mrf.mxu0
        %v2577 = vadd.f32 %v1545, %v2576
        %2578 = vmatprep.mubr.bf16.mxu0 %v1373
        %2579 = vmatmul.mubr.bf16.gmra.mxu0 %v1372
        %v2580 = vpop.f32.mrf.mxu0
        %v2581 = vadd.f32 %v1541, %v2580
        %v2582 = vpop.f32.mrf.mxu0
        %v2583 = vadd.f32 %v1545, %v2582
        %v2584 = vpop.f32.mrf.mxu0
        %v2585 = vadd.f32 %v1541, %v2584
        %v2586 = vpop.f32.mrf.mxu0
        %v2587 = vadd.f32 %v1545, %v2586
        %2588 = vmatprep.mubr.bf16.mxu0 %v1376
        %2589 = vmatmul.mubr.bf16.gmra.mxu0 %v1375
        %v2590 = vpop.f32.mrf.mxu0
        %v2591 = vadd.f32 %v1541, %v2590
        %v2592 = vpop.f32.mrf.mxu0
        %v2593 = vadd.f32 %v1545, %v2592
        %v2594 = vpop.f32.mrf.mxu0
        %v2595 = vadd.f32 %v1541, %v2594
        %v2596 = vpop.f32.mrf.mxu0
        %v2597 = vadd.f32 %v1545, %v2596
        %2598 = vmatprep.mubr.bf16.mxu0 %v1379
        %2599 = vmatmul.mubr.bf16.gmra.mxu0 %v1378
        %v2600 = vpop.f32.mrf.mxu0
        %v2601 = vadd.f32 %v1541, %v2600
        %v2602 = vpop.f32.mrf.mxu0
        %v2603 = vadd.f32 %v1545, %v2602
        %v2604 = vpop.f32.mrf.mxu0
        %v2605 = vadd.f32 %v1541, %v2604
        %v2606 = vpop.f32.mrf.mxu0
        %v2607 = vadd.f32 %v1545, %v2606
        %2608 = vmatprep.mubr.bf16.mxu0 %v1382
        %2609 = vmatmul.mubr.bf16.gmra.mxu0 %v1381
        %v2610 = vpop.f32.mrf.mxu0
        %v2611 = vadd.f32 %v1541, %v2610
        %v2612 = vpop.f32.mrf.mxu0
        %v2613 = vadd.f32 %v1545, %v2612
        %v2614 = vpop.f32.mrf.mxu0
        %v2615 = vadd.f32 %v1541, %v2614
        %v2616 = vpop.f32.mrf.mxu0
        %v2617 = vadd.f32 %v1545, %v2616
        %2618 = vdwg.mxu0
        %2619 = vmatprep.subr.bf16.mxu0 %v2133
        %2620 = vmatpush1.bf16.msra.mxu0 %v2132
        %2621 = vmatprep.subr.bf16.mxu0 %v2127
        %2622 = vmatpush1.bf16.msra.mxu0 %v2126
        %2623 = vmatprep.subr.bf16.mxu0 %v2121
        %2624 = vmatpush1.bf16.msra.mxu0 %v2120
        %2625 = vmatprep.subr.bf16.mxu0 %v2115
        %2626 = vmatpush1.bf16.msra.mxu0 %v2114
        %2627 = vmatprep.subr.bf16.mxu0 %v2109
        %2628 = vmatpush1.bf16.msra.mxu0 %v2108
        %2629 = vmatprep.subr.bf16.mxu0 %v2103
        %2630 = vmatpush1.bf16.msra.mxu0 %v2102
        %2631 = vmatprep.subr.bf16.mxu0 %v2097
        %2632 = vmatpush1.bf16.msra.mxu0 %v2096
        %2633 = vmatprep.subr.bf16.mxu0 %v2091
        %2634 = vmatpush1.bf16.msra.mxu0 %v2090
        %2635 = vmatprep.subr.bf16.mxu0 0
        %2636 = vmatpush2.bf16.msra.mxu0 0
        %2637 = vmatprep.subr.bf16.mxu0 0
        %2638 = vmatpush2.bf16.msra.mxu0 0
        %2639 = vmatprep.subr.bf16.mxu0 0
        %2640 = vmatpush2.bf16.msra.mxu0 0
        %2641 = vmatprep.subr.bf16.mxu0 0
        %2642 = vmatpush2.bf16.msra.mxu0 0
        %2643 = vmatprep.subr.bf16.mxu0 0
        %2644 = vmatpush2.bf16.msra.mxu0 0
        %2645 = vmatprep.subr.bf16.mxu0 0
        %2646 = vmatpush2.bf16.msra.mxu0 0
        %2647 = vmatprep.subr.bf16.mxu0 0
        %2648 = vmatpush2.bf16.msra.mxu0 0
        %2649 = vmatprep.subr.bf16.mxu0 0
        %2650 = vmatpush2.bf16.msra.mxu0 0
        %2651 = vmatprep.mubr.bf16.mxu0 0
        %2652 = vmatmul.mubr.bf16.gmra.mxu0 %v1362
        %v2653 = vpop.f32.mrf.mxu0
        %v2654 = vadd.f32 %v2541, %v2653
        %v2655 = vpop.f32.mrf.mxu0
        %v2656 = vadd.f32 %v2543, %v2655
        %v2657 = vpop.f32.mrf.mxu0
        %v2658 = vadd.f32 %v2545, %v2657
        %v2659 = vpop.f32.mrf.mxu0
        %v2660 = vadd.f32 %v2547, %v2659
        %2661 = vmatprep.mubr.bf16.mxu0 0
        %2662 = vmatmul.mubr.bf16.gmra.mxu0 %v1365
        %v2663 = vpop.f32.mrf.mxu0
        %v2664 = vadd.f32 %v2551, %v2663
        %v2665 = vpop.f32.mrf.mxu0
        %v2666 = vadd.f32 %v2553, %v2665
        %v2667 = vpop.f32.mrf.mxu0
        %v2668 = vadd.f32 %v2555, %v2667
        %v2669 = vpop.f32.mrf.mxu0
        %v2670 = vadd.f32 %v2557, %v2669
        %2671 = vmatprep.mubr.bf16.mxu0 0
        %2672 = vmatmul.mubr.bf16.gmra.mxu0 %v1368
        %v2673 = vpop.f32.mrf.mxu0
        %v2674 = vadd.f32 %v2561, %v2673
        %v2675 = vpop.f32.mrf.mxu0
        %v2676 = vadd.f32 %v2563, %v2675
        %v2677 = vpop.f32.mrf.mxu0
        %v2678 = vadd.f32 %v2565, %v2677
        %v2679 = vpop.f32.mrf.mxu0
        %v2680 = vadd.f32 %v2567, %v2679
        %2681 = vmatprep.mubr.bf16.mxu0 0
        %2682 = vmatmul.mubr.bf16.gmra.mxu0 %v1371
        %v2683 = vpop.f32.mrf.mxu0
        %v2684 = vadd.f32 %v2571, %v2683
        %v2685 = vpop.f32.mrf.mxu0
        %v2686 = vadd.f32 %v2573, %v2685
        %v2687 = vpop.f32.mrf.mxu0
        %v2688 = vadd.f32 %v2575, %v2687
        %v2689 = vpop.f32.mrf.mxu0
        %v2690 = vadd.f32 %v2577, %v2689
        %2691 = vmatprep.mubr.bf16.mxu0 0
        %2692 = vmatmul.mubr.bf16.gmra.mxu0 %v1374
        %v2693 = vpop.f32.mrf.mxu0
        %v2694 = vadd.f32 %v2581, %v2693
        %v2695 = vpop.f32.mrf.mxu0
        %v2696 = vadd.f32 %v2583, %v2695
        %v2697 = vpop.f32.mrf.mxu0
        %v2698 = vadd.f32 %v2585, %v2697
        %v2699 = vpop.f32.mrf.mxu0
        %v2700 = vadd.f32 %v2587, %v2699
        %2701 = vmatprep.mubr.bf16.mxu0 0
        %2702 = vmatmul.mubr.bf16.gmra.mxu0 %v1377
        %v2703 = vpop.f32.mrf.mxu0
        %v2704 = vadd.f32 %v2591, %v2703
        %v2705 = vpop.f32.mrf.mxu0
        %v2706 = vadd.f32 %v2593, %v2705
        %v2707 = vpop.f32.mrf.mxu0
        %v2708 = vadd.f32 %v2595, %v2707
        %v2709 = vpop.f32.mrf.mxu0
        %v2710 = vadd.f32 %v2597, %v2709
        %2711 = vmatprep.mubr.bf16.mxu0 0
        %2712 = vmatmul.mubr.bf16.gmra.mxu0 %v1380
        %v2713 = vpop.f32.mrf.mxu0
        %v2714 = vadd.f32 %v2601, %v2713
        %v2715 = vpop.f32.mrf.mxu0
        %v2716 = vadd.f32 %v2603, %v2715
        %v2717 = vpop.f32.mrf.mxu0
        %v2718 = vadd.f32 %v2605, %v2717
        %v2719 = vpop.f32.mrf.mxu0
        %v2720 = vadd.f32 %v2607, %v2719
        %2721 = vmatprep.mubr.bf16.mxu0 0
        %2722 = vmatmul.mubr.bf16.gmra.mxu0 %v1383
        %v2723 = vpop.f32.mrf.mxu0
        %v2724 = vadd.f32 %v2611, %v2723
        %v2725 = vpop.f32.mrf.mxu0
        %v2726 = vadd.f32 %v2613, %v2725
        %v2727 = vpop.f32.mrf.mxu0
        %v2728 = vadd.f32 %v2615, %v2727
        %v2729 = vpop.f32.mrf.mxu0
        %v2730 = vadd.f32 %v2617, %v2729
        %2731 = vdwg.mxu0
        %2732 = vmatprep.subr.bf16.mxu0 %v2039
        %2733 = vmatpush1.bf16.msra.mxu0 %v2038
        %2734 = vmatprep.subr.bf16.mxu0 %v2033
        %2735 = vmatpush1.bf16.msra.mxu0 %v2032
        %2736 = vmatprep.subr.bf16.mxu0 %v2027
        %2737 = vmatpush1.bf16.msra.mxu0 %v2026
        %2738 = vmatprep.subr.bf16.mxu0 %v2021
        %2739 = vmatpush1.bf16.msra.mxu0 %v2020
        %2740 = vmatprep.subr.bf16.mxu0 %v2015
        %2741 = vmatpush1.bf16.msra.mxu0 %v2014
        %2742 = vmatprep.subr.bf16.mxu0 %v2009
        %2743 = vmatpush1.bf16.msra.mxu0 %v2008
        %2744 = vmatprep.subr.bf16.mxu0 %v2003
        %2745 = vmatpush1.bf16.msra.mxu0 %v2002
        %2746 = vmatprep.subr.bf16.mxu0 %v1997
        %2747 = vmatpush1.bf16.msra.mxu0 %v1996
        %2748 = vmatprep.subr.bf16.mxu0 %v2087
        %2749 = vmatpush2.bf16.msra.mxu0 %v2086
        %2750 = vmatprep.subr.bf16.mxu0 %v2081
        %2751 = vmatpush2.bf16.msra.mxu0 %v2080
        %2752 = vmatprep.subr.bf16.mxu0 %v2075
        %2753 = vmatpush2.bf16.msra.mxu0 %v2074
        %2754 = vmatprep.subr.bf16.mxu0 %v2069
        %2755 = vmatpush2.bf16.msra.mxu0 %v2068
        %2756 = vmatprep.subr.bf16.mxu0 %v2063
        %2757 = vmatpush2.bf16.msra.mxu0 %v2062
        %2758 = vmatprep.subr.bf16.mxu0 %v2057
        %2759 = vmatpush2.bf16.msra.mxu0 %v2056
        %2760 = vmatprep.subr.bf16.mxu0 %v2051
        %2761 = vmatpush2.bf16.msra.mxu0 %v2050
        %2762 = vmatprep.subr.bf16.mxu0 %v2045
        %2763 = vmatpush2.bf16.msra.mxu0 %v2044
        %2764 = vmatprep.mubr.bf16.mxu0 %v1361
        %2765 = vmatmul.mubr.bf16.gmra.mxu0 %v1360
        %v2766 = vpop.f32.mrf.mxu0
        %v2767 = vadd.f32 %v1549, %v2766
        %v2768 = vpop.f32.mrf.mxu0
        %v2769 = vadd.f32 %v1553, %v2768
        %v2770 = vpop.f32.mrf.mxu0
        %v2771 = vadd.f32 %v1549, %v2770
        %v2772 = vpop.f32.mrf.mxu0
        %v2773 = vadd.f32 %v1553, %v2772
        %2774 = vmatprep.mubr.bf16.mxu0 %v1364
        %2775 = vmatmul.mubr.bf16.gmra.mxu0 %v1363
        %v2776 = vpop.f32.mrf.mxu0
        %v2777 = vadd.f32 %v1549, %v2776
        %v2778 = vpop.f32.mrf.mxu0
        %v2779 = vadd.f32 %v1553, %v2778
        %v2780 = vpop.f32.mrf.mxu0
        %v2781 = vadd.f32 %v1549, %v2780
        %v2782 = vpop.f32.mrf.mxu0
        %v2783 = vadd.f32 %v1553, %v2782
        %2784 = vmatprep.mubr.bf16.mxu0 %v1367
        %2785 = vmatmul.mubr.bf16.gmra.mxu0 %v1366
        %v2786 = vpop.f32.mrf.mxu0
        %v2787 = vadd.f32 %v1549, %v2786
        %v2788 = vpop.f32.mrf.mxu0
        %v2789 = vadd.f32 %v1553, %v2788
        %v2790 = vpop.f32.mrf.mxu0
        %v2791 = vadd.f32 %v1549, %v2790
        %v2792 = vpop.f32.mrf.mxu0
        %v2793 = vadd.f32 %v1553, %v2792
        %2794 = vmatprep.mubr.bf16.mxu0 %v1370
        %2795 = vmatmul.mubr.bf16.gmra.mxu0 %v1369
        %v2796 = vpop.f32.mrf.mxu0
        %v2797 = vadd.f32 %v1549, %v2796
        %v2798 = vpop.f32.mrf.mxu0
        %v2799 = vadd.f32 %v1553, %v2798
        %v2800 = vpop.f32.mrf.mxu0
        %v2801 = vadd.f32 %v1549, %v2800
        %v2802 = vpop.f32.mrf.mxu0
        %v2803 = vadd.f32 %v1553, %v2802
        %2804 = vmatprep.mubr.bf16.mxu0 %v1373
        %2805 = vmatmul.mubr.bf16.gmra.mxu0 %v1372
        %v2806 = vpop.f32.mrf.mxu0
        %v2807 = vadd.f32 %v1549, %v2806
        %v2808 = vpop.f32.mrf.mxu0
        %v2809 = vadd.f32 %v1553, %v2808
        %v2810 = vpop.f32.mrf.mxu0
        %v2811 = vadd.f32 %v1549, %v2810
        %v2812 = vpop.f32.mrf.mxu0
        %v2813 = vadd.f32 %v1553, %v2812
        %2814 = vmatprep.mubr.bf16.mxu0 %v1376
        %2815 = vmatmul.mubr.bf16.gmra.mxu0 %v1375
        %v2816 = vpop.f32.mrf.mxu0
        %v2817 = vadd.f32 %v1549, %v2816
        %v2818 = vpop.f32.mrf.mxu0
        %v2819 = vadd.f32 %v1553, %v2818
        %v2820 = vpop.f32.mrf.mxu0
        %v2821 = vadd.f32 %v1549, %v2820
        %v2822 = vpop.f32.mrf.mxu0
        %v2823 = vadd.f32 %v1553, %v2822
        %2824 = vmatprep.mubr.bf16.mxu0 %v1379
        %2825 = vmatmul.mubr.bf16.gmra.mxu0 %v1378
        %v2826 = vpop.f32.mrf.mxu0
        %v2827 = vadd.f32 %v1549, %v2826
        %v2828 = vpop.f32.mrf.mxu0
        %v2829 = vadd.f32 %v1553, %v2828
        %v2830 = vpop.f32.mrf.mxu0
        %v2831 = vadd.f32 %v1549, %v2830
        %v2832 = vpop.f32.mrf.mxu0
        %v2833 = vadd.f32 %v1553, %v2832
        %2834 = vmatprep.mubr.bf16.mxu0 %v1382
        %2835 = vmatmul.mubr.bf16.gmra.mxu0 %v1381
        %v2836 = vpop.f32.mrf.mxu0
        %v2837 = vadd.f32 %v1549, %v2836
        %v2838 = vpop.f32.mrf.mxu0
        %v2839 = vadd.f32 %v1553, %v2838
        %v2840 = vpop.f32.mrf.mxu0
        %v2841 = vadd.f32 %v1549, %v2840
        %v2842 = vpop.f32.mrf.mxu0
        %v2843 = vadd.f32 %v1553, %v2842
        %2844 = vdwg.mxu0
        %2845 = vmatprep.subr.bf16.mxu0 %v2135
        %2846 = vmatpush1.bf16.msra.mxu0 %v2134
        %2847 = vmatprep.subr.bf16.mxu0 %v2129
        %2848 = vmatpush1.bf16.msra.mxu0 %v2128
        %2849 = vmatprep.subr.bf16.mxu0 %v2123
        %2850 = vmatpush1.bf16.msra.mxu0 %v2122
        %2851 = vmatprep.subr.bf16.mxu0 %v2117
        %2852 = vmatpush1.bf16.msra.mxu0 %v2116
        %2853 = vmatprep.subr.bf16.mxu0 %v2111
        %2854 = vmatpush1.bf16.msra.mxu0 %v2110
        %2855 = vmatprep.subr.bf16.mxu0 %v2105
        %2856 = vmatpush1.bf16.msra.mxu0 %v2104
        %2857 = vmatprep.subr.bf16.mxu0 %v2099
        %2858 = vmatpush1.bf16.msra.mxu0 %v2098
        %2859 = vmatprep.subr.bf16.mxu0 %v2093
        %2860 = vmatpush1.bf16.msra.mxu0 %v2092
        %2861 = vmatprep.subr.bf16.mxu0 0
        %2862 = vmatpush2.bf16.msra.mxu0 0
        %2863 = vmatprep.subr.bf16.mxu0 0
        %2864 = vmatpush2.bf16.msra.mxu0 0
        %2865 = vmatprep.subr.bf16.mxu0 0
        %2866 = vmatpush2.bf16.msra.mxu0 0
        %2867 = vmatprep.subr.bf16.mxu0 0
        %2868 = vmatpush2.bf16.msra.mxu0 0
        %2869 = vmatprep.subr.bf16.mxu0 0
        %2870 = vmatpush2.bf16.msra.mxu0 0
        %2871 = vmatprep.subr.bf16.mxu0 0
        %2872 = vmatpush2.bf16.msra.mxu0 0
        %2873 = vmatprep.subr.bf16.mxu0 0
        %2874 = vmatpush2.bf16.msra.mxu0 0
        %2875 = vmatprep.subr.bf16.mxu0 0
        %2876 = vmatpush2.bf16.msra.mxu0 0
        %2877 = vmatprep.mubr.bf16.mxu0 0
        %2878 = vmatmul.mubr.bf16.gmra.mxu0 %v1362
        %v2879 = vpop.f32.mrf.mxu0
        %v2880 = vadd.f32 %v2767, %v2879
        %v2881 = vpop.f32.mrf.mxu0
        %v2882 = vadd.f32 %v2769, %v2881
        %v2883 = vpop.f32.mrf.mxu0
        %v2884 = vadd.f32 %v2771, %v2883
        %v2885 = vpop.f32.mrf.mxu0
        %v2886 = vadd.f32 %v2773, %v2885
        %2887 = vmatprep.mubr.bf16.mxu0 0
        %2888 = vmatmul.mubr.bf16.gmra.mxu0 %v1365
        %v2889 = vpop.f32.mrf.mxu0
        %v2890 = vadd.f32 %v2777, %v2889
        %v2891 = vpop.f32.mrf.mxu0
        %v2892 = vadd.f32 %v2779, %v2891
        %v2893 = vpop.f32.mrf.mxu0
        %v2894 = vadd.f32 %v2781, %v2893
        %v2895 = vpop.f32.mrf.mxu0
        %v2896 = vadd.f32 %v2783, %v2895
        %2897 = vmatprep.mubr.bf16.mxu0 0
        %2898 = vmatmul.mubr.bf16.gmra.mxu0 %v1368
        %v2899 = vpop.f32.mrf.mxu0
        %v2900 = vadd.f32 %v2787, %v2899
        %v2901 = vpop.f32.mrf.mxu0
        %v2902 = vadd.f32 %v2789, %v2901
        %v2903 = vpop.f32.mrf.mxu0
        %v2904 = vadd.f32 %v2791, %v2903
        %v2905 = vpop.f32.mrf.mxu0
        %v2906 = vadd.f32 %v2793, %v2905
        %2907 = vmatprep.mubr.bf16.mxu0 0
        %2908 = vmatmul.mubr.bf16.gmra.mxu0 %v1371
        %v2909 = vpop.f32.mrf.mxu0
        %v2910 = vadd.f32 %v2797, %v2909
        %v2911 = vpop.f32.mrf.mxu0
        %v2912 = vadd.f32 %v2799, %v2911
        %v2913 = vpop.f32.mrf.mxu0
        %v2914 = vadd.f32 %v2801, %v2913
        %v2915 = vpop.f32.mrf.mxu0
        %v2916 = vadd.f32 %v2803, %v2915
        %2917 = vmatprep.mubr.bf16.mxu0 0
        %2918 = vmatmul.mubr.bf16.gmra.mxu0 %v1374
        %v2919 = vpop.f32.mrf.mxu0
        %v2920 = vadd.f32 %v2807, %v2919
        %v2921 = vpop.f32.mrf.mxu0
        %v2922 = vadd.f32 %v2809, %v2921
        %v2923 = vpop.f32.mrf.mxu0
        %v2924 = vadd.f32 %v2811, %v2923
        %v2925 = vpop.f32.mrf.mxu0
        %v2926 = vadd.f32 %v2813, %v2925
        %2927 = vmatprep.mubr.bf16.mxu0 0
        %2928 = vmatmul.mubr.bf16.gmra.mxu0 %v1377
        %v2929 = vpop.f32.mrf.mxu0
        %v2930 = vadd.f32 %v2817, %v2929
        %v2931 = vpop.f32.mrf.mxu0
        %v2932 = vadd.f32 %v2819, %v2931
        %v2933 = vpop.f32.mrf.mxu0
        %v2934 = vadd.f32 %v2821, %v2933
        %v2935 = vpop.f32.mrf.mxu0
        %v2936 = vadd.f32 %v2823, %v2935
        %2937 = vmatprep.mubr.bf16.mxu0 0
        %2938 = vmatmul.mubr.bf16.gmra.mxu0 %v1380
        %v2939 = vpop.f32.mrf.mxu0
        %v2940 = vadd.f32 %v2827, %v2939
        %v2941 = vpop.f32.mrf.mxu0
        %v2942 = vadd.f32 %v2829, %v2941
        %v2943 = vpop.f32.mrf.mxu0
        %v2944 = vadd.f32 %v2831, %v2943
        %v2945 = vpop.f32.mrf.mxu0
        %v2946 = vadd.f32 %v2833, %v2945
        %2947 = vmatprep.mubr.bf16.mxu0 0
        %2948 = vmatmul.mubr.bf16.gmra.mxu0 %v1383
        %v2949 = vpop.f32.mrf.mxu0
        %v2950 = vadd.f32 %v2837, %v2949
        %v2951 = vpop.f32.mrf.mxu0
        %v2952 = vadd.f32 %v2839, %v2951
        %v2953 = vpop.f32.mrf.mxu0
        %v2954 = vadd.f32 %v2841, %v2953
        %v2955 = vpop.f32.mrf.mxu0
        %v2956 = vadd.f32 %v2843, %v2955
        %2957 = vdwg.mxu0
        %v2958 = vmax.f32 %v2428, 0.0
        %v2959 = vmax.f32 %v2430, 0.0
        %v2960 = vmax.f32 %v2654, 0.0
        %v2961 = vmax.f32 %v2656, 0.0
        %v2962 = vmax.f32 %v2880, 0.0
        %v2963 = vmax.f32 %v2882, 0.0
        %v2964 = vmax.f32 %v2432, 0.0
        %v2965 = vmax.f32 %v2434, 0.0
        %v2966 = vmax.f32 %v2658, 0.0
        %v2967 = vmax.f32 %v2660, 0.0
        %v2968 = vmax.f32 %v2884, 0.0
        %v2969 = vmax.f32 %v2886, 0.0
        %v2970 = vmax.f32 %v2438, 0.0
        %v2971 = vmax.f32 %v2440, 0.0
        %v2972 = vmax.f32 %v2664, 0.0
        %v2973 = vmax.f32 %v2666, 0.0
        %v2974 = vmax.f32 %v2890, 0.0
        %v2975 = vmax.f32 %v2892, 0.0
        %v2976 = vmax.f32 %v2442, 0.0
        %v2977 = vmax.f32 %v2444, 0.0
        %v2978 = vmax.f32 %v2668, 0.0
        %v2979 = vmax.f32 %v2670, 0.0
        %v2980 = vmax.f32 %v2894, 0.0
        %v2981 = vmax.f32 %v2896, 0.0
        %v2982 = vmax.f32 %v2448, 0.0
        %v2983 = vmax.f32 %v2450, 0.0
        %v2984 = vmax.f32 %v2674, 0.0
        %v2985 = vmax.f32 %v2676, 0.0
        %v2986 = vmax.f32 %v2900, 0.0
        %v2987 = vmax.f32 %v2902, 0.0
        %v2988 = vmax.f32 %v2452, 0.0
        %v2989 = vmax.f32 %v2454, 0.0
        %v2990 = vmax.f32 %v2678, 0.0
        %v2991 = vmax.f32 %v2680, 0.0
        %v2992 = vmax.f32 %v2904, 0.0
        %v2993 = vmax.f32 %v2906, 0.0
        %v2994 = vmax.f32 %v2458, 0.0
        %v2995 = vmax.f32 %v2460, 0.0
        %v2996 = vmax.f32 %v2684, 0.0
        %v2997 = vmax.f32 %v2686, 0.0
        %v2998 = vmax.f32 %v2910, 0.0
        %v2999 = vmax.f32 %v2912, 0.0
        %v3000 = vmax.f32 %v2462, 0.0
        %v3001 = vmax.f32 %v2464, 0.0
        %v3002 = vmax.f32 %v2688, 0.0
        %v3003 = vmax.f32 %v2690, 0.0
        %v3004 = vmax.f32 %v2914, 0.0
        %v3005 = vmax.f32 %v2916, 0.0
        %v3006 = vmax.f32 %v2468, 0.0
        %v3007 = vmax.f32 %v2470, 0.0
        %v3008 = vmax.f32 %v2694, 0.0
        %v3009 = vmax.f32 %v2696, 0.0
        %v3010 = vmax.f32 %v2920, 0.0
        %v3011 = vmax.f32 %v2922, 0.0
        %v3012 = vmax.f32 %v2472, 0.0
        %v3013 = vmax.f32 %v2474, 0.0
        %v3014 = vmax.f32 %v2698, 0.0
        %v3015 = vmax.f32 %v2700, 0.0
        %v3016 = vmax.f32 %v2924, 0.0
        %v3017 = vmax.f32 %v2926, 0.0
        %v3018 = vmax.f32 %v2478, 0.0
        %v3019 = vmax.f32 %v2480, 0.0
        %v3020 = vmax.f32 %v2704, 0.0
        %v3021 = vmax.f32 %v2706, 0.0
        %v3022 = vmax.f32 %v2930, 0.0
        %v3023 = vmax.f32 %v2932, 0.0
        %v3024 = vmax.f32 %v2482, 0.0
        %v3025 = vmax.f32 %v2484, 0.0
        %v3026 = vmax.f32 %v2708, 0.0
        %v3027 = vmax.f32 %v2710, 0.0
        %v3028 = vmax.f32 %v2934, 0.0
        %v3029 = vmax.f32 %v2936, 0.0
        %v3030 = vmax.f32 %v2488, 0.0
        %v3031 = vmax.f32 %v2490, 0.0
        %v3032 = vmax.f32 %v2714, 0.0
        %v3033 = vmax.f32 %v2716, 0.0
        %v3034 = vmax.f32 %v2940, 0.0
        %v3035 = vmax.f32 %v2942, 0.0
        %v3036 = vmax.f32 %v2492, 0.0
        %v3037 = vmax.f32 %v2494, 0.0
        %v3038 = vmax.f32 %v2718, 0.0
        %v3039 = vmax.f32 %v2720, 0.0
        %v3040 = vmax.f32 %v2944, 0.0
        %v3041 = vmax.f32 %v2946, 0.0
        %v3042 = vmax.f32 %v2498, 0.0
        %v3043 = vmax.f32 %v2500, 0.0
        %v3044 = vmax.f32 %v2724, 0.0
        %v3045 = vmax.f32 %v2726, 0.0
        %v3046 = vmax.f32 %v2950, 0.0
        %v3047 = vmax.f32 %v2952, 0.0
        %v3048 = vmax.f32 %v2502, 0.0
        %v3049 = vmax.f32 %v2504, 0.0
        %v3050 = vmax.f32 %v2728, 0.0
        %v3051 = vmax.f32 %v2730, 0.0
        %v3052 = vmax.f32 %v2954, 0.0
        %v3053 = vmax.f32 %v2956, 0.0
        %v3054 = vpack.c.bf16 %v2964, %v2958
        %v3055 = vpack.c.bf16 %v2965, %v2959
        %v3056 = vpack.c.bf16 %v2966, %v2960
        %v3057 = vpack.c.bf16 %v2967, %v2961
        %v3058 = vpack.c.bf16 %v2968, %v2962
        %v3059 = vpack.c.bf16 %v2969, %v2963
        %v3060 = vpack.c.bf16 %v2976, %v2970
        %v3061 = vpack.c.bf16 %v2977, %v2971
        %v3062 = vpack.c.bf16 %v2978, %v2972
        %v3063 = vpack.c.bf16 %v2979, %v2973
        %v3064 = vpack.c.bf16 %v2980, %v2974
        %v3065 = vpack.c.bf16 %v2981, %v2975
        %v3066 = vpack.c.bf16 %v2988, %v2982
        %v3067 = vpack.c.bf16 %v2989, %v2983
        %v3068 = vpack.c.bf16 %v2990, %v2984
        %v3069 = vpack.c.bf16 %v2991, %v2985
        %v3070 = vpack.c.bf16 %v2992, %v2986
        %v3071 = vpack.c.bf16 %v2993, %v2987
        %v3072 = vpack.c.bf16 %v3000, %v2994
        %v3073 = vpack.c.bf16 %v3001, %v2995
        %v3074 = vpack.c.bf16 %v3002, %v2996
        %v3075 = vpack.c.bf16 %v3003, %v2997
        %v3076 = vpack.c.bf16 %v3004, %v2998
        %v3077 = vpack.c.bf16 %v3005, %v2999
        %v3078 = vpack.c.bf16 %v3012, %v3006
        %v3079 = vpack.c.bf16 %v3013, %v3007
        %v3080 = vpack.c.bf16 %v3014, %v3008
        %v3081 = vpack.c.bf16 %v3015, %v3009
        %v3082 = vpack.c.bf16 %v3016, %v3010
        %v3083 = vpack.c.bf16 %v3017, %v3011
        %v3084 = vpack.c.bf16 %v3024, %v3018
        %v3085 = vpack.c.bf16 %v3025, %v3019
        %v3086 = vpack.c.bf16 %v3026, %v3020
        %v3087 = vpack.c.bf16 %v3027, %v3021
        %v3088 = vpack.c.bf16 %v3028, %v3022
        %v3089 = vpack.c.bf16 %v3029, %v3023
        %v3090 = vpack.c.bf16 %v3036, %v3030
        %v3091 = vpack.c.bf16 %v3037, %v3031
        %v3092 = vpack.c.bf16 %v3038, %v3032
        %v3093 = vpack.c.bf16 %v3039, %v3033
        %v3094 = vpack.c.bf16 %v3040, %v3034
        %v3095 = vpack.c.bf16 %v3041, %v3035
        %v3096 = vpack.c.bf16 %v3048, %v3042
        %v3097 = vpack.c.bf16 %v3049, %v3043
        %v3098 = vpack.c.bf16 %v3050, %v3044
        %v3099 = vpack.c.bf16 %v3051, %v3045
        %v3100 = vpack.c.bf16 %v3052, %v3046
        %v3101 = vpack.c.bf16 %v3053, %v3047
        %v3102 = vld [vmem:[#allocation6] sm:$0xf]
        %v3103 = vld [vmem:[#allocation6 + $0x4] sm:$0xf]
        %v3104 = vld [vmem:[#allocation6 + $0x8] sm:$0xf]
        %v3105 = vld [vmem:[#allocation6 + $0xc] sm:$0xf]
        %v3106 = vld [vmem:[#allocation6 + $0x10] sm:$0xf]
        %v3107 = vld [vmem:[#allocation6 + $0x14] sm:$0xf]
        %v3108 = vld [vmem:[#allocation6 + $0x18] sm:$0xf]
        %v3109 = vld [vmem:[#allocation6 + $0x1c] sm:$0xf]
        %v3110 = vld [vmem:[#allocation6 + $0x20] sm:$0xf]
        %v3111 = vld [vmem:[#allocation6 + $0x24] sm:$0xf]
        %v3112 = vld [vmem:[#allocation6 + $0x28] sm:$0xf]
        %v3113 = vld [vmem:[#allocation6 + $0x2c] sm:$0xf]
        %v3114 = vld [vmem:[#allocation6 + $0x30] sm:$0xf]
        %v3115 = vld [vmem:[#allocation6 + $0x34] sm:$0xf]
        %v3116 = vld [vmem:[#allocation6 + $0x38] sm:$0xf]
        %v3117 = vld [vmem:[#allocation6 + $0x3c] sm:$0xf]
        %v3118 = vld [vmem:[#allocation6 + $0x40] sm:$0xf]
        %v3119 = vld [vmem:[#allocation6 + $0x44] sm:$0xf]
        %v3120 = vld [vmem:[#allocation6 + $0x48] sm:$0xf]
        %v3121 = vld [vmem:[#allocation6 + $0x4c] sm:$0xf]
        %v3122 = vld [vmem:[#allocation6 + $0x50] sm:$0xf]
        %v3123 = vld [vmem:[#allocation6 + $0x54] sm:$0xf]
        %v3124 = vld [vmem:[#allocation6 + $0x58] sm:$0xf]
        %v3125 = vld [vmem:[#allocation6 + $0x5c] sm:$0xf]
        %v3126 = vld [vmem:[#allocation6 + $0x60] sm:$0xf]
        %v3127 = vld [vmem:[#allocation6 + $0x64] sm:$0xf]
        %v3128 = vld [vmem:[#allocation6 + $0x68] sm:$0xf]
        %v3129 = vld [vmem:[#allocation6 + $0x6c] sm:$0xf]
        %v3130 = vld [vmem:[#allocation6 + $0x70] sm:$0xf]
        %v3131 = vld [vmem:[#allocation6 + $0x74] sm:$0xf]
        %v3132 = vld [vmem:[#allocation6 + $0x78] sm:$0xf]
        %v3133 = vld [vmem:[#allocation6 + $0x7c] sm:$0xf]
        %v3134 = vld [vmem:[#allocation6 + $0x80] sm:$0xf]
        %v3135 = vld [vmem:[#allocation6 + $0x84] sm:$0xf]
        %v3136 = vld [vmem:[#allocation6 + $0x88] sm:$0xf]
        %v3137 = vld [vmem:[#allocation6 + $0x8c] sm:$0xf]
        %v3138 = vld [vmem:[#allocation6 + $0x90] sm:$0xf]
        %v3139 = vld [vmem:[#allocation6 + $0x94] sm:$0xf]
        %v3140 = vld [vmem:[#allocation6 + $0x98] sm:$0xf]
        %v3141 = vld [vmem:[#allocation6 + $0x9c] sm:$0xf]
        %v3142 = vld [vmem:[#allocation6 + $0xa0] sm:$0xf]
        %v3143 = vld [vmem:[#allocation6 + $0xa4] sm:$0xf]
        %v3144 = vld [vmem:[#allocation6 + $0xa8] sm:$0xf]
        %v3145 = vld [vmem:[#allocation6 + $0xac] sm:$0xf]
        %v3146 = vld [vmem:[#allocation6 + $0xb0] sm:$0xf]
        %v3147 = vld [vmem:[#allocation6 + $0xb4] sm:$0xf]
        %v3148 = vld [vmem:[#allocation6 + $0xb8] sm:$0xf]
        %v3149 = vld [vmem:[#allocation6 + $0xbc] sm:$0xf]
        %v3150 = vld [vmem:[#allocation6 + $0xc0] sm:$0xf]
        %v3151 = vld [vmem:[#allocation6 + $0xc4] sm:$0xf]
        %v3152 = vld [vmem:[#allocation6 + $0xc8] sm:$0xf]
        %v3153 = vld [vmem:[#allocation6 + $0xcc] sm:$0xf]
        %v3154 = vld [vmem:[#allocation6 + $0xd0] sm:$0xf]
        %v3155 = vld [vmem:[#allocation6 + $0xd4] sm:$0xf]
        %v3156 = vld [vmem:[#allocation6 + $0xd8] sm:$0xf]
        %v3157 = vld [vmem:[#allocation6 + $0xdc] sm:$0xf]
        %v3158 = vld [vmem:[#allocation6 + $0xe0] sm:$0xf]
        %v3159 = vld [vmem:[#allocation6 + $0xe4] sm:$0xf]
        %v3160 = vld [vmem:[#allocation6 + $0xe8] sm:$0xf]
        %v3161 = vld [vmem:[#allocation6 + $0xec] sm:$0xf]
        %v3162 = vld [vmem:[#allocation6 + $0xf0] sm:$0xf]
        %v3163 = vld [vmem:[#allocation6 + $0xf4] sm:$0xf]
        %v3164 = vld [vmem:[#allocation6 + $0xf8] sm:$0xf]
        %v3165 = vld [vmem:[#allocation6 + $0xfc] sm:$0xf]
        %v3166 = vld [vmem:[#allocation6 + $0x100] sm:$0xf]
        %v3167 = vld [vmem:[#allocation6 + $0x104] sm:$0xf]
        %v3168 = vld [vmem:[#allocation6 + $0x108] sm:$0xf]
        %v3169 = vld [vmem:[#allocation6 + $0x10c] sm:$0xf]
        %v3170 = vld [vmem:[#allocation6 + $0x110] sm:$0xf]
        %v3171 = vld [vmem:[#allocation6 + $0x114] sm:$0xf]
        %v3172 = vld [vmem:[#allocation6 + $0x118] sm:$0xf]
        %v3173 = vld [vmem:[#allocation6 + $0x11c] sm:$0xf]
        %v3174 = vld [vmem:[#allocation6 + $0x120] sm:$0xf]
        %v3175 = vld [vmem:[#allocation6 + $0x124] sm:$0xf]
        %v3176 = vld [vmem:[#allocation6 + $0x128] sm:$0xf]
        %v3177 = vld [vmem:[#allocation6 + $0x12c] sm:$0xf]
        %v3178 = vld [vmem:[#allocation6 + $0x130] sm:$0xf]
        %v3179 = vld [vmem:[#allocation6 + $0x134] sm:$0xf]
        %v3180 = vld [vmem:[#allocation6 + $0x138] sm:$0xf]
        %v3181 = vld [vmem:[#allocation6 + $0x13c] sm:$0xf]
        %v3182 = vld [vmem:[#allocation6 + $0x140] sm:$0xf]
        %v3183 = vld [vmem:[#allocation6 + $0x144] sm:$0xf]
        %v3184 = vld [vmem:[#allocation6 + $0x148] sm:$0xf]
        %v3185 = vld [vmem:[#allocation6 + $0x14c] sm:$0xf]
        %v3186 = vld [vmem:[#allocation6 + $0x150] sm:$0xf]
        %v3187 = vld [vmem:[#allocation6 + $0x154] sm:$0xf]
        %v3188 = vld [vmem:[#allocation6 + $0x158] sm:$0xf]
        %v3189 = vld [vmem:[#allocation6 + $0x15c] sm:$0xf]
        %v3190 = vld [vmem:[#allocation6 + $0x160] sm:$0xf]
        %v3191 = vld [vmem:[#allocation6 + $0x164] sm:$0xf]
        %v3192 = vld [vmem:[#allocation6 + $0x168] sm:$0xf]
        %v3193 = vld [vmem:[#allocation6 + $0x16c] sm:$0xf]
        %v3194 = vld [vmem:[#allocation6 + $0x170] sm:$0xf]
        %v3195 = vld [vmem:[#allocation6 + $0x174] sm:$0xf]
        %v3196 = vld [vmem:[#allocation6 + $0x178] sm:$0xf]
        %v3197 = vld [vmem:[#allocation6 + $0x17c] sm:$0xf]
        %v3294 = vunpack.c.l.b16 %v3102
        %v3295 = vunpack.c.l.b16 %v3103
        %v3296 = vunpack.c.l.b16 %v3104
        %v3297 = vunpack.c.l.b16 %v3105
        %v3298 = vunpack.c.l.b16 %v3106
        %v3299 = vunpack.c.l.b16 %v3107
        %v3300 = vunpack.c.l.b16 %v3108
        %v3301 = vunpack.c.l.b16 %v3109
        %v3302 = vunpack.c.l.b16 %v3110
        %v3303 = vunpack.c.l.b16 %v3111
        %v3304 = vunpack.c.l.b16 %v3112
        %v3305 = vunpack.c.l.b16 %v3113
        %v3306 = vunpack.c.l.b16 %v3114
        %v3307 = vunpack.c.l.b16 %v3115
        %v3308 = vunpack.c.l.b16 %v3116
        %v3309 = vunpack.c.l.b16 %v3117
        %v3310 = vunpack.c.l.b16 %v3118
        %v3311 = vunpack.c.l.b16 %v3119
        %v3312 = vunpack.c.l.b16 %v3120
        %v3313 = vunpack.c.l.b16 %v3121
        %v3314 = vunpack.c.l.b16 %v3122
        %v3315 = vunpack.c.l.b16 %v3123
        %v3316 = vunpack.c.l.b16 %v3124
        %v3317 = vunpack.c.l.b16 %v3125
        %v3318 = vunpack.c.l.b16 %v3126
        %v3319 = vunpack.c.l.b16 %v3127
        %v3320 = vunpack.c.l.b16 %v3128
        %v3321 = vunpack.c.l.b16 %v3129
        %v3322 = vunpack.c.l.b16 %v3130
        %v3323 = vunpack.c.l.b16 %v3131
        %v3324 = vunpack.c.l.b16 %v3132
        %v3325 = vunpack.c.l.b16 %v3133
        %v3326 = vunpack.c.l.b16 %v3134
        %v3327 = vunpack.c.l.b16 %v3135
        %v3328 = vunpack.c.l.b16 %v3136
        %v3329 = vunpack.c.l.b16 %v3137
        %v3330 = vunpack.c.l.b16 %v3138
        %v3331 = vunpack.c.l.b16 %v3139
        %v3332 = vunpack.c.l.b16 %v3140
        %v3333 = vunpack.c.l.b16 %v3141
        %v3334 = vunpack.c.l.b16 %v3142
        %v3335 = vunpack.c.l.b16 %v3143
        %v3336 = vunpack.c.l.b16 %v3144
        %v3337 = vunpack.c.l.b16 %v3145
        %v3338 = vunpack.c.l.b16 %v3146
        %v3339 = vunpack.c.l.b16 %v3147
        %v3340 = vunpack.c.l.b16 %v3148
        %v3341 = vunpack.c.l.b16 %v3149
        %v3342 = vunpack.c.l.b16 %v3150
        %v3343 = vunpack.c.l.b16 %v3151
        %v3344 = vunpack.c.l.b16 %v3152
        %v3345 = vunpack.c.l.b16 %v3153
        %v3346 = vunpack.c.l.b16 %v3154
        %v3347 = vunpack.c.l.b16 %v3155
        %v3348 = vunpack.c.l.b16 %v3156
        %v3349 = vunpack.c.l.b16 %v3157
        %v3350 = vunpack.c.l.b16 %v3158
        %v3351 = vunpack.c.l.b16 %v3159
        %v3352 = vunpack.c.l.b16 %v3160
        %v3353 = vunpack.c.l.b16 %v3161
        %v3354 = vunpack.c.l.b16 %v3162
        %v3355 = vunpack.c.l.b16 %v3163
        %v3356 = vunpack.c.l.b16 %v3164
        %v3357 = vunpack.c.l.b16 %v3165
        %v3358 = vunpack.c.l.b16 %v3166
        %v3359 = vunpack.c.l.b16 %v3167
        %v3360 = vunpack.c.l.b16 %v3168
        %v3361 = vunpack.c.l.b16 %v3169
        %v3362 = vunpack.c.l.b16 %v3170
        %v3363 = vunpack.c.l.b16 %v3171
        %v3364 = vunpack.c.l.b16 %v3172
        %v3365 = vunpack.c.l.b16 %v3173
        %v3366 = vunpack.c.l.b16 %v3174
        %v3367 = vunpack.c.l.b16 %v3175
        %v3368 = vunpack.c.l.b16 %v3176
        %v3369 = vunpack.c.l.b16 %v3177
        %v3370 = vunpack.c.l.b16 %v3178
        %v3371 = vunpack.c.l.b16 %v3179
        %v3372 = vunpack.c.l.b16 %v3180
        %v3373 = vunpack.c.l.b16 %v3181
        %v3374 = vunpack.c.l.b16 %v3182
        %v3375 = vunpack.c.l.b16 %v3183
        %v3376 = vunpack.c.l.b16 %v3184
        %v3377 = vunpack.c.l.b16 %v3185
        %v3378 = vunpack.c.l.b16 %v3186
        %v3379 = vunpack.c.l.b16 %v3187
        %v3380 = vunpack.c.l.b16 %v3188
        %v3381 = vunpack.c.l.b16 %v3189
        %v3382 = vunpack.c.l.b16 %v3190
        %v3383 = vunpack.c.l.b16 %v3191
        %v3384 = vunpack.c.l.b16 %v3192
        %v3385 = vunpack.c.l.b16 %v3193
        %v3386 = vunpack.c.l.b16 %v3194
        %v3387 = vunpack.c.l.b16 %v3195
        %v3388 = vunpack.c.l.b16 %v3196
        %v3389 = vunpack.c.l.b16 %v3197
        %v3390 = vpack.c.b16 %v3295, %v3294
        %v3391 = vpack.c.b16 %v3297, %v3296
        %v3392 = vpack.c.b16 %v3299, %v3298
        %v3393 = vpack.c.b16 %v3301, %v3300
        %v3394 = vpack.c.b16 %v3303, %v3302
        %v3395 = vpack.c.b16 %v3305, %v3304
        %v3396 = vpack.c.b16 %v3307, %v3306
        %v3397 = vpack.c.b16 %v3309, %v3308
        %v3398 = vpack.c.b16 %v3311, %v3310
        %v3399 = vpack.c.b16 %v3313, %v3312
        %v3400 = vpack.c.b16 %v3315, %v3314
        %v3401 = vpack.c.b16 %v3317, %v3316
        %v3402 = vpack.c.b16 %v3319, %v3318
        %v3403 = vpack.c.b16 %v3321, %v3320
        %v3404 = vpack.c.b16 %v3323, %v3322
        %v3405 = vpack.c.b16 %v3325, %v3324
        %v3406 = vpack.c.b16 %v3327, %v3326
        %v3407 = vpack.c.b16 %v3329, %v3328
        %v3408 = vpack.c.b16 %v3331, %v3330
        %v3409 = vpack.c.b16 %v3333, %v3332
        %v3410 = vpack.c.b16 %v3335, %v3334
        %v3411 = vpack.c.b16 %v3337, %v3336
        %v3412 = vpack.c.b16 %v3339, %v3338
        %v3413 = vpack.c.b16 %v3341, %v3340
        %v3414 = vpack.c.b16 %v3343, %v3342
        %v3415 = vpack.c.b16 %v3345, %v3344
        %v3416 = vpack.c.b16 %v3347, %v3346
        %v3417 = vpack.c.b16 %v3349, %v3348
        %v3418 = vpack.c.b16 %v3351, %v3350
        %v3419 = vpack.c.b16 %v3353, %v3352
        %v3420 = vpack.c.b16 %v3355, %v3354
        %v3421 = vpack.c.b16 %v3357, %v3356
        %v3422 = vpack.c.b16 %v3359, %v3358
        %v3423 = vpack.c.b16 %v3361, %v3360
        %v3424 = vpack.c.b16 %v3363, %v3362
        %v3425 = vpack.c.b16 %v3365, %v3364
        %v3426 = vpack.c.b16 %v3367, %v3366
        %v3427 = vpack.c.b16 %v3369, %v3368
        %v3428 = vpack.c.b16 %v3371, %v3370
        %v3429 = vpack.c.b16 %v3373, %v3372
        %v3430 = vpack.c.b16 %v3375, %v3374
        %v3431 = vpack.c.b16 %v3377, %v3376
        %v3432 = vpack.c.b16 %v3379, %v3378
        %v3433 = vpack.c.b16 %v3381, %v3380
        %v3434 = vpack.c.b16 %v3383, %v3382
        %v3435 = vpack.c.b16 %v3385, %v3384
        %v3436 = vpack.c.b16 %v3387, %v3386
        %v3437 = vpack.c.b16 %v3389, %v3388
        %3486 = vmatprep.subr.bf16.mxu0 0
        %3487 = vmatpush1.bf16.msra.mxu0 %v3397
        %3488 = vmatprep.subr.bf16.mxu0 0
        %3489 = vmatpush1.bf16.msra.mxu0 %v3396
        %3490 = vmatprep.subr.bf16.mxu0 0
        %3491 = vmatpush1.bf16.msra.mxu0 %v3395
        %3492 = vmatprep.subr.bf16.mxu0 0
        %3493 = vmatpush1.bf16.msra.mxu0 %v3394
        %3494 = vmatprep.subr.bf16.mxu0 0
        %3495 = vmatpush1.bf16.msra.mxu0 %v3393
        %3496 = vmatprep.subr.bf16.mxu0 0
        %3497 = vmatpush1.bf16.msra.mxu0 %v3392
        %3498 = vmatprep.subr.bf16.mxu0 0
        %3499 = vmatpush1.bf16.msra.mxu0 %v3391
        %3500 = vmatprep.subr.bf16.mxu0 0
        %3501 = vmatpush1.bf16.msra.mxu0 %v3390
        %3502 = vmatprep.subr.bf16.mxu0 0
        %3503 = vmatpush2.bf16.msra.mxu0 %v3405
        %3504 = vmatprep.subr.bf16.mxu0 0
        %3505 = vmatpush2.bf16.msra.mxu0 %v3404
        %3506 = vmatprep.subr.bf16.mxu0 0
        %3507 = vmatpush2.bf16.msra.mxu0 %v3403
        %3508 = vmatprep.subr.bf16.mxu0 0
        %3509 = vmatpush2.bf16.msra.mxu0 %v3402
        %3510 = vmatprep.subr.bf16.mxu0 0
        %3511 = vmatpush2.bf16.msra.mxu0 %v3401
        %3512 = vmatprep.subr.bf16.mxu0 0
        %3513 = vmatpush2.bf16.msra.mxu0 %v3400
        %3514 = vmatprep.subr.bf16.mxu0 0
        %3515 = vmatpush2.bf16.msra.mxu0 %v3399
        %3516 = vmatprep.subr.bf16.mxu0 0
        %3517 = vmatpush2.bf16.msra.mxu0 %v3398
        %3518 = vmatprep.mubr.bf16.mxu0 %v3055
        %3519 = vmatmul.mubr.bf16.gmra.mxu0 %v3054
        %v3520 = vpop.f32.mrf.mxu0
        %v3521 = vadd.f32 0.0, %v3520
        %v3522 = vpop.f32.mrf.mxu0
        %v3523 = vpop.f32.mrf.mxu0
        %v3524 = vadd.f32 0.0, %v3523
        %v3525 = vpop.f32.mrf.mxu0
        %3526 = vmatprep.mubr.bf16.mxu0 %v3061
        %3527 = vmatmul.mubr.bf16.gmra.mxu0 %v3060
        %v3528 = vpop.f32.mrf.mxu0
        %v3529 = vadd.f32 0.0, %v3528
        %v3530 = vpop.f32.mrf.mxu0
        %v3531 = vpop.f32.mrf.mxu0
        %v3532 = vadd.f32 0.0, %v3531
        %v3533 = vpop.f32.mrf.mxu0
        %3534 = vmatprep.mubr.bf16.mxu0 %v3067
        %3535 = vmatmul.mubr.bf16.gmra.mxu0 %v3066
        %v3536 = vpop.f32.mrf.mxu0
        %v3537 = vadd.f32 0.0, %v3536
        %v3538 = vpop.f32.mrf.mxu0
        %v3539 = vpop.f32.mrf.mxu0
        %v3540 = vadd.f32 0.0, %v3539
        %v3541 = vpop.f32.mrf.mxu0
        %3542 = vmatprep.mubr.bf16.mxu0 %v3073
        %3543 = vmatmul.mubr.bf16.gmra.mxu0 %v3072
        %v3544 = vpop.f32.mrf.mxu0
        %v3545 = vadd.f32 0.0, %v3544
        %v3546 = vpop.f32.mrf.mxu0
        %v3547 = vpop.f32.mrf.mxu0
        %v3548 = vadd.f32 0.0, %v3547
        %v3549 = vpop.f32.mrf.mxu0
        %3550 = vmatprep.mubr.bf16.mxu0 %v3079
        %3551 = vmatmul.mubr.bf16.gmra.mxu0 %v3078
        %v3552 = vpop.f32.mrf.mxu0
        %v3553 = vadd.f32 0.0, %v3552
        %v3554 = vpop.f32.mrf.mxu0
        %v3555 = vpop.f32.mrf.mxu0
        %v3556 = vadd.f32 0.0, %v3555
        %v3557 = vpop.f32.mrf.mxu0
        %3558 = vmatprep.mubr.bf16.mxu0 %v3085
        %3559 = vmatmul.mubr.bf16.gmra.mxu0 %v3084
        %v3560 = vpop.f32.mrf.mxu0
        %v3561 = vadd.f32 0.0, %v3560
        %v3562 = vpop.f32.mrf.mxu0
        %v3563 = vpop.f32.mrf.mxu0
        %v3564 = vadd.f32 0.0, %v3563
        %v3565 = vpop.f32.mrf.mxu0
        %3566 = vmatprep.mubr.bf16.mxu0 %v3091
        %3567 = vmatmul.mubr.bf16.gmra.mxu0 %v3090
        %v3568 = vpop.f32.mrf.mxu0
        %v3569 = vadd.f32 0.0, %v3568
        %v3570 = vpop.f32.mrf.mxu0
        %v3571 = vpop.f32.mrf.mxu0
        %v3572 = vadd.f32 0.0, %v3571
        %v3573 = vpop.f32.mrf.mxu0
        %3574 = vmatprep.mubr.bf16.mxu0 %v3097
        %3575 = vmatmul.mubr.bf16.gmra.mxu0 %v3096
        %v3576 = vpop.f32.mrf.mxu0
        %v3577 = vadd.f32 0.0, %v3576
        %v3578 = vpop.f32.mrf.mxu0
        %v3579 = vpop.f32.mrf.mxu0
        %v3580 = vadd.f32 0.0, %v3579
        %v3581 = vpop.f32.mrf.mxu0
        %3582 = vdwg.mxu0
        %3583 = vmatprep.subr.bf16.mxu0 0
        %3584 = vmatpush1.bf16.msra.mxu0 %v3413
        %3585 = vmatprep.subr.bf16.mxu0 0
        %3586 = vmatpush1.bf16.msra.mxu0 %v3412
        %3587 = vmatprep.subr.bf16.mxu0 0
        %3588 = vmatpush1.bf16.msra.mxu0 %v3411
        %3589 = vmatprep.subr.bf16.mxu0 0
        %3590 = vmatpush1.bf16.msra.mxu0 %v3410
        %3591 = vmatprep.subr.bf16.mxu0 0
        %3592 = vmatpush1.bf16.msra.mxu0 %v3409
        %3593 = vmatprep.subr.bf16.mxu0 0
        %3594 = vmatpush1.bf16.msra.mxu0 %v3408
        %3595 = vmatprep.subr.bf16.mxu0 0
        %3596 = vmatpush1.bf16.msra.mxu0 %v3407
        %3597 = vmatprep.subr.bf16.mxu0 0
        %3598 = vmatpush1.bf16.msra.mxu0 %v3406
        %3599 = vmatprep.subr.bf16.mxu0 0
        %3600 = vmatpush2.bf16.msra.mxu0 %v3421
        %3601 = vmatprep.subr.bf16.mxu0 0
        %3602 = vmatpush2.bf16.msra.mxu0 %v3420
        %3603 = vmatprep.subr.bf16.mxu0 0
        %3604 = vmatpush2.bf16.msra.mxu0 %v3419
        %3605 = vmatprep.subr.bf16.mxu0 0
        %3606 = vmatpush2.bf16.msra.mxu0 %v3418
        %3607 = vmatprep.subr.bf16.mxu0 0
        %3608 = vmatpush2.bf16.msra.mxu0 %v3417
        %3609 = vmatprep.subr.bf16.mxu0 0
        %3610 = vmatpush2.bf16.msra.mxu0 %v3416
        %3611 = vmatprep.subr.bf16.mxu0 0
        %3612 = vmatpush2.bf16.msra.mxu0 %v3415
        %3613 = vmatprep.subr.bf16.mxu0 0
        %3614 = vmatpush2.bf16.msra.mxu0 %v3414
        %3615 = vmatprep.mubr.bf16.mxu0 %v3057
        %3616 = vmatmul.mubr.bf16.gmra.mxu0 %v3056
        %v3617 = vpop.f32.mrf.mxu0
        %v3618 = vadd.f32 %v3521, %v3617
        %v3619 = vpop.f32.mrf.mxu0
        %v3620 = vpop.f32.mrf.mxu0
        %v3621 = vadd.f32 %v3524, %v3620
        %v3622 = vpop.f32.mrf.mxu0
        %3623 = vmatprep.mubr.bf16.mxu0 %v3063
        %3624 = vmatmul.mubr.bf16.gmra.mxu0 %v3062
        %v3625 = vpop.f32.mrf.mxu0
        %v3626 = vadd.f32 %v3529, %v3625
        %v3627 = vpop.f32.mrf.mxu0
        %v3628 = vpop.f32.mrf.mxu0
        %v3629 = vadd.f32 %v3532, %v3628
        %v3630 = vpop.f32.mrf.mxu0
        %3631 = vmatprep.mubr.bf16.mxu0 %v3069
        %3632 = vmatmul.mubr.bf16.gmra.mxu0 %v3068
        %v3633 = vpop.f32.mrf.mxu0
        %v3634 = vadd.f32 %v3537, %v3633
        %v3635 = vpop.f32.mrf.mxu0
        %v3636 = vpop.f32.mrf.mxu0
        %v3637 = vadd.f32 %v3540, %v3636
        %v3638 = vpop.f32.mrf.mxu0
        %3639 = vmatprep.mubr.bf16.mxu0 %v3075
        %3640 = vmatmul.mubr.bf16.gmra.mxu0 %v3074
        %v3641 = vpop.f32.mrf.mxu0
        %v3642 = vadd.f32 %v3545, %v3641
        %v3643 = vpop.f32.mrf.mxu0
        %v3644 = vpop.f32.mrf.mxu0
        %v3645 = vadd.f32 %v3548, %v3644
        %v3646 = vpop.f32.mrf.mxu0
        %3647 = vmatprep.mubr.bf16.mxu0 %v3081
        %3648 = vmatmul.mubr.bf16.gmra.mxu0 %v3080
        %v3649 = vpop.f32.mrf.mxu0
        %v3650 = vadd.f32 %v3553, %v3649
        %v3651 = vpop.f32.mrf.mxu0
        %v3652 = vpop.f32.mrf.mxu0
        %v3653 = vadd.f32 %v3556, %v3652
        %v3654 = vpop.f32.mrf.mxu0
        %3655 = vmatprep.mubr.bf16.mxu0 %v3087
        %3656 = vmatmul.mubr.bf16.gmra.mxu0 %v3086
        %v3657 = vpop.f32.mrf.mxu0
        %v3658 = vadd.f32 %v3561, %v3657
        %v3659 = vpop.f32.mrf.mxu0
        %v3660 = vpop.f32.mrf.mxu0
        %v3661 = vadd.f32 %v3564, %v3660
        %v3662 = vpop.f32.mrf.mxu0
        %3663 = vmatprep.mubr.bf16.mxu0 %v3093
        %3664 = vmatmul.mubr.bf16.gmra.mxu0 %v3092
        %v3665 = vpop.f32.mrf.mxu0
        %v3666 = vadd.f32 %v3569, %v3665
        %v3667 = vpop.f32.mrf.mxu0
        %v3668 = vpop.f32.mrf.mxu0
        %v3669 = vadd.f32 %v3572, %v3668
        %v3670 = vpop.f32.mrf.mxu0
        %3671 = vmatprep.mubr.bf16.mxu0 %v3099
        %3672 = vmatmul.mubr.bf16.gmra.mxu0 %v3098
        %v3673 = vpop.f32.mrf.mxu0
        %v3674 = vadd.f32 %v3577, %v3673
        %v3675 = vpop.f32.mrf.mxu0
        %v3676 = vpop.f32.mrf.mxu0
        %v3677 = vadd.f32 %v3580, %v3676
        %v3678 = vpop.f32.mrf.mxu0
        %3679 = vdwg.mxu0
        %3680 = vmatprep.subr.bf16.mxu0 0
        %3681 = vmatpush1.bf16.msra.mxu0 %v3429
        %3682 = vmatprep.subr.bf16.mxu0 0
        %3683 = vmatpush1.bf16.msra.mxu0 %v3428
        %3684 = vmatprep.subr.bf16.mxu0 0
        %3685 = vmatpush1.bf16.msra.mxu0 %v3427
        %3686 = vmatprep.subr.bf16.mxu0 0
        %3687 = vmatpush1.bf16.msra.mxu0 %v3426
        %3688 = vmatprep.subr.bf16.mxu0 0
        %3689 = vmatpush1.bf16.msra.mxu0 %v3425
        %3690 = vmatprep.subr.bf16.mxu0 0
        %3691 = vmatpush1.bf16.msra.mxu0 %v3424
        %3692 = vmatprep.subr.bf16.mxu0 0
        %3693 = vmatpush1.bf16.msra.mxu0 %v3423
        %3694 = vmatprep.subr.bf16.mxu0 0
        %3695 = vmatpush1.bf16.msra.mxu0 %v3422
        %3696 = vmatprep.subr.bf16.mxu0 0
        %3697 = vmatpush2.bf16.msra.mxu0 %v3437
        %3698 = vmatprep.subr.bf16.mxu0 0
        %3699 = vmatpush2.bf16.msra.mxu0 %v3436
        %3700 = vmatprep.subr.bf16.mxu0 0
        %3701 = vmatpush2.bf16.msra.mxu0 %v3435
        %3702 = vmatprep.subr.bf16.mxu0 0
        %3703 = vmatpush2.bf16.msra.mxu0 %v3434
        %3704 = vmatprep.subr.bf16.mxu0 0
        %3705 = vmatpush2.bf16.msra.mxu0 %v3433
        %3706 = vmatprep.subr.bf16.mxu0 0
        %3707 = vmatpush2.bf16.msra.mxu0 %v3432
        %3708 = vmatprep.subr.bf16.mxu0 0
        %3709 = vmatpush2.bf16.msra.mxu0 %v3431
        %3710 = vmatprep.subr.bf16.mxu0 0
        %3711 = vmatpush2.bf16.msra.mxu0 %v3430
        %3712 = vmatprep.mubr.bf16.mxu0 %v3059
        %3713 = vmatmul.mubr.bf16.gmra.mxu0 %v3058
        %v3714 = vpop.f32.mrf.mxu0
        %v3715 = vadd.f32 %v3618, %v3714
        %v3716 = vpop.f32.mrf.mxu0
        %v3717 = vpop.f32.mrf.mxu0
        %v3718 = vadd.f32 %v3621, %v3717
        %v3719 = vpop.f32.mrf.mxu0
        %3720 = vmatprep.mubr.bf16.mxu0 %v3065
        %3721 = vmatmul.mubr.bf16.gmra.mxu0 %v3064
        %v3722 = vpop.f32.mrf.mxu0
        %v3723 = vadd.f32 %v3626, %v3722
        %v3724 = vpop.f32.mrf.mxu0
        %v3725 = vpop.f32.mrf.mxu0
        %v3726 = vadd.f32 %v3629, %v3725
        %v3727 = vpop.f32.mrf.mxu0
        %3728 = vmatprep.mubr.bf16.mxu0 %v3071
        %3729 = vmatmul.mubr.bf16.gmra.mxu0 %v3070
        %v3730 = vpop.f32.mrf.mxu0
        %v3731 = vadd.f32 %v3634, %v3730
        %v3732 = vpop.f32.mrf.mxu0
        %v3733 = vpop.f32.mrf.mxu0
        %v3734 = vadd.f32 %v3637, %v3733
        %v3735 = vpop.f32.mrf.mxu0
        %3736 = vmatprep.mubr.bf16.mxu0 %v3077
        %3737 = vmatmul.mubr.bf16.gmra.mxu0 %v3076
        %v3738 = vpop.f32.mrf.mxu0
        %v3739 = vadd.f32 %v3642, %v3738
        %v3740 = vpop.f32.mrf.mxu0
        %v3741 = vpop.f32.mrf.mxu0
        %v3742 = vadd.f32 %v3645, %v3741
        %v3743 = vpop.f32.mrf.mxu0
        %3744 = vmatprep.mubr.bf16.mxu0 %v3083
        %3745 = vmatmul.mubr.bf16.gmra.mxu0 %v3082
        %v3746 = vpop.f32.mrf.mxu0
        %v3747 = vadd.f32 %v3650, %v3746
        %v3748 = vpop.f32.mrf.mxu0
        %v3749 = vpop.f32.mrf.mxu0
        %v3750 = vadd.f32 %v3653, %v3749
        %v3751 = vpop.f32.mrf.mxu0
        %3752 = vmatprep.mubr.bf16.mxu0 %v3089
        %3753 = vmatmul.mubr.bf16.gmra.mxu0 %v3088
        %v3754 = vpop.f32.mrf.mxu0
        %v3755 = vadd.f32 %v3658, %v3754
        %v3756 = vpop.f32.mrf.mxu0
        %v3757 = vpop.f32.mrf.mxu0
        %v3758 = vadd.f32 %v3661, %v3757
        %v3759 = vpop.f32.mrf.mxu0
        %3760 = vmatprep.mubr.bf16.mxu0 %v3095
        %3761 = vmatmul.mubr.bf16.gmra.mxu0 %v3094
        %v3762 = vpop.f32.mrf.mxu0
        %v3763 = vadd.f32 %v3666, %v3762
        %v3764 = vpop.f32.mrf.mxu0
        %v3765 = vpop.f32.mrf.mxu0
        %v3766 = vadd.f32 %v3669, %v3765
        %v3767 = vpop.f32.mrf.mxu0
        %3768 = vmatprep.mubr.bf16.mxu0 %v3101
        %3769 = vmatmul.mubr.bf16.gmra.mxu0 %v3100
        %v3770 = vpop.f32.mrf.mxu0
        %v3771 = vadd.f32 %v3674, %v3770
        %v3772 = vpop.f32.mrf.mxu0
        %v3773 = vpop.f32.mrf.mxu0
        %v3774 = vadd.f32 %v3677, %v3773
        %v3775 = vpop.f32.mrf.mxu0
        %3776 = vdwg.mxu0
        %v3777 = vld [vmem:[%s491] sm:$0xf]
        %v3778 = vld [vmem:[%s491 + $0x4] sm:$0xf]
        %v3779 = vld [vmem:[%s491 + $0x8] sm:$0xf]
        %v3780 = vld [vmem:[%s491 + $0xc] sm:$0xf]
        %v3781 = vld [vmem:[%s491 + $0x10] sm:$0xf]
        %v3782 = vld [vmem:[%s491 + $0x14] sm:$0xf]
        %v3783 = vld [vmem:[%s491 + $0x18] sm:$0xf]
        %v3784 = vld [vmem:[%s491 + $0x1c] sm:$0xf]
        %v3785 = vld [vmem:[%s491 + $0x20] sm:$0xf]
        %v3786 = vld [vmem:[%s491 + $0x24] sm:$0xf]
        %v3787 = vld [vmem:[%s491 + $0x28] sm:$0xf]
        %v3788 = vld [vmem:[%s491 + $0x2c] sm:$0xf]
        %v3789 = vld [vmem:[%s491 + $0x30] sm:$0xf]
        %v3790 = vld [vmem:[%s491 + $0x34] sm:$0xf]
        %v3791 = vld [vmem:[%s491 + $0x38] sm:$0xf]
        %v3792 = vld [vmem:[%s491 + $0x3c] sm:$0xf]
        %v3793 = vld [vmem:[%s491 + $0x40] sm:$0xf]
        %v3794 = vld [vmem:[%s491 + $0x44] sm:$0xf]
        %v3795 = vld [vmem:[%s491 + $0x48] sm:$0xf]
        %v3796 = vld [vmem:[%s491 + $0x4c] sm:$0xf]
        %v3797 = vld [vmem:[%s491 + $0x50] sm:$0xf]
        %v3798 = vld [vmem:[%s491 + $0x54] sm:$0xf]
        %v3799 = vld [vmem:[%s491 + $0x58] sm:$0xf]
        %v3800 = vld [vmem:[%s491 + $0x5c] sm:$0xf]
        %v3801 = vld [vmem:[%s491 + $0x60] sm:$0xf]
        %v3802 = vld [vmem:[%s491 + $0x64] sm:$0xf]
        %v3803 = vld [vmem:[%s491 + $0x68] sm:$0xf]
        %v3804 = vld [vmem:[%s491 + $0x6c] sm:$0xf]
        %v3805 = vld [vmem:[%s491 + $0x70] sm:$0xf]
        %v3806 = vld [vmem:[%s491 + $0x74] sm:$0xf]
        %v3807 = vld [vmem:[%s491 + $0x78] sm:$0xf]
        %v3808 = vld [vmem:[%s491 + $0x7c] sm:$0xf]
        %v3809 = vld [vmem:[%s491 + $0x80] sm:$0xf]
        %v3810 = vld [vmem:[%s491 + $0x84] sm:$0xf]
        %v3811 = vld [vmem:[%s491 + $0x88] sm:$0xf]
        %v3812 = vld [vmem:[%s491 + $0x8c] sm:$0xf]
        %v3813 = vld [vmem:[%s491 + $0x90] sm:$0xf]
        %v3814 = vld [vmem:[%s491 + $0x94] sm:$0xf]
        %v3815 = vld [vmem:[%s491 + $0x98] sm:$0xf]
        %v3816 = vld [vmem:[%s491 + $0x9c] sm:$0xf]
        %v3817 = vld [vmem:[%s491 + $0xa0] sm:$0xf]
        %v3818 = vld [vmem:[%s491 + $0xa4] sm:$0xf]
        %v3819 = vld [vmem:[%s491 + $0xa8] sm:$0xf]
        %v3820 = vld [vmem:[%s491 + $0xac] sm:$0xf]
        %v3821 = vld [vmem:[%s491 + $0xb0] sm:$0xf]
        %v3822 = vld [vmem:[%s491 + $0xb4] sm:$0xf]
        %v3823 = vld [vmem:[%s491 + $0xb8] sm:$0xf]
        %v3824 = vld [vmem:[%s491 + $0xbc] sm:$0xf]
        %v3825 = vld [vmem:[%s491 + $0xc0] sm:$0xf]
        %v3826 = vld [vmem:[%s491 + $0xc4] sm:$0xf]
        %v3827 = vld [vmem:[%s491 + $0xc8] sm:$0xf]
        %v3828 = vld [vmem:[%s491 + $0xcc] sm:$0xf]
        %v3829 = vld [vmem:[%s491 + $0xd0] sm:$0xf]
        %v3830 = vld [vmem:[%s491 + $0xd4] sm:$0xf]
        %v3831 = vld [vmem:[%s491 + $0xd8] sm:$0xf]
        %v3832 = vld [vmem:[%s491 + $0xdc] sm:$0xf]
        %v3833 = vld [vmem:[%s491 + $0xe0] sm:$0xf]
        %v3834 = vld [vmem:[%s491 + $0xe4] sm:$0xf]
        %v3835 = vld [vmem:[%s491 + $0xe8] sm:$0xf]
        %v3836 = vld [vmem:[%s491 + $0xec] sm:$0xf]
        %v3837 = vld [vmem:[%s491 + $0xf0] sm:$0xf]
        %v3838 = vld [vmem:[%s491 + $0xf4] sm:$0xf]
        %v3839 = vld [vmem:[%s491 + $0xf8] sm:$0xf]
        %v3840 = vld [vmem:[%s491 + $0xfc] sm:$0xf]
        %v3841 = vld [vmem:[%s491 + $0x100] sm:$0xf]
        %v3842 = vld [vmem:[%s491 + $0x104] sm:$0xf]
        %v3843 = vld [vmem:[%s491 + $0x108] sm:$0xf]
        %v3844 = vld [vmem:[%s491 + $0x10c] sm:$0xf]
        %v3845 = vld [vmem:[%s491 + $0x110] sm:$0xf]
        %v3846 = vld [vmem:[%s491 + $0x114] sm:$0xf]
        %v3847 = vld [vmem:[%s491 + $0x118] sm:$0xf]
        %v3848 = vld [vmem:[%s491 + $0x11c] sm:$0xf]
        %v3849 = vld [vmem:[%s491 + $0x120] sm:$0xf]
        %v3850 = vld [vmem:[%s491 + $0x124] sm:$0xf]
        %v3851 = vld [vmem:[%s491 + $0x128] sm:$0xf]
        %v3852 = vld [vmem:[%s491 + $0x12c] sm:$0xf]
        %v3853 = vld [vmem:[%s491 + $0x130] sm:$0xf]
        %v3854 = vld [vmem:[%s491 + $0x134] sm:$0xf]
        %v3855 = vld [vmem:[%s491 + $0x138] sm:$0xf]
        %v3856 = vld [vmem:[%s491 + $0x13c] sm:$0xf]
        %v3857 = vld [vmem:[%s7] sm:$0x3]
        %v3938 = vunpack.c.l.b16 %v3777
        %v3939 = vunpack.c.l.b16 %v3778
        %v3940 = vunpack.c.l.b16 %v3779
        %v3941 = vunpack.c.l.b16 %v3780
        %v3942 = vunpack.c.l.b16 %v3781
        %v3943 = vunpack.c.l.b16 %v3782
        %v3944 = vunpack.c.l.b16 %v3783
        %v3945 = vunpack.c.l.b16 %v3784
        %v3946 = vunpack.c.l.b16 %v3785
        %v3947 = vunpack.c.l.b16 %v3786
        %v3948 = vunpack.c.l.b16 %v3787
        %v3949 = vunpack.c.l.b16 %v3788
        %v3950 = vunpack.c.l.b16 %v3789
        %v3951 = vunpack.c.l.b16 %v3790
        %v3952 = vunpack.c.l.b16 %v3791
        %v3953 = vunpack.c.l.b16 %v3792
        %v3954 = vunpack.c.l.b16 %v3793
        %v3955 = vunpack.c.l.b16 %v3794
        %v3956 = vunpack.c.l.b16 %v3795
        %v3957 = vunpack.c.l.b16 %v3796
        %v3958 = vunpack.c.l.b16 %v3797
        %v3959 = vunpack.c.l.b16 %v3798
        %v3960 = vunpack.c.l.b16 %v3799
        %v3961 = vunpack.c.l.b16 %v3800
        %v3962 = vunpack.c.l.b16 %v3801
        %v3963 = vunpack.c.l.b16 %v3802
        %v3964 = vunpack.c.l.b16 %v3803
        %v3965 = vunpack.c.l.b16 %v3804
        %v3966 = vunpack.c.l.b16 %v3805
        %v3967 = vunpack.c.l.b16 %v3806
        %v3968 = vunpack.c.l.b16 %v3807
        %v3969 = vunpack.c.l.b16 %v3808
        %v3970 = vunpack.c.l.b16 %v3809
        %v3971 = vunpack.c.l.b16 %v3810
        %v3972 = vunpack.c.l.b16 %v3811
        %v3973 = vunpack.c.l.b16 %v3812
        %v3974 = vunpack.c.l.b16 %v3813
        %v3975 = vunpack.c.l.b16 %v3814
        %v3976 = vunpack.c.l.b16 %v3815
        %v3977 = vunpack.c.l.b16 %v3816
        %v3978 = vunpack.c.l.b16 %v3817
        %v3979 = vunpack.c.l.b16 %v3818
        %v3980 = vunpack.c.l.b16 %v3819
        %v3981 = vunpack.c.l.b16 %v3820
        %v3982 = vunpack.c.l.b16 %v3821
        %v3983 = vunpack.c.l.b16 %v3822
        %v3984 = vunpack.c.l.b16 %v3823
        %v3985 = vunpack.c.l.b16 %v3824
        %v3986 = vunpack.c.l.b16 %v3825
        %v3987 = vunpack.c.l.b16 %v3826
        %v3988 = vunpack.c.l.b16 %v3827
        %v3989 = vunpack.c.l.b16 %v3828
        %v3990 = vunpack.c.l.b16 %v3829
        %v3991 = vunpack.c.l.b16 %v3830
        %v3992 = vunpack.c.l.b16 %v3831
        %v3993 = vunpack.c.l.b16 %v3832
        %v3994 = vunpack.c.l.b16 %v3833
        %v3995 = vunpack.c.l.b16 %v3834
        %v3996 = vunpack.c.l.b16 %v3835
        %v3997 = vunpack.c.l.b16 %v3836
        %v3998 = vunpack.c.l.b16 %v3837
        %v3999 = vunpack.c.l.b16 %v3838
        %v4000 = vunpack.c.l.b16 %v3839
        %v4001 = vunpack.c.l.b16 %v3840
        %v4002 = vunpack.c.l.b16 %v3841
        %v4003 = vunpack.c.l.b16 %v3842
        %v4004 = vunpack.c.l.b16 %v3843
        %v4005 = vunpack.c.l.b16 %v3844
        %v4006 = vunpack.c.l.b16 %v3845
        %v4007 = vunpack.c.l.b16 %v3846
        %v4008 = vunpack.c.l.b16 %v3847
        %v4009 = vunpack.c.l.b16 %v3848
        %v4010 = vunpack.c.l.b16 %v3849
        %v4011 = vunpack.c.l.b16 %v3850
        %v4012 = vunpack.c.l.b16 %v3851
        %v4013 = vunpack.c.l.b16 %v3852
        %v4014 = vunpack.c.l.b16 %v3853
        %v4015 = vunpack.c.l.b16 %v3854
        %v4016 = vunpack.c.l.b16 %v3855
        %v4017 = vunpack.c.l.b16 %v3856
        %v4018 = vpack.c.b16 %v3939, %v3938
        %v4019 = vpack.c.b16 %v3941, %v3940
        %v4020 = vpack.c.b16 %v3943, %v3942
        %v4021 = vpack.c.b16 %v3945, %v3944
        %v4022 = vpack.c.b16 %v3947, %v3946
        %v4023 = vpack.c.b16 %v3949, %v3948
        %v4024 = vpack.c.b16 %v3951, %v3950
        %v4025 = vpack.c.b16 %v3953, %v3952
        %v4026 = vpack.c.b16 %v3955, %v3954
        %v4027 = vpack.c.b16 %v3957, %v3956
        %v4028 = vpack.c.b16 %v3959, %v3958
        %v4029 = vpack.c.b16 %v3961, %v3960
        %v4030 = vpack.c.b16 %v3963, %v3962
        %v4031 = vpack.c.b16 %v3965, %v3964
        %v4032 = vpack.c.b16 %v3967, %v3966
        %v4033 = vpack.c.b16 %v3969, %v3968
        %v4034 = vpack.c.b16 %v3971, %v3970
        %v4035 = vpack.c.b16 %v3973, %v3972
        %v4036 = vpack.c.b16 %v3975, %v3974
        %v4037 = vpack.c.b16 %v3977, %v3976
        %v4038 = vpack.c.b16 %v3979, %v3978
        %v4039 = vpack.c.b16 %v3981, %v3980
        %v4040 = vpack.c.b16 %v3983, %v3982
        %v4041 = vpack.c.b16 %v3985, %v3984
        %v4042 = vpack.c.b16 %v3987, %v3986
        %v4043 = vpack.c.b16 %v3989, %v3988
        %v4044 = vpack.c.b16 %v3991, %v3990
        %v4045 = vpack.c.b16 %v3993, %v3992
        %v4046 = vpack.c.b16 %v3995, %v3994
        %v4047 = vpack.c.b16 %v3997, %v3996
        %v4048 = vpack.c.b16 %v3999, %v3998
        %v4049 = vpack.c.b16 %v4001, %v4000
        %v4050 = vpack.c.b16 %v4003, %v4002
        %v4051 = vpack.c.b16 %v4005, %v4004
        %v4052 = vpack.c.b16 %v4007, %v4006
        %v4053 = vpack.c.b16 %v4009, %v4008
        %v4054 = vpack.c.b16 %v4011, %v4010
        %v4055 = vpack.c.b16 %v4013, %v4012
        %v4056 = vpack.c.b16 %v4015, %v4014
        %v4057 = vpack.c.b16 %v4017, %v4016
        %vm4058 = vcmask 31744
        %v4060 = vsel %vm4058, %v4018, 0
        %v4063 = vsel %vm4058, %v4019, 0
        %v4066 = vsel %vm4058, %v4020, 0
        %v4069 = vsel %vm4058, %v4021, 0
        %v4072 = vsel %vm4058, %v4022, 0
        %v4075 = vsel %vm4058, %v4023, 0
        %v4078 = vsel %vm4058, %v4024, 0
        %v4081 = vsel %vm4058, %v4025, 0
        %v4084 = vsel %vm4058, %v4026, 0
        %v4087 = vsel %vm4058, %v4027, 0
        %v4090 = vsel %vm4058, %v4028, 0
        %v4093 = vsel %vm4058, %v4029, 0
        %v4096 = vsel %vm4058, %v4030, 0
        %v4099 = vsel %vm4058, %v4031, 0
        %v4102 = vsel %vm4058, %v4032, 0
        %v4105 = vsel %vm4058, %v4033, 0
        %v4108 = vsel %vm4058, %v4034, 0
        %v4111 = vsel %vm4058, %v4035, 0
        %v4114 = vsel %vm4058, %v4036, 0
        %v4117 = vsel %vm4058, %v4037, 0
        %v4120 = vsel %vm4058, %v4038, 0
        %v4123 = vsel %vm4058, %v4039, 0
        %v4126 = vsel %vm4058, %v4040, 0
        %v4129 = vsel %vm4058, %v4041, 0
        %v4132 = vsel %vm4058, %v4042, 0
        %v4135 = vsel %vm4058, %v4043, 0
        %v4138 = vsel %vm4058, %v4044, 0
        %v4141 = vsel %vm4058, %v4045, 0
        %v4144 = vsel %vm4058, %v4046, 0
        %v4147 = vsel %vm4058, %v4047, 0
        %v4150 = vsel %vm4058, %v4048, 0
        %v4153 = vsel %vm4058, %v4049, 0
        %v4156 = vsel %vm4058, %v4050, 0
        %v4159 = vsel %vm4058, %v4051, 0
        %v4162 = vsel %vm4058, %v4052, 0
        %v4165 = vsel %vm4058, %v4053, 0
        %v4168 = vsel %vm4058, %v4054, 0
        %v4171 = vsel %vm4058, %v4055, 0
        %v4174 = vsel %vm4058, %v4056, 0
        %v4177 = vsel %vm4058, %v4057, 0
        %vm4179 = vcmask 1041408
        %v4181 = vsel %vm4179, %v3857, 0
        %4183 = vmatprep.subr.bf16.mxu0 0
        %4184 = vmatpush1.bf16.msra.mxu0 0
        %4185 = vmatprep.subr.bf16.mxu0 0
        %4186 = vmatpush1.bf16.msra.mxu0 0
        %4187 = vmatprep.subr.bf16.mxu0 0
        %4188 = vmatpush1.bf16.msra.mxu0 0
        %4189 = vmatprep.subr.bf16.mxu0 0
        %4190 = vmatpush1.bf16.msra.mxu0 0
        %4191 = vmatprep.subr.bf16.mxu0 0
        %4192 = vmatpush1.bf16.msra.mxu0 0
        %4193 = vmatprep.subr.bf16.mxu0 0
        %4194 = vmatpush1.bf16.msra.mxu0 0
        %4195 = vmatprep.subr.bf16.mxu0 0
        %4196 = vmatpush1.bf16.msra.mxu0 0
        %4197 = vmatprep.subr.bf16.mxu0 0
        %4198 = vmatpush1.bf16.msra.mxu0 %v4181
        %4199 = vmatprep.subr.bf16.mxu0 0
        %4200 = vmatpush2.bf16.msra.mxu0 0
        %4201 = vmatprep.subr.bf16.mxu0 0
        %4202 = vmatpush2.bf16.msra.mxu0 0
        %4203 = vmatprep.subr.bf16.mxu0 0
        %4204 = vmatpush2.bf16.msra.mxu0 0
        %4205 = vmatprep.subr.bf16.mxu0 0
        %4206 = vmatpush2.bf16.msra.mxu0 0
        %4207 = vmatprep.subr.bf16.mxu0 0
        %4208 = vmatpush2.bf16.msra.mxu0 0
        %4209 = vmatprep.subr.bf16.mxu0 0
        %4210 = vmatpush2.bf16.msra.mxu0 0
        %4211 = vmatprep.subr.bf16.mxu0 0
        %4212 = vmatpush2.bf16.msra.mxu0 0
        %4213 = vmatprep.subr.bf16.mxu0 0
        %4214 = vmatpush2.bf16.msra.mxu0 0
        %4215 = vmatprep.mubr.bf16.mxu0 0
        %4216 = vmatmul.mubr.bf16.gmra.mxu0 %v4060
        %v4217 = vpop.f32.mrf.mxu0
        %v4218 = vadd.f32 0.0, %v4217
        %v4219 = vpop.f32.mrf.mxu0
        %v4220 = vpop.f32.mrf.mxu0
        %v4221 = vadd.f32 0.0, %v4220
        %v4222 = vpop.f32.mrf.mxu0
        %4223 = vmatprep.mubr.bf16.mxu0 0
        %4224 = vmatmul.mubr.bf16.gmra.mxu0 %v4063
        %v4225 = vpop.f32.mrf.mxu0
        %v4226 = vadd.f32 0.0, %v4225
        %v4227 = vpop.f32.mrf.mxu0
        %v4228 = vpop.f32.mrf.mxu0
        %v4229 = vadd.f32 0.0, %v4228
        %v4230 = vpop.f32.mrf.mxu0
        %4231 = vmatprep.mubr.bf16.mxu0 0
        %4232 = vmatmul.mubr.bf16.gmra.mxu0 %v4066
        %v4233 = vpop.f32.mrf.mxu0
        %v4234 = vadd.f32 0.0, %v4233
        %v4235 = vpop.f32.mrf.mxu0
        %v4236 = vpop.f32.mrf.mxu0
        %v4237 = vadd.f32 0.0, %v4236
        %v4238 = vpop.f32.mrf.mxu0
        %4239 = vmatprep.mubr.bf16.mxu0 0
        %4240 = vmatmul.mubr.bf16.gmra.mxu0 %v4069
        %v4241 = vpop.f32.mrf.mxu0
        %v4242 = vadd.f32 0.0, %v4241
        %v4243 = vpop.f32.mrf.mxu0
        %v4244 = vpop.f32.mrf.mxu0
        %v4245 = vadd.f32 0.0, %v4244
        %v4246 = vpop.f32.mrf.mxu0
        %4247 = vmatprep.mubr.bf16.mxu0 0
        %4248 = vmatmul.mubr.bf16.gmra.mxu0 %v4072
        %v4249 = vpop.f32.mrf.mxu0
        %v4250 = vadd.f32 0.0, %v4249
        %v4251 = vpop.f32.mrf.mxu0
        %v4252 = vpop.f32.mrf.mxu0
        %v4253 = vadd.f32 0.0, %v4252
        %v4254 = vpop.f32.mrf.mxu0
        %4255 = vmatprep.mubr.bf16.mxu0 0
        %4256 = vmatmul.mubr.bf16.gmra.mxu0 %v4075
        %v4257 = vpop.f32.mrf.mxu0
        %v4258 = vadd.f32 0.0, %v4257
        %v4259 = vpop.f32.mrf.mxu0
        %v4260 = vpop.f32.mrf.mxu0
        %v4261 = vadd.f32 0.0, %v4260
        %v4262 = vpop.f32.mrf.mxu0
        %4263 = vmatprep.mubr.bf16.mxu0 0
        %4264 = vmatmul.mubr.bf16.gmra.mxu0 %v4078
        %v4265 = vpop.f32.mrf.mxu0
        %v4266 = vadd.f32 0.0, %v4265
        %v4267 = vpop.f32.mrf.mxu0
        %v4268 = vpop.f32.mrf.mxu0
        %v4269 = vadd.f32 0.0, %v4268
        %v4270 = vpop.f32.mrf.mxu0
        %4271 = vmatprep.mubr.bf16.mxu0 0
        %4272 = vmatmul.mubr.bf16.gmra.mxu0 %v4081
        %v4273 = vpop.f32.mrf.mxu0
        %v4274 = vadd.f32 0.0, %v4273
        %v4275 = vpop.f32.mrf.mxu0
        %v4276 = vpop.f32.mrf.mxu0
        %v4277 = vadd.f32 0.0, %v4276
        %v4278 = vpop.f32.mrf.mxu0
        %4279 = vmatprep.mubr.bf16.mxu0 0
        %4280 = vmatmul.mubr.bf16.gmra.mxu0 %v4084
        %v4281 = vpop.f32.mrf.mxu0
        %v4282 = vadd.f32 0.0, %v4281
        %v4283 = vpop.f32.mrf.mxu0
        %v4284 = vpop.f32.mrf.mxu0
        %v4285 = vadd.f32 0.0, %v4284
        %v4286 = vpop.f32.mrf.mxu0
        %4287 = vmatprep.mubr.bf16.mxu0 0
        %4288 = vmatmul.mubr.bf16.gmra.mxu0 %v4087
        %v4289 = vpop.f32.mrf.mxu0
        %v4290 = vadd.f32 0.0, %v4289
        %v4291 = vpop.f32.mrf.mxu0
        %v4292 = vpop.f32.mrf.mxu0
        %v4293 = vadd.f32 0.0, %v4292
        %v4294 = vpop.f32.mrf.mxu0
        %4295 = vmatprep.mubr.bf16.mxu0 0
        %4296 = vmatmul.mubr.bf16.gmra.mxu0 %v4090
        %v4297 = vpop.f32.mrf.mxu0
        %v4298 = vadd.f32 0.0, %v4297
        %v4299 = vpop.f32.mrf.mxu0
        %v4300 = vpop.f32.mrf.mxu0
        %v4301 = vadd.f32 0.0, %v4300
        %v4302 = vpop.f32.mrf.mxu0
        %4303 = vmatprep.mubr.bf16.mxu0 0
        %4304 = vmatmul.mubr.bf16.gmra.mxu0 %v4093
        %v4305 = vpop.f32.mrf.mxu0
        %v4306 = vadd.f32 0.0, %v4305
        %v4307 = vpop.f32.mrf.mxu0
        %v4308 = vpop.f32.mrf.mxu0
        %v4309 = vadd.f32 0.0, %v4308
        %v4310 = vpop.f32.mrf.mxu0
        %4311 = vmatprep.mubr.bf16.mxu0 0
        %4312 = vmatmul.mubr.bf16.gmra.mxu0 %v4096
        %v4313 = vpop.f32.mrf.mxu0
        %v4314 = vadd.f32 0.0, %v4313
        %v4315 = vpop.f32.mrf.mxu0
        %v4316 = vpop.f32.mrf.mxu0
        %v4317 = vadd.f32 0.0, %v4316
        %v4318 = vpop.f32.mrf.mxu0
        %4319 = vmatprep.mubr.bf16.mxu0 0
        %4320 = vmatmul.mubr.bf16.gmra.mxu0 %v4099
        %v4321 = vpop.f32.mrf.mxu0
        %v4322 = vadd.f32 0.0, %v4321
        %v4323 = vpop.f32.mrf.mxu0
        %v4324 = vpop.f32.mrf.mxu0
        %v4325 = vadd.f32 0.0, %v4324
        %v4326 = vpop.f32.mrf.mxu0
        %4327 = vmatprep.mubr.bf16.mxu0 0
        %4328 = vmatmul.mubr.bf16.gmra.mxu0 %v4102
        %v4329 = vpop.f32.mrf.mxu0
        %v4330 = vadd.f32 0.0, %v4329
        %v4331 = vpop.f32.mrf.mxu0
        %v4332 = vpop.f32.mrf.mxu0
        %v4333 = vadd.f32 0.0, %v4332
        %v4334 = vpop.f32.mrf.mxu0
        %4335 = vmatprep.mubr.bf16.mxu0 0
        %4336 = vmatmul.mubr.bf16.gmra.mxu0 %v4105
        %v4337 = vpop.f32.mrf.mxu0
        %v4338 = vadd.f32 0.0, %v4337
        %v4339 = vpop.f32.mrf.mxu0
        %v4340 = vpop.f32.mrf.mxu0
        %v4341 = vadd.f32 0.0, %v4340
        %v4342 = vpop.f32.mrf.mxu0
        %4343 = vmatprep.mubr.bf16.mxu0 0
        %4344 = vmatmul.mubr.bf16.gmra.mxu0 %v4108
        %v4345 = vpop.f32.mrf.mxu0
        %v4346 = vadd.f32 0.0, %v4345
        %v4347 = vpop.f32.mrf.mxu0
        %v4348 = vpop.f32.mrf.mxu0
        %v4349 = vadd.f32 0.0, %v4348
        %v4350 = vpop.f32.mrf.mxu0
        %4351 = vmatprep.mubr.bf16.mxu0 0
        %4352 = vmatmul.mubr.bf16.gmra.mxu0 %v4111
        %v4353 = vpop.f32.mrf.mxu0
        %v4354 = vadd.f32 0.0, %v4353
        %v4355 = vpop.f32.mrf.mxu0
        %v4356 = vpop.f32.mrf.mxu0
        %v4357 = vadd.f32 0.0, %v4356
        %v4358 = vpop.f32.mrf.mxu0
        %4359 = vmatprep.mubr.bf16.mxu0 0
        %4360 = vmatmul.mubr.bf16.gmra.mxu0 %v4114
        %v4361 = vpop.f32.mrf.mxu0
        %v4362 = vadd.f32 0.0, %v4361
        %v4363 = vpop.f32.mrf.mxu0
        %v4364 = vpop.f32.mrf.mxu0
        %v4365 = vadd.f32 0.0, %v4364
        %v4366 = vpop.f32.mrf.mxu0
        %4367 = vmatprep.mubr.bf16.mxu0 0
        %4368 = vmatmul.mubr.bf16.gmra.mxu0 %v4117
        %v4369 = vpop.f32.mrf.mxu0
        %v4370 = vadd.f32 0.0, %v4369
        %v4371 = vpop.f32.mrf.mxu0
        %v4372 = vpop.f32.mrf.mxu0
        %v4373 = vadd.f32 0.0, %v4372
        %v4374 = vpop.f32.mrf.mxu0
        %4375 = vmatprep.mubr.bf16.mxu0 0
        %4376 = vmatmul.mubr.bf16.gmra.mxu0 %v4120
        %v4377 = vpop.f32.mrf.mxu0
        %v4378 = vadd.f32 0.0, %v4377
        %v4379 = vpop.f32.mrf.mxu0
        %v4380 = vpop.f32.mrf.mxu0
        %v4381 = vadd.f32 0.0, %v4380
        %v4382 = vpop.f32.mrf.mxu0
        %4383 = vmatprep.mubr.bf16.mxu0 0
        %4384 = vmatmul.mubr.bf16.gmra.mxu0 %v4123
        %v4385 = vpop.f32.mrf.mxu0
        %v4386 = vadd.f32 0.0, %v4385
        %v4387 = vpop.f32.mrf.mxu0
        %v4388 = vpop.f32.mrf.mxu0
        %v4389 = vadd.f32 0.0, %v4388
        %v4390 = vpop.f32.mrf.mxu0
        %4391 = vmatprep.mubr.bf16.mxu0 0
        %4392 = vmatmul.mubr.bf16.gmra.mxu0 %v4126
        %v4393 = vpop.f32.mrf.mxu0
        %v4394 = vadd.f32 0.0, %v4393
        %v4395 = vpop.f32.mrf.mxu0
        %v4396 = vpop.f32.mrf.mxu0
        %v4397 = vadd.f32 0.0, %v4396
        %v4398 = vpop.f32.mrf.mxu0
        %4399 = vmatprep.mubr.bf16.mxu0 0
        %4400 = vmatmul.mubr.bf16.gmra.mxu0 %v4129
        %v4401 = vpop.f32.mrf.mxu0
        %v4402 = vadd.f32 0.0, %v4401
        %v4403 = vpop.f32.mrf.mxu0
        %v4404 = vpop.f32.mrf.mxu0
        %v4405 = vadd.f32 0.0, %v4404
        %v4406 = vpop.f32.mrf.mxu0
        %4407 = vmatprep.mubr.bf16.mxu0 0
        %4408 = vmatmul.mubr.bf16.gmra.mxu0 %v4132
        %v4409 = vpop.f32.mrf.mxu0
        %v4410 = vadd.f32 0.0, %v4409
        %v4411 = vpop.f32.mrf.mxu0
        %v4412 = vpop.f32.mrf.mxu0
        %v4413 = vadd.f32 0.0, %v4412
        %v4414 = vpop.f32.mrf.mxu0
        %4415 = vmatprep.mubr.bf16.mxu0 0
        %4416 = vmatmul.mubr.bf16.gmra.mxu0 %v4135
        %v4417 = vpop.f32.mrf.mxu0
        %v4418 = vadd.f32 0.0, %v4417
        %v4419 = vpop.f32.mrf.mxu0
        %v4420 = vpop.f32.mrf.mxu0
        %v4421 = vadd.f32 0.0, %v4420
        %v4422 = vpop.f32.mrf.mxu0
        %4423 = vmatprep.mubr.bf16.mxu0 0
        %4424 = vmatmul.mubr.bf16.gmra.mxu0 %v4138
        %v4425 = vpop.f32.mrf.mxu0
        %v4426 = vadd.f32 0.0, %v4425
        %v4427 = vpop.f32.mrf.mxu0
        %v4428 = vpop.f32.mrf.mxu0
        %v4429 = vadd.f32 0.0, %v4428
        %v4430 = vpop.f32.mrf.mxu0
        %4431 = vmatprep.mubr.bf16.mxu0 0
        %4432 = vmatmul.mubr.bf16.gmra.mxu0 %v4141
        %v4433 = vpop.f32.mrf.mxu0
        %v4434 = vadd.f32 0.0, %v4433
        %v4435 = vpop.f32.mrf.mxu0
        %v4436 = vpop.f32.mrf.mxu0
        %v4437 = vadd.f32 0.0, %v4436
        %v4438 = vpop.f32.mrf.mxu0
        %4439 = vmatprep.mubr.bf16.mxu0 0
        %4440 = vmatmul.mubr.bf16.gmra.mxu0 %v4144
        %v4441 = vpop.f32.mrf.mxu0
        %v4442 = vadd.f32 0.0, %v4441
        %v4443 = vpop.f32.mrf.mxu0
        %v4444 = vpop.f32.mrf.mxu0
        %v4445 = vadd.f32 0.0, %v4444
        %v4446 = vpop.f32.mrf.mxu0
        %4447 = vmatprep.mubr.bf16.mxu0 0
        %4448 = vmatmul.mubr.bf16.gmra.mxu0 %v4147
        %v4449 = vpop.f32.mrf.mxu0
        %v4450 = vadd.f32 0.0, %v4449
        %v4451 = vpop.f32.mrf.mxu0
        %v4452 = vpop.f32.mrf.mxu0
        %v4453 = vadd.f32 0.0, %v4452
        %v4454 = vpop.f32.mrf.mxu0
        %4455 = vmatprep.mubr.bf16.mxu0 0
        %4456 = vmatmul.mubr.bf16.gmra.mxu0 %v4150
        %v4457 = vpop.f32.mrf.mxu0
        %v4458 = vadd.f32 0.0, %v4457
        %v4459 = vpop.f32.mrf.mxu0
        %v4460 = vpop.f32.mrf.mxu0
        %v4461 = vadd.f32 0.0, %v4460
        %v4462 = vpop.f32.mrf.mxu0
        %4463 = vmatprep.mubr.bf16.mxu0 0
        %4464 = vmatmul.mubr.bf16.gmra.mxu0 %v4153
        %v4465 = vpop.f32.mrf.mxu0
        %v4466 = vadd.f32 0.0, %v4465
        %v4467 = vpop.f32.mrf.mxu0
        %v4468 = vpop.f32.mrf.mxu0
        %v4469 = vadd.f32 0.0, %v4468
        %v4470 = vpop.f32.mrf.mxu0
        %4471 = vmatprep.mubr.bf16.mxu0 0
        %4472 = vmatmul.mubr.bf16.gmra.mxu0 %v4156
        %v4473 = vpop.f32.mrf.mxu0
        %v4474 = vadd.f32 0.0, %v4473
        %v4475 = vpop.f32.mrf.mxu0
        %v4476 = vpop.f32.mrf.mxu0
        %v4477 = vadd.f32 0.0, %v4476
        %v4478 = vpop.f32.mrf.mxu0
        %4479 = vmatprep.mubr.bf16.mxu0 0
        %4480 = vmatmul.mubr.bf16.gmra.mxu0 %v4159
        %v4481 = vpop.f32.mrf.mxu0
        %v4482 = vadd.f32 0.0, %v4481
        %v4483 = vpop.f32.mrf.mxu0
        %v4484 = vpop.f32.mrf.mxu0
        %v4485 = vadd.f32 0.0, %v4484
        %v4486 = vpop.f32.mrf.mxu0
        %4487 = vmatprep.mubr.bf16.mxu0 0
        %4488 = vmatmul.mubr.bf16.gmra.mxu0 %v4162
        %v4489 = vpop.f32.mrf.mxu0
        %v4490 = vadd.f32 0.0, %v4489
        %v4491 = vpop.f32.mrf.mxu0
        %v4492 = vpop.f32.mrf.mxu0
        %v4493 = vadd.f32 0.0, %v4492
        %v4494 = vpop.f32.mrf.mxu0
        %4495 = vmatprep.mubr.bf16.mxu0 0
        %4496 = vmatmul.mubr.bf16.gmra.mxu0 %v4165
        %v4497 = vpop.f32.mrf.mxu0
        %v4498 = vadd.f32 0.0, %v4497
        %v4499 = vpop.f32.mrf.mxu0
        %v4500 = vpop.f32.mrf.mxu0
        %v4501 = vadd.f32 0.0, %v4500
        %v4502 = vpop.f32.mrf.mxu0
        %4503 = vmatprep.mubr.bf16.mxu0 0
        %4504 = vmatmul.mubr.bf16.gmra.mxu0 %v4168
        %v4505 = vpop.f32.mrf.mxu0
        %v4506 = vadd.f32 0.0, %v4505
        %v4507 = vpop.f32.mrf.mxu0
        %v4508 = vpop.f32.mrf.mxu0
        %v4509 = vadd.f32 0.0, %v4508
        %v4510 = vpop.f32.mrf.mxu0
        %4511 = vmatprep.mubr.bf16.mxu0 0
        %4512 = vmatmul.mubr.bf16.gmra.mxu0 %v4171
        %v4513 = vpop.f32.mrf.mxu0
        %v4514 = vadd.f32 0.0, %v4513
        %v4515 = vpop.f32.mrf.mxu0
        %v4516 = vpop.f32.mrf.mxu0
        %v4517 = vadd.f32 0.0, %v4516
        %v4518 = vpop.f32.mrf.mxu0
        %4519 = vmatprep.mubr.bf16.mxu0 0
        %4520 = vmatmul.mubr.bf16.gmra.mxu0 %v4174
        %v4521 = vpop.f32.mrf.mxu0
        %v4522 = vadd.f32 0.0, %v4521
        %v4523 = vpop.f32.mrf.mxu0
        %v4524 = vpop.f32.mrf.mxu0
        %v4525 = vadd.f32 0.0, %v4524
        %v4526 = vpop.f32.mrf.mxu0
        %4527 = vmatprep.mubr.bf16.mxu0 0
        %4528 = vmatmul.mubr.bf16.gmra.mxu0 %v4177
        %v4529 = vpop.f32.mrf.mxu0
        %v4530 = vadd.f32 0.0, %v4529
        %v4531 = vpop.f32.mrf.mxu0
        %v4532 = vpop.f32.mrf.mxu0
        %v4533 = vadd.f32 0.0, %v4532
        %v4534 = vpop.f32.mrf.mxu0
        %4535 = vdwg.mxu0
        %v4536 = vmax.f32 %v4218, 0.0
        %v4537 = vmax.f32 %v4221, 0.0
        %v4538 = vmax.f32 %v4226, 0.0
        %v4539 = vmax.f32 %v4229, 0.0
        %v4540 = vmax.f32 %v4234, 0.0
        %v4541 = vmax.f32 %v4237, 0.0
        %v4542 = vmax.f32 %v4242, 0.0
        %v4543 = vmax.f32 %v4245, 0.0
        %v4544 = vmax.f32 %v4250, 0.0
        %v4545 = vmax.f32 %v4253, 0.0
        %v4546 = vmax.f32 %v4258, 0.0
        %v4547 = vmax.f32 %v4261, 0.0
        %v4548 = vmax.f32 %v4266, 0.0
        %v4549 = vmax.f32 %v4269, 0.0
        %v4550 = vmax.f32 %v4274, 0.0
        %v4551 = vmax.f32 %v4277, 0.0
        %v4552 = vmax.f32 %v4282, 0.0
        %v4553 = vmax.f32 %v4285, 0.0
        %v4554 = vmax.f32 %v4290, 0.0
        %v4555 = vmax.f32 %v4293, 0.0
        %v4556 = vmax.f32 %v4298, 0.0
        %v4557 = vmax.f32 %v4301, 0.0
        %v4558 = vmax.f32 %v4306, 0.0
        %v4559 = vmax.f32 %v4309, 0.0
        %v4560 = vmax.f32 %v4314, 0.0
        %v4561 = vmax.f32 %v4317, 0.0
        %v4562 = vmax.f32 %v4322, 0.0
        %v4563 = vmax.f32 %v4325, 0.0
        %v4564 = vmax.f32 %v4330, 0.0
        %v4565 = vmax.f32 %v4333, 0.0
        %v4566 = vmax.f32 %v4338, 0.0
        %v4567 = vmax.f32 %v4341, 0.0
        %v4568 = vmax.f32 %v4346, 0.0
        %v4569 = vmax.f32 %v4349, 0.0
        %v4570 = vmax.f32 %v4354, 0.0
        %v4571 = vmax.f32 %v4357, 0.0
        %v4572 = vmax.f32 %v4362, 0.0
        %v4573 = vmax.f32 %v4365, 0.0
        %v4574 = vmax.f32 %v4370, 0.0
        %v4575 = vmax.f32 %v4373, 0.0
        %v4576 = vmax.f32 %v4378, 0.0
        %v4577 = vmax.f32 %v4381, 0.0
        %v4578 = vmax.f32 %v4386, 0.0
        %v4579 = vmax.f32 %v4389, 0.0
        %v4580 = vmax.f32 %v4394, 0.0
        %v4581 = vmax.f32 %v4397, 0.0
        %v4582 = vmax.f32 %v4402, 0.0
        %v4583 = vmax.f32 %v4405, 0.0
        %v4584 = vmax.f32 %v4410, 0.0
        %v4585 = vmax.f32 %v4413, 0.0
        %v4586 = vmax.f32 %v4418, 0.0
        %v4587 = vmax.f32 %v4421, 0.0
        %v4588 = vmax.f32 %v4426, 0.0
        %v4589 = vmax.f32 %v4429, 0.0
        %v4590 = vmax.f32 %v4434, 0.0
        %v4591 = vmax.f32 %v4437, 0.0
        %v4592 = vmax.f32 %v4442, 0.0
        %v4593 = vmax.f32 %v4445, 0.0
        %v4594 = vmax.f32 %v4450, 0.0
        %v4595 = vmax.f32 %v4453, 0.0
        %v4596 = vmax.f32 %v4458, 0.0
        %v4597 = vmax.f32 %v4461, 0.0
        %v4598 = vmax.f32 %v4466, 0.0
        %v4599 = vmax.f32 %v4469, 0.0
        %v4600 = vmax.f32 %v4474, 0.0
        %v4601 = vmax.f32 %v4477, 0.0
        %v4602 = vmax.f32 %v4482, 0.0
        %v4603 = vmax.f32 %v4485, 0.0
        %v4604 = vmax.f32 %v4490, 0.0
        %v4605 = vmax.f32 %v4493, 0.0
        %v4606 = vmax.f32 %v4498, 0.0
        %v4607 = vmax.f32 %v4501, 0.0
        %v4608 = vmax.f32 %v4506, 0.0
        %v4609 = vmax.f32 %v4509, 0.0
        %v4610 = vmax.f32 %v4514, 0.0
        %v4611 = vmax.f32 %v4517, 0.0
        %v4612 = vmax.f32 %v4522, 0.0
        %v4613 = vmax.f32 %v4525, 0.0
        %v4614 = vmax.f32 %v4530, 0.0
        %v4615 = vmax.f32 %v4533, 0.0
        %v4616 = vpack.c.bf16 %v4537, %v4536
        %v4617 = vpack.c.bf16 %v4539, %v4538
        %v4618 = vpack.c.bf16 %v4541, %v4540
        %v4619 = vpack.c.bf16 %v4543, %v4542
        %v4620 = vpack.c.bf16 %v4545, %v4544
        %v4621 = vpack.c.bf16 %v4547, %v4546
        %v4622 = vpack.c.bf16 %v4549, %v4548
        %v4623 = vpack.c.bf16 %v4551, %v4550
        %v4624 = vpack.c.bf16 %v4553, %v4552
        %v4625 = vpack.c.bf16 %v4555, %v4554
        %v4626 = vpack.c.bf16 %v4557, %v4556
        %v4627 = vpack.c.bf16 %v4559, %v4558
        %v4628 = vpack.c.bf16 %v4561, %v4560
        %v4629 = vpack.c.bf16 %v4563, %v4562
        %v4630 = vpack.c.bf16 %v4565, %v4564
        %v4631 = vpack.c.bf16 %v4567, %v4566
        %v4632 = vpack.c.bf16 %v4569, %v4568
        %v4633 = vpack.c.bf16 %v4571, %v4570
        %v4634 = vpack.c.bf16 %v4573, %v4572
        %v4635 = vpack.c.bf16 %v4575, %v4574
        %v4636 = vpack.c.bf16 %v4577, %v4576
        %v4637 = vpack.c.bf16 %v4579, %v4578
        %v4638 = vpack.c.bf16 %v4581, %v4580
        %v4639 = vpack.c.bf16 %v4583, %v4582
        %v4640 = vpack.c.bf16 %v4585, %v4584
        %v4641 = vpack.c.bf16 %v4587, %v4586
        %v4642 = vpack.c.bf16 %v4589, %v4588
        %v4643 = vpack.c.bf16 %v4591, %v4590
        %v4644 = vpack.c.bf16 %v4593, %v4592
        %v4645 = vpack.c.bf16 %v4595, %v4594
        %v4646 = vpack.c.bf16 %v4597, %v4596
        %v4647 = vpack.c.bf16 %v4599, %v4598
        %v4648 = vpack.c.bf16 %v4601, %v4600
        %v4649 = vpack.c.bf16 %v4603, %v4602
        %v4650 = vpack.c.bf16 %v4605, %v4604
        %v4651 = vpack.c.bf16 %v4607, %v4606
        %v4652 = vpack.c.bf16 %v4609, %v4608
        %v4653 = vpack.c.bf16 %v4611, %v4610
        %v4654 = vpack.c.bf16 %v4613, %v4612
        %v4655 = vpack.c.bf16 %v4615, %v4614
        %v4656 = vld [vmem:[%s8] sm:$0xf]
        %v4657 = vld [vmem:[%s8 + $0x4] sm:$0xf]
        %v4658 = vld [vmem:[%s8 + $0x8] sm:$0xf]
        %v4659 = vld [vmem:[%s8 + $0xc] sm:$0xf]
        %v4660 = vld [vmem:[%s8 + $0x10] sm:$0xf]
        %v4661 = vld [vmem:[%s8 + $0x14] sm:$0xf]
        %v4662 = vld [vmem:[%s8 + $0x18] sm:$0xf]
        %v4663 = vld [vmem:[%s8 + $0x1c] sm:$0xf]
        %s4664 = scalar_lea.vmem %s8, 32
        %v4665 = vld [vmem:[%s4664] sm:$0xf]
        %v4666 = vld [vmem:[%s4664 + $0x4] sm:$0xf]
        %v4667 = vld [vmem:[%s4664 + $0x8] sm:$0xf]
        %v4668 = vld [vmem:[%s4664 + $0xc] sm:$0xf]
        %v4669 = vld [vmem:[%s4664 + $0x10] sm:$0xf]
        %v4670 = vld [vmem:[%s4664 + $0x14] sm:$0xf]
        %v4671 = vld [vmem:[%s4664 + $0x18] sm:$0xf]
        %v4672 = vld [vmem:[%s4664 + $0x1c] sm:$0xf]
        %s4673 = scalar_lea.vmem %s8, 64
        %v4674 = vld [vmem:[%s4673] sm:$0xf]
        %v4675 = vld [vmem:[%s4673 + $0x4] sm:$0xf]
        %v4676 = vld [vmem:[%s4673 + $0x8] sm:$0xf]
        %v4677 = vld [vmem:[%s4673 + $0xc] sm:$0xf]
        %v4678 = vld [vmem:[%s4673 + $0x10] sm:$0xf]
        %v4679 = vld [vmem:[%s4673 + $0x14] sm:$0xf]
        %v4680 = vld [vmem:[%s4673 + $0x18] sm:$0xf]
        %v4681 = vld [vmem:[%s4673 + $0x1c] sm:$0xf]
        %v4682 = vld [vmem:[%s9] sm:$0x1]
        %s4683 = scalar_lea.vmem %s9, 1
        %v4684 = vld [vmem:[%s4683] sm:$0x1]
        %s4685 = scalar_lea.vmem %s9, 2
        %v4686 = vld [vmem:[%s4685] sm:$0x1]
        %v4687 = vld [vmem:[%s10] sm:$0xf]
        %v4688 = vld [vmem:[%s10 + $0x4] sm:$0xf]
        %v4689 = vld [vmem:[%s10 + $0x8] sm:$0xf]
        %v4690 = vld [vmem:[%s10 + $0xc] sm:$0xf]
        %v4691 = vld [vmem:[%s10 + $0x10] sm:$0xf]
        %v4692 = vld [vmem:[%s10 + $0x14] sm:$0xf]
        %v4693 = vld [vmem:[%s10 + $0x18] sm:$0xf]
        %v4694 = vld [vmem:[%s10 + $0x1c] sm:$0xf]
        %v4696 = vlaneseq
        %v4697 = vshrl.u32 %v4696, 7
        %v4698 = vsub.s32 0, %v4697
        %v4699 = vrot.slane %v4682, %v4698
        %v4709 = vunpack.c.l.b16 %v4656
        %v4710 = vunpack.c.l.b16 %v4657
        %v4711 = vunpack.c.l.b16 %v4658
        %v4712 = vunpack.c.l.b16 %v4659
        %v4713 = vunpack.c.l.b16 %v4660
        %v4714 = vunpack.c.l.b16 %v4661
        %v4715 = vunpack.c.l.b16 %v4662
        %v4716 = vunpack.c.l.b16 %v4663
        %v4717 = vpack.c.b16 %v4710, %v4709
        %v4718 = vpack.c.b16 %v4712, %v4711
        %v4719 = vpack.c.b16 %v4714, %v4713
        %v4720 = vpack.c.b16 %v4716, %v4715
        %vm4725 = vcmask 523264
        %v4727 = vsel %vm4725, %v4616, 0
        %v4730 = vsel %vm4725, %v4617, 0
        %v4733 = vsel %vm4725, %v4618, 0
        %v4736 = vsel %vm4725, %v4619, 0
        %v4739 = vsel %vm4725, %v4620, 0
        %v4742 = vsel %vm4725, %v4621, 0
        %v4745 = vsel %vm4725, %v4622, 0
        %v4748 = vsel %vm4725, %v4623, 0
        %4750 = vmatprep.subr.bf16.mxu0 0
        %4751 = vmatpush1.bf16.msra.mxu0 0
        %4752 = vmatprep.subr.bf16.mxu0 0
        %4753 = vmatpush1.bf16.msra.mxu0 0
        %4754 = vmatprep.subr.bf16.mxu0 0
        %4755 = vmatpush1.bf16.msra.mxu0 0
        %4756 = vmatprep.subr.bf16.mxu0 0
        %4757 = vmatpush1.bf16.msra.mxu0 0
        %4758 = vmatprep.subr.bf16.mxu0 0
        %4759 = vmatpush1.bf16.msra.mxu0 %v4720
        %4760 = vmatprep.subr.bf16.mxu0 0
        %4761 = vmatpush1.bf16.msra.mxu0 %v4719
        %4762 = vmatprep.subr.bf16.mxu0 0
        %4763 = vmatpush1.bf16.msra.mxu0 %v4718
        %4764 = vmatprep.subr.bf16.mxu0 0
        %4765 = vmatpush1.bf16.msra.mxu0 %v4717
        %4766 = vmatprep.subr.bf16.mxu0 0
        %4767 = vmatpush2.bf16.msra.mxu0 0
        %4768 = vmatprep.subr.bf16.mxu0 0
        %4769 = vmatpush2.bf16.msra.mxu0 0
        %4770 = vmatprep.subr.bf16.mxu0 0
        %4771 = vmatpush2.bf16.msra.mxu0 0
        %4772 = vmatprep.subr.bf16.mxu0 0
        %4773 = vmatpush2.bf16.msra.mxu0 0
        %4774 = vmatprep.subr.bf16.mxu0 0
        %4775 = vmatpush2.bf16.msra.mxu0 0
        %4776 = vmatprep.subr.bf16.mxu0 0
        %4777 = vmatpush2.bf16.msra.mxu0 0
        %4778 = vmatprep.subr.bf16.mxu0 0
        %4779 = vmatpush2.bf16.msra.mxu0 0
        %4780 = vmatprep.subr.bf16.mxu0 0
        %4781 = vmatpush2.bf16.msra.mxu0 0
        %4782 = vmatprep.mubr.bf16.mxu0 0
        %4783 = vmatmul.mubr.bf16.gmra.mxu0 %v4727
        %v4784 = vpop.f32.mrf.mxu0
        %v4785 = vadd.f32 %v4699, %v4784
        %v4786 = vpop.f32.mrf.mxu0
        %v4787 = vpop.f32.mrf.mxu0
        %v4788 = vadd.f32 %v4699, %v4787
        %v4789 = vpop.f32.mrf.mxu0
        %4790 = vmatprep.mubr.bf16.mxu0 0
        %4791 = vmatmul.mubr.bf16.gmra.mxu0 %v4730
        %v4792 = vpop.f32.mrf.mxu0
        %v4793 = vadd.f32 %v4699, %v4792
        %v4794 = vpop.f32.mrf.mxu0
        %v4795 = vpop.f32.mrf.mxu0
        %v4796 = vadd.f32 %v4699, %v4795
        %v4797 = vpop.f32.mrf.mxu0
        %4798 = vmatprep.mubr.bf16.mxu0 0
        %4799 = vmatmul.mubr.bf16.gmra.mxu0 %v4733
        %v4800 = vpop.f32.mrf.mxu0
        %v4801 = vadd.f32 %v4699, %v4800
        %v4802 = vpop.f32.mrf.mxu0
        %v4803 = vpop.f32.mrf.mxu0
        %v4804 = vadd.f32 %v4699, %v4803
        %v4805 = vpop.f32.mrf.mxu0
        %4806 = vmatprep.mubr.bf16.mxu0 0
        %4807 = vmatmul.mubr.bf16.gmra.mxu0 %v4736
        %v4808 = vpop.f32.mrf.mxu0
        %v4809 = vadd.f32 %v4699, %v4808
        %v4810 = vpop.f32.mrf.mxu0
        %v4811 = vpop.f32.mrf.mxu0
        %v4812 = vadd.f32 %v4699, %v4811
        %v4813 = vpop.f32.mrf.mxu0
        %4814 = vmatprep.mubr.bf16.mxu0 0
        %4815 = vmatmul.mubr.bf16.gmra.mxu0 %v4739
        %v4816 = vpop.f32.mrf.mxu0
        %v4817 = vadd.f32 %v4699, %v4816
        %v4818 = vpop.f32.mrf.mxu0
        %v4819 = vpop.f32.mrf.mxu0
        %v4820 = vadd.f32 %v4699, %v4819
        %v4821 = vpop.f32.mrf.mxu0
        %4822 = vmatprep.mubr.bf16.mxu0 0
        %4823 = vmatmul.mubr.bf16.gmra.mxu0 %v4742
        %v4824 = vpop.f32.mrf.mxu0
        %v4825 = vadd.f32 %v4699, %v4824
        %v4826 = vpop.f32.mrf.mxu0
        %v4827 = vpop.f32.mrf.mxu0
        %v4828 = vadd.f32 %v4699, %v4827
        %v4829 = vpop.f32.mrf.mxu0
        %4830 = vmatprep.mubr.bf16.mxu0 0
        %4831 = vmatmul.mubr.bf16.gmra.mxu0 %v4745
        %v4832 = vpop.f32.mrf.mxu0
        %v4833 = vadd.f32 %v4699, %v4832
        %v4834 = vpop.f32.mrf.mxu0
        %v4835 = vpop.f32.mrf.mxu0
        %v4836 = vadd.f32 %v4699, %v4835
        %v4837 = vpop.f32.mrf.mxu0
        %4838 = vmatprep.mubr.bf16.mxu0 0
        %4839 = vmatmul.mubr.bf16.gmra.mxu0 %v4748
        %v4840 = vpop.f32.mrf.mxu0
        %v4841 = vadd.f32 %v4699, %v4840
        %v4842 = vpop.f32.mrf.mxu0
        %v4843 = vpop.f32.mrf.mxu0
        %v4844 = vadd.f32 %v4699, %v4843
        %v4845 = vpop.f32.mrf.mxu0
        %4846 = vdwg.mxu0
        %v4847 = vadd.f32 %v4785, %v3715
        %v4848 = vadd.f32 %v4788, %v3718
        %v4849 = vadd.f32 %v4793, %v3723
        %v4850 = vadd.f32 %v4796, %v3726
        %v4851 = vadd.f32 %v4801, %v3731
        %v4852 = vadd.f32 %v4804, %v3734
        %v4853 = vadd.f32 %v4809, %v3739
        %v4854 = vadd.f32 %v4812, %v3742
        %v4855 = vadd.f32 %v4817, %v3747
        %v4856 = vadd.f32 %v4820, %v3750
        %v4857 = vadd.f32 %v4825, %v3755
        %v4858 = vadd.f32 %v4828, %v3758
        %v4859 = vadd.f32 %v4833, %v3763
        %v4860 = vadd.f32 %v4836, %v3766
        %v4861 = vadd.f32 %v4841, %v3771
        %v4862 = vadd.f32 %v4844, %v3774
        %v4863 = vmax.f32 %v4847, 0.0
        %v4864 = vmax.f32 %v4848, 0.0
        %v4865 = vmax.f32 %v4849, 0.0
        %v4866 = vmax.f32 %v4850, 0.0
        %v4867 = vmax.f32 %v4851, 0.0
        %v4868 = vmax.f32 %v4852, 0.0
        %v4869 = vmax.f32 %v4853, 0.0
        %v4870 = vmax.f32 %v4854, 0.0
        %v4871 = vmax.f32 %v4855, 0.0
        %v4872 = vmax.f32 %v4856, 0.0
        %v4873 = vmax.f32 %v4857, 0.0
        %v4874 = vmax.f32 %v4858, 0.0
        %v4875 = vmax.f32 %v4859, 0.0
        %v4876 = vmax.f32 %v4860, 0.0
        %v4877 = vmax.f32 %v4861, 0.0
        %v4878 = vmax.f32 %v4862, 0.0
        %v4879 = vpack.c.bf16 %v4864, %v4863
        %v4880 = vpack.c.bf16 %v4866, %v4865
        %v4881 = vpack.c.bf16 %v4868, %v4867
        %v4882 = vpack.c.bf16 %v4870, %v4869
        %v4883 = vpack.c.bf16 %v4872, %v4871
        %v4884 = vpack.c.bf16 %v4874, %v4873
        %v4885 = vpack.c.bf16 %v4876, %v4875
        %v4886 = vpack.c.bf16 %v4878, %v4877
        %v4888 = vlaneseq
        %v4889 = vshrl.u32 %v4888, 7
        %v4890 = vsub.s32 0, %v4889
        %v4891 = vrot.slane %v4684, %v4890
        %v4901 = vunpack.c.l.b16 %v4665
        %v4902 = vunpack.c.l.b16 %v4666
        %v4903 = vunpack.c.l.b16 %v4667
        %v4904 = vunpack.c.l.b16 %v4668
        %v4905 = vunpack.c.l.b16 %v4669
        %v4906 = vunpack.c.l.b16 %v4670
        %v4907 = vunpack.c.l.b16 %v4671
        %v4908 = vunpack.c.l.b16 %v4672
        %v4909 = vpack.c.b16 %v4902, %v4901
        %v4910 = vpack.c.b16 %v4904, %v4903
        %v4911 = vpack.c.b16 %v4906, %v4905
        %v4912 = vpack.c.b16 %v4908, %v4907
        %v4918 = vsel %vm4725, %v4879, 0
        %v4921 = vsel %vm4725, %v4880, 0
        %v4924 = vsel %vm4725, %v4881, 0
        %v4927 = vsel %vm4725, %v4882, 0
        %v4930 = vsel %vm4725, %v4883, 0
        %v4933 = vsel %vm4725, %v4884, 0
        %v4936 = vsel %vm4725, %v4885, 0
        %v4939 = vsel %vm4725, %v4886, 0
        %4941 = vmatprep.subr.bf16.mxu0 0
        %4942 = vmatpush1.bf16.msra.mxu0 0
        %4943 = vmatprep.subr.bf16.mxu0 0
        %4944 = vmatpush1.bf16.msra.mxu0 0
        %4945 = vmatprep.subr.bf16.mxu0 0
        %4946 = vmatpush1.bf16.msra.mxu0 0
        %4947 = vmatprep.subr.bf16.mxu0 0
        %4948 = vmatpush1.bf16.msra.mxu0 0
        %4949 = vmatprep.subr.bf16.mxu0 0
        %4950 = vmatpush1.bf16.msra.mxu0 %v4912
        %4951 = vmatprep.subr.bf16.mxu0 0
        %4952 = vmatpush1.bf16.msra.mxu0 %v4911
        %4953 = vmatprep.subr.bf16.mxu0 0
        %4954 = vmatpush1.bf16.msra.mxu0 %v4910
        %4955 = vmatprep.subr.bf16.mxu0 0
        %4956 = vmatpush1.bf16.msra.mxu0 %v4909
        %4957 = vmatprep.subr.bf16.mxu0 0
        %4958 = vmatpush2.bf16.msra.mxu0 0
        %4959 = vmatprep.subr.bf16.mxu0 0
        %4960 = vmatpush2.bf16.msra.mxu0 0
        %4961 = vmatprep.subr.bf16.mxu0 0
        %4962 = vmatpush2.bf16.msra.mxu0 0
        %4963 = vmatprep.subr.bf16.mxu0 0
        %4964 = vmatpush2.bf16.msra.mxu0 0
        %4965 = vmatprep.subr.bf16.mxu0 0
        %4966 = vmatpush2.bf16.msra.mxu0 0
        %4967 = vmatprep.subr.bf16.mxu0 0
        %4968 = vmatpush2.bf16.msra.mxu0 0
        %4969 = vmatprep.subr.bf16.mxu0 0
        %4970 = vmatpush2.bf16.msra.mxu0 0
        %4971 = vmatprep.subr.bf16.mxu0 0
        %4972 = vmatpush2.bf16.msra.mxu0 0
        %4973 = vmatprep.mubr.bf16.mxu0 0
        %4974 = vmatmul.mubr.bf16.gmra.mxu0 %v4918
        %v4975 = vpop.f32.mrf.mxu0
        %v4976 = vadd.f32 %v4891, %v4975
        %v4977 = vpop.f32.mrf.mxu0
        %v4978 = vpop.f32.mrf.mxu0
        %v4979 = vadd.f32 %v4891, %v4978
        %v4980 = vpop.f32.mrf.mxu0
        %4981 = vmatprep.mubr.bf16.mxu0 0
        %4982 = vmatmul.mubr.bf16.gmra.mxu0 %v4921
        %v4983 = vpop.f32.mrf.mxu0
        %v4984 = vadd.f32 %v4891, %v4983
        %v4985 = vpop.f32.mrf.mxu0
        %v4986 = vpop.f32.mrf.mxu0
        %v4987 = vadd.f32 %v4891, %v4986
        %v4988 = vpop.f32.mrf.mxu0
        %4989 = vmatprep.mubr.bf16.mxu0 0
        %4990 = vmatmul.mubr.bf16.gmra.mxu0 %v4924
        %v4991 = vpop.f32.mrf.mxu0
        %v4992 = vadd.f32 %v4891, %v4991
        %v4993 = vpop.f32.mrf.mxu0
        %v4994 = vpop.f32.mrf.mxu0
        %v4995 = vadd.f32 %v4891, %v4994
        %v4996 = vpop.f32.mrf.mxu0
        %4997 = vmatprep.mubr.bf16.mxu0 0
        %4998 = vmatmul.mubr.bf16.gmra.mxu0 %v4927
        %v4999 = vpop.f32.mrf.mxu0
        %v5000 = vadd.f32 %v4891, %v4999
        %v5001 = vpop.f32.mrf.mxu0
        %v5002 = vpop.f32.mrf.mxu0
        %v5003 = vadd.f32 %v4891, %v5002
        %v5004 = vpop.f32.mrf.mxu0
        %5005 = vmatprep.mubr.bf16.mxu0 0
        %5006 = vmatmul.mubr.bf16.gmra.mxu0 %v4930
        %v5007 = vpop.f32.mrf.mxu0
        %v5008 = vadd.f32 %v4891, %v5007
        %v5009 = vpop.f32.mrf.mxu0
        %v5010 = vpop.f32.mrf.mxu0
        %v5011 = vadd.f32 %v4891, %v5010
        %v5012 = vpop.f32.mrf.mxu0
        %5013 = vmatprep.mubr.bf16.mxu0 0
        %5014 = vmatmul.mubr.bf16.gmra.mxu0 %v4933
        %v5015 = vpop.f32.mrf.mxu0
        %v5016 = vadd.f32 %v4891, %v5015
        %v5017 = vpop.f32.mrf.mxu0
        %v5018 = vpop.f32.mrf.mxu0
        %v5019 = vadd.f32 %v4891, %v5018
        %v5020 = vpop.f32.mrf.mxu0
        %5021 = vmatprep.mubr.bf16.mxu0 0
        %5022 = vmatmul.mubr.bf16.gmra.mxu0 %v4936
        %v5023 = vpop.f32.mrf.mxu0
        %v5024 = vadd.f32 %v4891, %v5023
        %v5025 = vpop.f32.mrf.mxu0
        %v5026 = vpop.f32.mrf.mxu0
        %v5027 = vadd.f32 %v4891, %v5026
        %v5028 = vpop.f32.mrf.mxu0
        %5029 = vmatprep.mubr.bf16.mxu0 0
        %5030 = vmatmul.mubr.bf16.gmra.mxu0 %v4939
        %v5031 = vpop.f32.mrf.mxu0
        %v5032 = vadd.f32 %v4891, %v5031
        %v5033 = vpop.f32.mrf.mxu0
        %v5034 = vpop.f32.mrf.mxu0
        %v5035 = vadd.f32 %v4891, %v5034
        %v5036 = vpop.f32.mrf.mxu0
        %5037 = vdwg.mxu0
        %v5038 = vmax.f32 %v4976, 0.0
        %v5039 = vmax.f32 %v4979, 0.0
        %v5040 = vmax.f32 %v4984, 0.0
        %v5041 = vmax.f32 %v4987, 0.0
        %v5042 = vmax.f32 %v4992, 0.0
        %v5043 = vmax.f32 %v4995, 0.0
        %v5044 = vmax.f32 %v5000, 0.0
        %v5045 = vmax.f32 %v5003, 0.0
        %v5046 = vmax.f32 %v5008, 0.0
        %v5047 = vmax.f32 %v5011, 0.0
        %v5048 = vmax.f32 %v5016, 0.0
        %v5049 = vmax.f32 %v5019, 0.0
        %v5050 = vmax.f32 %v5024, 0.0
        %v5051 = vmax.f32 %v5027, 0.0
        %v5052 = vmax.f32 %v5032, 0.0
        %v5053 = vmax.f32 %v5035, 0.0
        %v5054 = vpack.c.bf16 %v5039, %v5038
        %v5055 = vpack.c.bf16 %v5041, %v5040
        %v5056 = vpack.c.bf16 %v5043, %v5042
        %v5057 = vpack.c.bf16 %v5045, %v5044
        %v5058 = vpack.c.bf16 %v5047, %v5046
        %v5059 = vpack.c.bf16 %v5049, %v5048
        %v5060 = vpack.c.bf16 %v5051, %v5050
        %v5061 = vpack.c.bf16 %v5053, %v5052
        %v5070 = vunpack.c.l.b16 %v4687
        %v5071 = vunpack.c.l.b16 %v4688
        %v5072 = vunpack.c.l.b16 %v4689
        %v5073 = vunpack.c.l.b16 %v4690
        %v5074 = vunpack.c.l.b16 %v4691
        %v5075 = vunpack.c.l.b16 %v4692
        %v5076 = vunpack.c.l.b16 %v4693
        %v5077 = vunpack.c.l.b16 %v4694
        %v5078 = vpack.c.b16 %v5071, %v5070
        %v5079 = vpack.c.b16 %v5073, %v5072
        %v5080 = vpack.c.b16 %v5075, %v5074
        %v5081 = vpack.c.b16 %v5077, %v5076
        %v5087 = vsel %vm4725, %v5054, 0
        %v5090 = vsel %vm4725, %v5055, 0
        %v5093 = vsel %vm4725, %v5056, 0
        %v5096 = vsel %vm4725, %v5057, 0
        %v5099 = vsel %vm4725, %v5058, 0
        %v5102 = vsel %vm4725, %v5059, 0
        %v5105 = vsel %vm4725, %v5060, 0
        %v5108 = vsel %vm4725, %v5061, 0
        %5110 = vmatprep.subr.bf16.mxu0 0
        %5111 = vmatpush1.bf16.msra.mxu0 0
        %5112 = vmatprep.subr.bf16.mxu0 0
        %5113 = vmatpush1.bf16.msra.mxu0 0
        %5114 = vmatprep.subr.bf16.mxu0 0
        %5115 = vmatpush1.bf16.msra.mxu0 0
        %5116 = vmatprep.subr.bf16.mxu0 0
        %5117 = vmatpush1.bf16.msra.mxu0 0
        %5118 = vmatprep.subr.bf16.mxu0 0
        %5119 = vmatpush1.bf16.msra.mxu0 %v5081
        %5120 = vmatprep.subr.bf16.mxu0 0
        %5121 = vmatpush1.bf16.msra.mxu0 %v5080
        %5122 = vmatprep.subr.bf16.mxu0 0
        %5123 = vmatpush1.bf16.msra.mxu0 %v5079
        %5124 = vmatprep.subr.bf16.mxu0 0
        %5125 = vmatpush1.bf16.msra.mxu0 %v5078
        %5126 = vmatprep.subr.bf16.mxu0 0
        %5127 = vmatpush2.bf16.msra.mxu0 0
        %5128 = vmatprep.subr.bf16.mxu0 0
        %5129 = vmatpush2.bf16.msra.mxu0 0
        %5130 = vmatprep.subr.bf16.mxu0 0
        %5131 = vmatpush2.bf16.msra.mxu0 0
        %5132 = vmatprep.subr.bf16.mxu0 0
        %5133 = vmatpush2.bf16.msra.mxu0 0
        %5134 = vmatprep.subr.bf16.mxu0 0
        %5135 = vmatpush2.bf16.msra.mxu0 0
        %5136 = vmatprep.subr.bf16.mxu0 0
        %5137 = vmatpush2.bf16.msra.mxu0 0
        %5138 = vmatprep.subr.bf16.mxu0 0
        %5139 = vmatpush2.bf16.msra.mxu0 0
        %5140 = vmatprep.subr.bf16.mxu0 0
        %5141 = vmatpush2.bf16.msra.mxu0 0
        %5142 = vmatprep.mubr.bf16.mxu0 0
        %5143 = vmatmul.mubr.bf16.gmra.mxu0 %v5087
        %v5144 = vpop.f32.mrf.mxu0
        %v5145 = vadd.f32 0.0, %v5144
        %v5146 = vpop.f32.mrf.mxu0
        %v5147 = vpop.f32.mrf.mxu0
        %v5148 = vadd.f32 0.0, %v5147
        %v5149 = vpop.f32.mrf.mxu0
        %5150 = vmatprep.mubr.bf16.mxu0 0
        %5151 = vmatmul.mubr.bf16.gmra.mxu0 %v5090
        %v5152 = vpop.f32.mrf.mxu0
        %v5153 = vadd.f32 0.0, %v5152
        %v5154 = vpop.f32.mrf.mxu0
        %v5155 = vpop.f32.mrf.mxu0
        %v5156 = vadd.f32 0.0, %v5155
        %v5157 = vpop.f32.mrf.mxu0
        %5158 = vmatprep.mubr.bf16.mxu0 0
        %5159 = vmatmul.mubr.bf16.gmra.mxu0 %v5093
        %v5160 = vpop.f32.mrf.mxu0
        %v5161 = vadd.f32 0.0, %v5160
        %v5162 = vpop.f32.mrf.mxu0
        %v5163 = vpop.f32.mrf.mxu0
        %v5164 = vadd.f32 0.0, %v5163
        %v5165 = vpop.f32.mrf.mxu0
        %5166 = vmatprep.mubr.bf16.mxu0 0
        %5167 = vmatmul.mubr.bf16.gmra.mxu0 %v5096
        %v5168 = vpop.f32.mrf.mxu0
        %v5169 = vadd.f32 0.0, %v5168
        %v5170 = vpop.f32.mrf.mxu0
        %v5171 = vpop.f32.mrf.mxu0
        %v5172 = vadd.f32 0.0, %v5171
        %v5173 = vpop.f32.mrf.mxu0
        %5174 = vmatprep.mubr.bf16.mxu0 0
        %5175 = vmatmul.mubr.bf16.gmra.mxu0 %v5099
        %v5176 = vpop.f32.mrf.mxu0
        %v5177 = vadd.f32 0.0, %v5176
        %v5178 = vpop.f32.mrf.mxu0
        %v5179 = vpop.f32.mrf.mxu0
        %v5180 = vadd.f32 0.0, %v5179
        %v5181 = vpop.f32.mrf.mxu0
        %5182 = vmatprep.mubr.bf16.mxu0 0
        %5183 = vmatmul.mubr.bf16.gmra.mxu0 %v5102
        %v5184 = vpop.f32.mrf.mxu0
        %v5185 = vadd.f32 0.0, %v5184
        %v5186 = vpop.f32.mrf.mxu0
        %v5187 = vpop.f32.mrf.mxu0
        %v5188 = vadd.f32 0.0, %v5187
        %v5189 = vpop.f32.mrf.mxu0
        %5190 = vmatprep.mubr.bf16.mxu0 0
        %5191 = vmatmul.mubr.bf16.gmra.mxu0 %v5105
        %v5192 = vpop.f32.mrf.mxu0
        %v5193 = vadd.f32 0.0, %v5192
        %v5194 = vpop.f32.mrf.mxu0
        %v5195 = vpop.f32.mrf.mxu0
        %v5196 = vadd.f32 0.0, %v5195
        %v5197 = vpop.f32.mrf.mxu0
        %5198 = vmatprep.mubr.bf16.mxu0 0
        %5199 = vmatmul.mubr.bf16.gmra.mxu0 %v5108
        %v5200 = vpop.f32.mrf.mxu0
        %v5201 = vadd.f32 0.0, %v5200
        %v5202 = vpop.f32.mrf.mxu0
        %v5203 = vpop.f32.mrf.mxu0
        %v5204 = vadd.f32 0.0, %v5203
        %v5205 = vpop.f32.mrf.mxu0
        %5206 = vdwg.mxu0
        %v5208 = vsel %vm4725, %v4624, 0
        %v5211 = vsel %vm4725, %v4625, 0
        %v5214 = vsel %vm4725, %v4626, 0
        %v5217 = vsel %vm4725, %v4627, 0
        %v5220 = vsel %vm4725, %v4628, 0
        %v5223 = vsel %vm4725, %v4629, 0
        %v5226 = vsel %vm4725, %v4630, 0
        %v5229 = vsel %vm4725, %v4631, 0
        %5231 = vmatprep.subr.bf16.mxu0 0
        %5232 = vmatpush1.bf16.msra.mxu0 0
        %5233 = vmatprep.subr.bf16.mxu0 0
        %5234 = vmatpush1.bf16.msra.mxu0 0
        %5235 = vmatprep.subr.bf16.mxu0 0
        %5236 = vmatpush1.bf16.msra.mxu0 0
        %5237 = vmatprep.subr.bf16.mxu0 0
        %5238 = vmatpush1.bf16.msra.mxu0 0
        %5239 = vmatprep.subr.bf16.mxu0 0
        %5240 = vmatpush1.bf16.msra.mxu0 %v4720
        %5241 = vmatprep.subr.bf16.mxu0 0
        %5242 = vmatpush1.bf16.msra.mxu0 %v4719
        %5243 = vmatprep.subr.bf16.mxu0 0
        %5244 = vmatpush1.bf16.msra.mxu0 %v4718
        %5245 = vmatprep.subr.bf16.mxu0 0
        %5246 = vmatpush1.bf16.msra.mxu0 %v4717
        %5247 = vmatprep.subr.bf16.mxu0 0
        %5248 = vmatpush2.bf16.msra.mxu0 0
        %5249 = vmatprep.subr.bf16.mxu0 0
        %5250 = vmatpush2.bf16.msra.mxu0 0
        %5251 = vmatprep.subr.bf16.mxu0 0
        %5252 = vmatpush2.bf16.msra.mxu0 0
        %5253 = vmatprep.subr.bf16.mxu0 0
        %5254 = vmatpush2.bf16.msra.mxu0 0
        %5255 = vmatprep.subr.bf16.mxu0 0
        %5256 = vmatpush2.bf16.msra.mxu0 0
        %5257 = vmatprep.subr.bf16.mxu0 0
        %5258 = vmatpush2.bf16.msra.mxu0 0
        %5259 = vmatprep.subr.bf16.mxu0 0
        %5260 = vmatpush2.bf16.msra.mxu0 0
        %5261 = vmatprep.subr.bf16.mxu0 0
        %5262 = vmatpush2.bf16.msra.mxu0 0
        %5263 = vmatprep.mubr.bf16.mxu0 0
        %5264 = vmatmul.mubr.bf16.gmra.mxu0 %v5208
        %v5265 = vpop.f32.mrf.mxu0
        %v5266 = vadd.f32 %v4699, %v5265
        %v5267 = vpop.f32.mrf.mxu0
        %v5268 = vpop.f32.mrf.mxu0
        %v5269 = vadd.f32 %v4699, %v5268
        %v5270 = vpop.f32.mrf.mxu0
        %5271 = vmatprep.mubr.bf16.mxu0 0
        %5272 = vmatmul.mubr.bf16.gmra.mxu0 %v5211
        %v5273 = vpop.f32.mrf.mxu0
        %v5274 = vadd.f32 %v4699, %v5273
        %v5275 = vpop.f32.mrf.mxu0
        %v5276 = vpop.f32.mrf.mxu0
        %v5277 = vadd.f32 %v4699, %v5276
        %v5278 = vpop.f32.mrf.mxu0
        %5279 = vmatprep.mubr.bf16.mxu0 0
        %5280 = vmatmul.mubr.bf16.gmra.mxu0 %v5214
        %v5281 = vpop.f32.mrf.mxu0
        %v5282 = vadd.f32 %v4699, %v5281
        %v5283 = vpop.f32.mrf.mxu0
        %v5284 = vpop.f32.mrf.mxu0
        %v5285 = vadd.f32 %v4699, %v5284
        %v5286 = vpop.f32.mrf.mxu0
        %5287 = vmatprep.mubr.bf16.mxu0 0
        %5288 = vmatmul.mubr.bf16.gmra.mxu0 %v5217
        %v5289 = vpop.f32.mrf.mxu0
        %v5290 = vadd.f32 %v4699, %v5289
        %v5291 = vpop.f32.mrf.mxu0
        %v5292 = vpop.f32.mrf.mxu0
        %v5293 = vadd.f32 %v4699, %v5292
        %v5294 = vpop.f32.mrf.mxu0
        %5295 = vmatprep.mubr.bf16.mxu0 0
        %5296 = vmatmul.mubr.bf16.gmra.mxu0 %v5220
        %v5297 = vpop.f32.mrf.mxu0
        %v5298 = vadd.f32 %v4699, %v5297
        %v5299 = vpop.f32.mrf.mxu0
        %v5300 = vpop.f32.mrf.mxu0
        %v5301 = vadd.f32 %v4699, %v5300
        %v5302 = vpop.f32.mrf.mxu0
        %5303 = vmatprep.mubr.bf16.mxu0 0
        %5304 = vmatmul.mubr.bf16.gmra.mxu0 %v5223
        %v5305 = vpop.f32.mrf.mxu0
        %v5306 = vadd.f32 %v4699, %v5305
        %v5307 = vpop.f32.mrf.mxu0
        %v5308 = vpop.f32.mrf.mxu0
        %v5309 = vadd.f32 %v4699, %v5308
        %v5310 = vpop.f32.mrf.mxu0
        %5311 = vmatprep.mubr.bf16.mxu0 0
        %5312 = vmatmul.mubr.bf16.gmra.mxu0 %v5226
        %v5313 = vpop.f32.mrf.mxu0
        %v5314 = vadd.f32 %v4699, %v5313
        %v5315 = vpop.f32.mrf.mxu0
        %v5316 = vpop.f32.mrf.mxu0
        %v5317 = vadd.f32 %v4699, %v5316
        %v5318 = vpop.f32.mrf.mxu0
        %5319 = vmatprep.mubr.bf16.mxu0 0
        %5320 = vmatmul.mubr.bf16.gmra.mxu0 %v5229
        %v5321 = vpop.f32.mrf.mxu0
        %v5322 = vadd.f32 %v4699, %v5321
        %v5323 = vpop.f32.mrf.mxu0
        %v5324 = vpop.f32.mrf.mxu0
        %v5325 = vadd.f32 %v4699, %v5324
        %v5326 = vpop.f32.mrf.mxu0
        %5327 = vdwg.mxu0
        %v5328 = vadd.f32 %v5266, %v3715
        %v5329 = vadd.f32 %v5269, %v3718
        %v5330 = vadd.f32 %v5274, %v3723
        %v5331 = vadd.f32 %v5277, %v3726
        %v5332 = vadd.f32 %v5282, %v3731
        %v5333 = vadd.f32 %v5285, %v3734
        %v5334 = vadd.f32 %v5290, %v3739
        %v5335 = vadd.f32 %v5293, %v3742
        %v5336 = vadd.f32 %v5298, %v3747
        %v5337 = vadd.f32 %v5301, %v3750
        %v5338 = vadd.f32 %v5306, %v3755
        %v5339 = vadd.f32 %v5309, %v3758
        %v5340 = vadd.f32 %v5314, %v3763
        %v5341 = vadd.f32 %v5317, %v3766
        %v5342 = vadd.f32 %v5322, %v3771
        %v5343 = vadd.f32 %v5325, %v3774
        %v5344 = vmax.f32 %v5328, 0.0
        %v5345 = vmax.f32 %v5329, 0.0
        %v5346 = vmax.f32 %v5330, 0.0
        %v5347 = vmax.f32 %v5331, 0.0
        %v5348 = vmax.f32 %v5332, 0.0
        %v5349 = vmax.f32 %v5333, 0.0
        %v5350 = vmax.f32 %v5334, 0.0
        %v5351 = vmax.f32 %v5335, 0.0
        %v5352 = vmax.f32 %v5336, 0.0
        %v5353 = vmax.f32 %v5337, 0.0
        %v5354 = vmax.f32 %v5338, 0.0
        %v5355 = vmax.f32 %v5339, 0.0
        %v5356 = vmax.f32 %v5340, 0.0
        %v5357 = vmax.f32 %v5341, 0.0
        %v5358 = vmax.f32 %v5342, 0.0
        %v5359 = vmax.f32 %v5343, 0.0
        %v5360 = vpack.c.bf16 %v5345, %v5344
        %v5361 = vpack.c.bf16 %v5347, %v5346
        %v5362 = vpack.c.bf16 %v5349, %v5348
        %v5363 = vpack.c.bf16 %v5351, %v5350
        %v5364 = vpack.c.bf16 %v5353, %v5352
        %v5365 = vpack.c.bf16 %v5355, %v5354
        %v5366 = vpack.c.bf16 %v5357, %v5356
        %v5367 = vpack.c.bf16 %v5359, %v5358
        %v5369 = vsel %vm4725, %v5360, 0
        %v5372 = vsel %vm4725, %v5361, 0
        %v5375 = vsel %vm4725, %v5362, 0
        %v5378 = vsel %vm4725, %v5363, 0
        %v5381 = vsel %vm4725, %v5364, 0
        %v5384 = vsel %vm4725, %v5365, 0
        %v5387 = vsel %vm4725, %v5366, 0
        %v5390 = vsel %vm4725, %v5367, 0
        %5392 = vmatprep.subr.bf16.mxu0 0
        %5393 = vmatpush1.bf16.msra.mxu0 0
        %5394 = vmatprep.subr.bf16.mxu0 0
        %5395 = vmatpush1.bf16.msra.mxu0 0
        %5396 = vmatprep.subr.bf16.mxu0 0
        %5397 = vmatpush1.bf16.msra.mxu0 0
        %5398 = vmatprep.subr.bf16.mxu0 0
        %5399 = vmatpush1.bf16.msra.mxu0 0
        %5400 = vmatprep.subr.bf16.mxu0 0
        %5401 = vmatpush1.bf16.msra.mxu0 %v4912
        %5402 = vmatprep.subr.bf16.mxu0 0
        %5403 = vmatpush1.bf16.msra.mxu0 %v4911
        %5404 = vmatprep.subr.bf16.mxu0 0
        %5405 = vmatpush1.bf16.msra.mxu0 %v4910
        %5406 = vmatprep.subr.bf16.mxu0 0
        %5407 = vmatpush1.bf16.msra.mxu0 %v4909
        %5408 = vmatprep.subr.bf16.mxu0 0
        %5409 = vmatpush2.bf16.msra.mxu0 0
        %5410 = vmatprep.subr.bf16.mxu0 0
        %5411 = vmatpush2.bf16.msra.mxu0 0
        %5412 = vmatprep.subr.bf16.mxu0 0
        %5413 = vmatpush2.bf16.msra.mxu0 0
        %5414 = vmatprep.subr.bf16.mxu0 0
        %5415 = vmatpush2.bf16.msra.mxu0 0
        %5416 = vmatprep.subr.bf16.mxu0 0
        %5417 = vmatpush2.bf16.msra.mxu0 0
        %5418 = vmatprep.subr.bf16.mxu0 0
        %5419 = vmatpush2.bf16.msra.mxu0 0
        %5420 = vmatprep.subr.bf16.mxu0 0
        %5421 = vmatpush2.bf16.msra.mxu0 0
        %5422 = vmatprep.subr.bf16.mxu0 0
        %5423 = vmatpush2.bf16.msra.mxu0 0
        %5424 = vmatprep.mubr.bf16.mxu0 0
        %5425 = vmatmul.mubr.bf16.gmra.mxu0 %v5369
        %v5426 = vpop.f32.mrf.mxu0
        %v5427 = vadd.f32 %v4891, %v5426
        %v5428 = vpop.f32.mrf.mxu0
        %v5429 = vpop.f32.mrf.mxu0
        %v5430 = vadd.f32 %v4891, %v5429
        %v5431 = vpop.f32.mrf.mxu0
        %5432 = vmatprep.mubr.bf16.mxu0 0
        %5433 = vmatmul.mubr.bf16.gmra.mxu0 %v5372
        %v5434 = vpop.f32.mrf.mxu0
        %v5435 = vadd.f32 %v4891, %v5434
        %v5436 = vpop.f32.mrf.mxu0
        %v5437 = vpop.f32.mrf.mxu0
        %v5438 = vadd.f32 %v4891, %v5437
        %v5439 = vpop.f32.mrf.mxu0
        %5440 = vmatprep.mubr.bf16.mxu0 0
        %5441 = vmatmul.mubr.bf16.gmra.mxu0 %v5375
        %v5442 = vpop.f32.mrf.mxu0
        %v5443 = vadd.f32 %v4891, %v5442
        %v5444 = vpop.f32.mrf.mxu0
        %v5445 = vpop.f32.mrf.mxu0
        %v5446 = vadd.f32 %v4891, %v5445
        %v5447 = vpop.f32.mrf.mxu0
        %5448 = vmatprep.mubr.bf16.mxu0 0
        %5449 = vmatmul.mubr.bf16.gmra.mxu0 %v5378
        %v5450 = vpop.f32.mrf.mxu0
        %v5451 = vadd.f32 %v4891, %v5450
        %v5452 = vpop.f32.mrf.mxu0
        %v5453 = vpop.f32.mrf.mxu0
        %v5454 = vadd.f32 %v4891, %v5453
        %v5455 = vpop.f32.mrf.mxu0
        %5456 = vmatprep.mubr.bf16.mxu0 0
        %5457 = vmatmul.mubr.bf16.gmra.mxu0 %v5381
        %v5458 = vpop.f32.mrf.mxu0
        %v5459 = vadd.f32 %v4891, %v5458
        %v5460 = vpop.f32.mrf.mxu0
        %v5461 = vpop.f32.mrf.mxu0
        %v5462 = vadd.f32 %v4891, %v5461
        %v5463 = vpop.f32.mrf.mxu0
        %5464 = vmatprep.mubr.bf16.mxu0 0
        %5465 = vmatmul.mubr.bf16.gmra.mxu0 %v5384
        %v5466 = vpop.f32.mrf.mxu0
        %v5467 = vadd.f32 %v4891, %v5466
        %v5468 = vpop.f32.mrf.mxu0
        %v5469 = vpop.f32.mrf.mxu0
        %v5470 = vadd.f32 %v4891, %v5469
        %v5471 = vpop.f32.mrf.mxu0
        %5472 = vmatprep.mubr.bf16.mxu0 0
        %5473 = vmatmul.mubr.bf16.gmra.mxu0 %v5387
        %v5474 = vpop.f32.mrf.mxu0
        %v5475 = vadd.f32 %v4891, %v5474
        %v5476 = vpop.f32.mrf.mxu0
        %v5477 = vpop.f32.mrf.mxu0
        %v5478 = vadd.f32 %v4891, %v5477
        %v5479 = vpop.f32.mrf.mxu0
        %5480 = vmatprep.mubr.bf16.mxu0 0
        %5481 = vmatmul.mubr.bf16.gmra.mxu0 %v5390
        %v5482 = vpop.f32.mrf.mxu0
        %v5483 = vadd.f32 %v4891, %v5482
        %v5484 = vpop.f32.mrf.mxu0
        %v5485 = vpop.f32.mrf.mxu0
        %v5486 = vadd.f32 %v4891, %v5485
        %v5487 = vpop.f32.mrf.mxu0
        %5488 = vdwg.mxu0
        %v5489 = vmax.f32 %v5427, 0.0
        %v5490 = vmax.f32 %v5430, 0.0
        %v5491 = vmax.f32 %v5435, 0.0
        %v5492 = vmax.f32 %v5438, 0.0
        %v5493 = vmax.f32 %v5443, 0.0
        %v5494 = vmax.f32 %v5446, 0.0
        %v5495 = vmax.f32 %v5451, 0.0
        %v5496 = vmax.f32 %v5454, 0.0
        %v5497 = vmax.f32 %v5459, 0.0
        %v5498 = vmax.f32 %v5462, 0.0
        %v5499 = vmax.f32 %v5467, 0.0
        %v5500 = vmax.f32 %v5470, 0.0
        %v5501 = vmax.f32 %v5475, 0.0
        %v5502 = vmax.f32 %v5478, 0.0
        %v5503 = vmax.f32 %v5483, 0.0
        %v5504 = vmax.f32 %v5486, 0.0
        %v5505 = vpack.c.bf16 %v5490, %v5489
        %v5506 = vpack.c.bf16 %v5492, %v5491
        %v5507 = vpack.c.bf16 %v5494, %v5493
        %v5508 = vpack.c.bf16 %v5496, %v5495
        %v5509 = vpack.c.bf16 %v5498, %v5497
        %v5510 = vpack.c.bf16 %v5500, %v5499
        %v5511 = vpack.c.bf16 %v5502, %v5501
        %v5512 = vpack.c.bf16 %v5504, %v5503
        %v5514 = vsel %vm4725, %v5505, 0
        %v5517 = vsel %vm4725, %v5506, 0
        %v5520 = vsel %vm4725, %v5507, 0
        %v5523 = vsel %vm4725, %v5508, 0
        %v5526 = vsel %vm4725, %v5509, 0
        %v5529 = vsel %vm4725, %v5510, 0
        %v5532 = vsel %vm4725, %v5511, 0
        %v5535 = vsel %vm4725, %v5512, 0
        %5537 = vmatprep.subr.bf16.mxu0 0
        %5538 = vmatpush1.bf16.msra.mxu0 0
        %5539 = vmatprep.subr.bf16.mxu0 0
        %5540 = vmatpush1.bf16.msra.mxu0 0
        %5541 = vmatprep.subr.bf16.mxu0 0
        %5542 = vmatpush1.bf16.msra.mxu0 0
        %5543 = vmatprep.subr.bf16.mxu0 0
        %5544 = vmatpush1.bf16.msra.mxu0 0
        %5545 = vmatprep.subr.bf16.mxu0 0
        %5546 = vmatpush1.bf16.msra.mxu0 %v5081
        %5547 = vmatprep.subr.bf16.mxu0 0
        %5548 = vmatpush1.bf16.msra.mxu0 %v5080
        %5549 = vmatprep.subr.bf16.mxu0 0
        %5550 = vmatpush1.bf16.msra.mxu0 %v5079
        %5551 = vmatprep.subr.bf16.mxu0 0
        %5552 = vmatpush1.bf16.msra.mxu0 %v5078
        %5553 = vmatprep.subr.bf16.mxu0 0
        %5554 = vmatpush2.bf16.msra.mxu0 0
        %5555 = vmatprep.subr.bf16.mxu0 0
        %5556 = vmatpush2.bf16.msra.mxu0 0
        %5557 = vmatprep.subr.bf16.mxu0 0
        %5558 = vmatpush2.bf16.msra.mxu0 0
        %5559 = vmatprep.subr.bf16.mxu0 0
        %5560 = vmatpush2.bf16.msra.mxu0 0
        %5561 = vmatprep.subr.bf16.mxu0 0
        %5562 = vmatpush2.bf16.msra.mxu0 0
        %5563 = vmatprep.subr.bf16.mxu0 0
        %5564 = vmatpush2.bf16.msra.mxu0 0
        %5565 = vmatprep.subr.bf16.mxu0 0
        %5566 = vmatpush2.bf16.msra.mxu0 0
        %5567 = vmatprep.subr.bf16.mxu0 0
        %5568 = vmatpush2.bf16.msra.mxu0 0
        %5569 = vmatprep.mubr.bf16.mxu0 0
        %5570 = vmatmul.mubr.bf16.gmra.mxu0 %v5514
        %v5571 = vpop.f32.mrf.mxu0
        %v5572 = vadd.f32 0.0, %v5571
        %v5573 = vpop.f32.mrf.mxu0
        %v5574 = vpop.f32.mrf.mxu0
        %v5575 = vadd.f32 0.0, %v5574
        %v5576 = vpop.f32.mrf.mxu0
        %5577 = vmatprep.mubr.bf16.mxu0 0
        %5578 = vmatmul.mubr.bf16.gmra.mxu0 %v5517
        %v5579 = vpop.f32.mrf.mxu0
        %v5580 = vadd.f32 0.0, %v5579
        %v5581 = vpop.f32.mrf.mxu0
        %v5582 = vpop.f32.mrf.mxu0
        %v5583 = vadd.f32 0.0, %v5582
        %v5584 = vpop.f32.mrf.mxu0
        %5585 = vmatprep.mubr.bf16.mxu0 0
        %5586 = vmatmul.mubr.bf16.gmra.mxu0 %v5520
        %v5587 = vpop.f32.mrf.mxu0
        %v5588 = vadd.f32 0.0, %v5587
        %v5589 = vpop.f32.mrf.mxu0
        %v5590 = vpop.f32.mrf.mxu0
        %v5591 = vadd.f32 0.0, %v5590
        %v5592 = vpop.f32.mrf.mxu0
        %5593 = vmatprep.mubr.bf16.mxu0 0
        %5594 = vmatmul.mubr.bf16.gmra.mxu0 %v5523
        %v5595 = vpop.f32.mrf.mxu0
        %v5596 = vadd.f32 0.0, %v5595
        %v5597 = vpop.f32.mrf.mxu0
        %v5598 = vpop.f32.mrf.mxu0
        %v5599 = vadd.f32 0.0, %v5598
        %v5600 = vpop.f32.mrf.mxu0
        %5601 = vmatprep.mubr.bf16.mxu0 0
        %5602 = vmatmul.mubr.bf16.gmra.mxu0 %v5526
        %v5603 = vpop.f32.mrf.mxu0
        %v5604 = vadd.f32 0.0, %v5603
        %v5605 = vpop.f32.mrf.mxu0
        %v5606 = vpop.f32.mrf.mxu0
        %v5607 = vadd.f32 0.0, %v5606
        %v5608 = vpop.f32.mrf.mxu0
        %5609 = vmatprep.mubr.bf16.mxu0 0
        %5610 = vmatmul.mubr.bf16.gmra.mxu0 %v5529
        %v5611 = vpop.f32.mrf.mxu0
        %v5612 = vadd.f32 0.0, %v5611
        %v5613 = vpop.f32.mrf.mxu0
        %v5614 = vpop.f32.mrf.mxu0
        %v5615 = vadd.f32 0.0, %v5614
        %v5616 = vpop.f32.mrf.mxu0
        %5617 = vmatprep.mubr.bf16.mxu0 0
        %5618 = vmatmul.mubr.bf16.gmra.mxu0 %v5532
        %v5619 = vpop.f32.mrf.mxu0
        %v5620 = vadd.f32 0.0, %v5619
        %v5621 = vpop.f32.mrf.mxu0
        %v5622 = vpop.f32.mrf.mxu0
        %v5623 = vadd.f32 0.0, %v5622
        %v5624 = vpop.f32.mrf.mxu0
        %5625 = vmatprep.mubr.bf16.mxu0 0
        %5626 = vmatmul.mubr.bf16.gmra.mxu0 %v5535
        %v5627 = vpop.f32.mrf.mxu0
        %v5628 = vadd.f32 0.0, %v5627
        %v5629 = vpop.f32.mrf.mxu0
        %v5630 = vpop.f32.mrf.mxu0
        %v5631 = vadd.f32 0.0, %v5630
        %v5632 = vpop.f32.mrf.mxu0
        %5633 = vdwg.mxu0
        %v5635 = vsel %vm4725, %v4632, 0
        %v5638 = vsel %vm4725, %v4633, 0
        %v5641 = vsel %vm4725, %v4634, 0
        %v5644 = vsel %vm4725, %v4635, 0
        %v5647 = vsel %vm4725, %v4636, 0
        %v5650 = vsel %vm4725, %v4637, 0
        %v5653 = vsel %vm4725, %v4638, 0
        %v5656 = vsel %vm4725, %v4639, 0
        %5658 = vmatprep.subr.bf16.mxu0 0
        %5659 = vmatpush1.bf16.msra.mxu0 0
        %5660 = vmatprep.subr.bf16.mxu0 0
        %5661 = vmatpush1.bf16.msra.mxu0 0
        %5662 = vmatprep.subr.bf16.mxu0 0
        %5663 = vmatpush1.bf16.msra.mxu0 0
        %5664 = vmatprep.subr.bf16.mxu0 0
        %5665 = vmatpush1.bf16.msra.mxu0 0
        %5666 = vmatprep.subr.bf16.mxu0 0
        %5667 = vmatpush1.bf16.msra.mxu0 %v4720
        %5668 = vmatprep.subr.bf16.mxu0 0
        %5669 = vmatpush1.bf16.msra.mxu0 %v4719
        %5670 = vmatprep.subr.bf16.mxu0 0
        %5671 = vmatpush1.bf16.msra.mxu0 %v4718
        %5672 = vmatprep.subr.bf16.mxu0 0
        %5673 = vmatpush1.bf16.msra.mxu0 %v4717
        %5674 = vmatprep.subr.bf16.mxu0 0
        %5675 = vmatpush2.bf16.msra.mxu0 0
        %5676 = vmatprep.subr.bf16.mxu0 0
        %5677 = vmatpush2.bf16.msra.mxu0 0
        %5678 = vmatprep.subr.bf16.mxu0 0
        %5679 = vmatpush2.bf16.msra.mxu0 0
        %5680 = vmatprep.subr.bf16.mxu0 0
        %5681 = vmatpush2.bf16.msra.mxu0 0
        %5682 = vmatprep.subr.bf16.mxu0 0
        %5683 = vmatpush2.bf16.msra.mxu0 0
        %5684 = vmatprep.subr.bf16.mxu0 0
        %5685 = vmatpush2.bf16.msra.mxu0 0
        %5686 = vmatprep.subr.bf16.mxu0 0
        %5687 = vmatpush2.bf16.msra.mxu0 0
        %5688 = vmatprep.subr.bf16.mxu0 0
        %5689 = vmatpush2.bf16.msra.mxu0 0
        %5690 = vmatprep.mubr.bf16.mxu0 0
        %5691 = vmatmul.mubr.bf16.gmra.mxu0 %v5635
        %v5692 = vpop.f32.mrf.mxu0
        %v5693 = vadd.f32 %v4699, %v5692
        %v5694 = vpop.f32.mrf.mxu0
        %v5695 = vpop.f32.mrf.mxu0
        %v5696 = vadd.f32 %v4699, %v5695
        %v5697 = vpop.f32.mrf.mxu0
        %5698 = vmatprep.mubr.bf16.mxu0 0
        %5699 = vmatmul.mubr.bf16.gmra.mxu0 %v5638
        %v5700 = vpop.f32.mrf.mxu0
        %v5701 = vadd.f32 %v4699, %v5700
        %v5702 = vpop.f32.mrf.mxu0
        %v5703 = vpop.f32.mrf.mxu0
        %v5704 = vadd.f32 %v4699, %v5703
        %v5705 = vpop.f32.mrf.mxu0
        %5706 = vmatprep.mubr.bf16.mxu0 0
        %5707 = vmatmul.mubr.bf16.gmra.mxu0 %v5641
        %v5708 = vpop.f32.mrf.mxu0
        %v5709 = vadd.f32 %v4699, %v5708
        %v5710 = vpop.f32.mrf.mxu0
        %v5711 = vpop.f32.mrf.mxu0
        %v5712 = vadd.f32 %v4699, %v5711
        %v5713 = vpop.f32.mrf.mxu0
        %5714 = vmatprep.mubr.bf16.mxu0 0
        %5715 = vmatmul.mubr.bf16.gmra.mxu0 %v5644
        %v5716 = vpop.f32.mrf.mxu0
        %v5717 = vadd.f32 %v4699, %v5716
        %v5718 = vpop.f32.mrf.mxu0
        %v5719 = vpop.f32.mrf.mxu0
        %v5720 = vadd.f32 %v4699, %v5719
        %v5721 = vpop.f32.mrf.mxu0
        %5722 = vmatprep.mubr.bf16.mxu0 0
        %5723 = vmatmul.mubr.bf16.gmra.mxu0 %v5647
        %v5724 = vpop.f32.mrf.mxu0
        %v5725 = vadd.f32 %v4699, %v5724
        %v5726 = vpop.f32.mrf.mxu0
        %v5727 = vpop.f32.mrf.mxu0
        %v5728 = vadd.f32 %v4699, %v5727
        %v5729 = vpop.f32.mrf.mxu0
        %5730 = vmatprep.mubr.bf16.mxu0 0
        %5731 = vmatmul.mubr.bf16.gmra.mxu0 %v5650
        %v5732 = vpop.f32.mrf.mxu0
        %v5733 = vadd.f32 %v4699, %v5732
        %v5734 = vpop.f32.mrf.mxu0
        %v5735 = vpop.f32.mrf.mxu0
        %v5736 = vadd.f32 %v4699, %v5735
        %v5737 = vpop.f32.mrf.mxu0
        %5738 = vmatprep.mubr.bf16.mxu0 0
        %5739 = vmatmul.mubr.bf16.gmra.mxu0 %v5653
        %v5740 = vpop.f32.mrf.mxu0
        %v5741 = vadd.f32 %v4699, %v5740
        %v5742 = vpop.f32.mrf.mxu0
        %v5743 = vpop.f32.mrf.mxu0
        %v5744 = vadd.f32 %v4699, %v5743
        %v5745 = vpop.f32.mrf.mxu0
        %5746 = vmatprep.mubr.bf16.mxu0 0
        %5747 = vmatmul.mubr.bf16.gmra.mxu0 %v5656
        %v5748 = vpop.f32.mrf.mxu0
        %v5749 = vadd.f32 %v4699, %v5748
        %v5750 = vpop.f32.mrf.mxu0
        %v5751 = vpop.f32.mrf.mxu0
        %v5752 = vadd.f32 %v4699, %v5751
        %v5753 = vpop.f32.mrf.mxu0
        %5754 = vdwg.mxu0
        %v5755 = vadd.f32 %v5693, %v3715
        %v5756 = vadd.f32 %v5696, %v3718
        %v5757 = vadd.f32 %v5701, %v3723
        %v5758 = vadd.f32 %v5704, %v3726
        %v5759 = vadd.f32 %v5709, %v3731
        %v5760 = vadd.f32 %v5712, %v3734
        %v5761 = vadd.f32 %v5717, %v3739
        %v5762 = vadd.f32 %v5720, %v3742
        %v5763 = vadd.f32 %v5725, %v3747
        %v5764 = vadd.f32 %v5728, %v3750
        %v5765 = vadd.f32 %v5733, %v3755
        %v5766 = vadd.f32 %v5736, %v3758
        %v5767 = vadd.f32 %v5741, %v3763
        %v5768 = vadd.f32 %v5744, %v3766
        %v5769 = vadd.f32 %v5749, %v3771
        %v5770 = vadd.f32 %v5752, %v3774
        %v5771 = vmax.f32 %v5755, 0.0
        %v5772 = vmax.f32 %v5756, 0.0
        %v5773 = vmax.f32 %v5757, 0.0
        %v5774 = vmax.f32 %v5758, 0.0
        %v5775 = vmax.f32 %v5759, 0.0
        %v5776 = vmax.f32 %v5760, 0.0
        %v5777 = vmax.f32 %v5761, 0.0
        %v5778 = vmax.f32 %v5762, 0.0
        %v5779 = vmax.f32 %v5763, 0.0
        %v5780 = vmax.f32 %v5764, 0.0
        %v5781 = vmax.f32 %v5765, 0.0
        %v5782 = vmax.f32 %v5766, 0.0
        %v5783 = vmax.f32 %v5767, 0.0
        %v5784 = vmax.f32 %v5768, 0.0
        %v5785 = vmax.f32 %v5769, 0.0
        %v5786 = vmax.f32 %v5770, 0.0
        %v5787 = vpack.c.bf16 %v5772, %v5771
        %v5788 = vpack.c.bf16 %v5774, %v5773
        %v5789 = vpack.c.bf16 %v5776, %v5775
        %v5790 = vpack.c.bf16 %v5778, %v5777
        %v5791 = vpack.c.bf16 %v5780, %v5779
        %v5792 = vpack.c.bf16 %v5782, %v5781
        %v5793 = vpack.c.bf16 %v5784, %v5783
        %v5794 = vpack.c.bf16 %v5786, %v5785
        %v5796 = vsel %vm4725, %v5787, 0
        %v5799 = vsel %vm4725, %v5788, 0
        %v5802 = vsel %vm4725, %v5789, 0
        %v5805 = vsel %vm4725, %v5790, 0
        %v5808 = vsel %vm4725, %v5791, 0
        %v5811 = vsel %vm4725, %v5792, 0
        %v5814 = vsel %vm4725, %v5793, 0
        %v5817 = vsel %vm4725, %v5794, 0
        %5819 = vmatprep.subr.bf16.mxu0 0
        %5820 = vmatpush1.bf16.msra.mxu0 0
        %5821 = vmatprep.subr.bf16.mxu0 0
        %5822 = vmatpush1.bf16.msra.mxu0 0
        %5823 = vmatprep.subr.bf16.mxu0 0
        %5824 = vmatpush1.bf16.msra.mxu0 0
        %5825 = vmatprep.subr.bf16.mxu0 0
        %5826 = vmatpush1.bf16.msra.mxu0 0
        %5827 = vmatprep.subr.bf16.mxu0 0
        %5828 = vmatpush1.bf16.msra.mxu0 %v4912
        %5829 = vmatprep.subr.bf16.mxu0 0
        %5830 = vmatpush1.bf16.msra.mxu0 %v4911
        %5831 = vmatprep.subr.bf16.mxu0 0
        %5832 = vmatpush1.bf16.msra.mxu0 %v4910
        %5833 = vmatprep.subr.bf16.mxu0 0
        %5834 = vmatpush1.bf16.msra.mxu0 %v4909
        %5835 = vmatprep.subr.bf16.mxu0 0
        %5836 = vmatpush2.bf16.msra.mxu0 0
        %5837 = vmatprep.subr.bf16.mxu0 0
        %5838 = vmatpush2.bf16.msra.mxu0 0
        %5839 = vmatprep.subr.bf16.mxu0 0
        %5840 = vmatpush2.bf16.msra.mxu0 0
        %5841 = vmatprep.subr.bf16.mxu0 0
        %5842 = vmatpush2.bf16.msra.mxu0 0
        %5843 = vmatprep.subr.bf16.mxu0 0
        %5844 = vmatpush2.bf16.msra.mxu0 0
        %5845 = vmatprep.subr.bf16.mxu0 0
        %5846 = vmatpush2.bf16.msra.mxu0 0
        %5847 = vmatprep.subr.bf16.mxu0 0
        %5848 = vmatpush2.bf16.msra.mxu0 0
        %5849 = vmatprep.subr.bf16.mxu0 0
        %5850 = vmatpush2.bf16.msra.mxu0 0
        %5851 = vmatprep.mubr.bf16.mxu0 0
        %5852 = vmatmul.mubr.bf16.gmra.mxu0 %v5796
        %v5853 = vpop.f32.mrf.mxu0
        %v5854 = vadd.f32 %v4891, %v5853
        %v5855 = vpop.f32.mrf.mxu0
        %v5856 = vpop.f32.mrf.mxu0
        %v5857 = vadd.f32 %v4891, %v5856
        %v5858 = vpop.f32.mrf.mxu0
        %5859 = vmatprep.mubr.bf16.mxu0 0
        %5860 = vmatmul.mubr.bf16.gmra.mxu0 %v5799
        %v5861 = vpop.f32.mrf.mxu0
        %v5862 = vadd.f32 %v4891, %v5861
        %v5863 = vpop.f32.mrf.mxu0
        %v5864 = vpop.f32.mrf.mxu0
        %v5865 = vadd.f32 %v4891, %v5864
        %v5866 = vpop.f32.mrf.mxu0
        %5867 = vmatprep.mubr.bf16.mxu0 0
        %5868 = vmatmul.mubr.bf16.gmra.mxu0 %v5802
        %v5869 = vpop.f32.mrf.mxu0
        %v5870 = vadd.f32 %v4891, %v5869
        %v5871 = vpop.f32.mrf.mxu0
        %v5872 = vpop.f32.mrf.mxu0
        %v5873 = vadd.f32 %v4891, %v5872
        %v5874 = vpop.f32.mrf.mxu0
        %5875 = vmatprep.mubr.bf16.mxu0 0
        %5876 = vmatmul.mubr.bf16.gmra.mxu0 %v5805
        %v5877 = vpop.f32.mrf.mxu0
        %v5878 = vadd.f32 %v4891, %v5877
        %v5879 = vpop.f32.mrf.mxu0
        %v5880 = vpop.f32.mrf.mxu0
        %v5881 = vadd.f32 %v4891, %v5880
        %v5882 = vpop.f32.mrf.mxu0
        %5883 = vmatprep.mubr.bf16.mxu0 0
        %5884 = vmatmul.mubr.bf16.gmra.mxu0 %v5808
        %v5885 = vpop.f32.mrf.mxu0
        %v5886 = vadd.f32 %v4891, %v5885
        %v5887 = vpop.f32.mrf.mxu0
        %v5888 = vpop.f32.mrf.mxu0
        %v5889 = vadd.f32 %v4891, %v5888
        %v5890 = vpop.f32.mrf.mxu0
        %5891 = vmatprep.mubr.bf16.mxu0 0
        %5892 = vmatmul.mubr.bf16.gmra.mxu0 %v5811
        %v5893 = vpop.f32.mrf.mxu0
        %v5894 = vadd.f32 %v4891, %v5893
        %v5895 = vpop.f32.mrf.mxu0
        %v5896 = vpop.f32.mrf.mxu0
        %v5897 = vadd.f32 %v4891, %v5896
        %v5898 = vpop.f32.mrf.mxu0
        %5899 = vmatprep.mubr.bf16.mxu0 0
        %5900 = vmatmul.mubr.bf16.gmra.mxu0 %v5814
        %v5901 = vpop.f32.mrf.mxu0
        %v5902 = vadd.f32 %v4891, %v5901
        %v5903 = vpop.f32.mrf.mxu0
        %v5904 = vpop.f32.mrf.mxu0
        %v5905 = vadd.f32 %v4891, %v5904
        %v5906 = vpop.f32.mrf.mxu0
        %5907 = vmatprep.mubr.bf16.mxu0 0
        %5908 = vmatmul.mubr.bf16.gmra.mxu0 %v5817
        %v5909 = vpop.f32.mrf.mxu0
        %v5910 = vadd.f32 %v4891, %v5909
        %v5911 = vpop.f32.mrf.mxu0
        %v5912 = vpop.f32.mrf.mxu0
        %v5913 = vadd.f32 %v4891, %v5912
        %v5914 = vpop.f32.mrf.mxu0
        %5915 = vdwg.mxu0
        %v5916 = vmax.f32 %v5854, 0.0
        %v5917 = vmax.f32 %v5857, 0.0
        %v5918 = vmax.f32 %v5862, 0.0
        %v5919 = vmax.f32 %v5865, 0.0
        %v5920 = vmax.f32 %v5870, 0.0
        %v5921 = vmax.f32 %v5873, 0.0
        %v5922 = vmax.f32 %v5878, 0.0
        %v5923 = vmax.f32 %v5881, 0.0
        %v5924 = vmax.f32 %v5886, 0.0
        %v5925 = vmax.f32 %v5889, 0.0
        %v5926 = vmax.f32 %v5894, 0.0
        %v5927 = vmax.f32 %v5897, 0.0
        %v5928 = vmax.f32 %v5902, 0.0
        %v5929 = vmax.f32 %v5905, 0.0
        %v5930 = vmax.f32 %v5910, 0.0
        %v5931 = vmax.f32 %v5913, 0.0
        %v5932 = vpack.c.bf16 %v5917, %v5916
        %v5933 = vpack.c.bf16 %v5919, %v5918
        %v5934 = vpack.c.bf16 %v5921, %v5920
        %v5935 = vpack.c.bf16 %v5923, %v5922
        %v5936 = vpack.c.bf16 %v5925, %v5924
        %v5937 = vpack.c.bf16 %v5927, %v5926
        %v5938 = vpack.c.bf16 %v5929, %v5928
        %v5939 = vpack.c.bf16 %v5931, %v5930
        %v5941 = vsel %vm4725, %v5932, 0
        %v5944 = vsel %vm4725, %v5933, 0
        %v5947 = vsel %vm4725, %v5934, 0
        %v5950 = vsel %vm4725, %v5935, 0
        %v5953 = vsel %vm4725, %v5936, 0
        %v5956 = vsel %vm4725, %v5937, 0
        %v5959 = vsel %vm4725, %v5938, 0
        %v5962 = vsel %vm4725, %v5939, 0
        %5964 = vmatprep.subr.bf16.mxu0 0
        %5965 = vmatpush1.bf16.msra.mxu0 0
        %5966 = vmatprep.subr.bf16.mxu0 0
        %5967 = vmatpush1.bf16.msra.mxu0 0
        %5968 = vmatprep.subr.bf16.mxu0 0
        %5969 = vmatpush1.bf16.msra.mxu0 0
        %5970 = vmatprep.subr.bf16.mxu0 0
        %5971 = vmatpush1.bf16.msra.mxu0 0
        %5972 = vmatprep.subr.bf16.mxu0 0
        %5973 = vmatpush1.bf16.msra.mxu0 %v5081
        %5974 = vmatprep.subr.bf16.mxu0 0
        %5975 = vmatpush1.bf16.msra.mxu0 %v5080
        %5976 = vmatprep.subr.bf16.mxu0 0
        %5977 = vmatpush1.bf16.msra.mxu0 %v5079
        %5978 = vmatprep.subr.bf16.mxu0 0
        %5979 = vmatpush1.bf16.msra.mxu0 %v5078
        %5980 = vmatprep.subr.bf16.mxu0 0
        %5981 = vmatpush2.bf16.msra.mxu0 0
        %5982 = vmatprep.subr.bf16.mxu0 0
        %5983 = vmatpush2.bf16.msra.mxu0 0
        %5984 = vmatprep.subr.bf16.mxu0 0
        %5985 = vmatpush2.bf16.msra.mxu0 0
        %5986 = vmatprep.subr.bf16.mxu0 0
        %5987 = vmatpush2.bf16.msra.mxu0 0
        %5988 = vmatprep.subr.bf16.mxu0 0
        %5989 = vmatpush2.bf16.msra.mxu0 0
        %5990 = vmatprep.subr.bf16.mxu0 0
        %5991 = vmatpush2.bf16.msra.mxu0 0
        %5992 = vmatprep.subr.bf16.mxu0 0
        %5993 = vmatpush2.bf16.msra.mxu0 0
        %5994 = vmatprep.subr.bf16.mxu0 0
        %5995 = vmatpush2.bf16.msra.mxu0 0
        %5996 = vmatprep.mubr.bf16.mxu0 0
        %5997 = vmatmul.mubr.bf16.gmra.mxu0 %v5941
        %v5998 = vpop.f32.mrf.mxu0
        %v5999 = vadd.f32 0.0, %v5998
        %v6000 = vpop.f32.mrf.mxu0
        %v6001 = vpop.f32.mrf.mxu0
        %v6002 = vadd.f32 0.0, %v6001
        %v6003 = vpop.f32.mrf.mxu0
        %6004 = vmatprep.mubr.bf16.mxu0 0
        %6005 = vmatmul.mubr.bf16.gmra.mxu0 %v5944
        %v6006 = vpop.f32.mrf.mxu0
        %v6007 = vadd.f32 0.0, %v6006
        %v6008 = vpop.f32.mrf.mxu0
        %v6009 = vpop.f32.mrf.mxu0
        %v6010 = vadd.f32 0.0, %v6009
        %v6011 = vpop.f32.mrf.mxu0
        %6012 = vmatprep.mubr.bf16.mxu0 0
        %6013 = vmatmul.mubr.bf16.gmra.mxu0 %v5947
        %v6014 = vpop.f32.mrf.mxu0
        %v6015 = vadd.f32 0.0, %v6014
        %v6016 = vpop.f32.mrf.mxu0
        %v6017 = vpop.f32.mrf.mxu0
        %v6018 = vadd.f32 0.0, %v6017
        %v6019 = vpop.f32.mrf.mxu0
        %6020 = vmatprep.mubr.bf16.mxu0 0
        %6021 = vmatmul.mubr.bf16.gmra.mxu0 %v5950
        %v6022 = vpop.f32.mrf.mxu0
        %v6023 = vadd.f32 0.0, %v6022
        %v6024 = vpop.f32.mrf.mxu0
        %v6025 = vpop.f32.mrf.mxu0
        %v6026 = vadd.f32 0.0, %v6025
        %v6027 = vpop.f32.mrf.mxu0
        %6028 = vmatprep.mubr.bf16.mxu0 0
        %6029 = vmatmul.mubr.bf16.gmra.mxu0 %v5953
        %v6030 = vpop.f32.mrf.mxu0
        %v6031 = vadd.f32 0.0, %v6030
        %v6032 = vpop.f32.mrf.mxu0
        %v6033 = vpop.f32.mrf.mxu0
        %v6034 = vadd.f32 0.0, %v6033
        %v6035 = vpop.f32.mrf.mxu0
        %6036 = vmatprep.mubr.bf16.mxu0 0
        %6037 = vmatmul.mubr.bf16.gmra.mxu0 %v5956
        %v6038 = vpop.f32.mrf.mxu0
        %v6039 = vadd.f32 0.0, %v6038
        %v6040 = vpop.f32.mrf.mxu0
        %v6041 = vpop.f32.mrf.mxu0
        %v6042 = vadd.f32 0.0, %v6041
        %v6043 = vpop.f32.mrf.mxu0
        %6044 = vmatprep.mubr.bf16.mxu0 0
        %6045 = vmatmul.mubr.bf16.gmra.mxu0 %v5959
        %v6046 = vpop.f32.mrf.mxu0
        %v6047 = vadd.f32 0.0, %v6046
        %v6048 = vpop.f32.mrf.mxu0
        %v6049 = vpop.f32.mrf.mxu0
        %v6050 = vadd.f32 0.0, %v6049
        %v6051 = vpop.f32.mrf.mxu0
        %6052 = vmatprep.mubr.bf16.mxu0 0
        %6053 = vmatmul.mubr.bf16.gmra.mxu0 %v5962
        %v6054 = vpop.f32.mrf.mxu0
        %v6055 = vadd.f32 0.0, %v6054
        %v6056 = vpop.f32.mrf.mxu0
        %v6057 = vpop.f32.mrf.mxu0
        %v6058 = vadd.f32 0.0, %v6057
        %v6059 = vpop.f32.mrf.mxu0
        %6060 = vdwg.mxu0
        %v6062 = vsel %vm4725, %v4640, 0
        %v6065 = vsel %vm4725, %v4641, 0
        %v6068 = vsel %vm4725, %v4642, 0
        %v6071 = vsel %vm4725, %v4643, 0
        %v6074 = vsel %vm4725, %v4644, 0
        %v6077 = vsel %vm4725, %v4645, 0
        %v6080 = vsel %vm4725, %v4646, 0
        %v6083 = vsel %vm4725, %v4647, 0
        %6085 = vmatprep.subr.bf16.mxu0 0
        %6086 = vmatpush1.bf16.msra.mxu0 0
        %6087 = vmatprep.subr.bf16.mxu0 0
        %6088 = vmatpush1.bf16.msra.mxu0 0
        %6089 = vmatprep.subr.bf16.mxu0 0
        %6090 = vmatpush1.bf16.msra.mxu0 0
        %6091 = vmatprep.subr.bf16.mxu0 0
        %6092 = vmatpush1.bf16.msra.mxu0 0
        %6093 = vmatprep.subr.bf16.mxu0 0
        %6094 = vmatpush1.bf16.msra.mxu0 %v4720
        %6095 = vmatprep.subr.bf16.mxu0 0
        %6096 = vmatpush1.bf16.msra.mxu0 %v4719
        %6097 = vmatprep.subr.bf16.mxu0 0
        %6098 = vmatpush1.bf16.msra.mxu0 %v4718
        %6099 = vmatprep.subr.bf16.mxu0 0
        %6100 = vmatpush1.bf16.msra.mxu0 %v4717
        %6101 = vmatprep.subr.bf16.mxu0 0
        %6102 = vmatpush2.bf16.msra.mxu0 0
        %6103 = vmatprep.subr.bf16.mxu0 0
        %6104 = vmatpush2.bf16.msra.mxu0 0
        %6105 = vmatprep.subr.bf16.mxu0 0
        %6106 = vmatpush2.bf16.msra.mxu0 0
        %6107 = vmatprep.subr.bf16.mxu0 0
        %6108 = vmatpush2.bf16.msra.mxu0 0
        %6109 = vmatprep.subr.bf16.mxu0 0
        %6110 = vmatpush2.bf16.msra.mxu0 0
        %6111 = vmatprep.subr.bf16.mxu0 0
        %6112 = vmatpush2.bf16.msra.mxu0 0
        %6113 = vmatprep.subr.bf16.mxu0 0
        %6114 = vmatpush2.bf16.msra.mxu0 0
        %6115 = vmatprep.subr.bf16.mxu0 0
        %6116 = vmatpush2.bf16.msra.mxu0 0
        %6117 = vmatprep.mubr.bf16.mxu0 0
        %6118 = vmatmul.mubr.bf16.gmra.mxu0 %v6062
        %v6119 = vpop.f32.mrf.mxu0
        %v6120 = vadd.f32 %v4699, %v6119
        %v6121 = vpop.f32.mrf.mxu0
        %v6122 = vpop.f32.mrf.mxu0
        %v6123 = vadd.f32 %v4699, %v6122
        %v6124 = vpop.f32.mrf.mxu0
        %6125 = vmatprep.mubr.bf16.mxu0 0
        %6126 = vmatmul.mubr.bf16.gmra.mxu0 %v6065
        %v6127 = vpop.f32.mrf.mxu0
        %v6128 = vadd.f32 %v4699, %v6127
        %v6129 = vpop.f32.mrf.mxu0
        %v6130 = vpop.f32.mrf.mxu0
        %v6131 = vadd.f32 %v4699, %v6130
        %v6132 = vpop.f32.mrf.mxu0
        %6133 = vmatprep.mubr.bf16.mxu0 0
        %6134 = vmatmul.mubr.bf16.gmra.mxu0 %v6068
        %v6135 = vpop.f32.mrf.mxu0
        %v6136 = vadd.f32 %v4699, %v6135
        %v6137 = vpop.f32.mrf.mxu0
        %v6138 = vpop.f32.mrf.mxu0
        %v6139 = vadd.f32 %v4699, %v6138
        %v6140 = vpop.f32.mrf.mxu0
        %6141 = vmatprep.mubr.bf16.mxu0 0
        %6142 = vmatmul.mubr.bf16.gmra.mxu0 %v6071
        %v6143 = vpop.f32.mrf.mxu0
        %v6144 = vadd.f32 %v4699, %v6143
        %v6145 = vpop.f32.mrf.mxu0
        %v6146 = vpop.f32.mrf.mxu0
        %v6147 = vadd.f32 %v4699, %v6146
        %v6148 = vpop.f32.mrf.mxu0
        %6149 = vmatprep.mubr.bf16.mxu0 0
        %6150 = vmatmul.mubr.bf16.gmra.mxu0 %v6074
        %v6151 = vpop.f32.mrf.mxu0
        %v6152 = vadd.f32 %v4699, %v6151
        %v6153 = vpop.f32.mrf.mxu0
        %v6154 = vpop.f32.mrf.mxu0
        %v6155 = vadd.f32 %v4699, %v6154
        %v6156 = vpop.f32.mrf.mxu0
        %6157 = vmatprep.mubr.bf16.mxu0 0
        %6158 = vmatmul.mubr.bf16.gmra.mxu0 %v6077
        %v6159 = vpop.f32.mrf.mxu0
        %v6160 = vadd.f32 %v4699, %v6159
        %v6161 = vpop.f32.mrf.mxu0
        %v6162 = vpop.f32.mrf.mxu0
        %v6163 = vadd.f32 %v4699, %v6162
        %v6164 = vpop.f32.mrf.mxu0
        %6165 = vmatprep.mubr.bf16.mxu0 0
        %6166 = vmatmul.mubr.bf16.gmra.mxu0 %v6080
        %v6167 = vpop.f32.mrf.mxu0
        %v6168 = vadd.f32 %v4699, %v6167
        %v6169 = vpop.f32.mrf.mxu0
        %v6170 = vpop.f32.mrf.mxu0
        %v6171 = vadd.f32 %v4699, %v6170
        %v6172 = vpop.f32.mrf.mxu0
        %6173 = vmatprep.mubr.bf16.mxu0 0
        %6174 = vmatmul.mubr.bf16.gmra.mxu0 %v6083
        %v6175 = vpop.f32.mrf.mxu0
        %v6176 = vadd.f32 %v4699, %v6175
        %v6177 = vpop.f32.mrf.mxu0
        %v6178 = vpop.f32.mrf.mxu0
        %v6179 = vadd.f32 %v4699, %v6178
        %v6180 = vpop.f32.mrf.mxu0
        %6181 = vdwg.mxu0
        %v6182 = vadd.f32 %v6120, %v3715
        %v6183 = vadd.f32 %v6123, %v3718
        %v6184 = vadd.f32 %v6128, %v3723
        %v6185 = vadd.f32 %v6131, %v3726
        %v6186 = vadd.f32 %v6136, %v3731
        %v6187 = vadd.f32 %v6139, %v3734
        %v6188 = vadd.f32 %v6144, %v3739
        %v6189 = vadd.f32 %v6147, %v3742
        %v6190 = vadd.f32 %v6152, %v3747
        %v6191 = vadd.f32 %v6155, %v3750
        %v6192 = vadd.f32 %v6160, %v3755
        %v6193 = vadd.f32 %v6163, %v3758
        %v6194 = vadd.f32 %v6168, %v3763
        %v6195 = vadd.f32 %v6171, %v3766
        %v6196 = vadd.f32 %v6176, %v3771
        %v6197 = vadd.f32 %v6179, %v3774
        %v6198 = vmax.f32 %v6182, 0.0
        %v6199 = vmax.f32 %v6183, 0.0
        %v6200 = vmax.f32 %v6184, 0.0
        %v6201 = vmax.f32 %v6185, 0.0
        %v6202 = vmax.f32 %v6186, 0.0
        %v6203 = vmax.f32 %v6187, 0.0
        %v6204 = vmax.f32 %v6188, 0.0
        %v6205 = vmax.f32 %v6189, 0.0
        %v6206 = vmax.f32 %v6190, 0.0
        %v6207 = vmax.f32 %v6191, 0.0
        %v6208 = vmax.f32 %v6192, 0.0
        %v6209 = vmax.f32 %v6193, 0.0
        %v6210 = vmax.f32 %v6194, 0.0
        %v6211 = vmax.f32 %v6195, 0.0
        %v6212 = vmax.f32 %v6196, 0.0
        %v6213 = vmax.f32 %v6197, 0.0
        %v6214 = vpack.c.bf16 %v6199, %v6198
        %v6215 = vpack.c.bf16 %v6201, %v6200
        %v6216 = vpack.c.bf16 %v6203, %v6202
        %v6217 = vpack.c.bf16 %v6205, %v6204
        %v6218 = vpack.c.bf16 %v6207, %v6206
        %v6219 = vpack.c.bf16 %v6209, %v6208
        %v6220 = vpack.c.bf16 %v6211, %v6210
        %v6221 = vpack.c.bf16 %v6213, %v6212
        %v6223 = vsel %vm4725, %v6214, 0
        %v6226 = vsel %vm4725, %v6215, 0
        %v6229 = vsel %vm4725, %v6216, 0
        %v6232 = vsel %vm4725, %v6217, 0
        %v6235 = vsel %vm4725, %v6218, 0
        %v6238 = vsel %vm4725, %v6219, 0
        %v6241 = vsel %vm4725, %v6220, 0
        %v6244 = vsel %vm4725, %v6221, 0
        %6246 = vmatprep.subr.bf16.mxu0 0
        %6247 = vmatpush1.bf16.msra.mxu0 0
        %6248 = vmatprep.subr.bf16.mxu0 0
        %6249 = vmatpush1.bf16.msra.mxu0 0
        %6250 = vmatprep.subr.bf16.mxu0 0
        %6251 = vmatpush1.bf16.msra.mxu0 0
        %6252 = vmatprep.subr.bf16.mxu0 0
        %6253 = vmatpush1.bf16.msra.mxu0 0
        %6254 = vmatprep.subr.bf16.mxu0 0
        %6255 = vmatpush1.bf16.msra.mxu0 %v4912
        %6256 = vmatprep.subr.bf16.mxu0 0
        %6257 = vmatpush1.bf16.msra.mxu0 %v4911
        %6258 = vmatprep.subr.bf16.mxu0 0
        %6259 = vmatpush1.bf16.msra.mxu0 %v4910
        %6260 = vmatprep.subr.bf16.mxu0 0
        %6261 = vmatpush1.bf16.msra.mxu0 %v4909
        %6262 = vmatprep.subr.bf16.mxu0 0
        %6263 = vmatpush2.bf16.msra.mxu0 0
        %6264 = vmatprep.subr.bf16.mxu0 0
        %6265 = vmatpush2.bf16.msra.mxu0 0
        %6266 = vmatprep.subr.bf16.mxu0 0
        %6267 = vmatpush2.bf16.msra.mxu0 0
        %6268 = vmatprep.subr.bf16.mxu0 0
        %6269 = vmatpush2.bf16.msra.mxu0 0
        %6270 = vmatprep.subr.bf16.mxu0 0
        %6271 = vmatpush2.bf16.msra.mxu0 0
        %6272 = vmatprep.subr.bf16.mxu0 0
        %6273 = vmatpush2.bf16.msra.mxu0 0
        %6274 = vmatprep.subr.bf16.mxu0 0
        %6275 = vmatpush2.bf16.msra.mxu0 0
        %6276 = vmatprep.subr.bf16.mxu0 0
        %6277 = vmatpush2.bf16.msra.mxu0 0
        %6278 = vmatprep.mubr.bf16.mxu0 0
        %6279 = vmatmul.mubr.bf16.gmra.mxu0 %v6223
        %v6280 = vpop.f32.mrf.mxu0
        %v6281 = vadd.f32 %v4891, %v6280
        %v6282 = vpop.f32.mrf.mxu0
        %v6283 = vpop.f32.mrf.mxu0
        %v6284 = vadd.f32 %v4891, %v6283
        %v6285 = vpop.f32.mrf.mxu0
        %6286 = vmatprep.mubr.bf16.mxu0 0
        %6287 = vmatmul.mubr.bf16.gmra.mxu0 %v6226
        %v6288 = vpop.f32.mrf.mxu0
        %v6289 = vadd.f32 %v4891, %v6288
        %v6290 = vpop.f32.mrf.mxu0
        %v6291 = vpop.f32.mrf.mxu0
        %v6292 = vadd.f32 %v4891, %v6291
        %v6293 = vpop.f32.mrf.mxu0
        %6294 = vmatprep.mubr.bf16.mxu0 0
        %6295 = vmatmul.mubr.bf16.gmra.mxu0 %v6229
        %v6296 = vpop.f32.mrf.mxu0
        %v6297 = vadd.f32 %v4891, %v6296
        %v6298 = vpop.f32.mrf.mxu0
        %v6299 = vpop.f32.mrf.mxu0
        %v6300 = vadd.f32 %v4891, %v6299
        %v6301 = vpop.f32.mrf.mxu0
        %6302 = vmatprep.mubr.bf16.mxu0 0
        %6303 = vmatmul.mubr.bf16.gmra.mxu0 %v6232
        %v6304 = vpop.f32.mrf.mxu0
        %v6305 = vadd.f32 %v4891, %v6304
        %v6306 = vpop.f32.mrf.mxu0
        %v6307 = vpop.f32.mrf.mxu0
        %v6308 = vadd.f32 %v4891, %v6307
        %v6309 = vpop.f32.mrf.mxu0
        %6310 = vmatprep.mubr.bf16.mxu0 0
        %6311 = vmatmul.mubr.bf16.gmra.mxu0 %v6235
        %v6312 = vpop.f32.mrf.mxu0
        %v6313 = vadd.f32 %v4891, %v6312
        %v6314 = vpop.f32.mrf.mxu0
        %v6315 = vpop.f32.mrf.mxu0
        %v6316 = vadd.f32 %v4891, %v6315
        %v6317 = vpop.f32.mrf.mxu0
        %6318 = vmatprep.mubr.bf16.mxu0 0
        %6319 = vmatmul.mubr.bf16.gmra.mxu0 %v6238
        %v6320 = vpop.f32.mrf.mxu0
        %v6321 = vadd.f32 %v4891, %v6320
        %v6322 = vpop.f32.mrf.mxu0
        %v6323 = vpop.f32.mrf.mxu0
        %v6324 = vadd.f32 %v4891, %v6323
        %v6325 = vpop.f32.mrf.mxu0
        %6326 = vmatprep.mubr.bf16.mxu0 0
        %6327 = vmatmul.mubr.bf16.gmra.mxu0 %v6241
        %v6328 = vpop.f32.mrf.mxu0
        %v6329 = vadd.f32 %v4891, %v6328
        %v6330 = vpop.f32.mrf.mxu0
        %v6331 = vpop.f32.mrf.mxu0
        %v6332 = vadd.f32 %v4891, %v6331
        %v6333 = vpop.f32.mrf.mxu0
        %6334 = vmatprep.mubr.bf16.mxu0 0
        %6335 = vmatmul.mubr.bf16.gmra.mxu0 %v6244
        %v6336 = vpop.f32.mrf.mxu0
        %v6337 = vadd.f32 %v4891, %v6336
        %v6338 = vpop.f32.mrf.mxu0
        %v6339 = vpop.f32.mrf.mxu0
        %v6340 = vadd.f32 %v4891, %v6339
        %v6341 = vpop.f32.mrf.mxu0
        %6342 = vdwg.mxu0
        %v6343 = vmax.f32 %v6281, 0.0
        %v6344 = vmax.f32 %v6284, 0.0
        %v6345 = vmax.f32 %v6289, 0.0
        %v6346 = vmax.f32 %v6292, 0.0
        %v6347 = vmax.f32 %v6297, 0.0
        %v6348 = vmax.f32 %v6300, 0.0
        %v6349 = vmax.f32 %v6305, 0.0
        %v6350 = vmax.f32 %v6308, 0.0
        %v6351 = vmax.f32 %v6313, 0.0
        %v6352 = vmax.f32 %v6316, 0.0
        %v6353 = vmax.f32 %v6321, 0.0
        %v6354 = vmax.f32 %v6324, 0.0
        %v6355 = vmax.f32 %v6329, 0.0
        %v6356 = vmax.f32 %v6332, 0.0
        %v6357 = vmax.f32 %v6337, 0.0
        %v6358 = vmax.f32 %v6340, 0.0
        %v6359 = vpack.c.bf16 %v6344, %v6343
        %v6360 = vpack.c.bf16 %v6346, %v6345
        %v6361 = vpack.c.bf16 %v6348, %v6347
        %v6362 = vpack.c.bf16 %v6350, %v6349
        %v6363 = vpack.c.bf16 %v6352, %v6351
        %v6364 = vpack.c.bf16 %v6354, %v6353
        %v6365 = vpack.c.bf16 %v6356, %v6355
        %v6366 = vpack.c.bf16 %v6358, %v6357
        %v6368 = vsel %vm4725, %v6359, 0
        %v6371 = vsel %vm4725, %v6360, 0
        %v6374 = vsel %vm4725, %v6361, 0
        %v6377 = vsel %vm4725, %v6362, 0
        %v6380 = vsel %vm4725, %v6363, 0
        %v6383 = vsel %vm4725, %v6364, 0
        %v6386 = vsel %vm4725, %v6365, 0
        %v6389 = vsel %vm4725, %v6366, 0
        %6391 = vmatprep.subr.bf16.mxu0 0
        %6392 = vmatpush1.bf16.msra.mxu0 0
        %6393 = vmatprep.subr.bf16.mxu0 0
        %6394 = vmatpush1.bf16.msra.mxu0 0
        %6395 = vmatprep.subr.bf16.mxu0 0
        %6396 = vmatpush1.bf16.msra.mxu0 0
        %6397 = vmatprep.subr.bf16.mxu0 0
        %6398 = vmatpush1.bf16.msra.mxu0 0
        %6399 = vmatprep.subr.bf16.mxu0 0
        %6400 = vmatpush1.bf16.msra.mxu0 %v5081
        %6401 = vmatprep.subr.bf16.mxu0 0
        %6402 = vmatpush1.bf16.msra.mxu0 %v5080
        %6403 = vmatprep.subr.bf16.mxu0 0
        %6404 = vmatpush1.bf16.msra.mxu0 %v5079
        %6405 = vmatprep.subr.bf16.mxu0 0
        %6406 = vmatpush1.bf16.msra.mxu0 %v5078
        %6407 = vmatprep.subr.bf16.mxu0 0
        %6408 = vmatpush2.bf16.msra.mxu0 0
        %6409 = vmatprep.subr.bf16.mxu0 0
        %6410 = vmatpush2.bf16.msra.mxu0 0
        %6411 = vmatprep.subr.bf16.mxu0 0
        %6412 = vmatpush2.bf16.msra.mxu0 0
        %6413 = vmatprep.subr.bf16.mxu0 0
        %6414 = vmatpush2.bf16.msra.mxu0 0
        %6415 = vmatprep.subr.bf16.mxu0 0
        %6416 = vmatpush2.bf16.msra.mxu0 0
        %6417 = vmatprep.subr.bf16.mxu0 0
        %6418 = vmatpush2.bf16.msra.mxu0 0
        %6419 = vmatprep.subr.bf16.mxu0 0
        %6420 = vmatpush2.bf16.msra.mxu0 0
        %6421 = vmatprep.subr.bf16.mxu0 0
        %6422 = vmatpush2.bf16.msra.mxu0 0
        %6423 = vmatprep.mubr.bf16.mxu0 0
        %6424 = vmatmul.mubr.bf16.gmra.mxu0 %v6368
        %v6425 = vpop.f32.mrf.mxu0
        %v6426 = vadd.f32 0.0, %v6425
        %v6427 = vpop.f32.mrf.mxu0
        %v6428 = vpop.f32.mrf.mxu0
        %v6429 = vadd.f32 0.0, %v6428
        %v6430 = vpop.f32.mrf.mxu0
        %6431 = vmatprep.mubr.bf16.mxu0 0
        %6432 = vmatmul.mubr.bf16.gmra.mxu0 %v6371
        %v6433 = vpop.f32.mrf.mxu0
        %v6434 = vadd.f32 0.0, %v6433
        %v6435 = vpop.f32.mrf.mxu0
        %v6436 = vpop.f32.mrf.mxu0
        %v6437 = vadd.f32 0.0, %v6436
        %v6438 = vpop.f32.mrf.mxu0
        %6439 = vmatprep.mubr.bf16.mxu0 0
        %6440 = vmatmul.mubr.bf16.gmra.mxu0 %v6374
        %v6441 = vpop.f32.mrf.mxu0
        %v6442 = vadd.f32 0.0, %v6441
        %v6443 = vpop.f32.mrf.mxu0
        %v6444 = vpop.f32.mrf.mxu0
        %v6445 = vadd.f32 0.0, %v6444
        %v6446 = vpop.f32.mrf.mxu0
        %6447 = vmatprep.mubr.bf16.mxu0 0
        %6448 = vmatmul.mubr.bf16.gmra.mxu0 %v6377
        %v6449 = vpop.f32.mrf.mxu0
        %v6450 = vadd.f32 0.0, %v6449
        %v6451 = vpop.f32.mrf.mxu0
        %v6452 = vpop.f32.mrf.mxu0
        %v6453 = vadd.f32 0.0, %v6452
        %v6454 = vpop.f32.mrf.mxu0
        %6455 = vmatprep.mubr.bf16.mxu0 0
        %6456 = vmatmul.mubr.bf16.gmra.mxu0 %v6380
        %v6457 = vpop.f32.mrf.mxu0
        %v6458 = vadd.f32 0.0, %v6457
        %v6459 = vpop.f32.mrf.mxu0
        %v6460 = vpop.f32.mrf.mxu0
        %v6461 = vadd.f32 0.0, %v6460
        %v6462 = vpop.f32.mrf.mxu0
        %6463 = vmatprep.mubr.bf16.mxu0 0
        %6464 = vmatmul.mubr.bf16.gmra.mxu0 %v6383
        %v6465 = vpop.f32.mrf.mxu0
        %v6466 = vadd.f32 0.0, %v6465
        %v6467 = vpop.f32.mrf.mxu0
        %v6468 = vpop.f32.mrf.mxu0
        %v6469 = vadd.f32 0.0, %v6468
        %v6470 = vpop.f32.mrf.mxu0
        %6471 = vmatprep.mubr.bf16.mxu0 0
        %6472 = vmatmul.mubr.bf16.gmra.mxu0 %v6386
        %v6473 = vpop.f32.mrf.mxu0
        %v6474 = vadd.f32 0.0, %v6473
        %v6475 = vpop.f32.mrf.mxu0
        %v6476 = vpop.f32.mrf.mxu0
        %v6477 = vadd.f32 0.0, %v6476
        %v6478 = vpop.f32.mrf.mxu0
        %6479 = vmatprep.mubr.bf16.mxu0 0
        %6480 = vmatmul.mubr.bf16.gmra.mxu0 %v6389
        %v6481 = vpop.f32.mrf.mxu0
        %v6482 = vadd.f32 0.0, %v6481
        %v6483 = vpop.f32.mrf.mxu0
        %v6484 = vpop.f32.mrf.mxu0
        %v6485 = vadd.f32 0.0, %v6484
        %v6486 = vpop.f32.mrf.mxu0
        %6487 = vdwg.mxu0
        %v6489 = vsel %vm4725, %v4648, 0
        %v6492 = vsel %vm4725, %v4649, 0
        %v6495 = vsel %vm4725, %v4650, 0
        %v6498 = vsel %vm4725, %v4651, 0
        %v6501 = vsel %vm4725, %v4652, 0
        %v6504 = vsel %vm4725, %v4653, 0
        %v6507 = vsel %vm4725, %v4654, 0
        %v6510 = vsel %vm4725, %v4655, 0
        %6512 = vmatprep.subr.bf16.mxu0 0
        %6513 = vmatpush1.bf16.msra.mxu0 0
        %6514 = vmatprep.subr.bf16.mxu0 0
        %6515 = vmatpush1.bf16.msra.mxu0 0
        %6516 = vmatprep.subr.bf16.mxu0 0
        %6517 = vmatpush1.bf16.msra.mxu0 0
        %6518 = vmatprep.subr.bf16.mxu0 0
        %6519 = vmatpush1.bf16.msra.mxu0 0
        %6520 = vmatprep.subr.bf16.mxu0 0
        %6521 = vmatpush1.bf16.msra.mxu0 %v4720
        %6522 = vmatprep.subr.bf16.mxu0 0
        %6523 = vmatpush1.bf16.msra.mxu0 %v4719
        %6524 = vmatprep.subr.bf16.mxu0 0
        %6525 = vmatpush1.bf16.msra.mxu0 %v4718
        %6526 = vmatprep.subr.bf16.mxu0 0
        %6527 = vmatpush1.bf16.msra.mxu0 %v4717
        %6528 = vmatprep.subr.bf16.mxu0 0
        %6529 = vmatpush2.bf16.msra.mxu0 0
        %6530 = vmatprep.subr.bf16.mxu0 0
        %6531 = vmatpush2.bf16.msra.mxu0 0
        %6532 = vmatprep.subr.bf16.mxu0 0
        %6533 = vmatpush2.bf16.msra.mxu0 0
        %6534 = vmatprep.subr.bf16.mxu0 0
        %6535 = vmatpush2.bf16.msra.mxu0 0
        %6536 = vmatprep.subr.bf16.mxu0 0
        %6537 = vmatpush2.bf16.msra.mxu0 0
        %6538 = vmatprep.subr.bf16.mxu0 0
        %6539 = vmatpush2.bf16.msra.mxu0 0
        %6540 = vmatprep.subr.bf16.mxu0 0
        %6541 = vmatpush2.bf16.msra.mxu0 0
        %6542 = vmatprep.subr.bf16.mxu0 0
        %6543 = vmatpush2.bf16.msra.mxu0 0
        %6544 = vmatprep.mubr.bf16.mxu0 0
        %6545 = vmatmul.mubr.bf16.gmra.mxu0 %v6489
        %v6546 = vpop.f32.mrf.mxu0
        %v6547 = vadd.f32 %v4699, %v6546
        %v6548 = vpop.f32.mrf.mxu0
        %v6549 = vpop.f32.mrf.mxu0
        %v6550 = vadd.f32 %v4699, %v6549
        %v6551 = vpop.f32.mrf.mxu0
        %6552 = vmatprep.mubr.bf16.mxu0 0
        %6553 = vmatmul.mubr.bf16.gmra.mxu0 %v6492
        %v6554 = vpop.f32.mrf.mxu0
        %v6555 = vadd.f32 %v4699, %v6554
        %v6556 = vpop.f32.mrf.mxu0
        %v6557 = vpop.f32.mrf.mxu0
        %v6558 = vadd.f32 %v4699, %v6557
        %v6559 = vpop.f32.mrf.mxu0
        %6560 = vmatprep.mubr.bf16.mxu0 0
        %6561 = vmatmul.mubr.bf16.gmra.mxu0 %v6495
        %v6562 = vpop.f32.mrf.mxu0
        %v6563 = vadd.f32 %v4699, %v6562
        %v6564 = vpop.f32.mrf.mxu0
        %v6565 = vpop.f32.mrf.mxu0
        %v6566 = vadd.f32 %v4699, %v6565
        %v6567 = vpop.f32.mrf.mxu0
        %6568 = vmatprep.mubr.bf16.mxu0 0
        %6569 = vmatmul.mubr.bf16.gmra.mxu0 %v6498
        %v6570 = vpop.f32.mrf.mxu0
        %v6571 = vadd.f32 %v4699, %v6570
        %v6572 = vpop.f32.mrf.mxu0
        %v6573 = vpop.f32.mrf.mxu0
        %v6574 = vadd.f32 %v4699, %v6573
        %v6575 = vpop.f32.mrf.mxu0
        %6576 = vmatprep.mubr.bf16.mxu0 0
        %6577 = vmatmul.mubr.bf16.gmra.mxu0 %v6501
        %v6578 = vpop.f32.mrf.mxu0
        %v6579 = vadd.f32 %v4699, %v6578
        %v6580 = vpop.f32.mrf.mxu0
        %v6581 = vpop.f32.mrf.mxu0
        %v6582 = vadd.f32 %v4699, %v6581
        %v6583 = vpop.f32.mrf.mxu0
        %6584 = vmatprep.mubr.bf16.mxu0 0
        %6585 = vmatmul.mubr.bf16.gmra.mxu0 %v6504
        %v6586 = vpop.f32.mrf.mxu0
        %v6587 = vadd.f32 %v4699, %v6586
        %v6588 = vpop.f32.mrf.mxu0
        %v6589 = vpop.f32.mrf.mxu0
        %v6590 = vadd.f32 %v4699, %v6589
        %v6591 = vpop.f32.mrf.mxu0
        %6592 = vmatprep.mubr.bf16.mxu0 0
        %6593 = vmatmul.mubr.bf16.gmra.mxu0 %v6507
        %v6594 = vpop.f32.mrf.mxu0
        %v6595 = vadd.f32 %v4699, %v6594
        %v6596 = vpop.f32.mrf.mxu0
        %v6597 = vpop.f32.mrf.mxu0
        %v6598 = vadd.f32 %v4699, %v6597
        %v6599 = vpop.f32.mrf.mxu0
        %6600 = vmatprep.mubr.bf16.mxu0 0
        %6601 = vmatmul.mubr.bf16.gmra.mxu0 %v6510
        %v6602 = vpop.f32.mrf.mxu0
        %v6603 = vadd.f32 %v4699, %v6602
        %v6604 = vpop.f32.mrf.mxu0
        %v6605 = vpop.f32.mrf.mxu0
        %v6606 = vadd.f32 %v4699, %v6605
        %v6607 = vpop.f32.mrf.mxu0
        %6608 = vdwg.mxu0
        %v6609 = vadd.f32 %v6547, %v3715
        %v6610 = vadd.f32 %v6550, %v3718
        %v6611 = vadd.f32 %v6555, %v3723
        %v6612 = vadd.f32 %v6558, %v3726
        %v6613 = vadd.f32 %v6563, %v3731
        %v6614 = vadd.f32 %v6566, %v3734
        %v6615 = vadd.f32 %v6571, %v3739
        %v6616 = vadd.f32 %v6574, %v3742
        %v6617 = vadd.f32 %v6579, %v3747
        %v6618 = vadd.f32 %v6582, %v3750
        %v6619 = vadd.f32 %v6587, %v3755
        %v6620 = vadd.f32 %v6590, %v3758
        %v6621 = vadd.f32 %v6595, %v3763
        %v6622 = vadd.f32 %v6598, %v3766
        %v6623 = vadd.f32 %v6603, %v3771
        %v6624 = vadd.f32 %v6606, %v3774
        %v6625 = vmax.f32 %v6609, 0.0
        %v6626 = vmax.f32 %v6610, 0.0
        %v6627 = vmax.f32 %v6611, 0.0
        %v6628 = vmax.f32 %v6612, 0.0
        %v6629 = vmax.f32 %v6613, 0.0
        %v6630 = vmax.f32 %v6614, 0.0
        %v6631 = vmax.f32 %v6615, 0.0
        %v6632 = vmax.f32 %v6616, 0.0
        %v6633 = vmax.f32 %v6617, 0.0
        %v6634 = vmax.f32 %v6618, 0.0
        %v6635 = vmax.f32 %v6619, 0.0
        %v6636 = vmax.f32 %v6620, 0.0
        %v6637 = vmax.f32 %v6621, 0.0
        %v6638 = vmax.f32 %v6622, 0.0
        %v6639 = vmax.f32 %v6623, 0.0
        %v6640 = vmax.f32 %v6624, 0.0
        %v6641 = vpack.c.bf16 %v6626, %v6625
        %v6642 = vpack.c.bf16 %v6628, %v6627
        %v6643 = vpack.c.bf16 %v6630, %v6629
        %v6644 = vpack.c.bf16 %v6632, %v6631
        %v6645 = vpack.c.bf16 %v6634, %v6633
        %v6646 = vpack.c.bf16 %v6636, %v6635
        %v6647 = vpack.c.bf16 %v6638, %v6637
        %v6648 = vpack.c.bf16 %v6640, %v6639
        %v6650 = vsel %vm4725, %v6641, 0
        %v6653 = vsel %vm4725, %v6642, 0
        %v6656 = vsel %vm4725, %v6643, 0
        %v6659 = vsel %vm4725, %v6644, 0
        %v6662 = vsel %vm4725, %v6645, 0
        %v6665 = vsel %vm4725, %v6646, 0
        %v6668 = vsel %vm4725, %v6647, 0
        %v6671 = vsel %vm4725, %v6648, 0
        %6673 = vmatprep.subr.bf16.mxu0 0
        %6674 = vmatpush1.bf16.msra.mxu0 0
        %6675 = vmatprep.subr.bf16.mxu0 0
        %6676 = vmatpush1.bf16.msra.mxu0 0
        %6677 = vmatprep.subr.bf16.mxu0 0
        %6678 = vmatpush1.bf16.msra.mxu0 0
        %6679 = vmatprep.subr.bf16.mxu0 0
        %6680 = vmatpush1.bf16.msra.mxu0 0
        %6681 = vmatprep.subr.bf16.mxu0 0
        %6682 = vmatpush1.bf16.msra.mxu0 %v4912
        %6683 = vmatprep.subr.bf16.mxu0 0
        %6684 = vmatpush1.bf16.msra.mxu0 %v4911
        %6685 = vmatprep.subr.bf16.mxu0 0
        %6686 = vmatpush1.bf16.msra.mxu0 %v4910
        %6687 = vmatprep.subr.bf16.mxu0 0
        %6688 = vmatpush1.bf16.msra.mxu0 %v4909
        %6689 = vmatprep.subr.bf16.mxu0 0
        %6690 = vmatpush2.bf16.msra.mxu0 0
        %6691 = vmatprep.subr.bf16.mxu0 0
        %6692 = vmatpush2.bf16.msra.mxu0 0
        %6693 = vmatprep.subr.bf16.mxu0 0
        %6694 = vmatpush2.bf16.msra.mxu0 0
        %6695 = vmatprep.subr.bf16.mxu0 0
        %6696 = vmatpush2.bf16.msra.mxu0 0
        %6697 = vmatprep.subr.bf16.mxu0 0
        %6698 = vmatpush2.bf16.msra.mxu0 0
        %6699 = vmatprep.subr.bf16.mxu0 0
        %6700 = vmatpush2.bf16.msra.mxu0 0
        %6701 = vmatprep.subr.bf16.mxu0 0
        %6702 = vmatpush2.bf16.msra.mxu0 0
        %6703 = vmatprep.subr.bf16.mxu0 0
        %6704 = vmatpush2.bf16.msra.mxu0 0
        %6705 = vmatprep.mubr.bf16.mxu0 0
        %6706 = vmatmul.mubr.bf16.gmra.mxu0 %v6650
        %v6707 = vpop.f32.mrf.mxu0
        %v6708 = vadd.f32 %v4891, %v6707
        %v6709 = vpop.f32.mrf.mxu0
        %v6710 = vpop.f32.mrf.mxu0
        %v6711 = vadd.f32 %v4891, %v6710
        %v6712 = vpop.f32.mrf.mxu0
        %6713 = vmatprep.mubr.bf16.mxu0 0
        %6714 = vmatmul.mubr.bf16.gmra.mxu0 %v6653
        %v6715 = vpop.f32.mrf.mxu0
        %v6716 = vadd.f32 %v4891, %v6715
        %v6717 = vpop.f32.mrf.mxu0
        %v6718 = vpop.f32.mrf.mxu0
        %v6719 = vadd.f32 %v4891, %v6718
        %v6720 = vpop.f32.mrf.mxu0
        %6721 = vmatprep.mubr.bf16.mxu0 0
        %6722 = vmatmul.mubr.bf16.gmra.mxu0 %v6656
        %v6723 = vpop.f32.mrf.mxu0
        %v6724 = vadd.f32 %v4891, %v6723
        %v6725 = vpop.f32.mrf.mxu0
        %v6726 = vpop.f32.mrf.mxu0
        %v6727 = vadd.f32 %v4891, %v6726
        %v6728 = vpop.f32.mrf.mxu0
        %6729 = vmatprep.mubr.bf16.mxu0 0
        %6730 = vmatmul.mubr.bf16.gmra.mxu0 %v6659
        %v6731 = vpop.f32.mrf.mxu0
        %v6732 = vadd.f32 %v4891, %v6731
        %v6733 = vpop.f32.mrf.mxu0
        %v6734 = vpop.f32.mrf.mxu0
        %v6735 = vadd.f32 %v4891, %v6734
        %v6736 = vpop.f32.mrf.mxu0
        %6737 = vmatprep.mubr.bf16.mxu0 0
        %6738 = vmatmul.mubr.bf16.gmra.mxu0 %v6662
        %v6739 = vpop.f32.mrf.mxu0
        %v6740 = vadd.f32 %v4891, %v6739
        %v6741 = vpop.f32.mrf.mxu0
        %v6742 = vpop.f32.mrf.mxu0
        %v6743 = vadd.f32 %v4891, %v6742
        %v6744 = vpop.f32.mrf.mxu0
        %6745 = vmatprep.mubr.bf16.mxu0 0
        %6746 = vmatmul.mubr.bf16.gmra.mxu0 %v6665
        %v6747 = vpop.f32.mrf.mxu0
        %v6748 = vadd.f32 %v4891, %v6747
        %v6749 = vpop.f32.mrf.mxu0
        %v6750 = vpop.f32.mrf.mxu0
        %v6751 = vadd.f32 %v4891, %v6750
        %v6752 = vpop.f32.mrf.mxu0
        %6753 = vmatprep.mubr.bf16.mxu0 0
        %6754 = vmatmul.mubr.bf16.gmra.mxu0 %v6668
        %v6755 = vpop.f32.mrf.mxu0
        %v6756 = vadd.f32 %v4891, %v6755
        %v6757 = vpop.f32.mrf.mxu0
        %v6758 = vpop.f32.mrf.mxu0
        %v6759 = vadd.f32 %v4891, %v6758
        %v6760 = vpop.f32.mrf.mxu0
        %6761 = vmatprep.mubr.bf16.mxu0 0
        %6762 = vmatmul.mubr.bf16.gmra.mxu0 %v6671
        %v6763 = vpop.f32.mrf.mxu0
        %v6764 = vadd.f32 %v4891, %v6763
        %v6765 = vpop.f32.mrf.mxu0
        %v6766 = vpop.f32.mrf.mxu0
        %v6767 = vadd.f32 %v4891, %v6766
        %v6768 = vpop.f32.mrf.mxu0
        %6769 = vdwg.mxu0
        %v6770 = vmax.f32 %v6708, 0.0
        %v6771 = vmax.f32 %v6711, 0.0
        %v6772 = vmax.f32 %v6716, 0.0
        %v6773 = vmax.f32 %v6719, 0.0
        %v6774 = vmax.f32 %v6724, 0.0
        %v6775 = vmax.f32 %v6727, 0.0
        %v6776 = vmax.f32 %v6732, 0.0
        %v6777 = vmax.f32 %v6735, 0.0
        %v6778 = vmax.f32 %v6740, 0.0
        %v6779 = vmax.f32 %v6743, 0.0
        %v6780 = vmax.f32 %v6748, 0.0
        %v6781 = vmax.f32 %v6751, 0.0
        %v6782 = vmax.f32 %v6756, 0.0
        %v6783 = vmax.f32 %v6759, 0.0
        %v6784 = vmax.f32 %v6764, 0.0
        %v6785 = vmax.f32 %v6767, 0.0
        %v6786 = vpack.c.bf16 %v6771, %v6770
        %v6787 = vpack.c.bf16 %v6773, %v6772
        %v6788 = vpack.c.bf16 %v6775, %v6774
        %v6789 = vpack.c.bf16 %v6777, %v6776
        %v6790 = vpack.c.bf16 %v6779, %v6778
        %v6791 = vpack.c.bf16 %v6781, %v6780
        %v6792 = vpack.c.bf16 %v6783, %v6782
        %v6793 = vpack.c.bf16 %v6785, %v6784
        %v6795 = vsel %vm4725, %v6786, 0
        %v6798 = vsel %vm4725, %v6787, 0
        %v6801 = vsel %vm4725, %v6788, 0
        %v6804 = vsel %vm4725, %v6789, 0
        %v6807 = vsel %vm4725, %v6790, 0
        %v6810 = vsel %vm4725, %v6791, 0
        %v6813 = vsel %vm4725, %v6792, 0
        %v6816 = vsel %vm4725, %v6793, 0
        %6818 = vmatprep.subr.bf16.mxu0 0
        %6819 = vmatpush1.bf16.msra.mxu0 0
        %6820 = vmatprep.subr.bf16.mxu0 0
        %6821 = vmatpush1.bf16.msra.mxu0 0
        %6822 = vmatprep.subr.bf16.mxu0 0
        %6823 = vmatpush1.bf16.msra.mxu0 0
        %6824 = vmatprep.subr.bf16.mxu0 0
        %6825 = vmatpush1.bf16.msra.mxu0 0
        %6826 = vmatprep.subr.bf16.mxu0 0
        %6827 = vmatpush1.bf16.msra.mxu0 %v5081
        %6828 = vmatprep.subr.bf16.mxu0 0
        %6829 = vmatpush1.bf16.msra.mxu0 %v5080
        %6830 = vmatprep.subr.bf16.mxu0 0
        %6831 = vmatpush1.bf16.msra.mxu0 %v5079
        %6832 = vmatprep.subr.bf16.mxu0 0
        %6833 = vmatpush1.bf16.msra.mxu0 %v5078
        %6834 = vmatprep.subr.bf16.mxu0 0
        %6835 = vmatpush2.bf16.msra.mxu0 0
        %6836 = vmatprep.subr.bf16.mxu0 0
        %6837 = vmatpush2.bf16.msra.mxu0 0
        %6838 = vmatprep.subr.bf16.mxu0 0
        %6839 = vmatpush2.bf16.msra.mxu0 0
        %6840 = vmatprep.subr.bf16.mxu0 0
        %6841 = vmatpush2.bf16.msra.mxu0 0
        %6842 = vmatprep.subr.bf16.mxu0 0
        %6843 = vmatpush2.bf16.msra.mxu0 0
        %6844 = vmatprep.subr.bf16.mxu0 0
        %6845 = vmatpush2.bf16.msra.mxu0 0
        %6846 = vmatprep.subr.bf16.mxu0 0
        %6847 = vmatpush2.bf16.msra.mxu0 0
        %6848 = vmatprep.subr.bf16.mxu0 0
        %6849 = vmatpush2.bf16.msra.mxu0 0
        %6850 = vmatprep.mubr.bf16.mxu0 0
        %6851 = vmatmul.mubr.bf16.gmra.mxu0 %v6795
        %v6852 = vpop.f32.mrf.mxu0
        %v6853 = vadd.f32 0.0, %v6852
        %v6854 = vpop.f32.mrf.mxu0
        %v6855 = vpop.f32.mrf.mxu0
        %v6856 = vadd.f32 0.0, %v6855
        %v6857 = vpop.f32.mrf.mxu0
        %6858 = vmatprep.mubr.bf16.mxu0 0
        %6859 = vmatmul.mubr.bf16.gmra.mxu0 %v6798
        %v6860 = vpop.f32.mrf.mxu0
        %v6861 = vadd.f32 0.0, %v6860
        %v6862 = vpop.f32.mrf.mxu0
        %v6863 = vpop.f32.mrf.mxu0
        %v6864 = vadd.f32 0.0, %v6863
        %v6865 = vpop.f32.mrf.mxu0
        %6866 = vmatprep.mubr.bf16.mxu0 0
        %6867 = vmatmul.mubr.bf16.gmra.mxu0 %v6801
        %v6868 = vpop.f32.mrf.mxu0
        %v6869 = vadd.f32 0.0, %v6868
        %v6870 = vpop.f32.mrf.mxu0
        %v6871 = vpop.f32.mrf.mxu0
        %v6872 = vadd.f32 0.0, %v6871
        %v6873 = vpop.f32.mrf.mxu0
        %6874 = vmatprep.mubr.bf16.mxu0 0
        %6875 = vmatmul.mubr.bf16.gmra.mxu0 %v6804
        %v6876 = vpop.f32.mrf.mxu0
        %v6877 = vadd.f32 0.0, %v6876
        %v6878 = vpop.f32.mrf.mxu0
        %v6879 = vpop.f32.mrf.mxu0
        %v6880 = vadd.f32 0.0, %v6879
        %v6881 = vpop.f32.mrf.mxu0
        %6882 = vmatprep.mubr.bf16.mxu0 0
        %6883 = vmatmul.mubr.bf16.gmra.mxu0 %v6807
        %v6884 = vpop.f32.mrf.mxu0
        %v6885 = vadd.f32 0.0, %v6884
        %v6886 = vpop.f32.mrf.mxu0
        %v6887 = vpop.f32.mrf.mxu0
        %v6888 = vadd.f32 0.0, %v6887
        %v6889 = vpop.f32.mrf.mxu0
        %6890 = vmatprep.mubr.bf16.mxu0 0
        %6891 = vmatmul.mubr.bf16.gmra.mxu0 %v6810
        %v6892 = vpop.f32.mrf.mxu0
        %v6893 = vadd.f32 0.0, %v6892
        %v6894 = vpop.f32.mrf.mxu0
        %v6895 = vpop.f32.mrf.mxu0
        %v6896 = vadd.f32 0.0, %v6895
        %v6897 = vpop.f32.mrf.mxu0
        %6898 = vmatprep.mubr.bf16.mxu0 0
        %6899 = vmatmul.mubr.bf16.gmra.mxu0 %v6813
        %v6900 = vpop.f32.mrf.mxu0
        %v6901 = vadd.f32 0.0, %v6900
        %v6902 = vpop.f32.mrf.mxu0
        %v6903 = vpop.f32.mrf.mxu0
        %v6904 = vadd.f32 0.0, %v6903
        %v6905 = vpop.f32.mrf.mxu0
        %6906 = vmatprep.mubr.bf16.mxu0 0
        %6907 = vmatmul.mubr.bf16.gmra.mxu0 %v6816
        %v6908 = vpop.f32.mrf.mxu0
        %v6909 = vadd.f32 0.0, %v6908
        %v6910 = vpop.f32.mrf.mxu0
        %v6911 = vpop.f32.mrf.mxu0
        %v6912 = vadd.f32 0.0, %v6911
        %v6913 = vpop.f32.mrf.mxu0
        %6914 = vdwg.mxu0
        %v6915 = vmax.f32 %v5145, %v5572
        %v6916 = vmax.f32 %v5148, %v5575
        %v6917 = vmax.f32 %v5153, %v5580
        %v6918 = vmax.f32 %v5156, %v5583
        %v6919 = vmax.f32 %v5161, %v5588
        %v6920 = vmax.f32 %v5164, %v5591
        %v6921 = vmax.f32 %v5169, %v5596
        %v6922 = vmax.f32 %v5172, %v5599
        %v6923 = vmax.f32 %v5177, %v5604
        %v6924 = vmax.f32 %v5180, %v5607
        %v6925 = vmax.f32 %v5185, %v5612
        %v6926 = vmax.f32 %v5188, %v5615
        %v6927 = vmax.f32 %v5193, %v5620
        %v6928 = vmax.f32 %v5196, %v5623
        %v6929 = vmax.f32 %v5201, %v5628
        %v6930 = vmax.f32 %v5204, %v5631
        %v6931 = vmax.f32 %v6915, %v5999
        %v6932 = vmax.f32 %v6916, %v6002
        %v6933 = vmax.f32 %v6917, %v6007
        %v6934 = vmax.f32 %v6918, %v6010
        %v6935 = vmax.f32 %v6919, %v6015
        %v6936 = vmax.f32 %v6920, %v6018
        %v6937 = vmax.f32 %v6921, %v6023
        %v6938 = vmax.f32 %v6922, %v6026
        %v6939 = vmax.f32 %v6923, %v6031
        %v6940 = vmax.f32 %v6924, %v6034
        %v6941 = vmax.f32 %v6925, %v6039
        %v6942 = vmax.f32 %v6926, %v6042
        %v6943 = vmax.f32 %v6927, %v6047
        %v6944 = vmax.f32 %v6928, %v6050
        %v6945 = vmax.f32 %v6929, %v6055
        %v6946 = vmax.f32 %v6930, %v6058
        %v6947 = vmax.f32 %v6931, %v6426
        %v6948 = vmax.f32 %v6932, %v6429
        %v6949 = vmax.f32 %v6933, %v6434
        %v6950 = vmax.f32 %v6934, %v6437
        %v6951 = vmax.f32 %v6935, %v6442
        %v6952 = vmax.f32 %v6936, %v6445
        %v6953 = vmax.f32 %v6937, %v6450
        %v6954 = vmax.f32 %v6938, %v6453
        %v6955 = vmax.f32 %v6939, %v6458
        %v6956 = vmax.f32 %v6940, %v6461
        %v6957 = vmax.f32 %v6941, %v6466
        %v6958 = vmax.f32 %v6942, %v6469
        %v6959 = vmax.f32 %v6943, %v6474
        %v6960 = vmax.f32 %v6944, %v6477
        %v6961 = vmax.f32 %v6945, %v6482
        %v6962 = vmax.f32 %v6946, %v6485
        %v6963 = vmax.f32 %v6947, %v6853
        %v6964 = vmax.f32 %v6948, %v6856
        %v6965 = vmax.f32 %v6949, %v6861
        %v6966 = vmax.f32 %v6950, %v6864
        %v6967 = vmax.f32 %v6951, %v6869
        %v6968 = vmax.f32 %v6952, %v6872
        %v6969 = vmax.f32 %v6953, %v6877
        %v6970 = vmax.f32 %v6954, %v6880
        %v6971 = vmax.f32 %v6955, %v6885
        %v6972 = vmax.f32 %v6956, %v6888
        %v6973 = vmax.f32 %v6957, %v6893
        %v6974 = vmax.f32 %v6958, %v6896
        %v6975 = vmax.f32 %v6959, %v6901
        %v6976 = vmax.f32 %v6960, %v6904
        %v6977 = vmax.f32 %v6961, %v6909
        %v6978 = vmax.f32 %v6962, %v6912
        %v6979 = vsub.f32 %v5145, %v6963
        %v6980 = vsub.f32 %v5148, %v6964
        %v6981 = vsub.f32 %v5153, %v6965
        %v6982 = vsub.f32 %v5156, %v6966
        %v6983 = vsub.f32 %v5161, %v6967
        %v6984 = vsub.f32 %v5164, %v6968
        %v6985 = vsub.f32 %v5169, %v6969
        %v6986 = vsub.f32 %v5172, %v6970
        %v6987 = vsub.f32 %v5177, %v6971
        %v6988 = vsub.f32 %v5180, %v6972
        %v6989 = vsub.f32 %v5185, %v6973
        %v6990 = vsub.f32 %v5188, %v6974
        %v6991 = vsub.f32 %v5193, %v6975
        %v6992 = vsub.f32 %v5196, %v6976
        %v6993 = vsub.f32 %v5201, %v6977
        %v6994 = vsub.f32 %v5204, %v6978
        %v6995 = vmul.f32 %v6979, 1.442695
        %v6996 = vpow.pop %v6995
        %v6997 = vmul.f32 %v6980, 1.442695
        %v6998 = vpow.pop %v6997
        %v6999 = vmul.f32 %v6981, 1.442695
        %v7000 = vpow.pop %v6999
        %v7001 = vmul.f32 %v6982, 1.442695
        %v7002 = vpow.pop %v7001
        %v7003 = vmul.f32 %v6983, 1.442695
        %v7004 = vpow.pop %v7003
        %v7005 = vmul.f32 %v6984, 1.442695
        %v7006 = vpow.pop %v7005
        %v7007 = vmul.f32 %v6985, 1.442695
        %v7008 = vpow.pop %v7007
        %v7009 = vmul.f32 %v6986, 1.442695
        %v7010 = vpow.pop %v7009
        %v7011 = vmul.f32 %v6987, 1.442695
        %v7012 = vpow.pop %v7011
        %v7013 = vmul.f32 %v6988, 1.442695
        %v7014 = vpow.pop %v7013
        %v7015 = vmul.f32 %v6989, 1.442695
        %v7016 = vpow.pop %v7015
        %v7017 = vmul.f32 %v6990, 1.442695
        %v7018 = vpow.pop %v7017
        %v7019 = vmul.f32 %v6991, 1.442695
        %v7020 = vpow.pop %v7019
        %v7021 = vmul.f32 %v6992, 1.442695
        %v7022 = vpow.pop %v7021
        %v7023 = vmul.f32 %v6993, 1.442695
        %v7024 = vpow.pop %v7023
        %v7025 = vmul.f32 %v6994, 1.442695
        %v7026 = vpow.pop %v7025
        %v7027 = vsub.f32 %v5572, %v6963
        %v7028 = vsub.f32 %v5575, %v6964
        %v7029 = vsub.f32 %v5580, %v6965
        %v7030 = vsub.f32 %v5583, %v6966
        %v7031 = vsub.f32 %v5588, %v6967
        %v7032 = vsub.f32 %v5591, %v6968
        %v7033 = vsub.f32 %v5596, %v6969
        %v7034 = vsub.f32 %v5599, %v6970
        %v7035 = vsub.f32 %v5604, %v6971
        %v7036 = vsub.f32 %v5607, %v6972
        %v7037 = vsub.f32 %v5612, %v6973
        %v7038 = vsub.f32 %v5615, %v6974
        %v7039 = vsub.f32 %v5620, %v6975
        %v7040 = vsub.f32 %v5623, %v6976
        %v7041 = vsub.f32 %v5628, %v6977
        %v7042 = vsub.f32 %v5631, %v6978
        %v7043 = vmul.f32 %v7027, 1.442695
        %v7044 = vpow.pop %v7043
        %v7045 = vmul.f32 %v7028, 1.442695
        %v7046 = vpow.pop %v7045
        %v7047 = vmul.f32 %v7029, 1.442695
        %v7048 = vpow.pop %v7047
        %v7049 = vmul.f32 %v7030, 1.442695
        %v7050 = vpow.pop %v7049
        %v7051 = vmul.f32 %v7031, 1.442695
        %v7052 = vpow.pop %v7051
        %v7053 = vmul.f32 %v7032, 1.442695
        %v7054 = vpow.pop %v7053
        %v7055 = vmul.f32 %v7033, 1.442695
        %v7056 = vpow.pop %v7055
        %v7057 = vmul.f32 %v7034, 1.442695
        %v7058 = vpow.pop %v7057
        %v7059 = vmul.f32 %v7035, 1.442695
        %v7060 = vpow.pop %v7059
        %v7061 = vmul.f32 %v7036, 1.442695
        %v7062 = vpow.pop %v7061
        %v7063 = vmul.f32 %v7037, 1.442695
        %v7064 = vpow.pop %v7063
        %v7065 = vmul.f32 %v7038, 1.442695
        %v7066 = vpow.pop %v7065
        %v7067 = vmul.f32 %v7039, 1.442695
        %v7068 = vpow.pop %v7067
        %v7069 = vmul.f32 %v7040, 1.442695
        %v7070 = vpow.pop %v7069
        %v7071 = vmul.f32 %v7041, 1.442695
        %v7072 = vpow.pop %v7071
        %v7073 = vmul.f32 %v7042, 1.442695
        %v7074 = vpow.pop %v7073
        %v7075 = vsub.f32 %v5999, %v6963
        %v7076 = vsub.f32 %v6002, %v6964
        %v7077 = vsub.f32 %v6007, %v6965
        %v7078 = vsub.f32 %v6010, %v6966
        %v7079 = vsub.f32 %v6015, %v6967
        %v7080 = vsub.f32 %v6018, %v6968
        %v7081 = vsub.f32 %v6023, %v6969
        %v7082 = vsub.f32 %v6026, %v6970
        %v7083 = vsub.f32 %v6031, %v6971
        %v7084 = vsub.f32 %v6034, %v6972
        %v7085 = vsub.f32 %v6039, %v6973
        %v7086 = vsub.f32 %v6042, %v6974
        %v7087 = vsub.f32 %v6047, %v6975
        %v7088 = vsub.f32 %v6050, %v6976
        %v7089 = vsub.f32 %v6055, %v6977
        %v7090 = vsub.f32 %v6058, %v6978
        %v7091 = vmul.f32 %v7075, 1.442695
        %v7092 = vpow.pop %v7091
        %v7093 = vmul.f32 %v7076, 1.442695
        %v7094 = vpow.pop %v7093
        %v7095 = vmul.f32 %v7077, 1.442695
        %v7096 = vpow.pop %v7095
        %v7097 = vmul.f32 %v7078, 1.442695
        %v7098 = vpow.pop %v7097
        %v7099 = vmul.f32 %v7079, 1.442695
        %v7100 = vpow.pop %v7099
        %v7101 = vmul.f32 %v7080, 1.442695
        %v7102 = vpow.pop %v7101
        %v7103 = vmul.f32 %v7081, 1.442695
        %v7104 = vpow.pop %v7103
        %v7105 = vmul.f32 %v7082, 1.442695
        %v7106 = vpow.pop %v7105
        %v7107 = vmul.f32 %v7083, 1.442695
        %v7108 = vpow.pop %v7107
        %v7109 = vmul.f32 %v7084, 1.442695
        %v7110 = vpow.pop %v7109
        %v7111 = vmul.f32 %v7085, 1.442695
        %v7112 = vpow.pop %v7111
        %v7113 = vmul.f32 %v7086, 1.442695
        %v7114 = vpow.pop %v7113
        %v7115 = vmul.f32 %v7087, 1.442695
        %v7116 = vpow.pop %v7115
        %v7117 = vmul.f32 %v7088, 1.442695
        %v7118 = vpow.pop %v7117
        %v7119 = vmul.f32 %v7089, 1.442695
        %v7120 = vpow.pop %v7119
        %v7121 = vmul.f32 %v7090, 1.442695
        %v7122 = vpow.pop %v7121
        %v7123 = vsub.f32 %v6426, %v6963
        %v7124 = vsub.f32 %v6429, %v6964
        %v7125 = vsub.f32 %v6434, %v6965
        %v7126 = vsub.f32 %v6437, %v6966
        %v7127 = vsub.f32 %v6442, %v6967
        %v7128 = vsub.f32 %v6445, %v6968
        %v7129 = vsub.f32 %v6450, %v6969
        %v7130 = vsub.f32 %v6453, %v6970
        %v7131 = vsub.f32 %v6458, %v6971
        %v7132 = vsub.f32 %v6461, %v6972
        %v7133 = vsub.f32 %v6466, %v6973
        %v7134 = vsub.f32 %v6469, %v6974
        %v7135 = vsub.f32 %v6474, %v6975
        %v7136 = vsub.f32 %v6477, %v6976
        %v7137 = vsub.f32 %v6482, %v6977
        %v7138 = vsub.f32 %v6485, %v6978
        %v7139 = vmul.f32 %v7123, 1.442695
        %v7140 = vpow.pop %v7139
        %v7141 = vmul.f32 %v7124, 1.442695
        %v7142 = vpow.pop %v7141
        %v7143 = vmul.f32 %v7125, 1.442695
        %v7144 = vpow.pop %v7143
        %v7145 = vmul.f32 %v7126, 1.442695
        %v7146 = vpow.pop %v7145
        %v7147 = vmul.f32 %v7127, 1.442695
        %v7148 = vpow.pop %v7147
        %v7149 = vmul.f32 %v7128, 1.442695
        %v7150 = vpow.pop %v7149
        %v7151 = vmul.f32 %v7129, 1.442695
        %v7152 = vpow.pop %v7151
        %v7153 = vmul.f32 %v7130, 1.442695
        %v7154 = vpow.pop %v7153
        %v7155 = vmul.f32 %v7131, 1.442695
        %v7156 = vpow.pop %v7155
        %v7157 = vmul.f32 %v7132, 1.442695
        %v7158 = vpow.pop %v7157
        %v7159 = vmul.f32 %v7133, 1.442695
        %v7160 = vpow.pop %v7159
        %v7161 = vmul.f32 %v7134, 1.442695
        %v7162 = vpow.pop %v7161
        %v7163 = vmul.f32 %v7135, 1.442695
        %v7164 = vpow.pop %v7163
        %v7165 = vmul.f32 %v7136, 1.442695
        %v7166 = vpow.pop %v7165
        %v7167 = vmul.f32 %v7137, 1.442695
        %v7168 = vpow.pop %v7167
        %v7169 = vmul.f32 %v7138, 1.442695
        %v7170 = vpow.pop %v7169
        %v7171 = vsub.f32 %v6853, %v6963
        %v7172 = vsub.f32 %v6856, %v6964
        %v7173 = vsub.f32 %v6861, %v6965
        %v7174 = vsub.f32 %v6864, %v6966
        %v7175 = vsub.f32 %v6869, %v6967
        %v7176 = vsub.f32 %v6872, %v6968
        %v7177 = vsub.f32 %v6877, %v6969
        %v7178 = vsub.f32 %v6880, %v6970
        %v7179 = vsub.f32 %v6885, %v6971
        %v7180 = vsub.f32 %v6888, %v6972
        %v7181 = vsub.f32 %v6893, %v6973
        %v7182 = vsub.f32 %v6896, %v6974
        %v7183 = vsub.f32 %v6901, %v6975
        %v7184 = vsub.f32 %v6904, %v6976
        %v7185 = vsub.f32 %v6909, %v6977
        %v7186 = vsub.f32 %v6912, %v6978
        %v7187 = vmul.f32 %v7171, 1.442695
        %v7188 = vpow.pop %v7187
        %v7189 = vmul.f32 %v7172, 1.442695
        %v7190 = vpow.pop %v7189
        %v7191 = vmul.f32 %v7173, 1.442695
        %v7192 = vpow.pop %v7191
        %v7193 = vmul.f32 %v7174, 1.442695
        %v7194 = vpow.pop %v7193
        %v7195 = vmul.f32 %v7175, 1.442695
        %v7196 = vpow.pop %v7195
        %v7197 = vmul.f32 %v7176, 1.442695
        %v7198 = vpow.pop %v7197
        %v7199 = vmul.f32 %v7177, 1.442695
        %v7200 = vpow.pop %v7199
        %v7201 = vmul.f32 %v7178, 1.442695
        %v7202 = vpow.pop %v7201
        %v7203 = vmul.f32 %v7179, 1.442695
        %v7204 = vpow.pop %v7203
        %v7205 = vmul.f32 %v7180, 1.442695
        %v7206 = vpow.pop %v7205
        %v7207 = vmul.f32 %v7181, 1.442695
        %v7208 = vpow.pop %v7207
        %v7209 = vmul.f32 %v7182, 1.442695
        %v7210 = vpow.pop %v7209
        %v7211 = vmul.f32 %v7183, 1.442695
        %v7212 = vpow.pop %v7211
        %v7213 = vmul.f32 %v7184, 1.442695
        %v7214 = vpow.pop %v7213
        %v7215 = vmul.f32 %v7185, 1.442695
        %v7216 = vpow.pop %v7215
        %v7217 = vmul.f32 %v7186, 1.442695
        %v7218 = vpow.pop %v7217
        %7220 = vset.pattern.permute.xlu0 0
        %7221 = vperm.xlu0 %7220, %v6996
        %v7222 = vpop.permute.xlu0 %7221
        %7225 = vset.pattern.permute.xlu0 0
        %7226 = vperm.xlu0 %7225, %v6998
        %v7227 = vpop.permute.xlu0 %7226
        %7230 = vset.pattern.permute.xlu0 0
        %7231 = vperm.xlu0 %7230, %v7000
        %v7232 = vpop.permute.xlu0 %7231
        %7235 = vset.pattern.permute.xlu0 0
        %7236 = vperm.xlu0 %7235, %v7002
        %v7237 = vpop.permute.xlu0 %7236
        %7240 = vset.pattern.permute.xlu0 0
        %7241 = vperm.xlu0 %7240, %v7004
        %v7242 = vpop.permute.xlu0 %7241
        %7245 = vset.pattern.permute.xlu0 0
        %7246 = vperm.xlu0 %7245, %v7006
        %v7247 = vpop.permute.xlu0 %7246
        %7250 = vset.pattern.permute.xlu0 0
        %7251 = vperm.xlu0 %7250, %v7008
        %v7252 = vpop.permute.xlu0 %7251
        %7255 = vset.pattern.permute.xlu0 0
        %7256 = vperm.xlu0 %7255, %v7010
        %v7257 = vpop.permute.xlu0 %7256
        %7260 = vset.pattern.permute.xlu0 0
        %7261 = vperm.xlu0 %7260, %v7012
        %v7262 = vpop.permute.xlu0 %7261
        %7265 = vset.pattern.permute.xlu0 0
        %7266 = vperm.xlu0 %7265, %v7014
        %v7267 = vpop.permute.xlu0 %7266
        %7270 = vset.pattern.permute.xlu0 0
        %7271 = vperm.xlu0 %7270, %v7016
        %v7272 = vpop.permute.xlu0 %7271
        %7275 = vset.pattern.permute.xlu0 0
        %7276 = vperm.xlu0 %7275, %v7018
        %v7277 = vpop.permute.xlu0 %7276
        %7280 = vset.pattern.permute.xlu0 0
        %7281 = vperm.xlu0 %7280, %v7020
        %v7282 = vpop.permute.xlu0 %7281
        %7285 = vset.pattern.permute.xlu0 0
        %7286 = vperm.xlu0 %7285, %v7022
        %v7287 = vpop.permute.xlu0 %7286
        %7290 = vset.pattern.permute.xlu0 0
        %7291 = vperm.xlu0 %7290, %v7024
        %v7292 = vpop.permute.xlu0 %7291
        %7295 = vset.pattern.permute.xlu0 0
        %7296 = vperm.xlu0 %7295, %v7026
        %v7297 = vpop.permute.xlu0 %7296
        %v7299 = vmul.f32 %v7222, %v5038
        %v7300 = vmul.f32 %v7227, %v5039
        %v7301 = vmul.f32 %v7232, %v5040
        %v7302 = vmul.f32 %v7237, %v5041
        %v7303 = vmul.f32 %v7242, %v5042
        %v7304 = vmul.f32 %v7247, %v5043
        %v7305 = vmul.f32 %v7252, %v5044
        %v7306 = vmul.f32 %v7257, %v5045
        %v7307 = vmul.f32 %v7262, %v5046
        %v7308 = vmul.f32 %v7267, %v5047
        %v7309 = vmul.f32 %v7272, %v5048
        %v7310 = vmul.f32 %v7277, %v5049
        %v7311 = vmul.f32 %v7282, %v5050
        %v7312 = vmul.f32 %v7287, %v5051
        %v7313 = vmul.f32 %v7292, %v5052
        %v7314 = vmul.f32 %v7297, %v5053
        %v7315 = vadd.f32 %v6996, %v7044
        %v7316 = vadd.f32 %v6998, %v7046
        %v7317 = vadd.f32 %v7000, %v7048
        %v7318 = vadd.f32 %v7002, %v7050
        %v7319 = vadd.f32 %v7004, %v7052
        %v7320 = vadd.f32 %v7006, %v7054
        %v7321 = vadd.f32 %v7008, %v7056
        %v7322 = vadd.f32 %v7010, %v7058
        %v7323 = vadd.f32 %v7012, %v7060
        %v7324 = vadd.f32 %v7014, %v7062
        %v7325 = vadd.f32 %v7016, %v7064
        %v7326 = vadd.f32 %v7018, %v7066
        %v7327 = vadd.f32 %v7020, %v7068
        %v7328 = vadd.f32 %v7022, %v7070
        %v7329 = vadd.f32 %v7024, %v7072
        %v7330 = vadd.f32 %v7026, %v7074
        %7332 = vset.pattern.permute.xlu0 0
        %7333 = vperm.xlu0 %7332, %v7044
        %v7334 = vpop.permute.xlu0 %7333
        %7337 = vset.pattern.permute.xlu0 0
        %7338 = vperm.xlu0 %7337, %v7046
        %v7339 = vpop.permute.xlu0 %7338
        %7342 = vset.pattern.permute.xlu0 0
        %7343 = vperm.xlu0 %7342, %v7048
        %v7344 = vpop.permute.xlu0 %7343
        %7347 = vset.pattern.permute.xlu0 0
        %7348 = vperm.xlu0 %7347, %v7050
        %v7349 = vpop.permute.xlu0 %7348
        %7352 = vset.pattern.permute.xlu0 0
        %7353 = vperm.xlu0 %7352, %v7052
        %v7354 = vpop.permute.xlu0 %7353
        %7357 = vset.pattern.permute.xlu0 0
        %7358 = vperm.xlu0 %7357, %v7054
        %v7359 = vpop.permute.xlu0 %7358
        %7362 = vset.pattern.permute.xlu0 0
        %7363 = vperm.xlu0 %7362, %v7056
        %v7364 = vpop.permute.xlu0 %7363
        %7367 = vset.pattern.permute.xlu0 0
        %7368 = vperm.xlu0 %7367, %v7058
        %v7369 = vpop.permute.xlu0 %7368
        %7372 = vset.pattern.permute.xlu0 0
        %7373 = vperm.xlu0 %7372, %v7060
        %v7374 = vpop.permute.xlu0 %7373
        %7377 = vset.pattern.permute.xlu0 0
        %7378 = vperm.xlu0 %7377, %v7062
        %v7379 = vpop.permute.xlu0 %7378
        %7382 = vset.pattern.permute.xlu0 0
        %7383 = vperm.xlu0 %7382, %v7064
        %v7384 = vpop.permute.xlu0 %7383
        %7387 = vset.pattern.permute.xlu0 0
        %7388 = vperm.xlu0 %7387, %v7066
        %v7389 = vpop.permute.xlu0 %7388
        %7392 = vset.pattern.permute.xlu0 0
        %7393 = vperm.xlu0 %7392, %v7068
        %v7394 = vpop.permute.xlu0 %7393
        %7397 = vset.pattern.permute.xlu0 0
        %7398 = vperm.xlu0 %7397, %v7070
        %v7399 = vpop.permute.xlu0 %7398
        %7402 = vset.pattern.permute.xlu0 0
        %7403 = vperm.xlu0 %7402, %v7072
        %v7404 = vpop.permute.xlu0 %7403
        %7407 = vset.pattern.permute.xlu0 0
        %7408 = vperm.xlu0 %7407, %v7074
        %v7409 = vpop.permute.xlu0 %7408
        %v7411 = vmul.f32 %v7334, %v5489
        %v7412 = vmul.f32 %v7339, %v5490
        %v7413 = vmul.f32 %v7344, %v5491
        %v7414 = vmul.f32 %v7349, %v5492
        %v7415 = vmul.f32 %v7354, %v5493
        %v7416 = vmul.f32 %v7359, %v5494
        %v7417 = vmul.f32 %v7364, %v5495
        %v7418 = vmul.f32 %v7369, %v5496
        %v7419 = vmul.f32 %v7374, %v5497
        %v7420 = vmul.f32 %v7379, %v5498
        %v7421 = vmul.f32 %v7384, %v5499
        %v7422 = vmul.f32 %v7389, %v5500
        %v7423 = vmul.f32 %v7394, %v5501
        %v7424 = vmul.f32 %v7399, %v5502
        %v7425 = vmul.f32 %v7404, %v5503
        %v7426 = vmul.f32 %v7409, %v5504
        %v7427 = vadd.f32 %v7299, %v7411
        %v7428 = vadd.f32 %v7300, %v7412
        %v7429 = vadd.f32 %v7301, %v7413
        %v7430 = vadd.f32 %v7302, %v7414
        %v7431 = vadd.f32 %v7303, %v7415
        %v7432 = vadd.f32 %v7304, %v7416
        %v7433 = vadd.f32 %v7305, %v7417
        %v7434 = vadd.f32 %v7306, %v7418
        %v7435 = vadd.f32 %v7307, %v7419
        %v7436 = vadd.f32 %v7308, %v7420
        %v7437 = vadd.f32 %v7309, %v7421
        %v7438 = vadd.f32 %v7310, %v7422
        %v7439 = vadd.f32 %v7311, %v7423
        %v7440 = vadd.f32 %v7312, %v7424
        %v7441 = vadd.f32 %v7313, %v7425
        %v7442 = vadd.f32 %v7314, %v7426
        %v7443 = vadd.f32 %v7315, %v7092
        %v7444 = vadd.f32 %v7316, %v7094
        %v7445 = vadd.f32 %v7317, %v7096
        %v7446 = vadd.f32 %v7318, %v7098
        %v7447 = vadd.f32 %v7319, %v7100
        %v7448 = vadd.f32 %v7320, %v7102
        %v7449 = vadd.f32 %v7321, %v7104
        %v7450 = vadd.f32 %v7322, %v7106
        %v7451 = vadd.f32 %v7323, %v7108
        %v7452 = vadd.f32 %v7324, %v7110
        %v7453 = vadd.f32 %v7325, %v7112
        %v7454 = vadd.f32 %v7326, %v7114
        %v7455 = vadd.f32 %v7327, %v7116
        %v7456 = vadd.f32 %v7328, %v7118
        %v7457 = vadd.f32 %v7329, %v7120
        %v7458 = vadd.f32 %v7330, %v7122
        %7460 = vset.pattern.permute.xlu0 0
        %7461 = vperm.xlu0 %7460, %v7092
        %v7462 = vpop.permute.xlu0 %7461
        %7465 = vset.pattern.permute.xlu0 0
        %7466 = vperm.xlu0 %7465, %v7094
        %v7467 = vpop.permute.xlu0 %7466
        %7470 = vset.pattern.permute.xlu0 0
        %7471 = vperm.xlu0 %7470, %v7096
        %v7472 = vpop.permute.xlu0 %7471
        %7475 = vset.pattern.permute.xlu0 0
        %7476 = vperm.xlu0 %7475, %v7098
        %v7477 = vpop.permute.xlu0 %7476
        %7480 = vset.pattern.permute.xlu0 0
        %7481 = vperm.xlu0 %7480, %v7100
        %v7482 = vpop.permute.xlu0 %7481
        %7485 = vset.pattern.permute.xlu0 0
        %7486 = vperm.xlu0 %7485, %v7102
        %v7487 = vpop.permute.xlu0 %7486
        %7490 = vset.pattern.permute.xlu0 0
        %7491 = vperm.xlu0 %7490, %v7104
        %v7492 = vpop.permute.xlu0 %7491
        %7495 = vset.pattern.permute.xlu0 0
        %7496 = vperm.xlu0 %7495, %v7106
        %v7497 = vpop.permute.xlu0 %7496
        %7500 = vset.pattern.permute.xlu0 0
        %7501 = vperm.xlu0 %7500, %v7108
        %v7502 = vpop.permute.xlu0 %7501
        %7505 = vset.pattern.permute.xlu0 0
        %7506 = vperm.xlu0 %7505, %v7110
        %v7507 = vpop.permute.xlu0 %7506
        %7510 = vset.pattern.permute.xlu0 0
        %7511 = vperm.xlu0 %7510, %v7112
        %v7512 = vpop.permute.xlu0 %7511
        %7515 = vset.pattern.permute.xlu0 0
        %7516 = vperm.xlu0 %7515, %v7114
        %v7517 = vpop.permute.xlu0 %7516
        %7520 = vset.pattern.permute.xlu0 0
        %7521 = vperm.xlu0 %7520, %v7116
        %v7522 = vpop.permute.xlu0 %7521
        %7525 = vset.pattern.permute.xlu0 0
        %7526 = vperm.xlu0 %7525, %v7118
        %v7527 = vpop.permute.xlu0 %7526
        %7530 = vset.pattern.permute.xlu0 0
        %7531 = vperm.xlu0 %7530, %v7120
        %v7532 = vpop.permute.xlu0 %7531
        %7535 = vset.pattern.permute.xlu0 0
        %7536 = vperm.xlu0 %7535, %v7122
        %v7537 = vpop.permute.xlu0 %7536
        %v7539 = vmul.f32 %v7462, %v5916
        %v7540 = vmul.f32 %v7467, %v5917
        %v7541 = vmul.f32 %v7472, %v5918
        %v7542 = vmul.f32 %v7477, %v5919
        %v7543 = vmul.f32 %v7482, %v5920
        %v7544 = vmul.f32 %v7487, %v5921
        %v7545 = vmul.f32 %v7492, %v5922
        %v7546 = vmul.f32 %v7497, %v5923
        %v7547 = vmul.f32 %v7502, %v5924
        %v7548 = vmul.f32 %v7507, %v5925
        %v7549 = vmul.f32 %v7512, %v5926
        %v7550 = vmul.f32 %v7517, %v5927
        %v7551 = vmul.f32 %v7522, %v5928
        %v7552 = vmul.f32 %v7527, %v5929
        %v7553 = vmul.f32 %v7532, %v5930
        %v7554 = vmul.f32 %v7537, %v5931
        %v7555 = vadd.f32 %v7427, %v7539
        %v7556 = vadd.f32 %v7428, %v7540
        %v7557 = vadd.f32 %v7429, %v7541
        %v7558 = vadd.f32 %v7430, %v7542
        %v7559 = vadd.f32 %v7431, %v7543
        %v7560 = vadd.f32 %v7432, %v7544
        %v7561 = vadd.f32 %v7433, %v7545
        %v7562 = vadd.f32 %v7434, %v7546
        %v7563 = vadd.f32 %v7435, %v7547
        %v7564 = vadd.f32 %v7436, %v7548
        %v7565 = vadd.f32 %v7437, %v7549
        %v7566 = vadd.f32 %v7438, %v7550
        %v7567 = vadd.f32 %v7439, %v7551
        %v7568 = vadd.f32 %v7440, %v7552
        %v7569 = vadd.f32 %v7441, %v7553
        %v7570 = vadd.f32 %v7442, %v7554
        %v7571 = vadd.f32 %v7443, %v7140
        %v7572 = vadd.f32 %v7444, %v7142
        %v7573 = vadd.f32 %v7445, %v7144
        %v7574 = vadd.f32 %v7446, %v7146
        %v7575 = vadd.f32 %v7447, %v7148
        %v7576 = vadd.f32 %v7448, %v7150
        %v7577 = vadd.f32 %v7449, %v7152
        %v7578 = vadd.f32 %v7450, %v7154
        %v7579 = vadd.f32 %v7451, %v7156
        %v7580 = vadd.f32 %v7452, %v7158
        %v7581 = vadd.f32 %v7453, %v7160
        %v7582 = vadd.f32 %v7454, %v7162
        %v7583 = vadd.f32 %v7455, %v7164
        %v7584 = vadd.f32 %v7456, %v7166
        %v7585 = vadd.f32 %v7457, %v7168
        %v7586 = vadd.f32 %v7458, %v7170
        %7588 = vset.pattern.permute.xlu0 0
        %7589 = vperm.xlu0 %7588, %v7140
        %v7590 = vpop.permute.xlu0 %7589
        %7593 = vset.pattern.permute.xlu0 0
        %7594 = vperm.xlu0 %7593, %v7142
        %v7595 = vpop.permute.xlu0 %7594
        %7598 = vset.pattern.permute.xlu0 0
        %7599 = vperm.xlu0 %7598, %v7144
        %v7600 = vpop.permute.xlu0 %7599
        %7603 = vset.pattern.permute.xlu0 0
        %7604 = vperm.xlu0 %7603, %v7146
        %v7605 = vpop.permute.xlu0 %7604
        %7608 = vset.pattern.permute.xlu0 0
        %7609 = vperm.xlu0 %7608, %v7148
        %v7610 = vpop.permute.xlu0 %7609
        %7613 = vset.pattern.permute.xlu0 0
        %7614 = vperm.xlu0 %7613, %v7150
        %v7615 = vpop.permute.xlu0 %7614
        %7618 = vset.pattern.permute.xlu0 0
        %7619 = vperm.xlu0 %7618, %v7152
        %v7620 = vpop.permute.xlu0 %7619
        %7623 = vset.pattern.permute.xlu0 0
        %7624 = vperm.xlu0 %7623, %v7154
        %v7625 = vpop.permute.xlu0 %7624
        %7628 = vset.pattern.permute.xlu0 0
        %7629 = vperm.xlu0 %7628, %v7156
        %v7630 = vpop.permute.xlu0 %7629
        %7633 = vset.pattern.permute.xlu0 0
        %7634 = vperm.xlu0 %7633, %v7158
        %v7635 = vpop.permute.xlu0 %7634
        %7638 = vset.pattern.permute.xlu0 0
        %7639 = vperm.xlu0 %7638, %v7160
        %v7640 = vpop.permute.xlu0 %7639
        %7643 = vset.pattern.permute.xlu0 0
        %7644 = vperm.xlu0 %7643, %v7162
        %v7645 = vpop.permute.xlu0 %7644
        %7648 = vset.pattern.permute.xlu0 0
        %7649 = vperm.xlu0 %7648, %v7164
        %v7650 = vpop.permute.xlu0 %7649
        %7653 = vset.pattern.permute.xlu0 0
        %7654 = vperm.xlu0 %7653, %v7166
        %v7655 = vpop.permute.xlu0 %7654
        %7658 = vset.pattern.permute.xlu0 0
        %7659 = vperm.xlu0 %7658, %v7168
        %v7660 = vpop.permute.xlu0 %7659
        %7663 = vset.pattern.permute.xlu0 0
        %7664 = vperm.xlu0 %7663, %v7170
        %v7665 = vpop.permute.xlu0 %7664
        %v7667 = vmul.f32 %v7590, %v6343
        %v7668 = vmul.f32 %v7595, %v6344
        %v7669 = vmul.f32 %v7600, %v6345
        %v7670 = vmul.f32 %v7605, %v6346
        %v7671 = vmul.f32 %v7610, %v6347
        %v7672 = vmul.f32 %v7615, %v6348
        %v7673 = vmul.f32 %v7620, %v6349
        %v7674 = vmul.f32 %v7625, %v6350
        %v7675 = vmul.f32 %v7630, %v6351
        %v7676 = vmul.f32 %v7635, %v6352
        %v7677 = vmul.f32 %v7640, %v6353
        %v7678 = vmul.f32 %v7645, %v6354
        %v7679 = vmul.f32 %v7650, %v6355
        %v7680 = vmul.f32 %v7655, %v6356
        %v7681 = vmul.f32 %v7660, %v6357
        %v7682 = vmul.f32 %v7665, %v6358
        %v7683 = vadd.f32 %v7555, %v7667
        %v7684 = vadd.f32 %v7556, %v7668
        %v7685 = vadd.f32 %v7557, %v7669
        %v7686 = vadd.f32 %v7558, %v7670
        %v7687 = vadd.f32 %v7559, %v7671
        %v7688 = vadd.f32 %v7560, %v7672
        %v7689 = vadd.f32 %v7561, %v7673
        %v7690 = vadd.f32 %v7562, %v7674
        %v7691 = vadd.f32 %v7563, %v7675
        %v7692 = vadd.f32 %v7564, %v7676
        %v7693 = vadd.f32 %v7565, %v7677
        %v7694 = vadd.f32 %v7566, %v7678
        %v7695 = vadd.f32 %v7567, %v7679
        %v7696 = vadd.f32 %v7568, %v7680
        %v7697 = vadd.f32 %v7569, %v7681
        %v7698 = vadd.f32 %v7570, %v7682
        %v7699 = vadd.f32 %v7571, %v7188
        %v7700 = vadd.f32 %v7572, %v7190
        %v7701 = vadd.f32 %v7573, %v7192
        %v7702 = vadd.f32 %v7574, %v7194
        %v7703 = vadd.f32 %v7575, %v7196
        %v7704 = vadd.f32 %v7576, %v7198
        %v7705 = vadd.f32 %v7577, %v7200
        %v7706 = vadd.f32 %v7578, %v7202
        %v7707 = vadd.f32 %v7579, %v7204
        %v7708 = vadd.f32 %v7580, %v7206
        %v7709 = vadd.f32 %v7581, %v7208
        %v7710 = vadd.f32 %v7582, %v7210
        %v7711 = vadd.f32 %v7583, %v7212
        %v7712 = vadd.f32 %v7584, %v7214
        %v7713 = vadd.f32 %v7585, %v7216
        %v7714 = vadd.f32 %v7586, %v7218
        %7716 = vset.pattern.permute.xlu0 0
        %7717 = vperm.xlu0 %7716, %v7188
        %v7718 = vpop.permute.xlu0 %7717
        %7721 = vset.pattern.permute.xlu0 0
        %7722 = vperm.xlu0 %7721, %v7190
        %v7723 = vpop.permute.xlu0 %7722
        %7726 = vset.pattern.permute.xlu0 0
        %7727 = vperm.xlu0 %7726, %v7192
        %v7728 = vpop.permute.xlu0 %7727
        %7731 = vset.pattern.permute.xlu0 0
        %7732 = vperm.xlu0 %7731, %v7194
        %v7733 = vpop.permute.xlu0 %7732
        %7736 = vset.pattern.permute.xlu0 0
        %7737 = vperm.xlu0 %7736, %v7196
        %v7738 = vpop.permute.xlu0 %7737
        %7741 = vset.pattern.permute.xlu0 0
        %7742 = vperm.xlu0 %7741, %v7198
        %v7743 = vpop.permute.xlu0 %7742
        %7746 = vset.pattern.permute.xlu0 0
        %7747 = vperm.xlu0 %7746, %v7200
        %v7748 = vpop.permute.xlu0 %7747
        %7751 = vset.pattern.permute.xlu0 0
        %7752 = vperm.xlu0 %7751, %v7202
        %v7753 = vpop.permute.xlu0 %7752
        %7756 = vset.pattern.permute.xlu0 0
        %7757 = vperm.xlu0 %7756, %v7204
        %v7758 = vpop.permute.xlu0 %7757
        %7761 = vset.pattern.permute.xlu0 0
        %7762 = vperm.xlu0 %7761, %v7206
        %v7763 = vpop.permute.xlu0 %7762
        %7766 = vset.pattern.permute.xlu0 0
        %7767 = vperm.xlu0 %7766, %v7208
        %v7768 = vpop.permute.xlu0 %7767
        %7771 = vset.pattern.permute.xlu0 0
        %7772 = vperm.xlu0 %7771, %v7210
        %v7773 = vpop.permute.xlu0 %7772
        %7776 = vset.pattern.permute.xlu0 0
        %7777 = vperm.xlu0 %7776, %v7212
        %v7778 = vpop.permute.xlu0 %7777
        %7781 = vset.pattern.permute.xlu0 0
        %7782 = vperm.xlu0 %7781, %v7214
        %v7783 = vpop.permute.xlu0 %7782
        %7786 = vset.pattern.permute.xlu0 0
        %7787 = vperm.xlu0 %7786, %v7216
        %v7788 = vpop.permute.xlu0 %7787
        %7791 = vset.pattern.permute.xlu0 0
        %7792 = vperm.xlu0 %7791, %v7218
        %v7793 = vpop.permute.xlu0 %7792
        %v7795 = vmul.f32 %v7718, %v6770
        %v7796 = vmul.f32 %v7723, %v6771
        %v7797 = vmul.f32 %v7728, %v6772
        %v7798 = vmul.f32 %v7733, %v6773
        %v7799 = vmul.f32 %v7738, %v6774
        %v7800 = vmul.f32 %v7743, %v6775
        %v7801 = vmul.f32 %v7748, %v6776
        %v7802 = vmul.f32 %v7753, %v6777
        %v7803 = vmul.f32 %v7758, %v6778
        %v7804 = vmul.f32 %v7763, %v6779
        %v7805 = vmul.f32 %v7768, %v6780
        %v7806 = vmul.f32 %v7773, %v6781
        %v7807 = vmul.f32 %v7778, %v6782
        %v7808 = vmul.f32 %v7783, %v6783
        %v7809 = vmul.f32 %v7788, %v6784
        %v7810 = vmul.f32 %v7793, %v6785
        %v7811 = vadd.f32 %v7683, %v7795
        %v7812 = vadd.f32 %v7684, %v7796
        %v7813 = vadd.f32 %v7685, %v7797
        %v7814 = vadd.f32 %v7686, %v7798
        %v7815 = vadd.f32 %v7687, %v7799
        %v7816 = vadd.f32 %v7688, %v7800
        %v7817 = vadd.f32 %v7689, %v7801
        %v7818 = vadd.f32 %v7690, %v7802
        %v7819 = vadd.f32 %v7691, %v7803
        %v7820 = vadd.f32 %v7692, %v7804
        %v7821 = vadd.f32 %v7693, %v7805
        %v7822 = vadd.f32 %v7694, %v7806
        %v7823 = vadd.f32 %v7695, %v7807
        %v7824 = vadd.f32 %v7696, %v7808
        %v7825 = vadd.f32 %v7697, %v7809
        %v7826 = vadd.f32 %v7698, %v7810
        %7828 = vset.pattern.permute.xlu0 0
        %7829 = vperm.xlu0 %7828, %v7699
        %v7830 = vpop.permute.xlu0 %7829
        %7833 = vset.pattern.permute.xlu0 0
        %7834 = vperm.xlu0 %7833, %v7700
        %v7835 = vpop.permute.xlu0 %7834
        %7838 = vset.pattern.permute.xlu0 0
        %7839 = vperm.xlu0 %7838, %v7701
        %v7840 = vpop.permute.xlu0 %7839
        %7843 = vset.pattern.permute.xlu0 0
        %7844 = vperm.xlu0 %7843, %v7702
        %v7845 = vpop.permute.xlu0 %7844
        %7848 = vset.pattern.permute.xlu0 0
        %7849 = vperm.xlu0 %7848, %v7703
        %v7850 = vpop.permute.xlu0 %7849
        %7853 = vset.pattern.permute.xlu0 0
        %7854 = vperm.xlu0 %7853, %v7704
        %v7855 = vpop.permute.xlu0 %7854
        %7858 = vset.pattern.permute.xlu0 0
        %7859 = vperm.xlu0 %7858, %v7705
        %v7860 = vpop.permute.xlu0 %7859
        %7863 = vset.pattern.permute.xlu0 0
        %7864 = vperm.xlu0 %7863, %v7706
        %v7865 = vpop.permute.xlu0 %7864
        %7868 = vset.pattern.permute.xlu0 0
        %7869 = vperm.xlu0 %7868, %v7707
        %v7870 = vpop.permute.xlu0 %7869
        %7873 = vset.pattern.permute.xlu0 0
        %7874 = vperm.xlu0 %7873, %v7708
        %v7875 = vpop.permute.xlu0 %7874
        %7878 = vset.pattern.permute.xlu0 0
        %7879 = vperm.xlu0 %7878, %v7709
        %v7880 = vpop.permute.xlu0 %7879
        %7883 = vset.pattern.permute.xlu0 0
        %7884 = vperm.xlu0 %7883, %v7710
        %v7885 = vpop.permute.xlu0 %7884
        %7888 = vset.pattern.permute.xlu0 0
        %7889 = vperm.xlu0 %7888, %v7711
        %v7890 = vpop.permute.xlu0 %7889
        %7893 = vset.pattern.permute.xlu0 0
        %7894 = vperm.xlu0 %7893, %v7712
        %v7895 = vpop.permute.xlu0 %7894
        %7898 = vset.pattern.permute.xlu0 0
        %7899 = vperm.xlu0 %7898, %v7713
        %v7900 = vpop.permute.xlu0 %7899
        %7903 = vset.pattern.permute.xlu0 0
        %7904 = vperm.xlu0 %7903, %v7714
        %v7905 = vpop.permute.xlu0 %7904
        %v7907 = vrcp.pop %v7830
        %v7908 = vmul.f32 %v7811, %v7907
        %v7909 = vrcp.pop %v7835
        %v7910 = vmul.f32 %v7812, %v7909
        %v7911 = vrcp.pop %v7840
        %v7912 = vmul.f32 %v7813, %v7911
        %v7913 = vrcp.pop %v7845
        %v7914 = vmul.f32 %v7814, %v7913
        %v7915 = vrcp.pop %v7850
        %v7916 = vmul.f32 %v7815, %v7915
        %v7917 = vrcp.pop %v7855
        %v7918 = vmul.f32 %v7816, %v7917
        %v7919 = vrcp.pop %v7860
        %v7920 = vmul.f32 %v7817, %v7919
        %v7921 = vrcp.pop %v7865
        %v7922 = vmul.f32 %v7818, %v7921
        %v7923 = vrcp.pop %v7870
        %v7924 = vmul.f32 %v7819, %v7923
        %v7925 = vrcp.pop %v7875
        %v7926 = vmul.f32 %v7820, %v7925
        %v7927 = vrcp.pop %v7880
        %v7928 = vmul.f32 %v7821, %v7927
        %v7929 = vrcp.pop %v7885
        %v7930 = vmul.f32 %v7822, %v7929
        %v7931 = vrcp.pop %v7890
        %v7932 = vmul.f32 %v7823, %v7931
        %v7933 = vrcp.pop %v7895
        %v7934 = vmul.f32 %v7824, %v7933
        %v7935 = vrcp.pop %v7900
        %v7936 = vmul.f32 %v7825, %v7935
        %v7937 = vrcp.pop %v7905
        %v7938 = vmul.f32 %v7826, %v7937
        %v7939 = vpack.c.bf16 %v7910, %v7908
        %v7940 = vpack.c.bf16 %v7914, %v7912
        %v7941 = vpack.c.bf16 %v7918, %v7916
        %v7942 = vpack.c.bf16 %v7922, %v7920
        %v7943 = vpack.c.bf16 %v7926, %v7924
        %v7944 = vpack.c.bf16 %v7930, %v7928
        %v7945 = vpack.c.bf16 %v7934, %v7932
        %v7946 = vpack.c.bf16 %v7938, %v7936
        %v7948 = vlaneseq
        %v7949 = vshrl.u32 %v7948, 7
        %v7950 = vsub.s32 0, %v7949
        %v7951 = vrot.slane %v4686, %v7950
        %v7961 = vunpack.c.l.b16 %v4674
        %v7962 = vunpack.c.l.b16 %v4675
        %v7963 = vunpack.c.l.b16 %v4676
        %v7964 = vunpack.c.l.b16 %v4677
        %v7965 = vunpack.c.l.b16 %v4678
        %v7966 = vunpack.c.l.b16 %v4679
        %v7967 = vunpack.c.l.b16 %v4680
        %v7968 = vunpack.c.l.b16 %v4681
        %v7969 = vpack.c.b16 %v7962, %v7961
        %v7970 = vpack.c.b16 %v7964, %v7963
        %v7971 = vpack.c.b16 %v7966, %v7965
        %v7972 = vpack.c.b16 %v7968, %v7967
        %v7978 = vsel %vm4725, %v7939, 0
        %v7981 = vsel %vm4725, %v7940, 0
        %v7984 = vsel %vm4725, %v7941, 0
        %v7987 = vsel %vm4725, %v7942, 0
        %v7990 = vsel %vm4725, %v7943, 0
        %v7993 = vsel %vm4725, %v7944, 0
        %v7996 = vsel %vm4725, %v7945, 0
        %v7999 = vsel %vm4725, %v7946, 0
        %8001 = vmatprep.subr.bf16.mxu0 0
        %8002 = vmatpush1.bf16.msra.mxu0 0
        %8003 = vmatprep.subr.bf16.mxu0 0
        %8004 = vmatpush1.bf16.msra.mxu0 0
        %8005 = vmatprep.subr.bf16.mxu0 0
        %8006 = vmatpush1.bf16.msra.mxu0 0
        %8007 = vmatprep.subr.bf16.mxu0 0
        %8008 = vmatpush1.bf16.msra.mxu0 0
        %8009 = vmatprep.subr.bf16.mxu0 0
        %8010 = vmatpush1.bf16.msra.mxu0 %v7972
        %8011 = vmatprep.subr.bf16.mxu0 0
        %8012 = vmatpush1.bf16.msra.mxu0 %v7971
        %8013 = vmatprep.subr.bf16.mxu0 0
        %8014 = vmatpush1.bf16.msra.mxu0 %v7970
        %8015 = vmatprep.subr.bf16.mxu0 0
        %8016 = vmatpush1.bf16.msra.mxu0 %v7969
        %8017 = vmatprep.subr.bf16.mxu0 0
        %8018 = vmatpush2.bf16.msra.mxu0 0
        %8019 = vmatprep.subr.bf16.mxu0 0
        %8020 = vmatpush2.bf16.msra.mxu0 0
        %8021 = vmatprep.subr.bf16.mxu0 0
        %8022 = vmatpush2.bf16.msra.mxu0 0
        %8023 = vmatprep.subr.bf16.mxu0 0
        %8024 = vmatpush2.bf16.msra.mxu0 0
        %8025 = vmatprep.subr.bf16.mxu0 0
        %8026 = vmatpush2.bf16.msra.mxu0 0
        %8027 = vmatprep.subr.bf16.mxu0 0
        %8028 = vmatpush2.bf16.msra.mxu0 0
        %8029 = vmatprep.subr.bf16.mxu0 0
        %8030 = vmatpush2.bf16.msra.mxu0 0
        %8031 = vmatprep.subr.bf16.mxu0 0
        %8032 = vmatpush2.bf16.msra.mxu0 0
        %8033 = vmatprep.mubr.bf16.mxu0 0
        %8034 = vmatmul.mubr.bf16.gmra.mxu0 %v7978
        %v8035 = vpop.f32.mrf.mxu0
        %v8036 = vadd.f32 %v7951, %v8035
        %v8037 = vpop.f32.mrf.mxu0
        %v8038 = vpop.f32.mrf.mxu0
        %v8039 = vadd.f32 %v7951, %v8038
        %v8040 = vpop.f32.mrf.mxu0
        %8041 = vmatprep.mubr.bf16.mxu0 0
        %8042 = vmatmul.mubr.bf16.gmra.mxu0 %v7981
        %v8043 = vpop.f32.mrf.mxu0
        %v8044 = vadd.f32 %v7951, %v8043
        %v8045 = vpop.f32.mrf.mxu0
        %v8046 = vpop.f32.mrf.mxu0
        %v8047 = vadd.f32 %v7951, %v8046
        %v8048 = vpop.f32.mrf.mxu0
        %8049 = vmatprep.mubr.bf16.mxu0 0
        %8050 = vmatmul.mubr.bf16.gmra.mxu0 %v7984
        %v8051 = vpop.f32.mrf.mxu0
        %v8052 = vadd.f32 %v7951, %v8051
        %v8053 = vpop.f32.mrf.mxu0
        %v8054 = vpop.f32.mrf.mxu0
        %v8055 = vadd.f32 %v7951, %v8054
        %v8056 = vpop.f32.mrf.mxu0
        %8057 = vmatprep.mubr.bf16.mxu0 0
        %8058 = vmatmul.mubr.bf16.gmra.mxu0 %v7987
        %v8059 = vpop.f32.mrf.mxu0
        %v8060 = vadd.f32 %v7951, %v8059
        %v8061 = vpop.f32.mrf.mxu0
        %v8062 = vpop.f32.mrf.mxu0
        %v8063 = vadd.f32 %v7951, %v8062
        %v8064 = vpop.f32.mrf.mxu0
        %8065 = vmatprep.mubr.bf16.mxu0 0
        %8066 = vmatmul.mubr.bf16.gmra.mxu0 %v7990
        %v8067 = vpop.f32.mrf.mxu0
        %v8068 = vadd.f32 %v7951, %v8067
        %v8069 = vpop.f32.mrf.mxu0
        %v8070 = vpop.f32.mrf.mxu0
        %v8071 = vadd.f32 %v7951, %v8070
        %v8072 = vpop.f32.mrf.mxu0
        %8073 = vmatprep.mubr.bf16.mxu0 0
        %8074 = vmatmul.mubr.bf16.gmra.mxu0 %v7993
        %v8075 = vpop.f32.mrf.mxu0
        %v8076 = vadd.f32 %v7951, %v8075
        %v8077 = vpop.f32.mrf.mxu0
        %v8078 = vpop.f32.mrf.mxu0
        %v8079 = vadd.f32 %v7951, %v8078
        %v8080 = vpop.f32.mrf.mxu0
        %8081 = vmatprep.mubr.bf16.mxu0 0
        %8082 = vmatmul.mubr.bf16.gmra.mxu0 %v7996
        %v8083 = vpop.f32.mrf.mxu0
        %v8084 = vadd.f32 %v7951, %v8083
        %v8085 = vpop.f32.mrf.mxu0
        %v8086 = vpop.f32.mrf.mxu0
        %v8087 = vadd.f32 %v7951, %v8086
        %v8088 = vpop.f32.mrf.mxu0
        %8089 = vmatprep.mubr.bf16.mxu0 0
        %8090 = vmatmul.mubr.bf16.gmra.mxu0 %v7999
        %v8091 = vpop.f32.mrf.mxu0
        %v8092 = vadd.f32 %v7951, %v8091
        %v8093 = vpop.f32.mrf.mxu0
        %v8094 = vpop.f32.mrf.mxu0
        %v8095 = vadd.f32 %v7951, %v8094
        %v8096 = vpop.f32.mrf.mxu0
        %8097 = vdwg.mxu0
        %v8098 = vmax.f32 %v8036, 0.0
        %v8099 = vmax.f32 %v8039, 0.0
        %v8100 = vmax.f32 %v8044, 0.0
        %v8101 = vmax.f32 %v8047, 0.0
        %v8102 = vmax.f32 %v8052, 0.0
        %v8103 = vmax.f32 %v8055, 0.0
        %v8104 = vmax.f32 %v8060, 0.0
        %v8105 = vmax.f32 %v8063, 0.0
        %v8106 = vmax.f32 %v8068, 0.0
        %v8107 = vmax.f32 %v8071, 0.0
        %v8108 = vmax.f32 %v8076, 0.0
        %v8109 = vmax.f32 %v8079, 0.0
        %v8110 = vmax.f32 %v8084, 0.0
        %v8111 = vmax.f32 %v8087, 0.0
        %v8112 = vmax.f32 %v8092, 0.0
        %v8113 = vmax.f32 %v8095, 0.0
        %v8114 = vld [vmem:[%s11] sm:$0x1]
        %v8115 = vpack.c.bf16 %v8099, %v8098
        %v8116 = vpack.c.bf16 %v8101, %v8100
        %v8117 = vpack.c.bf16 %v8103, %v8102
        %v8118 = vpack.c.bf16 %v8105, %v8104
        %v8119 = vpack.c.bf16 %v8107, %v8106
        %v8120 = vpack.c.bf16 %v8109, %v8108
        %v8121 = vpack.c.bf16 %v8111, %v8110
        %v8122 = vpack.c.bf16 %v8113, %v8112
        %v8123 = vld [vmem:[#allocation2] sm:$0x1]
        %8125 = vset.pattern.permute.xlu0 0
        %8126 = vperm.xlu0 %8125, %v8123
        %v8127 = vpop.permute.xlu0 %8126
        %v8129 = vlaneseq
        %v8130 = vshrl.u32 %v8129, 7
        %v8131 = vsub.s32 0, %v8130
        %v8132 = vrot.slane %v8127, %v8131
        %v8134 = vsel %vm4725, %v8114, 0
        %v8137 = vsel %vm4725, %v8115, 0
        %v8140 = vsel %vm4725, %v8116, 0
        %v8143 = vsel %vm4725, %v8117, 0
        %v8146 = vsel %vm4725, %v8118, 0
        %v8149 = vsel %vm4725, %v8119, 0
        %v8152 = vsel %vm4725, %v8120, 0
        %v8155 = vsel %vm4725, %v8121, 0
        %v8158 = vsel %vm4725, %v8122, 0
        %8160 = vmatprep.subr.bf16.mxu0 0
        %8161 = vmatpush1.bf16.xpose.msra.mxu0 %v8158
        %8162 = vmatprep.subr.bf16.mxu0 0
        %8163 = vmatpush1.bf16.xpose.msra.mxu0 %v8155
        %8164 = vmatprep.subr.bf16.mxu0 0
        %8165 = vmatpush1.bf16.xpose.msra.mxu0 %v8152
        %8166 = vmatprep.subr.bf16.mxu0 0
        %8167 = vmatpush1.bf16.xpose.msra.mxu0 %v8149
        %8168 = vmatprep.subr.bf16.mxu0 0
        %8169 = vmatpush1.bf16.xpose.msra.mxu0 %v8146
        %8170 = vmatprep.subr.bf16.mxu0 0
        %8171 = vmatpush1.bf16.xpose.msra.mxu0 %v8143
        %8172 = vmatprep.subr.bf16.mxu0 0
        %8173 = vmatpush1.bf16.xpose.msra.mxu0 %v8140
        %8174 = vmatprep.subr.bf16.mxu0 0
        %8175 = vmatpush1.bf16.xpose.msra.mxu0 %v8137
        %8176 = vmatprep.subr.bf16.mxu0 0
        %8177 = vmatpush2.bf16.xpose.msra.mxu0 0
        %8178 = vmatprep.subr.bf16.mxu0 0
        %8179 = vmatpush2.bf16.xpose.msra.mxu0 0
        %8180 = vmatprep.subr.bf16.mxu0 0
        %8181 = vmatpush2.bf16.xpose.msra.mxu0 0
        %8182 = vmatprep.subr.bf16.mxu0 0
        %8183 = vmatpush2.bf16.xpose.msra.mxu0 0
        %8184 = vmatprep.subr.bf16.mxu0 0
        %8185 = vmatpush2.bf16.xpose.msra.mxu0 0
        %8186 = vmatprep.subr.bf16.mxu0 0
        %8187 = vmatpush2.bf16.xpose.msra.mxu0 0
        %8188 = vmatprep.subr.bf16.mxu0 0
        %8189 = vmatpush2.bf16.xpose.msra.mxu0 0
        %8190 = vmatprep.subr.bf16.mxu0 0
        %8191 = vmatpush2.bf16.xpose.msra.mxu0 0
        %8192 = vmatprep.mubr.bf16.mxu0 0
        %8193 = vmatmul.mubr.bf16.gmra.mxu0 %v8134
        %v8194 = vpop.f32.mrf.mxu0
        %v8195 = vadd.f32 %v8132, %v8194
        %v8196 = vpop.f32.mrf.mxu0
        %v8197 = vpop.f32.mrf.mxu0
        %v8198 = vpop.f32.mrf.mxu0
        %8199 = vdwg.mxu0
        %8200 = vst [vmem:[%s480] sm:$0x1] %v8195
        %s8201 = sand.u32 %s322, 1
        %s8202 = scalar_lea.sflag [#allocation5], %s8201
        %s8203 = sand.u32 %s322, 1
        %s8204 = scalar_lea.vmem [#allocation8], %s8203
        // Predicated region
        $region81: #{_lambda_.1} parent=71 // pred_check
          %p8205 = pneg %p332
        $region82: #{_lambda_.1} parent=71 // pred_check_branch
          %8207 = sbr.rel (%p8205) target = $region84
        $region83: #{_lambda_.1} parent=71 // pred_region
          %s8209 = ssub.s32 16, 16
          %8210 = vsyncadd %s8202, %s8209
          %s8211 = smul.addr %s31, 16
          %s8212 = scalar_lea.hbm %s13, %s8211
          %s8214 = sshll.u32 %s8204, 4
          %s8215 = int_to_ptr.vmem [resolvable:$true] %s8214
          %8217 = dma.vmem_to_hbm [thread:$0]  %s8215, 16, %s8212, %s8202
        $region84: #{_lambda_.1} parent=71 // pred_fallthru
          _
      $region72: #{_lambda_.1} parent=5 // pred_fallthru
        _
      %p8218 = scmp.le.s32.totalorder 2, %s26
      // Predicated region
      $region85: #{_lambda_.1} parent=5 // pred_check
        %p8219 = pneg %p8218
      $region86: #{_lambda_.1} parent=5 // pred_check_branch
        %8221 = sbr.rel (%p8219) target = $region88
      $region87: #{_lambda_.1} parent=5 // pred_region
        %s8222 = ssub.s32 %s26, 2
        // Predicated region
        $region89: #{_lambda_.1} parent=87 // pred_check
          %p8223 = pneg %p338
        $region90: #{_lambda_.1} parent=87 // pred_check_branch
          %8225 = sbr.rel (%p8223) target = $region92
        $region91: #{_lambda_.1} parent=87 // pred_region
          %s8226 = sand.u32 %s323, 1
          %s8227 = scalar_lea.sflag [#allocation5], %s8226
          %s8228 = sand.u32 %s323, 1
          %s8229 = scalar_lea.vmem [#allocation8], %s8228
          %8230 = dma.done %s8227, 16
        $region92: #{_lambda_.1} parent=87 // pred_fallthru
          _
      $region88: #{_lambda_.1} parent=5 // pred_fallthru
        _
    $region6: #{_lambda_.1} parent=1 // loop_footer
      %s30 = sadd.s32 1, %s26
    $region7: #{_lambda_.1} parent=1 // loop_footer_branch
      %25 = sbr.rel target = $region3
    $region8: #{_lambda_.1} parent=1 // loop_exit
      _
    %8231 = vsyncpa [#allocation4], 1
    %s8232 = scalar_lea.sflag [#allocation4], 1
    %8233 = vsyncpa %s8232, 1
    %8234 = vsyncpa [#allocation7], 1
    %8235 = vsyncpa [#allocation5], 1
    %s8236 = scalar_lea.sflag [#allocation5], 1
    %8237 = vsyncpa %s8236, 1

</llo_original>
